<compile_context>
chip_gen: v7x
topology: tpu7x:2x2x1
jax: 0.10.0
libtpu: 0.0.40
codegen_flags: <defaults>
</compile_context>

<pallas_src>
import functools

import jax
import jax.numpy as jnp
from jax.experimental import pallas as pl
from jax.experimental.pallas import tpu as pltpu

LEAKY_SLOPE = 0.2

NERF, GAN = 256, 512
SHAPE, EXP, ALBEDO, LIT = 100, 50, 50, 27
HEAD = 128                      # lane-aligned slot width for packed parameter heads
SLAB = 4 * HEAD                 # packed FLAME-parameter slab: [shape | exp | albedo | lit]
BIAS_LANES = 512                # bias-pack lane width (max fan_out)
MIN_BPAD = 8                    # pad batch to the f32 sublane multiple

# (fan_in, fan_out, leaky_relu) per layer, true (unpadded) dims.
_L2P_SPECS = (
    ("Latent2ShapeExpCode",  ((NERF, 256, True), (256, 256, True), (256, 256, True))),
    ("latent2shape",         ((256, 256, True), (256, SHAPE, False))),
    ("latent2exp",           ((256, 256, True), (256, EXP, False))),
    ("Latent2AlbedoLitCode", ((GAN, 512, True), (512, 256, True), (256, 256, True))),
    ("latent2albedo",        ((256, 256, True), (256, ALBEDO, False))),
    ("latent2lit",           ((256, 256, True), (256, LIT, False))),
)
_RIG_SPECS = (
    ("WGanEncoder",   ((GAN, 256, True), (256, 256, True))),
    ("ShapeEncoder",  ((SHAPE, 128, True), (128, 128, True))),
    ("ExpEncoder",    ((EXP, 128, True), (128, 128, True))),
    # NOTE: the original __init__ never builds WNerfEncoder even though rig() uses it
    # (a latent bug in the PyTorch code); architecture taken from build_WNerfEncoder.
    ("WNerfEncoder",  ((NERF, 256, True), (256, 256, True))),
    ("WGanDecoder",   ((512, 256, True), (256, GAN, False))),
    ("AlbedoEncoder", ((ALBEDO, 128, True), (128, 128, True))),
    ("LitEncoder",    ((LIT, 128, True), (128, 128, True))),
    ("WNerfDecoder",  ((512, 256, True), (256, NERF, False))),
)
_L2P_DICT = dict(_L2P_SPECS)
_RIG_DICT = dict(_RIG_SPECS)

# heads whose LAST-layer output is zero-padded to HEAD lanes (packed slab slots)
_PAD_OUT_LAST = ("latent2shape", "latent2exp", "latent2albedo", "latent2lit")
# encoders whose FIRST-layer input is zero-padded to HEAD lanes (they read slab slots)
_PAD_IN_FIRST = ("ShapeEncoder", "ExpEncoder", "AlbedoEncoder", "LitEncoder")

_VMEM = functools.partial(pl.BlockSpec, memory_space=pltpu.MemorySpace.VMEM)


# ----------------------------------------------------------------------------
# Static weight-packing layout (groups of equal-shape layers -> (N, in, out) stacks).
# ----------------------------------------------------------------------------
def _padded_dims(name, li, fi, fo, n_layers):
    pin = HEAD if (name in _PAD_IN_FIRST and li == 0) else fi
    pout = HEAD if (name in _PAD_OUT_LAST and li == n_layers - 1) else fo
    return pin, pout


def _stage_layout(specs):
    """Returns (sorted group shapes, per-shape counts,
    {(net, layer): (shape, idx_in_group, bias_row, leaky)}, n_layers)."""
    counts, meta, row = {}, {}, 0
    for name, layers in specs:
        for li, (fi, fo, act) in enumerate(layers):
            shp = _padded_dims(name, li, fi, fo, len(layers))
            idx = counts.get(shp, 0)
            counts[shp] = idx + 1
            meta[(name, li)] = (shp, idx, row, act)
            row += 1
    return tuple(sorted(counts)), counts, meta, row


def _pack_stage(params, specs):
    """Pack per-layer (padded) weights into a few (N, in, out) bf16 stacks grouped by
    shape plus one (n_layers, BIAS_LANES) f32 bias slab -> ~5 HBM operands per stage."""
    shapes, counts, meta, nrows = _stage_layout(specs)
    buckets = {s: [None] * counts[s] for s in shapes}
    bias = jnp.zeros((nrows, BIAS_LANES), jnp.float32)
    for name, layers in specs:
        for li in range(len(layers)):
            w, b = params[name][li]
            shp, idx, row, _ = meta[(name, li)]
            assert w.shape == shp and b.shape == (1, shp[1])
            buckets[shp][idx] = w.astype(jnp.bfloat16)
            bias = bias.at[row, :shp[1]].set(b[0].astype(jnp.float32))
    return [jnp.stack(buckets[s], axis=0) for s in shapes], bias


def pack_params(params):
    l2p_w, l2p_b = _pack_stage(params, _L2P_SPECS)
    rig_w, rig_b = _pack_stage(params, _RIG_SPECS)
    return {"l2p_w": l2p_w, "l2p_b": l2p_b, "rig_w": rig_w, "rig_b": rig_b}


# ----------------------------------------------------------------------------
# The single fused kernel: stage A (l2p v,w) -> stage B (both rig calls) -> stage C
# (l2p w_same,w_hat).  All intermediates stay in VMEM/vregs.
# ----------------------------------------------------------------------------
def _fused_forward_kernel(*refs, choice, bpad, g1, g2,
                          l2p_shapes, l2p_meta, rig_shapes, rig_meta):
    sl_v, al_v, sl_w, al_w = refs[0:4]
    l2p_w_refs = refs[4:4 + g1]
    l2p_b_ref = refs[4 + g1]
    rig_w_hbm = refs[5 + g1:5 + g1 + g2]
    rig_b_ref = refs[5 + g1 + g2]
    o = 6 + g1 + g2
    (slab_v_ref, slab_w_ref, slab_same_ref, slab_mapped_ref,
     nerf_same_ref, gan_same_ref) = refs[o:o + 6]
    s = o + 6
    rig_w_vmem = refs[s:s + g2]
    rig_sem = refs[s + g2]

    # Kick off the rig-stage weight streams now; they overlap with stage-A compute.
    # (The l2p weights were DMA'd by the pallas prologue and are already resident.)
    for gi in range(g2):
        pltpu.make_async_copy(rig_w_hbm[gi], rig_w_vmem[gi], rig_sem.at[gi]).start()

    l2p_groups = dict(zip(l2p_shapes, l2p_w_refs))
    rig_groups = dict(zip(rig_shapes, rig_w_vmem))

    def layer(groups, bias_ref, meta, name, li, h):
        shp, idx, row, act = meta[(name, li)]
        w = groups[shp][idx]                               # (in, out) bf16, static index
        b = bias_ref[row:row + 1, 0:shp[1]]                # (1, out) f32, aligned slice
        h = jnp.dot(h.astype(w.dtype), w, preferred_element_type=jnp.float32) + b
        if act:
            h = jnp.maximum(h, LEAKY_SLOPE * h)            # LeakyReLU(0.2)
        return h

    def run_l2p(name, h):
        for li in range(len(_L2P_DICT[name])):
            h = layer(l2p_groups, l2p_b_ref, l2p_meta, name, li, h)
        return h

    def run_rig(name, h):
        for li in range(len(_RIG_DICT[name])):
            h = layer(rig_groups, rig_b_ref, rig_meta, name, li, h)
        return h

    def run_rig_decoder(name, parts, widths):
        # First layer via split-K accumulation: avoids the (B,512) lane concat.
        shp, idx, row, act = rig_meta[(name, 0)]
        w_full = rig_groups[shp][idx]                      # (512, 256) bf16
        acc = rig_b_ref[row:row + 1, 0:shp[1]]
        off = 0
        for p, wd in zip(parts, widths):
            acc = acc + jnp.dot(p.astype(w_full.dtype), w_full[off:off + wd, :],
                                preferred_element_type=jnp.float32)
            off += wd
        h = jnp.maximum(acc, LEAKY_SLOPE * acc) if act else acc
        for li in range(1, len(_RIG_DICT[name])):
            h = layer(rig_groups, rig_b_ref, rig_meta, name, li, h)
        return h

    def l2p_stage(sl, al, top_ref, bot_ref):
        # sl: (2*bpad, NERF), al: (2*bpad, GAN).  Head outputs land directly in the
        # 128-lane-aligned slab slots (full-width unmasked stores, no concat temp).
        shape_fea = run_l2p("Latent2ShapeExpCode", sl)
        app_fea = run_l2p("Latent2AlbedoLitCode", al)
        heads = (("latent2shape", shape_fea), ("latent2exp", shape_fea),
                 ("latent2albedo", app_fea), ("latent2lit", app_fea))
        for k, (name, fea) in enumerate(heads):
            y = run_l2p(name, fea)                         # (2*bpad, HEAD)
            top_ref[:, k * HEAD:(k + 1) * HEAD] = y[:bpad]
            bot_ref[:, k * HEAD:(k + 1) * HEAD] = y[bpad:]

    # ---- Stage A: latent2params(v) and latent2params(w), batched along rows ----
    l2p_stage(jnp.concatenate([sl_v[...], sl_w[...]], axis=0),
              jnp.concatenate([al_v[...], al_w[...]], axis=0),
              slab_v_ref, slab_w_ref)

    # ---- Wait for rig weights (their DMA was hidden behind stage A) ----
    for gi in range(g2):
        pltpu.make_async_copy(rig_w_hbm[gi], rig_w_vmem[gi], rig_sem.at[gi]).wait()

    # ---- Stage B: rig(p_w) and rig(p_w_replaced), batched; `choice` swap is static ----
    wgan_in = jnp.concatenate([al_w[...], al_w[...]], axis=0)    # (2*bpad, GAN)
    wnerf_in = jnp.concatenate([sl_w[...], sl_w[...]], axis=0)   # (2*bpad, NERF)

    def slot_in(k):
        w = slab_w_ref[:, k * HEAD:(k + 1) * HEAD]
        rep = slab_v_ref[:, k * HEAD:(k + 1) * HEAD] if k == choice else w
        return jnp.concatenate([w, rep], axis=0)                 # (2*bpad, HEAD)

    lgan = run_rig("WGanEncoder", wgan_in)
    lshape = run_rig("ShapeEncoder", slot_in(0))
    lexp = run_rig("ExpEncoder", slot_in(1))
    deltagan = run_rig_decoder("WGanDecoder", (lgan, lshape, lexp), (256, HEAD, HEAD))

    lnerf = run_rig("WNerfEncoder", wnerf_in)
    lalbedo = run_rig("AlbedoEncoder", slot_in(2))
    llit = run_rig("LitEncoder", slot_in(3))
    deltanerf = run_rig_decoder("WNerfDecoder", (lnerf, lalbedo, llit), (256, HEAD, HEAD))

    nerf2 = deltanerf + wnerf_in                 # rows [:bpad]=w_same, [bpad:]=w_hat
    gan2 = deltagan + wgan_in
    nerf_same_ref[...] = nerf2[:bpad]
    gan_same_ref[...] = gan2[:bpad]

    # ---- Stage C: latent2params(w_same) and latent2params(w_hat), batched ----
    l2p_stage(nerf2, gan2, slab_same_ref, slab_mapped_ref)


# ----------------------------------------------------------------------------
# pallas_call wrapper.
# ----------------------------------------------------------------------------
def rignerft_fused_call(packed, choice, sl_v, al_v, sl_w, al_w):
    b = sl_v.shape[0]
    bpad = max(MIN_BPAD, -(-b // 8) * 8)
    pad = lambda x: jnp.pad(x, ((0, bpad - b), (0, 0)))
    inputs = tuple(pad(x) for x in (sl_v, al_v, sl_w, al_w))

    l2p_w, l2p_b = packed["l2p_w"], packed["l2p_b"]
    rig_w, rig_b = packed["rig_w"], packed["rig_b"]
    g1, g2 = len(l2p_w), len(rig_w)
    l2p_shapes, _, l2p_meta, _ = _stage_layout(_L2P_SPECS)
    rig_shapes, _, rig_meta, _ = _stage_layout(_RIG_SPECS)

    kernel = functools.partial(
        _fused_forward_kernel, choice=choice, bpad=bpad, g1=g1, g2=g2,
        l2p_shapes=l2p_shapes, l2p_meta=l2p_meta,
        rig_shapes=rig_shapes, rig_meta=rig_meta)

    out_shape = (
        jax.ShapeDtypeStruct((bpad, SLAB), jnp.float32),   # slab_v
        jax.ShapeDtypeStruct((bpad, SLAB), jnp.float32),   # slab_w
        jax.ShapeDtypeStruct((bpad, SLAB), jnp.float32),   # slab_w_same
        jax.ShapeDtypeStruct((bpad, SLAB), jnp.float32),   # slab_w_mapped
        jax.ShapeDtypeStruct((bpad, NERF), jnp.float32),   # shape_latent_w_same
        jax.ShapeDtypeStruct((bpad, GAN), jnp.float32),    # appearance_latent_w_same
    )
    in_specs = ([_VMEM()] * 4                              # 4 latent inputs
                + [_VMEM()] * g1 + [_VMEM()]               # l2p weight groups + bias pack
                + [pl.BlockSpec(memory_space=pl.ANY)] * g2  # rig weight groups (manual DMA)
                + [_VMEM()])                               # rig bias pack
    out_specs = tuple(_VMEM() for _ in out_shape)
    scratch_shapes = ([pltpu.VMEM(w.shape, jnp.bfloat16) for w in rig_w]
                      + [pltpu.SemaphoreType.DMA((g2,))])

    return pl.pallas_call(
        kernel,
        out_shape=out_shape,
        in_specs=in_specs,
        out_specs=out_specs,
        scratch_shapes=scratch_shapes,
        compiler_params=pltpu.CompilerParams(vmem_limit_bytes=32 * 1024 * 1024),
    )(*inputs, *l2p_w, l2p_b, *rig_w, rig_b)


def _unpack_slab(slab, b):
    shapecode = slab[:b, 0:SHAPE]
    expcode = slab[:b, HEAD:HEAD + EXP]
    albedocode = slab[:b, 2 * HEAD:2 * HEAD + ALBEDO]
    litcode = slab[:b, 3 * HEAD:3 * HEAD + LIT].reshape(b, 9, 3)
    return [shapecode, expcode, albedocode, litcode]


def make_forward(choice):
    """`choice` replaces torch.randint(0, 4, (1,)).item(); it is compile-time static."""
    def forward(packed, shape_latent_v, appearance_latent_v,
                shape_latent_w, appearance_latent_w):
        b = shape_latent_v.shape[0]
        (slab_v, slab_w, slab_same, slab_mapped,
         nerf_same, gan_same) = rignerft_fused_call(
            packed, choice, shape_latent_v, appearance_latent_v,
            shape_latent_w, appearance_latent_w)

        p_v = _unpack_slab(slab_v, b)
        p_w = _unpack_slab(slab_w, b)
        p_w_same = _unpack_slab(slab_same, b)
        p_w_mapped = _unpack_slab(slab_mapped, b)

        p_v_ = [p_w_mapped[j] if j == choice else p_v[j] for j in range(4)]
        p_w_ = [p_w[j] if j == choice else p_w_mapped[j] for j in range(4)]

        # TODO(synk): flame_render(p_w_same / p_w_ / p_v_, pose, cam) -> landmarks and
        # rendered images requires FLAME/FLAMETex/Renderer assets; returning parameters.
        return p_w_same, p_w_, p_v_, nerf_same[:b], gan_same[:b]
    return forward


# ----------------------------------------------------------------------------
# Pure-JAX reference (identical math, XLA instead of Pallas) for validation.
# ----------------------------------------------------------------------------
def _ref_mlp(params, specs_dict, name, h):
    acts = [a for _, _, a in specs_dict[name]]
    for (w, b), act in zip(params[name], acts):
        h = jnp.dot(h.astype(w.dtype), w, preferred_element_type=jnp.float32) + b
        if act:
            h = jnp.maximum(h, LEAKY_SLOPE * h)
    return h


def _ref_latent2params(params, sl, al):
    d = _L2P_DICT
    sf = _ref_mlp(params, d, "Latent2ShapeExpCode", sl)
    af = _ref_mlp(params, d, "Latent2AlbedoLitCode", al)
    return [_ref_mlp(params, d, "latent2shape", sf),
            _ref_mlp(params, d, "latent2exp", sf),
            _ref_mlp(params, d, "latent2albedo", af),
            _ref_mlp(params, d, "latent2lit", af)]          # each (B, HEAD), padded


def _ref_rig(params, wgan, wnerf, p):
    d = _RIG_DICT
    lgan = _ref_mlp(params, d, "WGanEncoder", wgan)
    lshape = _ref_mlp(params, d, "ShapeEncoder", p[0])
    lexp = _ref_mlp(params, d, "ExpEncoder", p[1])
    deltagan = _ref_mlp(params, d, "WGanDecoder",
                        jnp.concatenate([lgan, lshape, lexp], axis=1))
    lnerf = _ref_mlp(params, d, "WNerfEncoder", wnerf)
    lalbedo = _ref_mlp(params, d, "AlbedoEncoder", p[2])
    llit = _ref_mlp(params, d, "LitEncoder", p[3])
    deltanerf = _ref_mlp(params, d, "WNerfDecoder",
                         jnp.concatenate([lnerf, lalbedo, llit], axis=1))
    return deltanerf + wnerf, deltagan + wgan


def make_ref_forward(choice):
    def forward(params, sl_v, al_v, sl_w, al_w):
        b = sl_v.shape[0]
        p_v = _ref_latent2params(params, sl_v, al_v)
        p_w = _ref_latent2params(params, sl_w, al_w)
        nerf_same, gan_same = _ref_rig(params, al_w, sl_w, p_w)
        p_w_same = _ref_latent2params(params, nerf_same, gan_same)
        p_w_replaced = [p_v[i] if i == choice else p_w[i] for i in range(4)]
        nerf_hat, gan_hat = _ref_rig(params, al_w, sl_w, p_w_replaced)
        p_w_mapped = _ref_latent2params(params, nerf_hat, gan_hat)

        def trim(p):
            return [p[0][:, :SHAPE], p[1][:, :EXP], p[2][:, :ALBEDO],
                    p[3][:, :LIT].reshape(b, 9, 3)]

        p_v_t, p_w_t = trim(p_v), trim(p_w)
        p_w_same_t, p_w_mapped_t = trim(p_w_same), trim(p_w_mapped)
        p_v_ = [p_w_mapped_t[j] if j == choice else p_v_t[j] for j in range(4)]
        p_w_ = [p_w_t[j] if j == choice else p_w_mapped_t[j] for j in range(4)]
        return p_w_same_t, p_w_, p_v_, nerf_same, gan_same
    return forward


# ----------------------------------------------------------------------------
# Deterministic synthetic parameters (no checkpoint loading).
# ----------------------------------------------------------------------------
def _init_linear(key, fan_in, fan_out, scale=0.05):
    w = scale * jax.random.normal(key, (fan_in, fan_out), jnp.float32)
    b = jnp.zeros((1, fan_out), jnp.float32)
    return w, b


def build_params(seed=42):
    """Weights bf16 (W: (in,out)), biases f32.  Layers touching the packed slab are
    zero-padded to HEAD=128 lanes, which keeps the math identical to the unpadded net."""
    all_specs = _L2P_SPECS + _RIG_SPECS
    keys = jax.random.split(jax.random.PRNGKey(seed), len(all_specs))
    params = {}
    for k, (name, layers) in zip(keys, all_specs):
        lkeys = jax.random.split(k, len(layers))
        plist = []
        for li, (lk, (fi, fo, _)) in enumerate(zip(lkeys, layers)):
            w, b = _init_linear(lk, fi, fo)
            if name in _PAD_OUT_LAST and li == len(layers) - 1:
                w = jnp.pad(w, ((0, 0), (0, HEAD - fo)))
                b = jnp.pad(b, ((0, 0), (0, HEAD - fo)))
            if name in _PAD_IN_FIRST and li == 0:
                w = jnp.pad(w, ((0, HEAD - fi), (0, 0)))
            plist.append((w.astype(jnp.bfloat16), b))
        params[name] = plist
    return params


if __name__ == "__main__":
    B = 2
    key = jax.random.PRNGKey(0)
    k1, k2, k3, k4, kc = jax.random.split(key, 5)
    shape_latent_v = jax.random.normal(k1, (B, NERF), jnp.float32)
    appearance_latent_v = jax.random.normal(k2, (B, GAN), jnp.float32)
    shape_latent_w = jax.random.normal(k3, (B, NERF), jnp.float32)
    appearance_latent_w = jax.random.normal(k4, (B, GAN), jnp.float32)
    choice = int(jax.random.randint(kc, (), 0, 4))   # stand-in for torch.randint

    params = build_params(seed=42)
    packed = pack_params(params)                     # packed HBM weight slabs

    fwd = jax.jit(make_forward(choice))
    out = fwd(packed, shape_latent_v, appearance_latent_v,
              shape_latent_w, appearance_latent_w)
    out = jax.block_until_ready(out)

    # Shape sanity checks.
    p_w_same, p_w_, p_v_, w_nerf_same, w_gan_same = out
    assert p_w_same[0].shape == (B, SHAPE) and p_w_same[1].shape == (B, EXP)
    assert p_w_same[2].shape == (B, ALBEDO) and p_w_same[3].shape == (B, 9, 3)
    assert w_nerf_same.shape == (B, NERF) and w_gan_same.shape == (B, GAN)

    # Numeric check against a pure-JAX (XLA) reference of the same math.
    ref_fwd = jax.jit(make_ref_forward(choice))
    ref = jax.block_until_ready(ref_fwd(params, shape_latent_v, appearance_latent_v,
                                        shape_latent_w, appearance_latent_w))
    for a, r in zip(jax.tree_util.tree_leaves(out), jax.tree_util.tree_leaves(ref)):
        assert a.shape == r.shape
        assert jnp.allclose(a, r, rtol=2e-2, atol=2e-2), float(jnp.max(jnp.abs(a - r)))

    print("KERNEL_OK")
</pallas_src>

<mosaic_0001>
module attributes {stable_mosaic.version = 11 : i64} {
  func.func @_fused_forward_kernel(%arg0: memref<8x256xf32, #tpu.memory_space<vmem>>, %arg1: memref<8x512xf32, #tpu.memory_space<vmem>>, %arg2: memref<8x256xf32, #tpu.memory_space<vmem>>, %arg3: memref<8x512xf32, #tpu.memory_space<vmem>>, %arg4: memref<4x256x128xbf16, #tpu.memory_space<vmem>>, %arg5: memref<8x256x256xbf16, #tpu.memory_space<vmem>>, %arg6: memref<1x512x256xbf16, #tpu.memory_space<vmem>>, %arg7: memref<1x512x512xbf16, #tpu.memory_space<vmem>>, %arg8: memref<14x512xf32, #tpu.memory_space<vmem>>, %arg9: memref<8x128x128xbf16, #tpu.memory_space<any>>, %arg10: memref<4x256x256xbf16, #tpu.memory_space<any>>, %arg11: memref<1x256x512xbf16, #tpu.memory_space<any>>, %arg12: memref<3x512x256xbf16, #tpu.memory_space<any>>, %arg13: memref<16x512xf32, #tpu.memory_space<vmem>>, %arg14: memref<8x512xf32, #tpu.memory_space<vmem>>, %arg15: memref<8x512xf32, #tpu.memory_space<vmem>>, %arg16: memref<8x512xf32, #tpu.memory_space<vmem>>, %arg17: memref<8x512xf32, #tpu.memory_space<vmem>>, %arg18: memref<8x256xf32, #tpu.memory_space<vmem>>, %arg19: memref<8x512xf32, #tpu.memory_space<vmem>>, %arg20: memref<8x128x128xbf16, #tpu.memory_space<vmem>>, %arg21: memref<4x256x256xbf16, #tpu.memory_space<vmem>>, %arg22: memref<1x256x512xbf16, #tpu.memory_space<vmem>>, %arg23: memref<3x512x256xbf16, #tpu.memory_space<vmem>>, %arg24: memref<4x!tpu.dma_semaphore, #tpu.memory_space<semaphore_mem>>) attributes {dimension_semantics = [], scalar_prefetch = 0 : i64, scratch_operands = 5 : i64, tpu.core_type = #tpu.core_type<tc>} {
    %c0_i32 = arith.constant 0 : i32
    %0 = tpu.memref_slice %arg24[%c0_i32] : memref<4x!tpu.dma_semaphore, #tpu.memory_space<semaphore_mem>> -> memref<1x!tpu.dma_semaphore, #tpu.memory_space<semaphore_mem>>
    %1 = tpu.memref_squeeze %0 : memref<1x!tpu.dma_semaphore, #tpu.memory_space<semaphore_mem>> -> memref<!tpu.dma_semaphore, #tpu.memory_space<semaphore_mem>>
    tpu.enqueue_dma source(%arg9 : memref<8x128x128xbf16, #tpu.memory_space<any>>) target(%arg20 : memref<8x128x128xbf16, #tpu.memory_space<vmem>>) target_semaphore(%1 : memref<!tpu.dma_semaphore, #tpu.memory_space<semaphore_mem>>)
    %c1_i32 = arith.constant 1 : i32
    %2 = tpu.memref_slice %arg24[%c1_i32] : memref<4x!tpu.dma_semaphore, #tpu.memory_space<semaphore_mem>> -> memref<1x!tpu.dma_semaphore, #tpu.memory_space<semaphore_mem>>
    %3 = tpu.memref_squeeze %2 : memref<1x!tpu.dma_semaphore, #tpu.memory_space<semaphore_mem>> -> memref<!tpu.dma_semaphore, #tpu.memory_space<semaphore_mem>>
    tpu.enqueue_dma source(%arg10 : memref<4x256x256xbf16, #tpu.memory_space<any>>) target(%arg21 : memref<4x256x256xbf16, #tpu.memory_space<vmem>>) target_semaphore(%3 : memref<!tpu.dma_semaphore, #tpu.memory_space<semaphore_mem>>)
    %c2_i32 = arith.constant 2 : i32
    %4 = tpu.memref_slice %arg24[%c2_i32] : memref<4x!tpu.dma_semaphore, #tpu.memory_space<semaphore_mem>> -> memref<1x!tpu.dma_semaphore, #tpu.memory_space<semaphore_mem>>
    %5 = tpu.memref_squeeze %4 : memref<1x!tpu.dma_semaphore, #tpu.memory_space<semaphore_mem>> -> memref<!tpu.dma_semaphore, #tpu.memory_space<semaphore_mem>>
    tpu.enqueue_dma source(%arg11 : memref<1x256x512xbf16, #tpu.memory_space<any>>) target(%arg22 : memref<1x256x512xbf16, #tpu.memory_space<vmem>>) target_semaphore(%5 : memref<!tpu.dma_semaphore, #tpu.memory_space<semaphore_mem>>)
    %c3_i32 = arith.constant 3 : i32
    %6 = tpu.memref_slice %arg24[%c3_i32] : memref<4x!tpu.dma_semaphore, #tpu.memory_space<semaphore_mem>> -> memref<1x!tpu.dma_semaphore, #tpu.memory_space<semaphore_mem>>
    %7 = tpu.memref_squeeze %6 : memref<1x!tpu.dma_semaphore, #tpu.memory_space<semaphore_mem>> -> memref<!tpu.dma_semaphore, #tpu.memory_space<semaphore_mem>>
    tpu.enqueue_dma source(%arg12 : memref<3x512x256xbf16, #tpu.memory_space<any>>) target(%arg23 : memref<3x512x256xbf16, #tpu.memory_space<vmem>>) target_semaphore(%7 : memref<!tpu.dma_semaphore, #tpu.memory_space<semaphore_mem>>)
    %c0 = arith.constant 0 : index
    %c0_0 = arith.constant 0 : index
    %8 = vector.load %arg0[%c0, %c0_0] : memref<8x256xf32, #tpu.memory_space<vmem>>, vector<8x256xf32>
    %c0_1 = arith.constant 0 : index
    %c0_2 = arith.constant 0 : index
    %9 = vector.load %arg2[%c0_1, %c0_2] : memref<8x256xf32, #tpu.memory_space<vmem>>, vector<8x256xf32>
    %10 = tpu.concatenate %8, %9 in 0 : vector<8x256xf32>, vector<8x256xf32> -> vector<16x256xf32>
    %c0_3 = arith.constant 0 : index
    %c0_4 = arith.constant 0 : index
    %11 = vector.load %arg1[%c0_3, %c0_4] : memref<8x512xf32, #tpu.memory_space<vmem>>, vector<8x512xf32>
    %c0_5 = arith.constant 0 : index
    %c0_6 = arith.constant 0 : index
    %12 = vector.load %arg3[%c0_5, %c0_6] : memref<8x512xf32, #tpu.memory_space<vmem>>, vector<8x512xf32>
    %13 = tpu.concatenate %11, %12 in 0 : vector<8x512xf32>, vector<8x512xf32> -> vector<16x512xf32>
    %c0_7 = arith.constant 0 : index
    %c0_8 = arith.constant 0 : index
    %c0_9 = arith.constant 0 : index
    %14 = vector.load %arg5[%c0_7, %c0_8, %c0_9] : memref<8x256x256xbf16, #tpu.memory_space<vmem>>, vector<1x256x256xbf16>
    %15 = vector.shape_cast %14 : vector<1x256x256xbf16> to vector<256x256xbf16>
    %c0_10 = arith.constant 0 : index
    %c0_11 = arith.constant 0 : index
    %16 = vector.load %arg8[%c0_10, %c0_11] : memref<14x512xf32, #tpu.memory_space<vmem>>, vector<1x256xf32>
    %17 = arith.truncf %10 : vector<16x256xf32> to vector<16x256xbf16>
    %cst = arith.constant dense<0.000000e+00> : vector<16x256xf32>
    %18 = tpu.matmul %17, %15, %cst {dimension_numbers = #tpu.dot_dimension_numbers<[1], [0], [0], [1], [0, 0, 1, 1], [], []>} : vector<16x256xbf16>, vector<256x256xbf16>, vector<16x256xf32> -> vector<16x256xf32>
    %19 = vector.broadcast %16 : vector<1x256xf32> to vector<16x256xf32>
    %20 = arith.addf %18, %19 : vector<16x256xf32>
    %cst_12 = arith.constant 2.000000e-01 : f32
    %21 = vector.broadcast %cst_12 : f32 to vector<16x256xf32>
    %22 = arith.mulf %21, %20 : vector<16x256xf32>
    %23 = arith.maximumf %20, %22 : vector<16x256xf32>
    %c1 = arith.constant 1 : index
    %c0_13 = arith.constant 0 : index
    %c0_14 = arith.constant 0 : index
    %24 = vector.load %arg5[%c1, %c0_13, %c0_14] : memref<8x256x256xbf16, #tpu.memory_space<vmem>>, vector<1x256x256xbf16>
    %25 = vector.shape_cast %24 : vector<1x256x256xbf16> to vector<256x256xbf16>
    %c1_15 = arith.constant 1 : index
    %c0_16 = arith.constant 0 : index
    %26 = vector.load %arg8[%c1_15, %c0_16] : memref<14x512xf32, #tpu.memory_space<vmem>>, vector<1x256xf32>
    %27 = arith.truncf %23 : vector<16x256xf32> to vector<16x256xbf16>
    %cst_17 = arith.constant dense<0.000000e+00> : vector<16x256xf32>
    %28 = tpu.matmul %27, %25, %cst_17 {dimension_numbers = #tpu.dot_dimension_numbers<[1], [0], [0], [1], [0, 0, 1, 1], [], []>} : vector<16x256xbf16>, vector<256x256xbf16>, vector<16x256xf32> -> vector<16x256xf32>
    %29 = vector.broadcast %26 : vector<1x256xf32> to vector<16x256xf32>
    %30 = arith.addf %28, %29 : vector<16x256xf32>
    %cst_18 = arith.constant 2.000000e-01 : f32
    %31 = vector.broadcast %cst_18 : f32 to vector<16x256xf32>
    %32 = arith.mulf %31, %30 : vector<16x256xf32>
    %33 = arith.maximumf %30, %32 : vector<16x256xf32>
    %c2 = arith.constant 2 : index
    %c0_19 = arith.constant 0 : index
    %c0_20 = arith.constant 0 : index
    %34 = vector.load %arg5[%c2, %c0_19, %c0_20] : memref<8x256x256xbf16, #tpu.memory_space<vmem>>, vector<1x256x256xbf16>
    %35 = vector.shape_cast %34 : vector<1x256x256xbf16> to vector<256x256xbf16>
    %c2_21 = arith.constant 2 : index
    %c0_22 = arith.constant 0 : index
    %36 = vector.load %arg8[%c2_21, %c0_22] : memref<14x512xf32, #tpu.memory_space<vmem>>, vector<1x256xf32>
    %37 = arith.truncf %33 : vector<16x256xf32> to vector<16x256xbf16>
    %cst_23 = arith.constant dense<0.000000e+00> : vector<16x256xf32>
    %38 = tpu.matmul %37, %35, %cst_23 {dimension_numbers = #tpu.dot_dimension_numbers<[1], [0], [0], [1], [0, 0, 1, 1], [], []>} : vector<16x256xbf16>, vector<256x256xbf16>, vector<16x256xf32> -> vector<16x256xf32>
    %39 = vector.broadcast %36 : vector<1x256xf32> to vector<16x256xf32>
    %40 = arith.addf %38, %39 : vector<16x256xf32>
    %cst_24 = arith.constant 2.000000e-01 : f32
    %41 = vector.broadcast %cst_24 : f32 to vector<16x256xf32>
    %42 = arith.mulf %41, %40 : vector<16x256xf32>
    %43 = arith.maximumf %40, %42 : vector<16x256xf32>
    %c0_25 = arith.constant 0 : index
    %c0_26 = arith.constant 0 : index
    %c0_27 = arith.constant 0 : index
    %44 = vector.load %arg7[%c0_25, %c0_26, %c0_27] : memref<1x512x512xbf16, #tpu.memory_space<vmem>>, vector<1x512x512xbf16>
    %45 = vector.shape_cast %44 : vector<1x512x512xbf16> to vector<512x512xbf16>
    %c7 = arith.constant 7 : index
    %c0_28 = arith.constant 0 : index
    %46 = vector.load %arg8[%c7, %c0_28] : memref<14x512xf32, #tpu.memory_space<vmem>>, vector<1x512xf32>
    %47 = arith.truncf %13 : vector<16x512xf32> to vector<16x512xbf16>
    %cst_29 = arith.constant dense<0.000000e+00> : vector<16x512xf32>
    %48 = tpu.matmul %47, %45, %cst_29 {dimension_numbers = #tpu.dot_dimension_numbers<[1], [0], [0], [1], [0, 0, 1, 1], [], []>} : vector<16x512xbf16>, vector<512x512xbf16>, vector<16x512xf32> -> vector<16x512xf32>
    %49 = vector.broadcast %46 : vector<1x512xf32> to vector<16x512xf32>
    %50 = arith.addf %48, %49 : vector<16x512xf32>
    %cst_30 = arith.constant 2.000000e-01 : f32
    %51 = vector.broadcast %cst_30 : f32 to vector<16x512xf32>
    %52 = arith.mulf %51, %50 : vector<16x512xf32>
    %53 = arith.maximumf %50, %52 : vector<16x512xf32>
    %c0_31 = arith.constant 0 : index
    %c0_32 = arith.constant 0 : index
    %c0_33 = arith.constant 0 : index
    %54 = vector.load %arg6[%c0_31, %c0_32, %c0_33] : memref<1x512x256xbf16, #tpu.memory_space<vmem>>, vector<1x512x256xbf16>
    %55 = vector.shape_cast %54 : vector<1x512x256xbf16> to vector<512x256xbf16>
    %c8 = arith.constant 8 : index
    %c0_34 = arith.constant 0 : index
    %56 = vector.load %arg8[%c8, %c0_34] : memref<14x512xf32, #tpu.memory_space<vmem>>, vector<1x256xf32>
    %57 = arith.truncf %53 : vector<16x512xf32> to vector<16x512xbf16>
    %cst_35 = arith.constant dense<0.000000e+00> : vector<16x256xf32>
    %58 = tpu.matmul %57, %55, %cst_35 {dimension_numbers = #tpu.dot_dimension_numbers<[1], [0], [0], [1], [0, 0, 1, 1], [], []>} : vector<16x512xbf16>, vector<512x256xbf16>, vector<16x256xf32> -> vector<16x256xf32>
    %59 = vector.broadcast %56 : vector<1x256xf32> to vector<16x256xf32>
    %60 = arith.addf %58, %59 : vector<16x256xf32>
    %cst_36 = arith.constant 2.000000e-01 : f32
    %61 = vector.broadcast %cst_36 : f32 to vector<16x256xf32>
    %62 = arith.mulf %61, %60 : vector<16x256xf32>
    %63 = arith.maximumf %60, %62 : vector<16x256xf32>
    %c5 = arith.constant 5 : index
    %c0_37 = arith.constant 0 : index
    %c0_38 = arith.constant 0 : index
    %64 = vector.load %arg5[%c5, %c0_37, %c0_38] : memref<8x256x256xbf16, #tpu.memory_space<vmem>>, vector<1x256x256xbf16>
    %65 = vector.shape_cast %64 : vector<1x256x256xbf16> to vector<256x256xbf16>
    %c9 = arith.constant 9 : index
    %c0_39 = arith.constant 0 : index
    %66 = vector.load %arg8[%c9, %c0_39] : memref<14x512xf32, #tpu.memory_space<vmem>>, vector<1x256xf32>
    %67 = arith.truncf %63 : vector<16x256xf32> to vector<16x256xbf16>
    %cst_40 = arith.constant dense<0.000000e+00> : vector<16x256xf32>
    %68 = tpu.matmul %67, %65, %cst_40 {dimension_numbers = #tpu.dot_dimension_numbers<[1], [0], [0], [1], [0, 0, 1, 1], [], []>} : vector<16x256xbf16>, vector<256x256xbf16>, vector<16x256xf32> -> vector<16x256xf32>
    %69 = vector.broadcast %66 : vector<1x256xf32> to vector<16x256xf32>
    %70 = arith.addf %68, %69 : vector<16x256xf32>
    %cst_41 = arith.constant 2.000000e-01 : f32
    %71 = vector.broadcast %cst_41 : f32 to vector<16x256xf32>
    %72 = arith.mulf %71, %70 : vector<16x256xf32>
    %73 = arith.maximumf %70, %72 : vector<16x256xf32>
    %c3 = arith.constant 3 : index
    %c0_42 = arith.constant 0 : index
    %c0_43 = arith.constant 0 : index
    %74 = vector.load %arg5[%c3, %c0_42, %c0_43] : memref<8x256x256xbf16, #tpu.memory_space<vmem>>, vector<1x256x256xbf16>
    %75 = vector.shape_cast %74 : vector<1x256x256xbf16> to vector<256x256xbf16>
    %c3_44 = arith.constant 3 : index
    %c0_45 = arith.constant 0 : index
    %76 = vector.load %arg8[%c3_44, %c0_45] : memref<14x512xf32, #tpu.memory_space<vmem>>, vector<1x256xf32>
    %77 = arith.truncf %43 : vector<16x256xf32> to vector<16x256xbf16>
    %cst_46 = arith.constant dense<0.000000e+00> : vector<16x256xf32>
    %78 = tpu.matmul %77, %75, %cst_46 {dimension_numbers = #tpu.dot_dimension_numbers<[1], [0], [0], [1], [0, 0, 1, 1], [], []>} : vector<16x256xbf16>, vector<256x256xbf16>, vector<16x256xf32> -> vector<16x256xf32>
    %79 = vector.broadcast %76 : vector<1x256xf32> to vector<16x256xf32>
    %80 = arith.addf %78, %79 : vector<16x256xf32>
    %cst_47 = arith.constant 2.000000e-01 : f32
    %81 = vector.broadcast %cst_47 : f32 to vector<16x256xf32>
    %82 = arith.mulf %81, %80 : vector<16x256xf32>
    %83 = arith.maximumf %80, %82 : vector<16x256xf32>
    %c0_48 = arith.constant 0 : index
    %c0_49 = arith.constant 0 : index
    %c0_50 = arith.constant 0 : index
    %84 = vector.load %arg4[%c0_48, %c0_49, %c0_50] : memref<4x256x128xbf16, #tpu.memory_space<vmem>>, vector<1x256x128xbf16>
    %85 = vector.shape_cast %84 : vector<1x256x128xbf16> to vector<256x128xbf16>
    %c4 = arith.constant 4 : index
    %c0_51 = arith.constant 0 : index
    %86 = vector.load %arg8[%c4, %c0_51] : memref<14x512xf32, #tpu.memory_space<vmem>>, vector<1x128xf32>
    %87 = arith.truncf %83 : vector<16x256xf32> to vector<16x256xbf16>
    %cst_52 = arith.constant dense<0.000000e+00> : vector<16x128xf32>
    %88 = tpu.matmul %87, %85, %cst_52 {dimension_numbers = #tpu.dot_dimension_numbers<[1], [0], [0], [1], [0, 0, 1, 1], [], []>} : vector<16x256xbf16>, vector<256x128xbf16>, vector<16x128xf32> -> vector<16x128xf32>
    %89 = vector.broadcast %86 : vector<1x128xf32> to vector<16x128xf32>
    %90 = arith.addf %88, %89 : vector<16x128xf32>
    %91 = vector.extract_strided_slice %90 {offsets = [0, 0], sizes = [8, 128], strides = [1, 1]} : vector<16x128xf32> to vector<8x128xf32>
    %c0_53 = arith.constant 0 : index
    %c0_54 = arith.constant 0 : index
    %92 = vector.load %arg14[%c0_53, %c0_54] : memref<8x512xf32, #tpu.memory_space<vmem>>, vector<8x128xf32>
    tpu.vector_store %arg14[%c0_53, %c0_54], %91 {strides = array<i32>} : memref<8x512xf32, #tpu.memory_space<vmem>>, vector<8x128xf32>,
    %93 = vector.extract_strided_slice %90 {offsets = [8, 0], sizes = [8, 128], strides = [1, 1]} : vector<16x128xf32> to vector<8x128xf32>
    %c0_55 = arith.constant 0 : index
    %c0_56 = arith.constant 0 : index
    %94 = vector.load %arg15[%c0_55, %c0_56] : memref<8x512xf32, #tpu.memory_space<vmem>>, vector<8x128xf32>
    tpu.vector_store %arg15[%c0_55, %c0_56], %93 {strides = array<i32>} : memref<8x512xf32, #tpu.memory_space<vmem>>, vector<8x128xf32>,
    %c4_57 = arith.constant 4 : index
    %c0_58 = arith.constant 0 : index
    %c0_59 = arith.constant 0 : index
    %95 = vector.load %arg5[%c4_57, %c0_58, %c0_59] : memref<8x256x256xbf16, #tpu.memory_space<vmem>>, vector<1x256x256xbf16>
    %96 = vector.shape_cast %95 : vector<1x256x256xbf16> to vector<256x256xbf16>
    %c5_60 = arith.constant 5 : index
    %c0_61 = arith.constant 0 : index
    %97 = vector.load %arg8[%c5_60, %c0_61] : memref<14x512xf32, #tpu.memory_space<vmem>>, vector<1x256xf32>
    %98 = arith.truncf %43 : vector<16x256xf32> to vector<16x256xbf16>
    %cst_62 = arith.constant dense<0.000000e+00> : vector<16x256xf32>
    %99 = tpu.matmul %98, %96, %cst_62 {dimension_numbers = #tpu.dot_dimension_numbers<[1], [0], [0], [1], [0, 0, 1, 1], [], []>} : vector<16x256xbf16>, vector<256x256xbf16>, vector<16x256xf32> -> vector<16x256xf32>
    %100 = vector.broadcast %97 : vector<1x256xf32> to vector<16x256xf32>
    %101 = arith.addf %99, %100 : vector<16x256xf32>
    %cst_63 = arith.constant 2.000000e-01 : f32
    %102 = vector.broadcast %cst_63 : f32 to vector<16x256xf32>
    %103 = arith.mulf %102, %101 : vector<16x256xf32>
    %104 = arith.maximumf %101, %103 : vector<16x256xf32>
    %c1_64 = arith.constant 1 : index
    %c0_65 = arith.constant 0 : index
    %c0_66 = arith.constant 0 : index
    %105 = vector.load %arg4[%c1_64, %c0_65, %c0_66] : memref<4x256x128xbf16, #tpu.memory_space<vmem>>, vector<1x256x128xbf16>
    %106 = vector.shape_cast %105 : vector<1x256x128xbf16> to vector<256x128xbf16>
    %c6 = arith.constant 6 : index
    %c0_67 = arith.constant 0 : index
    %107 = vector.load %arg8[%c6, %c0_67] : memref<14x512xf32, #tpu.memory_space<vmem>>, vector<1x128xf32>
    %108 = arith.truncf %104 : vector<16x256xf32> to vector<16x256xbf16>
    %cst_68 = arith.constant dense<0.000000e+00> : vector<16x128xf32>
    %109 = tpu.matmul %108, %106, %cst_68 {dimension_numbers = #tpu.dot_dimension_numbers<[1], [0], [0], [1], [0, 0, 1, 1], [], []>} : vector<16x256xbf16>, vector<256x128xbf16>, vector<16x128xf32> -> vector<16x128xf32>
    %110 = vector.broadcast %107 : vector<1x128xf32> to vector<16x128xf32>
    %111 = arith.addf %109, %110 : vector<16x128xf32>
    %112 = vector.extract_strided_slice %111 {offsets = [0, 0], sizes = [8, 128], strides = [1, 1]} : vector<16x128xf32> to vector<8x128xf32>
    %c0_69 = arith.constant 0 : index
    %c128 = arith.constant 128 : index
    %113 = vector.load %arg14[%c0_69, %c128] : memref<8x512xf32, #tpu.memory_space<vmem>>, vector<8x128xf32>
    tpu.vector_store %arg14[%c0_69, %c128], %112 {strides = array<i32>} : memref<8x512xf32, #tpu.memory_space<vmem>>, vector<8x128xf32>,
    %114 = vector.extract_strided_slice %111 {offsets = [8, 0], sizes = [8, 128], strides = [1, 1]} : vector<16x128xf32> to vector<8x128xf32>
    %c0_70 = arith.constant 0 : index
    %c128_71 = arith.constant 128 : index
    %115 = vector.load %arg15[%c0_70, %c128_71] : memref<8x512xf32, #tpu.memory_space<vmem>>, vector<8x128xf32>
    tpu.vector_store %arg15[%c0_70, %c128_71], %114 {strides = array<i32>} : memref<8x512xf32, #tpu.memory_space<vmem>>, vector<8x128xf32>,
    %c6_72 = arith.constant 6 : index
    %c0_73 = arith.constant 0 : index
    %c0_74 = arith.constant 0 : index
    %116 = vector.load %arg5[%c6_72, %c0_73, %c0_74] : memref<8x256x256xbf16, #tpu.memory_space<vmem>>, vector<1x256x256xbf16>
    %117 = vector.shape_cast %116 : vector<1x256x256xbf16> to vector<256x256xbf16>
    %c10 = arith.constant 10 : index
    %c0_75 = arith.constant 0 : index
    %118 = vector.load %arg8[%c10, %c0_75] : memref<14x512xf32, #tpu.memory_space<vmem>>, vector<1x256xf32>
    %119 = arith.truncf %73 : vector<16x256xf32> to vector<16x256xbf16>
    %cst_76 = arith.constant dense<0.000000e+00> : vector<16x256xf32>
    %120 = tpu.matmul %119, %117, %cst_76 {dimension_numbers = #tpu.dot_dimension_numbers<[1], [0], [0], [1], [0, 0, 1, 1], [], []>} : vector<16x256xbf16>, vector<256x256xbf16>, vector<16x256xf32> -> vector<16x256xf32>
    %121 = vector.broadcast %118 : vector<1x256xf32> to vector<16x256xf32>
    %122 = arith.addf %120, %121 : vector<16x256xf32>
    %cst_77 = arith.constant 2.000000e-01 : f32
    %123 = vector.broadcast %cst_77 : f32 to vector<16x256xf32>
    %124 = arith.mulf %123, %122 : vector<16x256xf32>
    %125 = arith.maximumf %122, %124 : vector<16x256xf32>
    %c2_78 = arith.constant 2 : index
    %c0_79 = arith.constant 0 : index
    %c0_80 = arith.constant 0 : index
    %126 = vector.load %arg4[%c2_78, %c0_79, %c0_80] : memref<4x256x128xbf16, #tpu.memory_space<vmem>>, vector<1x256x128xbf16>
    %127 = vector.shape_cast %126 : vector<1x256x128xbf16> to vector<256x128xbf16>
    %c11 = arith.constant 11 : index
    %c0_81 = arith.constant 0 : index
    %128 = vector.load %arg8[%c11, %c0_81] : memref<14x512xf32, #tpu.memory_space<vmem>>, vector<1x128xf32>
    %129 = arith.truncf %125 : vector<16x256xf32> to vector<16x256xbf16>
    %cst_82 = arith.constant dense<0.000000e+00> : vector<16x128xf32>
    %130 = tpu.matmul %129, %127, %cst_82 {dimension_numbers = #tpu.dot_dimension_numbers<[1], [0], [0], [1], [0, 0, 1, 1], [], []>} : vector<16x256xbf16>, vector<256x128xbf16>, vector<16x128xf32> -> vector<16x128xf32>
    %131 = vector.broadcast %128 : vector<1x128xf32> to vector<16x128xf32>
    %132 = arith.addf %130, %131 : vector<16x128xf32>
    %133 = vector.extract_strided_slice %132 {offsets = [0, 0], sizes = [8, 128], strides = [1, 1]} : vector<16x128xf32> to vector<8x128xf32>
    %c0_83 = arith.constant 0 : index
    %c256 = arith.constant 256 : index
    %134 = vector.load %arg14[%c0_83, %c256] : memref<8x512xf32, #tpu.memory_space<vmem>>, vector<8x128xf32>
    tpu.vector_store %arg14[%c0_83, %c256], %133 {strides = array<i32>} : memref<8x512xf32, #tpu.memory_space<vmem>>, vector<8x128xf32>,
    %135 = vector.extract_strided_slice %132 {offsets = [8, 0], sizes = [8, 128], strides = [1, 1]} : vector<16x128xf32> to vector<8x128xf32>
    %c0_84 = arith.constant 0 : index
    %c256_85 = arith.constant 256 : index
    %136 = vector.load %arg15[%c0_84, %c256_85] : memref<8x512xf32, #tpu.memory_space<vmem>>, vector<8x128xf32>
    tpu.vector_store %arg15[%c0_84, %c256_85], %135 {strides = array<i32>} : memref<8x512xf32, #tpu.memory_space<vmem>>, vector<8x128xf32>,
    %c7_86 = arith.constant 7 : index
    %c0_87 = arith.constant 0 : index
    %c0_88 = arith.constant 0 : index
    %137 = vector.load %arg5[%c7_86, %c0_87, %c0_88] : memref<8x256x256xbf16, #tpu.memory_space<vmem>>, vector<1x256x256xbf16>
    %138 = vector.shape_cast %137 : vector<1x256x256xbf16> to vector<256x256xbf16>
    %c12 = arith.constant 12 : index
    %c0_89 = arith.constant 0 : index
    %139 = vector.load %arg8[%c12, %c0_89] : memref<14x512xf32, #tpu.memory_space<vmem>>, vector<1x256xf32>
    %140 = arith.truncf %73 : vector<16x256xf32> to vector<16x256xbf16>
    %cst_90 = arith.constant dense<0.000000e+00> : vector<16x256xf32>
    %141 = tpu.matmul %140, %138, %cst_90 {dimension_numbers = #tpu.dot_dimension_numbers<[1], [0], [0], [1], [0, 0, 1, 1], [], []>} : vector<16x256xbf16>, vector<256x256xbf16>, vector<16x256xf32> -> vector<16x256xf32>
    %142 = vector.broadcast %139 : vector<1x256xf32> to vector<16x256xf32>
    %143 = arith.addf %141, %142 : vector<16x256xf32>
    %cst_91 = arith.constant 2.000000e-01 : f32
    %144 = vector.broadcast %cst_91 : f32 to vector<16x256xf32>
    %145 = arith.mulf %144, %143 : vector<16x256xf32>
    %146 = arith.maximumf %143, %145 : vector<16x256xf32>
    %c3_92 = arith.constant 3 : index
    %c0_93 = arith.constant 0 : index
    %c0_94 = arith.constant 0 : index
    %147 = vector.load %arg4[%c3_92, %c0_93, %c0_94] : memref<4x256x128xbf16, #tpu.memory_space<vmem>>, vector<1x256x128xbf16>
    %148 = vector.shape_cast %147 : vector<1x256x128xbf16> to vector<256x128xbf16>
    %c13 = arith.constant 13 : index
    %c0_95 = arith.constant 0 : index
    %149 = vector.load %arg8[%c13, %c0_95] : memref<14x512xf32, #tpu.memory_space<vmem>>, vector<1x128xf32>
    %150 = arith.truncf %146 : vector<16x256xf32> to vector<16x256xbf16>
    %cst_96 = arith.constant dense<0.000000e+00> : vector<16x128xf32>
    %151 = tpu.matmul %150, %148, %cst_96 {dimension_numbers = #tpu.dot_dimension_numbers<[1], [0], [0], [1], [0, 0, 1, 1], [], []>} : vector<16x256xbf16>, vector<256x128xbf16>, vector<16x128xf32> -> vector<16x128xf32>
    %152 = vector.broadcast %149 : vector<1x128xf32> to vector<16x128xf32>
    %153 = arith.addf %151, %152 : vector<16x128xf32>
    %154 = vector.extract_strided_slice %153 {offsets = [0, 0], sizes = [8, 128], strides = [1, 1]} : vector<16x128xf32> to vector<8x128xf32>
    %c0_97 = arith.constant 0 : index
    %c384 = arith.constant 384 : index
    %155 = vector.load %arg14[%c0_97, %c384] : memref<8x512xf32, #tpu.memory_space<vmem>>, vector<8x128xf32>
    tpu.vector_store %arg14[%c0_97, %c384], %154 {strides = array<i32>} : memref<8x512xf32, #tpu.memory_space<vmem>>, vector<8x128xf32>,
    %156 = vector.extract_strided_slice %153 {offsets = [8, 0], sizes = [8, 128], strides = [1, 1]} : vector<16x128xf32> to vector<8x128xf32>
    %c0_98 = arith.constant 0 : index
    %c384_99 = arith.constant 384 : index
    %157 = vector.load %arg15[%c0_98, %c384_99] : memref<8x512xf32, #tpu.memory_space<vmem>>, vector<8x128xf32>
    tpu.vector_store %arg15[%c0_98, %c384_99], %156 {strides = array<i32>} : memref<8x512xf32, #tpu.memory_space<vmem>>, vector<8x128xf32>,
    %c0_i32_100 = arith.constant 0 : i32
    %158 = tpu.memref_slice %arg24[%c0_i32_100] : memref<4x!tpu.dma_semaphore, #tpu.memory_space<semaphore_mem>> -> memref<1x!tpu.dma_semaphore, #tpu.memory_space<semaphore_mem>>
    %159 = tpu.memref_squeeze %158 : memref<1x!tpu.dma_semaphore, #tpu.memory_space<semaphore_mem>> -> memref<!tpu.dma_semaphore, #tpu.memory_space<semaphore_mem>>
    tpu.wait_dma2 semaphore(%159 : memref<!tpu.dma_semaphore, #tpu.memory_space<semaphore_mem>>) src(%arg9 : memref<8x128x128xbf16, #tpu.memory_space<any>>) dst(%arg20 : memref<8x128x128xbf16, #tpu.memory_space<vmem>>)
    %c1_i32_101 = arith.constant 1 : i32
    %160 = tpu.memref_slice %arg24[%c1_i32_101] : memref<4x!tpu.dma_semaphore, #tpu.memory_space<semaphore_mem>> -> memref<1x!tpu.dma_semaphore, #tpu.memory_space<semaphore_mem>>
    %161 = tpu.memref_squeeze %160 : memref<1x!tpu.dma_semaphore, #tpu.memory_space<semaphore_mem>> -> memref<!tpu.dma_semaphore, #tpu.memory_space<semaphore_mem>>
    tpu.wait_dma2 semaphore(%161 : memref<!tpu.dma_semaphore, #tpu.memory_space<semaphore_mem>>) src(%arg10 : memref<4x256x256xbf16, #tpu.memory_space<any>>) dst(%arg21 : memref<4x256x256xbf16, #tpu.memory_space<vmem>>)
    %c2_i32_102 = arith.constant 2 : i32
    %162 = tpu.memref_slice %arg24[%c2_i32_102] : memref<4x!tpu.dma_semaphore, #tpu.memory_space<semaphore_mem>> -> memref<1x!tpu.dma_semaphore, #tpu.memory_space<semaphore_mem>>
    %163 = tpu.memref_squeeze %162 : memref<1x!tpu.dma_semaphore, #tpu.memory_space<semaphore_mem>> -> memref<!tpu.dma_semaphore, #tpu.memory_space<semaphore_mem>>
    tpu.wait_dma2 semaphore(%163 : memref<!tpu.dma_semaphore, #tpu.memory_space<semaphore_mem>>) src(%arg11 : memref<1x256x512xbf16, #tpu.memory_space<any>>) dst(%arg22 : memref<1x256x512xbf16, #tpu.memory_space<vmem>>)
    %c3_i32_103 = arith.constant 3 : i32
    %164 = tpu.memref_slice %arg24[%c3_i32_103] : memref<4x!tpu.dma_semaphore, #tpu.memory_space<semaphore_mem>> -> memref<1x!tpu.dma_semaphore, #tpu.memory_space<semaphore_mem>>
    %165 = tpu.memref_squeeze %164 : memref<1x!tpu.dma_semaphore, #tpu.memory_space<semaphore_mem>> -> memref<!tpu.dma_semaphore, #tpu.memory_space<semaphore_mem>>
    tpu.wait_dma2 semaphore(%165 : memref<!tpu.dma_semaphore, #tpu.memory_space<semaphore_mem>>) src(%arg12 : memref<3x512x256xbf16, #tpu.memory_space<any>>) dst(%arg23 : memref<3x512x256xbf16, #tpu.memory_space<vmem>>)
    %c0_104 = arith.constant 0 : index
    %c0_105 = arith.constant 0 : index
    %166 = vector.load %arg3[%c0_104, %c0_105] : memref<8x512xf32, #tpu.memory_space<vmem>>, vector<8x512xf32>
    %c0_106 = arith.constant 0 : index
    %c0_107 = arith.constant 0 : index
    %167 = vector.load %arg3[%c0_106, %c0_107] : memref<8x512xf32, #tpu.memory_space<vmem>>, vector<8x512xf32>
    %168 = tpu.concatenate %166, %167 in 0 : vector<8x512xf32>, vector<8x512xf32> -> vector<16x512xf32>
    %c0_108 = arith.constant 0 : index
    %c0_109 = arith.constant 0 : index
    %169 = vector.load %arg2[%c0_108, %c0_109] : memref<8x256xf32, #tpu.memory_space<vmem>>, vector<8x256xf32>
    %c0_110 = arith.constant 0 : index
    %c0_111 = arith.constant 0 : index
    %170 = vector.load %arg2[%c0_110, %c0_111] : memref<8x256xf32, #tpu.memory_space<vmem>>, vector<8x256xf32>
    %171 = tpu.concatenate %169, %170 in 0 : vector<8x256xf32>, vector<8x256xf32> -> vector<16x256xf32>
    %c0_112 = arith.constant 0 : index
    %c0_113 = arith.constant 0 : index
    %c0_114 = arith.constant 0 : index
    %172 = vector.load %arg23[%c0_112, %c0_113, %c0_114] : memref<3x512x256xbf16, #tpu.memory_space<vmem>>, vector<1x512x256xbf16>
    %173 = vector.shape_cast %172 : vector<1x512x256xbf16> to vector<512x256xbf16>
    %c0_115 = arith.constant 0 : index
    %c0_116 = arith.constant 0 : index
    %174 = vector.load %arg13[%c0_115, %c0_116] : memref<16x512xf32, #tpu.memory_space<vmem>>, vector<1x256xf32>
    %175 = arith.truncf %168 : vector<16x512xf32> to vector<16x512xbf16>
    %cst_117 = arith.constant dense<0.000000e+00> : vector<16x256xf32>
    %176 = tpu.matmul %175, %173, %cst_117 {dimension_numbers = #tpu.dot_dimension_numbers<[1], [0], [0], [1], [0, 0, 1, 1], [], []>} : vector<16x512xbf16>, vector<512x256xbf16>, vector<16x256xf32> -> vector<16x256xf32>
    %177 = vector.broadcast %174 : vector<1x256xf32> to vector<16x256xf32>
    %178 = arith.addf %176, %177 : vector<16x256xf32>
    %cst_118 = arith.constant 2.000000e-01 : f32
    %179 = vector.broadcast %cst_118 : f32 to vector<16x256xf32>
    %180 = arith.mulf %179, %178 : vector<16x256xf32>
    %181 = arith.maximumf %178, %180 : vector<16x256xf32>
    %c0_119 = arith.constant 0 : index
    %c0_120 = arith.constant 0 : index
    %c0_121 = arith.constant 0 : index
    %182 = vector.load %arg21[%c0_119, %c0_120, %c0_121] : memref<4x256x256xbf16, #tpu.memory_space<vmem>>, vector<1x256x256xbf16>
    %183 = vector.shape_cast %182 : vector<1x256x256xbf16> to vector<256x256xbf16>
    %c1_122 = arith.constant 1 : index
    %c0_123 = arith.constant 0 : index
    %184 = vector.load %arg13[%c1_122, %c0_123] : memref<16x512xf32, #tpu.memory_space<vmem>>, vector<1x256xf32>
    %185 = arith.truncf %181 : vector<16x256xf32> to vector<16x256xbf16>
    %cst_124 = arith.constant dense<0.000000e+00> : vector<16x256xf32>
    %186 = tpu.matmul %185, %183, %cst_124 {dimension_numbers = #tpu.dot_dimension_numbers<[1], [0], [0], [1], [0, 0, 1, 1], [], []>} : vector<16x256xbf16>, vector<256x256xbf16>, vector<16x256xf32> -> vector<16x256xf32>
    %187 = vector.broadcast %184 : vector<1x256xf32> to vector<16x256xf32>
    %188 = arith.addf %186, %187 : vector<16x256xf32>
    %cst_125 = arith.constant 2.000000e-01 : f32
    %189 = vector.broadcast %cst_125 : f32 to vector<16x256xf32>
    %190 = arith.mulf %189, %188 : vector<16x256xf32>
    %191 = arith.maximumf %188, %190 : vector<16x256xf32>
    %c0_126 = arith.constant 0 : index
    %c0_127 = arith.constant 0 : index
    %192 = vector.load %arg15[%c0_126, %c0_127] : memref<8x512xf32, #tpu.memory_space<vmem>>, vector<8x128xf32>
    %c0_128 = arith.constant 0 : index
    %c0_129 = arith.constant 0 : index
    %193 = vector.load %arg14[%c0_128, %c0_129] : memref<8x512xf32, #tpu.memory_space<vmem>>, vector<8x128xf32>
    %194 = tpu.concatenate %192, %193 in 0 : vector<8x128xf32>, vector<8x128xf32> -> vector<16x128xf32>
    %c0_130 = arith.constant 0 : index
    %c0_131 = arith.constant 0 : index
    %c0_132 = arith.constant 0 : index
    %195 = vector.load %arg20[%c0_130, %c0_131, %c0_132] : memref<8x128x128xbf16, #tpu.memory_space<vmem>>, vector<1x128x128xbf16>
    %196 = vector.shape_cast %195 : vector<1x128x128xbf16> to vector<128x128xbf16>
    %c2_133 = arith.constant 2 : index
    %c0_134 = arith.constant 0 : index
    %197 = vector.load %arg13[%c2_133, %c0_134] : memref<16x512xf32, #tpu.memory_space<vmem>>, vector<1x128xf32>
    %198 = arith.truncf %194 : vector<16x128xf32> to vector<16x128xbf16>
    %cst_135 = arith.constant dense<0.000000e+00> : vector<16x128xf32>
    %199 = tpu.matmul %198, %196, %cst_135 {dimension_numbers = #tpu.dot_dimension_numbers<[1], [0], [0], [1], [0, 0, 1, 1], [], []>} : vector<16x128xbf16>, vector<128x128xbf16>, vector<16x128xf32> -> vector<16x128xf32>
    %200 = vector.broadcast %197 : vector<1x128xf32> to vector<16x128xf32>
    %201 = arith.addf %199, %200 : vector<16x128xf32>
    %cst_136 = arith.constant 2.000000e-01 : f32
    %202 = vector.broadcast %cst_136 : f32 to vector<16x128xf32>
    %203 = arith.mulf %202, %201 : vector<16x128xf32>
    %204 = arith.maximumf %201, %203 : vector<16x128xf32>
    %c1_137 = arith.constant 1 : index
    %c0_138 = arith.constant 0 : index
    %c0_139 = arith.constant 0 : index
    %205 = vector.load %arg20[%c1_137, %c0_138, %c0_139] : memref<8x128x128xbf16, #tpu.memory_space<vmem>>, vector<1x128x128xbf16>
    %206 = vector.shape_cast %205 : vector<1x128x128xbf16> to vector<128x128xbf16>
    %c3_140 = arith.constant 3 : index
    %c0_141 = arith.constant 0 : index
    %207 = vector.load %arg13[%c3_140, %c0_141] : memref<16x512xf32, #tpu.memory_space<vmem>>, vector<1x128xf32>
    %208 = arith.truncf %204 : vector<16x128xf32> to vector<16x128xbf16>
    %cst_142 = arith.constant dense<0.000000e+00> : vector<16x128xf32>
    %209 = tpu.matmul %208, %206, %cst_142 {dimension_numbers = #tpu.dot_dimension_numbers<[1], [0], [0], [1], [0, 0, 1, 1], [], []>} : vector<16x128xbf16>, vector<128x128xbf16>, vector<16x128xf32> -> vector<16x128xf32>
    %210 = vector.broadcast %207 : vector<1x128xf32> to vector<16x128xf32>
    %211 = arith.addf %209, %210 : vector<16x128xf32>
    %cst_143 = arith.constant 2.000000e-01 : f32
    %212 = vector.broadcast %cst_143 : f32 to vector<16x128xf32>
    %213 = arith.mulf %212, %211 : vector<16x128xf32>
    %214 = arith.maximumf %211, %213 : vector<16x128xf32>
    %c0_144 = arith.constant 0 : index
    %c128_145 = arith.constant 128 : index
    %215 = vector.load %arg15[%c0_144, %c128_145] : memref<8x512xf32, #tpu.memory_space<vmem>>, vector<8x128xf32>
    %216 = tpu.concatenate %215, %215 in 0 : vector<8x128xf32>, vector<8x128xf32> -> vector<16x128xf32>
    %c2_146 = arith.constant 2 : index
    %c0_147 = arith.constant 0 : index
    %c0_148 = arith.constant 0 : index
    %217 = vector.load %arg20[%c2_146, %c0_147, %c0_148] : memref<8x128x128xbf16, #tpu.memory_space<vmem>>, vector<1x128x128xbf16>
    %218 = vector.shape_cast %217 : vector<1x128x128xbf16> to vector<128x128xbf16>
    %c4_149 = arith.constant 4 : index
    %c0_150 = arith.constant 0 : index
    %219 = vector.load %arg13[%c4_149, %c0_150] : memref<16x512xf32, #tpu.memory_space<vmem>>, vector<1x128xf32>
    %220 = arith.truncf %216 : vector<16x128xf32> to vector<16x128xbf16>
    %cst_151 = arith.constant dense<0.000000e+00> : vector<16x128xf32>
    %221 = tpu.matmul %220, %218, %cst_151 {dimension_numbers = #tpu.dot_dimension_numbers<[1], [0], [0], [1], [0, 0, 1, 1], [], []>} : vector<16x128xbf16>, vector<128x128xbf16>, vector<16x128xf32> -> vector<16x128xf32>
    %222 = vector.broadcast %219 : vector<1x128xf32> to vector<16x128xf32>
    %223 = arith.addf %221, %222 : vector<16x128xf32>
    %cst_152 = arith.constant 2.000000e-01 : f32
    %224 = vector.broadcast %cst_152 : f32 to vector<16x128xf32>
    %225 = arith.mulf %224, %223 : vector<16x128xf32>
    %226 = arith.maximumf %223, %225 : vector<16x128xf32>
    %c3_153 = arith.constant 3 : index
    %c0_154 = arith.constant 0 : index
    %c0_155 = arith.constant 0 : index
    %227 = vector.load %arg20[%c3_153, %c0_154, %c0_155] : memref<8x128x128xbf16, #tpu.memory_space<vmem>>, vector<1x128x128xbf16>
    %228 = vector.shape_cast %227 : vector<1x128x128xbf16> to vector<128x128xbf16>
    %c5_156 = arith.constant 5 : index
    %c0_157 = arith.constant 0 : index
    %229 = vector.load %arg13[%c5_156, %c0_157] : memref<16x512xf32, #tpu.memory_space<vmem>>, vector<1x128xf32>
    %230 = arith.truncf %226 : vector<16x128xf32> to vector<16x128xbf16>
    %cst_158 = arith.constant dense<0.000000e+00> : vector<16x128xf32>
    %231 = tpu.matmul %230, %228, %cst_158 {dimension_numbers = #tpu.dot_dimension_numbers<[1], [0], [0], [1], [0, 0, 1, 1], [], []>} : vector<16x128xbf16>, vector<128x128xbf16>, vector<16x128xf32> -> vector<16x128xf32>
    %232 = vector.broadcast %229 : vector<1x128xf32> to vector<16x128xf32>
    %233 = arith.addf %231, %232 : vector<16x128xf32>
    %cst_159 = arith.constant 2.000000e-01 : f32
    %234 = vector.broadcast %cst_159 : f32 to vector<16x128xf32>
    %235 = arith.mulf %234, %233 : vector<16x128xf32>
    %236 = arith.maximumf %233, %235 : vector<16x128xf32>
    %c1_160 = arith.constant 1 : index
    %c0_161 = arith.constant 0 : index
    %c0_162 = arith.constant 0 : index
    %237 = vector.load %arg23[%c1_160, %c0_161, %c0_162] : memref<3x512x256xbf16, #tpu.memory_space<vmem>>, vector<1x512x256xbf16>
    %238 = vector.shape_cast %237 : vector<1x512x256xbf16> to vector<512x256xbf16>
    %c8_163 = arith.constant 8 : index
    %c0_164 = arith.constant 0 : index
    %239 = vector.load %arg13[%c8_163, %c0_164] : memref<16x512xf32, #tpu.memory_space<vmem>>, vector<1x256xf32>
    %240 = arith.truncf %191 : vector<16x256xf32> to vector<16x256xbf16>
    %241 = vector.extract_strided_slice %238 {offsets = [0, 0], sizes = [256, 256], strides = [1, 1]} : vector<512x256xbf16> to vector<256x256xbf16>
    %cst_165 = arith.constant dense<0.000000e+00> : vector<16x256xf32>
    %242 = tpu.matmul %240, %241, %cst_165 {dimension_numbers = #tpu.dot_dimension_numbers<[1], [0], [0], [1], [0, 0, 1, 1], [], []>} : vector<16x256xbf16>, vector<256x256xbf16>, vector<16x256xf32> -> vector<16x256xf32>
    %243 = vector.broadcast %239 : vector<1x256xf32> to vector<16x256xf32>
    %244 = arith.addf %243, %242 : vector<16x256xf32>
    %245 = arith.truncf %214 : vector<16x128xf32> to vector<16x128xbf16>
    %246 = vector.extract_strided_slice %238 {offsets = [256, 0], sizes = [128, 256], strides = [1, 1]} : vector<512x256xbf16> to vector<128x256xbf16>
    %cst_166 = arith.constant dense<0.000000e+00> : vector<16x256xf32>
    %247 = tpu.matmul %245, %246, %cst_166 {dimension_numbers = #tpu.dot_dimension_numbers<[1], [0], [0], [1], [0, 0, 1, 1], [], []>} : vector<16x128xbf16>, vector<128x256xbf16>, vector<16x256xf32> -> vector<16x256xf32>
    %248 = arith.addf %244, %247 : vector<16x256xf32>
    %249 = arith.truncf %236 : vector<16x128xf32> to vector<16x128xbf16>
    %250 = vector.extract_strided_slice %238 {offsets = [384, 0], sizes = [128, 256], strides = [1, 1]} : vector<512x256xbf16> to vector<128x256xbf16>
    %cst_167 = arith.constant dense<0.000000e+00> : vector<16x256xf32>
    %251 = tpu.matmul %249, %250, %cst_167 {dimension_numbers = #tpu.dot_dimension_numbers<[1], [0], [0], [1], [0, 0, 1, 1], [], []>} : vector<16x128xbf16>, vector<128x256xbf16>, vector<16x256xf32> -> vector<16x256xf32>
    %252 = arith.addf %248, %251 : vector<16x256xf32>
    %cst_168 = arith.constant 2.000000e-01 : f32
    %253 = vector.broadcast %cst_168 : f32 to vector<16x256xf32>
    %254 = arith.mulf %253, %252 : vector<16x256xf32>
    %255 = arith.maximumf %252, %254 : vector<16x256xf32>
    %c0_169 = arith.constant 0 : index
    %c0_170 = arith.constant 0 : index
    %c0_171 = arith.constant 0 : index
    %256 = vector.load %arg22[%c0_169, %c0_170, %c0_171] : memref<1x256x512xbf16, #tpu.memory_space<vmem>>, vector<1x256x512xbf16>
    %257 = vector.shape_cast %256 : vector<1x256x512xbf16> to vector<256x512xbf16>
    %c9_172 = arith.constant 9 : index
    %c0_173 = arith.constant 0 : index
    %258 = vector.load %arg13[%c9_172, %c0_173] : memref<16x512xf32, #tpu.memory_space<vmem>>, vector<1x512xf32>
    %259 = arith.truncf %255 : vector<16x256xf32> to vector<16x256xbf16>
    %cst_174 = arith.constant dense<0.000000e+00> : vector<16x512xf32>
    %260 = tpu.matmul %259, %257, %cst_174 {dimension_numbers = #tpu.dot_dimension_numbers<[1], [0], [0], [1], [0, 0, 1, 1], [], []>} : vector<16x256xbf16>, vector<256x512xbf16>, vector<16x512xf32> -> vector<16x512xf32>
    %261 = vector.broadcast %258 : vector<1x512xf32> to vector<16x512xf32>
    %262 = arith.addf %260, %261 : vector<16x512xf32>
    %c1_175 = arith.constant 1 : index
    %c0_176 = arith.constant 0 : index
    %c0_177 = arith.constant 0 : index
    %263 = vector.load %arg21[%c1_175, %c0_176, %c0_177] : memref<4x256x256xbf16, #tpu.memory_space<vmem>>, vector<1x256x256xbf16>
    %264 = vector.shape_cast %263 : vector<1x256x256xbf16> to vector<256x256xbf16>
    %c6_178 = arith.constant 6 : index
    %c0_179 = arith.constant 0 : index
    %265 = vector.load %arg13[%c6_178, %c0_179] : memref<16x512xf32, #tpu.memory_space<vmem>>, vector<1x256xf32>
    %266 = arith.truncf %171 : vector<16x256xf32> to vector<16x256xbf16>
    %cst_180 = arith.constant dense<0.000000e+00> : vector<16x256xf32>
    %267 = tpu.matmul %266, %264, %cst_180 {dimension_numbers = #tpu.dot_dimension_numbers<[1], [0], [0], [1], [0, 0, 1, 1], [], []>} : vector<16x256xbf16>, vector<256x256xbf16>, vector<16x256xf32> -> vector<16x256xf32>
    %268 = vector.broadcast %265 : vector<1x256xf32> to vector<16x256xf32>
    %269 = arith.addf %267, %268 : vector<16x256xf32>
    %cst_181 = arith.constant 2.000000e-01 : f32
    %270 = vector.broadcast %cst_181 : f32 to vector<16x256xf32>
    %271 = arith.mulf %270, %269 : vector<16x256xf32>
    %272 = arith.maximumf %269, %271 : vector<16x256xf32>
    %c2_182 = arith.constant 2 : index
    %c0_183 = arith.constant 0 : index
    %c0_184 = arith.constant 0 : index
    %273 = vector.load %arg21[%c2_182, %c0_183, %c0_184] : memref<4x256x256xbf16, #tpu.memory_space<vmem>>, vector<1x256x256xbf16>
    %274 = vector.shape_cast %273 : vector<1x256x256xbf16> to vector<256x256xbf16>
    %c7_185 = arith.constant 7 : index
    %c0_186 = arith.constant 0 : index
    %275 = vector.load %arg13[%c7_185, %c0_186] : memref<16x512xf32, #tpu.memory_space<vmem>>, vector<1x256xf32>
    %276 = arith.truncf %272 : vector<16x256xf32> to vector<16x256xbf16>
    %cst_187 = arith.constant dense<0.000000e+00> : vector<16x256xf32>
    %277 = tpu.matmul %276, %274, %cst_187 {dimension_numbers = #tpu.dot_dimension_numbers<[1], [0], [0], [1], [0, 0, 1, 1], [], []>} : vector<16x256xbf16>, vector<256x256xbf16>, vector<16x256xf32> -> vector<16x256xf32>
    %278 = vector.broadcast %275 : vector<1x256xf32> to vector<16x256xf32>
    %279 = arith.addf %277, %278 : vector<16x256xf32>
    %cst_188 = arith.constant 2.000000e-01 : f32
    %280 = vector.broadcast %cst_188 : f32 to vector<16x256xf32>
    %281 = arith.mulf %280, %279 : vector<16x256xf32>
    %282 = arith.maximumf %279, %281 : vector<16x256xf32>
    %c0_189 = arith.constant 0 : index
    %c256_190 = arith.constant 256 : index
    %283 = vector.load %arg15[%c0_189, %c256_190] : memref<8x512xf32, #tpu.memory_space<vmem>>, vector<8x128xf32>
    %284 = tpu.concatenate %283, %283 in 0 : vector<8x128xf32>, vector<8x128xf32> -> vector<16x128xf32>
    %c4_191 = arith.constant 4 : index
    %c0_192 = arith.constant 0 : index
    %c0_193 = arith.constant 0 : index
    %285 = vector.load %arg20[%c4_191, %c0_192, %c0_193] : memref<8x128x128xbf16, #tpu.memory_space<vmem>>, vector<1x128x128xbf16>
    %286 = vector.shape_cast %285 : vector<1x128x128xbf16> to vector<128x128xbf16>
    %c10_194 = arith.constant 10 : index
    %c0_195 = arith.constant 0 : index
    %287 = vector.load %arg13[%c10_194, %c0_195] : memref<16x512xf32, #tpu.memory_space<vmem>>, vector<1x128xf32>
    %288 = arith.truncf %284 : vector<16x128xf32> to vector<16x128xbf16>
    %cst_196 = arith.constant dense<0.000000e+00> : vector<16x128xf32>
    %289 = tpu.matmul %288, %286, %cst_196 {dimension_numbers = #tpu.dot_dimension_numbers<[1], [0], [0], [1], [0, 0, 1, 1], [], []>} : vector<16x128xbf16>, vector<128x128xbf16>, vector<16x128xf32> -> vector<16x128xf32>
    %290 = vector.broadcast %287 : vector<1x128xf32> to vector<16x128xf32>
    %291 = arith.addf %289, %290 : vector<16x128xf32>
    %cst_197 = arith.constant 2.000000e-01 : f32
    %292 = vector.broadcast %cst_197 : f32 to vector<16x128xf32>
    %293 = arith.mulf %292, %291 : vector<16x128xf32>
    %294 = arith.maximumf %291, %293 : vector<16x128xf32>
    %c5_198 = arith.constant 5 : index
    %c0_199 = arith.constant 0 : index
    %c0_200 = arith.constant 0 : index
    %295 = vector.load %arg20[%c5_198, %c0_199, %c0_200] : memref<8x128x128xbf16, #tpu.memory_space<vmem>>, vector<1x128x128xbf16>
    %296 = vector.shape_cast %295 : vector<1x128x128xbf16> to vector<128x128xbf16>
    %c11_201 = arith.constant 11 : index
    %c0_202 = arith.constant 0 : index
    %297 = vector.load %arg13[%c11_201, %c0_202] : memref<16x512xf32, #tpu.memory_space<vmem>>, vector<1x128xf32>
    %298 = arith.truncf %294 : vector<16x128xf32> to vector<16x128xbf16>
    %cst_203 = arith.constant dense<0.000000e+00> : vector<16x128xf32>
    %299 = tpu.matmul %298, %296, %cst_203 {dimension_numbers = #tpu.dot_dimension_numbers<[1], [0], [0], [1], [0, 0, 1, 1], [], []>} : vector<16x128xbf16>, vector<128x128xbf16>, vector<16x128xf32> -> vector<16x128xf32>
    %300 = vector.broadcast %297 : vector<1x128xf32> to vector<16x128xf32>
    %301 = arith.addf %299, %300 : vector<16x128xf32>
    %cst_204 = arith.constant 2.000000e-01 : f32
    %302 = vector.broadcast %cst_204 : f32 to vector<16x128xf32>
    %303 = arith.mulf %302, %301 : vector<16x128xf32>
    %304 = arith.maximumf %301, %303 : vector<16x128xf32>
    %c0_205 = arith.constant 0 : index
    %c384_206 = arith.constant 384 : index
    %305 = vector.load %arg15[%c0_205, %c384_206] : memref<8x512xf32, #tpu.memory_space<vmem>>, vector<8x128xf32>
    %306 = tpu.concatenate %305, %305 in 0 : vector<8x128xf32>, vector<8x128xf32> -> vector<16x128xf32>
    %c6_207 = arith.constant 6 : index
    %c0_208 = arith.constant 0 : index
    %c0_209 = arith.constant 0 : index
    %307 = vector.load %arg20[%c6_207, %c0_208, %c0_209] : memref<8x128x128xbf16, #tpu.memory_space<vmem>>, vector<1x128x128xbf16>
    %308 = vector.shape_cast %307 : vector<1x128x128xbf16> to vector<128x128xbf16>
    %c12_210 = arith.constant 12 : index
    %c0_211 = arith.constant 0 : index
    %309 = vector.load %arg13[%c12_210, %c0_211] : memref<16x512xf32, #tpu.memory_space<vmem>>, vector<1x128xf32>
    %310 = arith.truncf %306 : vector<16x128xf32> to vector<16x128xbf16>
    %cst_212 = arith.constant dense<0.000000e+00> : vector<16x128xf32>
    %311 = tpu.matmul %310, %308, %cst_212 {dimension_numbers = #tpu.dot_dimension_numbers<[1], [0], [0], [1], [0, 0, 1, 1], [], []>} : vector<16x128xbf16>, vector<128x128xbf16>, vector<16x128xf32> -> vector<16x128xf32>
    %312 = vector.broadcast %309 : vector<1x128xf32> to vector<16x128xf32>
    %313 = arith.addf %311, %312 : vector<16x128xf32>
    %cst_213 = arith.constant 2.000000e-01 : f32
    %314 = vector.broadcast %cst_213 : f32 to vector<16x128xf32>
    %315 = arith.mulf %314, %313 : vector<16x128xf32>
    %316 = arith.maximumf %313, %315 : vector<16x128xf32>
    %c7_214 = arith.constant 7 : index
    %c0_215 = arith.constant 0 : index
    %c0_216 = arith.constant 0 : index
    %317 = vector.load %arg20[%c7_214, %c0_215, %c0_216] : memref<8x128x128xbf16, #tpu.memory_space<vmem>>, vector<1x128x128xbf16>
    %318 = vector.shape_cast %317 : vector<1x128x128xbf16> to vector<128x128xbf16>
    %c13_217 = arith.constant 13 : index
    %c0_218 = arith.constant 0 : index
    %319 = vector.load %arg13[%c13_217, %c0_218] : memref<16x512xf32, #tpu.memory_space<vmem>>, vector<1x128xf32>
    %320 = arith.truncf %316 : vector<16x128xf32> to vector<16x128xbf16>
    %cst_219 = arith.constant dense<0.000000e+00> : vector<16x128xf32>
    %321 = tpu.matmul %320, %318, %cst_219 {dimension_numbers = #tpu.dot_dimension_numbers<[1], [0], [0], [1], [0, 0, 1, 1], [], []>} : vector<16x128xbf16>, vector<128x128xbf16>, vector<16x128xf32> -> vector<16x128xf32>
    %322 = vector.broadcast %319 : vector<1x128xf32> to vector<16x128xf32>
    %323 = arith.addf %321, %322 : vector<16x128xf32>
    %cst_220 = arith.constant 2.000000e-01 : f32
    %324 = vector.broadcast %cst_220 : f32 to vector<16x128xf32>
    %325 = arith.mulf %324, %323 : vector<16x128xf32>
    %326 = arith.maximumf %323, %325 : vector<16x128xf32>
    %c2_221 = arith.constant 2 : index
    %c0_222 = arith.constant 0 : index
    %c0_223 = arith.constant 0 : index
    %327 = vector.load %arg23[%c2_221, %c0_222, %c0_223] : memref<3x512x256xbf16, #tpu.memory_space<vmem>>, vector<1x512x256xbf16>
    %328 = vector.shape_cast %327 : vector<1x512x256xbf16> to vector<512x256xbf16>
    %c14 = arith.constant 14 : index
    %c0_224 = arith.constant 0 : index
    %329 = vector.load %arg13[%c14, %c0_224] : memref<16x512xf32, #tpu.memory_space<vmem>>, vector<1x256xf32>
    %330 = arith.truncf %282 : vector<16x256xf32> to vector<16x256xbf16>
    %331 = vector.extract_strided_slice %328 {offsets = [0, 0], sizes = [256, 256], strides = [1, 1]} : vector<512x256xbf16> to vector<256x256xbf16>
    %cst_225 = arith.constant dense<0.000000e+00> : vector<16x256xf32>
    %332 = tpu.matmul %330, %331, %cst_225 {dimension_numbers = #tpu.dot_dimension_numbers<[1], [0], [0], [1], [0, 0, 1, 1], [], []>} : vector<16x256xbf16>, vector<256x256xbf16>, vector<16x256xf32> -> vector<16x256xf32>
    %333 = vector.broadcast %329 : vector<1x256xf32> to vector<16x256xf32>
    %334 = arith.addf %333, %332 : vector<16x256xf32>
    %335 = arith.truncf %304 : vector<16x128xf32> to vector<16x128xbf16>
    %336 = vector.extract_strided_slice %328 {offsets = [256, 0], sizes = [128, 256], strides = [1, 1]} : vector<512x256xbf16> to vector<128x256xbf16>
    %cst_226 = arith.constant dense<0.000000e+00> : vector<16x256xf32>
    %337 = tpu.matmul %335, %336, %cst_226 {dimension_numbers = #tpu.dot_dimension_numbers<[1], [0], [0], [1], [0, 0, 1, 1], [], []>} : vector<16x128xbf16>, vector<128x256xbf16>, vector<16x256xf32> -> vector<16x256xf32>
    %338 = arith.addf %334, %337 : vector<16x256xf32>
    %339 = arith.truncf %326 : vector<16x128xf32> to vector<16x128xbf16>
    %340 = vector.extract_strided_slice %328 {offsets = [384, 0], sizes = [128, 256], strides = [1, 1]} : vector<512x256xbf16> to vector<128x256xbf16>
    %cst_227 = arith.constant dense<0.000000e+00> : vector<16x256xf32>
    %341 = tpu.matmul %339, %340, %cst_227 {dimension_numbers = #tpu.dot_dimension_numbers<[1], [0], [0], [1], [0, 0, 1, 1], [], []>} : vector<16x128xbf16>, vector<128x256xbf16>, vector<16x256xf32> -> vector<16x256xf32>
    %342 = arith.addf %338, %341 : vector<16x256xf32>
    %cst_228 = arith.constant 2.000000e-01 : f32
    %343 = vector.broadcast %cst_228 : f32 to vector<16x256xf32>
    %344 = arith.mulf %343, %342 : vector<16x256xf32>
    %345 = arith.maximumf %342, %344 : vector<16x256xf32>
    %c3_229 = arith.constant 3 : index
    %c0_230 = arith.constant 0 : index
    %c0_231 = arith.constant 0 : index
    %346 = vector.load %arg21[%c3_229, %c0_230, %c0_231] : memref<4x256x256xbf16, #tpu.memory_space<vmem>>, vector<1x256x256xbf16>
    %347 = vector.shape_cast %346 : vector<1x256x256xbf16> to vector<256x256xbf16>
    %c15 = arith.constant 15 : index
    %c0_232 = arith.constant 0 : index
    %348 = vector.load %arg13[%c15, %c0_232] : memref<16x512xf32, #tpu.memory_space<vmem>>, vector<1x256xf32>
    %349 = arith.truncf %345 : vector<16x256xf32> to vector<16x256xbf16>
    %cst_233 = arith.constant dense<0.000000e+00> : vector<16x256xf32>
    %350 = tpu.matmul %349, %347, %cst_233 {dimension_numbers = #tpu.dot_dimension_numbers<[1], [0], [0], [1], [0, 0, 1, 1], [], []>} : vector<16x256xbf16>, vector<256x256xbf16>, vector<16x256xf32> -> vector<16x256xf32>
    %351 = vector.broadcast %348 : vector<1x256xf32> to vector<16x256xf32>
    %352 = arith.addf %350, %351 : vector<16x256xf32>
    %353 = arith.addf %352, %171 : vector<16x256xf32>
    %354 = arith.addf %262, %168 : vector<16x512xf32>
    %355 = vector.extract_strided_slice %353 {offsets = [0, 0], sizes = [8, 256], strides = [1, 1]} : vector<16x256xf32> to vector<8x256xf32>
    %c0_234 = arith.constant 0 : index
    %c0_235 = arith.constant 0 : index
    %356 = vector.load %arg18[%c0_234, %c0_235] : memref<8x256xf32, #tpu.memory_space<vmem>>, vector<8x256xf32>
    tpu.vector_store %arg18[%c0_234, %c0_235], %355 {strides = array<i32>} : memref<8x256xf32, #tpu.memory_space<vmem>>, vector<8x256xf32>,
    %357 = vector.extract_strided_slice %354 {offsets = [0, 0], sizes = [8, 512], strides = [1, 1]} : vector<16x512xf32> to vector<8x512xf32>
    %c0_236 = arith.constant 0 : index
    %c0_237 = arith.constant 0 : index
    %358 = vector.load %arg19[%c0_236, %c0_237] : memref<8x512xf32, #tpu.memory_space<vmem>>, vector<8x512xf32>
    tpu.vector_store %arg19[%c0_236, %c0_237], %357 {strides = array<i32>} : memref<8x512xf32, #tpu.memory_space<vmem>>, vector<8x512xf32>,
    %c0_238 = arith.constant 0 : index
    %c0_239 = arith.constant 0 : index
    %c0_240 = arith.constant 0 : index
    %359 = vector.load %arg5[%c0_238, %c0_239, %c0_240] : memref<8x256x256xbf16, #tpu.memory_space<vmem>>, vector<1x256x256xbf16>
    %360 = vector.shape_cast %359 : vector<1x256x256xbf16> to vector<256x256xbf16>
    %c0_241 = arith.constant 0 : index
    %c0_242 = arith.constant 0 : index
    %361 = vector.load %arg8[%c0_241, %c0_242] : memref<14x512xf32, #tpu.memory_space<vmem>>, vector<1x256xf32>
    %362 = arith.truncf %353 : vector<16x256xf32> to vector<16x256xbf16>
    %cst_243 = arith.constant dense<0.000000e+00> : vector<16x256xf32>
    %363 = tpu.matmul %362, %360, %cst_243 {dimension_numbers = #tpu.dot_dimension_numbers<[1], [0], [0], [1], [0, 0, 1, 1], [], []>} : vector<16x256xbf16>, vector<256x256xbf16>, vector<16x256xf32> -> vector<16x256xf32>
    %364 = vector.broadcast %361 : vector<1x256xf32> to vector<16x256xf32>
    %365 = arith.addf %363, %364 : vector<16x256xf32>
    %cst_244 = arith.constant 2.000000e-01 : f32
    %366 = vector.broadcast %cst_244 : f32 to vector<16x256xf32>
    %367 = arith.mulf %366, %365 : vector<16x256xf32>
    %368 = arith.maximumf %365, %367 : vector<16x256xf32>
    %c1_245 = arith.constant 1 : index
    %c0_246 = arith.constant 0 : index
    %c0_247 = arith.constant 0 : index
    %369 = vector.load %arg5[%c1_245, %c0_246, %c0_247] : memref<8x256x256xbf16, #tpu.memory_space<vmem>>, vector<1x256x256xbf16>
    %370 = vector.shape_cast %369 : vector<1x256x256xbf16> to vector<256x256xbf16>
    %c1_248 = arith.constant 1 : index
    %c0_249 = arith.constant 0 : index
    %371 = vector.load %arg8[%c1_248, %c0_249] : memref<14x512xf32, #tpu.memory_space<vmem>>, vector<1x256xf32>
    %372 = arith.truncf %368 : vector<16x256xf32> to vector<16x256xbf16>
    %cst_250 = arith.constant dense<0.000000e+00> : vector<16x256xf32>
    %373 = tpu.matmul %372, %370, %cst_250 {dimension_numbers = #tpu.dot_dimension_numbers<[1], [0], [0], [1], [0, 0, 1, 1], [], []>} : vector<16x256xbf16>, vector<256x256xbf16>, vector<16x256xf32> -> vector<16x256xf32>
    %374 = vector.broadcast %371 : vector<1x256xf32> to vector<16x256xf32>
    %375 = arith.addf %373, %374 : vector<16x256xf32>
    %cst_251 = arith.constant 2.000000e-01 : f32
    %376 = vector.broadcast %cst_251 : f32 to vector<16x256xf32>
    %377 = arith.mulf %376, %375 : vector<16x256xf32>
    %378 = arith.maximumf %375, %377 : vector<16x256xf32>
    %c2_252 = arith.constant 2 : index
    %c0_253 = arith.constant 0 : index
    %c0_254 = arith.constant 0 : index
    %379 = vector.load %arg5[%c2_252, %c0_253, %c0_254] : memref<8x256x256xbf16, #tpu.memory_space<vmem>>, vector<1x256x256xbf16>
    %380 = vector.shape_cast %379 : vector<1x256x256xbf16> to vector<256x256xbf16>
    %c2_255 = arith.constant 2 : index
    %c0_256 = arith.constant 0 : index
    %381 = vector.load %arg8[%c2_255, %c0_256] : memref<14x512xf32, #tpu.memory_space<vmem>>, vector<1x256xf32>
    %382 = arith.truncf %378 : vector<16x256xf32> to vector<16x256xbf16>
    %cst_257 = arith.constant dense<0.000000e+00> : vector<16x256xf32>
    %383 = tpu.matmul %382, %380, %cst_257 {dimension_numbers = #tpu.dot_dimension_numbers<[1], [0], [0], [1], [0, 0, 1, 1], [], []>} : vector<16x256xbf16>, vector<256x256xbf16>, vector<16x256xf32> -> vector<16x256xf32>
    %384 = vector.broadcast %381 : vector<1x256xf32> to vector<16x256xf32>
    %385 = arith.addf %383, %384 : vector<16x256xf32>
    %cst_258 = arith.constant 2.000000e-01 : f32
    %386 = vector.broadcast %cst_258 : f32 to vector<16x256xf32>
    %387 = arith.mulf %386, %385 : vector<16x256xf32>
    %388 = arith.maximumf %385, %387 : vector<16x256xf32>
    %c0_259 = arith.constant 0 : index
    %c0_260 = arith.constant 0 : index
    %c0_261 = arith.constant 0 : index
    %389 = vector.load %arg7[%c0_259, %c0_260, %c0_261] : memref<1x512x512xbf16, #tpu.memory_space<vmem>>, vector<1x512x512xbf16>
    %390 = vector.shape_cast %389 : vector<1x512x512xbf16> to vector<512x512xbf16>
    %c7_262 = arith.constant 7 : index
    %c0_263 = arith.constant 0 : index
    %391 = vector.load %arg8[%c7_262, %c0_263] : memref<14x512xf32, #tpu.memory_space<vmem>>, vector<1x512xf32>
    %392 = arith.truncf %354 : vector<16x512xf32> to vector<16x512xbf16>
    %cst_264 = arith.constant dense<0.000000e+00> : vector<16x512xf32>
    %393 = tpu.matmul %392, %390, %cst_264 {dimension_numbers = #tpu.dot_dimension_numbers<[1], [0], [0], [1], [0, 0, 1, 1], [], []>} : vector<16x512xbf16>, vector<512x512xbf16>, vector<16x512xf32> -> vector<16x512xf32>
    %394 = vector.broadcast %391 : vector<1x512xf32> to vector<16x512xf32>
    %395 = arith.addf %393, %394 : vector<16x512xf32>
    %cst_265 = arith.constant 2.000000e-01 : f32
    %396 = vector.broadcast %cst_265 : f32 to vector<16x512xf32>
    %397 = arith.mulf %396, %395 : vector<16x512xf32>
    %398 = arith.maximumf %395, %397 : vector<16x512xf32>
    %c0_266 = arith.constant 0 : index
    %c0_267 = arith.constant 0 : index
    %c0_268 = arith.constant 0 : index
    %399 = vector.load %arg6[%c0_266, %c0_267, %c0_268] : memref<1x512x256xbf16, #tpu.memory_space<vmem>>, vector<1x512x256xbf16>
    %400 = vector.shape_cast %399 : vector<1x512x256xbf16> to vector<512x256xbf16>
    %c8_269 = arith.constant 8 : index
    %c0_270 = arith.constant 0 : index
    %401 = vector.load %arg8[%c8_269, %c0_270] : memref<14x512xf32, #tpu.memory_space<vmem>>, vector<1x256xf32>
    %402 = arith.truncf %398 : vector<16x512xf32> to vector<16x512xbf16>
    %cst_271 = arith.constant dense<0.000000e+00> : vector<16x256xf32>
    %403 = tpu.matmul %402, %400, %cst_271 {dimension_numbers = #tpu.dot_dimension_numbers<[1], [0], [0], [1], [0, 0, 1, 1], [], []>} : vector<16x512xbf16>, vector<512x256xbf16>, vector<16x256xf32> -> vector<16x256xf32>
    %404 = vector.broadcast %401 : vector<1x256xf32> to vector<16x256xf32>
    %405 = arith.addf %403, %404 : vector<16x256xf32>
    %cst_272 = arith.constant 2.000000e-01 : f32
    %406 = vector.broadcast %cst_272 : f32 to vector<16x256xf32>
    %407 = arith.mulf %406, %405 : vector<16x256xf32>
    %408 = arith.maximumf %405, %407 : vector<16x256xf32>
    %c5_273 = arith.constant 5 : index
    %c0_274 = arith.constant 0 : index
    %c0_275 = arith.constant 0 : index
    %409 = vector.load %arg5[%c5_273, %c0_274, %c0_275] : memref<8x256x256xbf16, #tpu.memory_space<vmem>>, vector<1x256x256xbf16>
    %410 = vector.shape_cast %409 : vector<1x256x256xbf16> to vector<256x256xbf16>
    %c9_276 = arith.constant 9 : index
    %c0_277 = arith.constant 0 : index
    %411 = vector.load %arg8[%c9_276, %c0_277] : memref<14x512xf32, #tpu.memory_space<vmem>>, vector<1x256xf32>
    %412 = arith.truncf %408 : vector<16x256xf32> to vector<16x256xbf16>
    %cst_278 = arith.constant dense<0.000000e+00> : vector<16x256xf32>
    %413 = tpu.matmul %412, %410, %cst_278 {dimension_numbers = #tpu.dot_dimension_numbers<[1], [0], [0], [1], [0, 0, 1, 1], [], []>} : vector<16x256xbf16>, vector<256x256xbf16>, vector<16x256xf32> -> vector<16x256xf32>
    %414 = vector.broadcast %411 : vector<1x256xf32> to vector<16x256xf32>
    %415 = arith.addf %413, %414 : vector<16x256xf32>
    %cst_279 = arith.constant 2.000000e-01 : f32
    %416 = vector.broadcast %cst_279 : f32 to vector<16x256xf32>
    %417 = arith.mulf %416, %415 : vector<16x256xf32>
    %418 = arith.maximumf %415, %417 : vector<16x256xf32>
    %c3_280 = arith.constant 3 : index
    %c0_281 = arith.constant 0 : index
    %c0_282 = arith.constant 0 : index
    %419 = vector.load %arg5[%c3_280, %c0_281, %c0_282] : memref<8x256x256xbf16, #tpu.memory_space<vmem>>, vector<1x256x256xbf16>
    %420 = vector.shape_cast %419 : vector<1x256x256xbf16> to vector<256x256xbf16>
    %c3_283 = arith.constant 3 : index
    %c0_284 = arith.constant 0 : index
    %421 = vector.load %arg8[%c3_283, %c0_284] : memref<14x512xf32, #tpu.memory_space<vmem>>, vector<1x256xf32>
    %422 = arith.truncf %388 : vector<16x256xf32> to vector<16x256xbf16>
    %cst_285 = arith.constant dense<0.000000e+00> : vector<16x256xf32>
    %423 = tpu.matmul %422, %420, %cst_285 {dimension_numbers = #tpu.dot_dimension_numbers<[1], [0], [0], [1], [0, 0, 1, 1], [], []>} : vector<16x256xbf16>, vector<256x256xbf16>, vector<16x256xf32> -> vector<16x256xf32>
    %424 = vector.broadcast %421 : vector<1x256xf32> to vector<16x256xf32>
    %425 = arith.addf %423, %424 : vector<16x256xf32>
    %cst_286 = arith.constant 2.000000e-01 : f32
    %426 = vector.broadcast %cst_286 : f32 to vector<16x256xf32>
    %427 = arith.mulf %426, %425 : vector<16x256xf32>
    %428 = arith.maximumf %425, %427 : vector<16x256xf32>
    %c0_287 = arith.constant 0 : index
    %c0_288 = arith.constant 0 : index
    %c0_289 = arith.constant 0 : index
    %429 = vector.load %arg4[%c0_287, %c0_288, %c0_289] : memref<4x256x128xbf16, #tpu.memory_space<vmem>>, vector<1x256x128xbf16>
    %430 = vector.shape_cast %429 : vector<1x256x128xbf16> to vector<256x128xbf16>
    %c4_290 = arith.constant 4 : index
    %c0_291 = arith.constant 0 : index
    %431 = vector.load %arg8[%c4_290, %c0_291] : memref<14x512xf32, #tpu.memory_space<vmem>>, vector<1x128xf32>
    %432 = arith.truncf %428 : vector<16x256xf32> to vector<16x256xbf16>
    %cst_292 = arith.constant dense<0.000000e+00> : vector<16x128xf32>
    %433 = tpu.matmul %432, %430, %cst_292 {dimension_numbers = #tpu.dot_dimension_numbers<[1], [0], [0], [1], [0, 0, 1, 1], [], []>} : vector<16x256xbf16>, vector<256x128xbf16>, vector<16x128xf32> -> vector<16x128xf32>
    %434 = vector.broadcast %431 : vector<1x128xf32> to vector<16x128xf32>
    %435 = arith.addf %433, %434 : vector<16x128xf32>
    %436 = vector.extract_strided_slice %435 {offsets = [0, 0], sizes = [8, 128], strides = [1, 1]} : vector<16x128xf32> to vector<8x128xf32>
    %c0_293 = arith.constant 0 : index
    %c0_294 = arith.constant 0 : index
    %437 = vector.load %arg16[%c0_293, %c0_294] : memref<8x512xf32, #tpu.memory_space<vmem>>, vector<8x128xf32>
    tpu.vector_store %arg16[%c0_293, %c0_294], %436 {strides = array<i32>} : memref<8x512xf32, #tpu.memory_space<vmem>>, vector<8x128xf32>,
    %438 = vector.extract_strided_slice %435 {offsets = [8, 0], sizes = [8, 128], strides = [1, 1]} : vector<16x128xf32> to vector<8x128xf32>
    %c0_295 = arith.constant 0 : index
    %c0_296 = arith.constant 0 : index
    %439 = vector.load %arg17[%c0_295, %c0_296] : memref<8x512xf32, #tpu.memory_space<vmem>>, vector<8x128xf32>
    tpu.vector_store %arg17[%c0_295, %c0_296], %438 {strides = array<i32>} : memref<8x512xf32, #tpu.memory_space<vmem>>, vector<8x128xf32>,
    %c4_297 = arith.constant 4 : index
    %c0_298 = arith.constant 0 : index
    %c0_299 = arith.constant 0 : index
    %440 = vector.load %arg5[%c4_297, %c0_298, %c0_299] : memref<8x256x256xbf16, #tpu.memory_space<vmem>>, vector<1x256x256xbf16>
    %441 = vector.shape_cast %440 : vector<1x256x256xbf16> to vector<256x256xbf16>
    %c5_300 = arith.constant 5 : index
    %c0_301 = arith.constant 0 : index
    %442 = vector.load %arg8[%c5_300, %c0_301] : memref<14x512xf32, #tpu.memory_space<vmem>>, vector<1x256xf32>
    %443 = arith.truncf %388 : vector<16x256xf32> to vector<16x256xbf16>
    %cst_302 = arith.constant dense<0.000000e+00> : vector<16x256xf32>
    %444 = tpu.matmul %443, %441, %cst_302 {dimension_numbers = #tpu.dot_dimension_numbers<[1], [0], [0], [1], [0, 0, 1, 1], [], []>} : vector<16x256xbf16>, vector<256x256xbf16>, vector<16x256xf32> -> vector<16x256xf32>
    %445 = vector.broadcast %442 : vector<1x256xf32> to vector<16x256xf32>
    %446 = arith.addf %444, %445 : vector<16x256xf32>
    %cst_303 = arith.constant 2.000000e-01 : f32
    %447 = vector.broadcast %cst_303 : f32 to vector<16x256xf32>
    %448 = arith.mulf %447, %446 : vector<16x256xf32>
    %449 = arith.maximumf %446, %448 : vector<16x256xf32>
    %c1_304 = arith.constant 1 : index
    %c0_305 = arith.constant 0 : index
    %c0_306 = arith.constant 0 : index
    %450 = vector.load %arg4[%c1_304, %c0_305, %c0_306] : memref<4x256x128xbf16, #tpu.memory_space<vmem>>, vector<1x256x128xbf16>
    %451 = vector.shape_cast %450 : vector<1x256x128xbf16> to vector<256x128xbf16>
    %c6_307 = arith.constant 6 : index
    %c0_308 = arith.constant 0 : index
    %452 = vector.load %arg8[%c6_307, %c0_308] : memref<14x512xf32, #tpu.memory_space<vmem>>, vector<1x128xf32>
    %453 = arith.truncf %449 : vector<16x256xf32> to vector<16x256xbf16>
    %cst_309 = arith.constant dense<0.000000e+00> : vector<16x128xf32>
    %454 = tpu.matmul %453, %451, %cst_309 {dimension_numbers = #tpu.dot_dimension_numbers<[1], [0], [0], [1], [0, 0, 1, 1], [], []>} : vector<16x256xbf16>, vector<256x128xbf16>, vector<16x128xf32> -> vector<16x128xf32>
    %455 = vector.broadcast %452 : vector<1x128xf32> to vector<16x128xf32>
    %456 = arith.addf %454, %455 : vector<16x128xf32>
    %457 = vector.extract_strided_slice %456 {offsets = [0, 0], sizes = [8, 128], strides = [1, 1]} : vector<16x128xf32> to vector<8x128xf32>
    %c0_310 = arith.constant 0 : index
    %c128_311 = arith.constant 128 : index
    %458 = vector.load %arg16[%c0_310, %c128_311] : memref<8x512xf32, #tpu.memory_space<vmem>>, vector<8x128xf32>
    tpu.vector_store %arg16[%c0_310, %c128_311], %457 {strides = array<i32>} : memref<8x512xf32, #tpu.memory_space<vmem>>, vector<8x128xf32>,
    %459 = vector.extract_strided_slice %456 {offsets = [8, 0], sizes = [8, 128], strides = [1, 1]} : vector<16x128xf32> to vector<8x128xf32>
    %c0_312 = arith.constant 0 : index
    %c128_313 = arith.constant 128 : index
    %460 = vector.load %arg17[%c0_312, %c128_313] : memref<8x512xf32, #tpu.memory_space<vmem>>, vector<8x128xf32>
    tpu.vector_store %arg17[%c0_312, %c128_313], %459 {strides = array<i32>} : memref<8x512xf32, #tpu.memory_space<vmem>>, vector<8x128xf32>,
    %c6_314 = arith.constant 6 : index
    %c0_315 = arith.constant 0 : index
    %c0_316 = arith.constant 0 : index
    %461 = vector.load %arg5[%c6_314, %c0_315, %c0_316] : memref<8x256x256xbf16, #tpu.memory_space<vmem>>, vector<1x256x256xbf16>
    %462 = vector.shape_cast %461 : vector<1x256x256xbf16> to vector<256x256xbf16>
    %c10_317 = arith.constant 10 : index
    %c0_318 = arith.constant 0 : index
    %463 = vector.load %arg8[%c10_317, %c0_318] : memref<14x512xf32, #tpu.memory_space<vmem>>, vector<1x256xf32>
    %464 = arith.truncf %418 : vector<16x256xf32> to vector<16x256xbf16>
    %cst_319 = arith.constant dense<0.000000e+00> : vector<16x256xf32>
    %465 = tpu.matmul %464, %462, %cst_319 {dimension_numbers = #tpu.dot_dimension_numbers<[1], [0], [0], [1], [0, 0, 1, 1], [], []>} : vector<16x256xbf16>, vector<256x256xbf16>, vector<16x256xf32> -> vector<16x256xf32>
    %466 = vector.broadcast %463 : vector<1x256xf32> to vector<16x256xf32>
    %467 = arith.addf %465, %466 : vector<16x256xf32>
    %cst_320 = arith.constant 2.000000e-01 : f32
    %468 = vector.broadcast %cst_320 : f32 to vector<16x256xf32>
    %469 = arith.mulf %468, %467 : vector<16x256xf32>
    %470 = arith.maximumf %467, %469 : vector<16x256xf32>
    %c2_321 = arith.constant 2 : index
    %c0_322 = arith.constant 0 : index
    %c0_323 = arith.constant 0 : index
    %471 = vector.load %arg4[%c2_321, %c0_322, %c0_323] : memref<4x256x128xbf16, #tpu.memory_space<vmem>>, vector<1x256x128xbf16>
    %472 = vector.shape_cast %471 : vector<1x256x128xbf16> to vector<256x128xbf16>
    %c11_324 = arith.constant 11 : index
    %c0_325 = arith.constant 0 : index
    %473 = vector.load %arg8[%c11_324, %c0_325] : memref<14x512xf32, #tpu.memory_space<vmem>>, vector<1x128xf32>
    %474 = arith.truncf %470 : vector<16x256xf32> to vector<16x256xbf16>
    %cst_326 = arith.constant dense<0.000000e+00> : vector<16x128xf32>
    %475 = tpu.matmul %474, %472, %cst_326 {dimension_numbers = #tpu.dot_dimension_numbers<[1], [0], [0], [1], [0, 0, 1, 1], [], []>} : vector<16x256xbf16>, vector<256x128xbf16>, vector<16x128xf32> -> vector<16x128xf32>
    %476 = vector.broadcast %473 : vector<1x128xf32> to vector<16x128xf32>
    %477 = arith.addf %475, %476 : vector<16x128xf32>
    %478 = vector.extract_strided_slice %477 {offsets = [0, 0], sizes = [8, 128], strides = [1, 1]} : vector<16x128xf32> to vector<8x128xf32>
    %c0_327 = arith.constant 0 : index
    %c256_328 = arith.constant 256 : index
    %479 = vector.load %arg16[%c0_327, %c256_328] : memref<8x512xf32, #tpu.memory_space<vmem>>, vector<8x128xf32>
    tpu.vector_store %arg16[%c0_327, %c256_328], %478 {strides = array<i32>} : memref<8x512xf32, #tpu.memory_space<vmem>>, vector<8x128xf32>,
    %480 = vector.extract_strided_slice %477 {offsets = [8, 0], sizes = [8, 128], strides = [1, 1]} : vector<16x128xf32> to vector<8x128xf32>
    %c0_329 = arith.constant 0 : index
    %c256_330 = arith.constant 256 : index
    %481 = vector.load %arg17[%c0_329, %c256_330] : memref<8x512xf32, #tpu.memory_space<vmem>>, vector<8x128xf32>
    tpu.vector_store %arg17[%c0_329, %c256_330], %480 {strides = array<i32>} : memref<8x512xf32, #tpu.memory_space<vmem>>, vector<8x128xf32>,
    %c7_331 = arith.constant 7 : index
    %c0_332 = arith.constant 0 : index
    %c0_333 = arith.constant 0 : index
    %482 = vector.load %arg5[%c7_331, %c0_332, %c0_333] : memref<8x256x256xbf16, #tpu.memory_space<vmem>>, vector<1x256x256xbf16>
    %483 = vector.shape_cast %482 : vector<1x256x256xbf16> to vector<256x256xbf16>
    %c12_334 = arith.constant 12 : index
    %c0_335 = arith.constant 0 : index
    %484 = vector.load %arg8[%c12_334, %c0_335] : memref<14x512xf32, #tpu.memory_space<vmem>>, vector<1x256xf32>
    %485 = arith.truncf %418 : vector<16x256xf32> to vector<16x256xbf16>
    %cst_336 = arith.constant dense<0.000000e+00> : vector<16x256xf32>
    %486 = tpu.matmul %485, %483, %cst_336 {dimension_numbers = #tpu.dot_dimension_numbers<[1], [0], [0], [1], [0, 0, 1, 1], [], []>} : vector<16x256xbf16>, vector<256x256xbf16>, vector<16x256xf32> -> vector<16x256xf32>
    %487 = vector.broadcast %484 : vector<1x256xf32> to vector<16x256xf32>
    %488 = arith.addf %486, %487 : vector<16x256xf32>
    %cst_337 = arith.constant 2.000000e-01 : f32
    %489 = vector.broadcast %cst_337 : f32 to vector<16x256xf32>
    %490 = arith.mulf %489, %488 : vector<16x256xf32>
    %491 = arith.maximumf %488, %490 : vector<16x256xf32>
    %c3_338 = arith.constant 3 : index
    %c0_339 = arith.constant 0 : index
    %c0_340 = arith.constant 0 : index
    %492 = vector.load %arg4[%c3_338, %c0_339, %c0_340] : memref<4x256x128xbf16, #tpu.memory_space<vmem>>, vector<1x256x128xbf16>
    %493 = vector.shape_cast %492 : vector<1x256x128xbf16> to vector<256x128xbf16>
    %c13_341 = arith.constant 13 : index
    %c0_342 = arith.constant 0 : index
    %494 = vector.load %arg8[%c13_341, %c0_342] : memref<14x512xf32, #tpu.memory_space<vmem>>, vector<1x128xf32>
    %495 = arith.truncf %491 : vector<16x256xf32> to vector<16x256xbf16>
    %cst_343 = arith.constant dense<0.000000e+00> : vector<16x128xf32>
    %496 = tpu.matmul %495, %493, %cst_343 {dimension_numbers = #tpu.dot_dimension_numbers<[1], [0], [0], [1], [0, 0, 1, 1], [], []>} : vector<16x256xbf16>, vector<256x128xbf16>, vector<16x128xf32> -> vector<16x128xf32>
    %497 = vector.broadcast %494 : vector<1x128xf32> to vector<16x128xf32>
    %498 = arith.addf %496, %497 : vector<16x128xf32>
    %499 = vector.extract_strided_slice %498 {offsets = [0, 0], sizes = [8, 128], strides = [1, 1]} : vector<16x128xf32> to vector<8x128xf32>
    %c0_344 = arith.constant 0 : index
    %c384_345 = arith.constant 384 : index
    %500 = vector.load %arg16[%c0_344, %c384_345] : memref<8x512xf32, #tpu.memory_space<vmem>>, vector<8x128xf32>
    tpu.vector_store %arg16[%c0_344, %c384_345], %499 {strides = array<i32>} : memref<8x512xf32, #tpu.memory_space<vmem>>, vector<8x128xf32>,
    %501 = vector.extract_strided_slice %498 {offsets = [8, 0], sizes = [8, 128], strides = [1, 1]} : vector<16x128xf32> to vector<8x128xf32>
    %c0_346 = arith.constant 0 : index
    %c384_347 = arith.constant 384 : index
    %502 = vector.load %arg17[%c0_346, %c384_347] : memref<8x512xf32, #tpu.memory_space<vmem>>, vector<8x128xf32>
    tpu.vector_store %arg17[%c0_346, %c384_347], %501 {strides = array<i32>} : memref<8x512xf32, #tpu.memory_space<vmem>>, vector<8x128xf32>,
    return
  }
}

</mosaic_0001>

<llo_original>
// kernel: forward.1
$region0: #{forward.1}
  #allocation0 [shape = 'u32[]', space=smem, size = 0x4, offset = 0x4, fixed_abs, tag = 'smem constant byte address 0x4 - core index']
  #allocation1 [shape = 'u32[144,128]{1,0:T(1,128)}', space=vmem, size = 0x12000, scoped, tag = 'internal scratch']
  #allocation2 [shape = 'bf16[8,128,128]{2,1,0:T(16,128)(2,1)}', space=vmem, size = 0x40000, scoped, tag = 'scratch operand']
  #allocation3 [shape = 'bf16[4,256,256]{2,1,0:T(16,128)(2,1)}', space=vmem, size = 0x80000, scoped, tag = 'scratch operand']
  #allocation4 [shape = 'bf16[1,256,512]{2,1,0:T(16,128)(2,1)}', space=vmem, size = 0x40000, scoped, tag = 'scratch operand']
  #allocation5 [shape = 'bf16[3,512,256]{2,1,0:T(16,128)(2,1)}', space=vmem, size = 0xc0000, scoped, tag = 'scratch operand']
  #allocation6 [shape = 's32[4]{0}', space=sflag, size = 0x10, scoped, tag = 'scratch operand']
  #allocation14 [shape = 's32[]', space=sflag, size = 0x4, offset = 0, fixed_abs, tag = 'sflag constant byte address 0x0 - dummy sync flag']
  #allocation15 [shape = 's32[]', space=sflag, size = 0x4, offset = 0, fixed_abs, tag = 'sflag constant byte address 0x0 - dummy sync flag']
  #allocation16 [shape = 'u32[]', space=smem, size = 0x4, offset = 0x44, fixed_abs, tag = 'smem constant byte address 0x44 - assertion arg 0']
  #allocation17 [shape = 'u32[]', space=smem, size = 0x4, offset = 0x48, fixed_abs, tag = 'smem constant byte address 0x48 - assertion arg 1']
  #allocation18 [shape = 's32[]', space=sflag, size = 0x4, offset = 0, fixed_abs, tag = 'sflag constant byte address 0x0 - dummy sync flag']
  #allocation20 [shape = 's32[]', space=sflag, size = 0x4, offset = 0, fixed_abs, tag = 'sflag constant byte address 0x0 - dummy sync flag']
  #allocation22 [shape = 's32[]', space=sflag, size = 0x4, offset = 0, fixed_abs, tag = 'sflag constant byte address 0x0 - dummy sync flag']
  %s0 = inlined_call_operand.vmem [shape: f32[8,256], index: 0, kind: input, shape index: {}]
  %s1 = inlined_call_operand.vmem [shape: f32[8,512], index: 1, kind: input, shape index: {}]
  %s2 = inlined_call_operand.vmem [shape: f32[8,256], index: 2, kind: input, shape index: {}]
  %s3 = inlined_call_operand.vmem [shape: f32[8,512], index: 3, kind: input, shape index: {}]
  %s4 = inlined_call_operand.hbm [shape: bf16[4,256,128], index: 4, kind: input, shape index: {}]
  %s5 = inlined_call_operand.hbm [shape: bf16[8,256,256], index: 5, kind: input, shape index: {}]
  %s6 = inlined_call_operand.hbm [shape: bf16[1,512,256], index: 6, kind: input, shape index: {}]
  %s7 = inlined_call_operand.hbm [shape: bf16[1,512,512], index: 7, kind: input, shape index: {}]
  %s8 = inlined_call_operand.vmem [shape: f32[14,512], index: 8, kind: input, shape index: {}]
  %s9 = inlined_call_operand.hbm [shape: bf16[8,128,128], index: 9, kind: input, shape index: {}]
  %s10 = inlined_call_operand.hbm [shape: bf16[4,256,256], index: 10, kind: input, shape index: {}]
  %s11 = inlined_call_operand.hbm [shape: bf16[1,256,512], index: 11, kind: input, shape index: {}]
  %s12 = inlined_call_operand.hbm [shape: bf16[3,512,256], index: 12, kind: input, shape index: {}]
  %s13 = inlined_call_operand.vmem [shape: f32[16,512], index: 13, kind: input, shape index: {}]
  %s14 = inlined_call_operand.vmem [shape: f32[8,512], index: 14, kind: output, shape index: {0}]
  %s15 = inlined_call_operand.vmem [shape: f32[8,512], index: 15, kind: output, shape index: {1}]
  %s16 = inlined_call_operand.vmem [shape: f32[8,512], index: 16, kind: output, shape index: {2}]
  %s17 = inlined_call_operand.vmem [shape: f32[8,512], index: 17, kind: output, shape index: {3}]
  %s18 = inlined_call_operand.vmem [shape: f32[8,256], index: 18, kind: output, shape index: {4}]
  %s19 = inlined_call_operand.vmem [shape: f32[8,512], index: 19, kind: output, shape index: {5}]
  %20 = xla_tuple %s14, %s15, %s16, %s17, %s18, %s19
  %s21 = sld [smem:[#allocation0]]
  $region110: #{forward.1} parent=0
    _
  %s23 = ssub.s32 1, %s21
  %s24 = scalar_select 0, %s23, %s21
  $region1: #{forward.1} parent=0
    #allocation7 [shape = 'u8[262144]{0}', space=vmem, size = 0x40000, scoped, tag = 'input window, operand 4, single buffered']
    #allocation8 [shape = 's32[1]{0}', space=sflag, size = 0x4, scoped, tag = 'scoped memory for forward.1']
    #allocation9 [shape = 'u8[1048576]{0}', space=vmem, size = 0x100000, scoped, tag = 'input window, operand 5, single buffered']
    #allocation10 [shape = 's32[1]{0}', space=sflag, size = 0x4, scoped, tag = 'scoped memory for forward.1']
    #allocation11 [shape = 'u8[262144]{0}', space=vmem, size = 0x40000, scoped, tag = 'input window, operand 6, single buffered']
    #allocation12 [shape = 'u8[524288]{0}', space=vmem, size = 0x80000, scoped, tag = 'input window, operand 7, single buffered']
    #allocation13 [shape = 's32[1]{0}', space=sflag, size = 0x4, scoped, tag = 'scoped memory for forward.1']
    #allocation19 [shape = 'u32[9]{0}', space=smem, size = 0x24, scoped, tag = 'DMA stride descriptor']
    #allocation21 [shape = 'u32[9]{0}', space=smem, size = 0x24, scoped, tag = 'DMA stride descriptor']
    #allocation23 [shape = 'u32[9]{0}', space=smem, size = 0x24, scoped, tag = 'DMA stride descriptor']
    %25 = vsyncpa [#allocation8], 0
    %26 = vsyncpa [#allocation10], 0
    %27 = vsyncpa [#allocation13], 0
    // Predicated region
    $region2: #{forward.1} parent=1 // pred_check
      _
    $region3: #{forward.1} parent=1 // pred_check_branch
      %29 = sbr.rel (0) target = $region5
    $region4: #{forward.1} parent=1 // pred_region
      _
    $region5: #{forward.1} parent=1 // pred_fallthru
      _
    // Predicated region
    $region6: #{forward.1} parent=1 // pred_check
      _
    $region7: #{forward.1} parent=1 // pred_check_branch
      %31 = sbr.rel (0) target = $region9
    $region8: #{forward.1} parent=1 // pred_region
      _
    $region9: #{forward.1} parent=1 // pred_fallthru
      _
    // Predicated region
    $region10: #{forward.1} parent=1 // pred_check
      _
    $region11: #{forward.1} parent=1 // pred_check_branch
      %33 = sbr.rel (0) target = $region13
    $region12: #{forward.1} parent=1 // pred_region
      _
    $region13: #{forward.1} parent=1 // pred_fallthru
      _
    // Predicated region
    $region14: #{forward.1} parent=1 // pred_check
      _
    $region15: #{forward.1} parent=1 // pred_check_branch
      %35 = sbr.rel (0) target = $region17
    $region16: #{forward.1} parent=1 // pred_region
      _
    $region17: #{forward.1} parent=1 // pred_fallthru
      _
    // Predicated region
    $region18: #{forward.1} parent=1 // pred_check
      _
    $region19: #{forward.1} parent=1 // pred_check_branch
      %37 = sbr.rel (0) target = $region21
    $region20: #{forward.1} parent=1 // pred_region
      %s39 = ssub.s32 8192, 8192
      %40 = vsyncadd [#allocation8], %s39
      %s41 = sshll.u32 [#allocation7], 4
      %s42 = int_to_ptr.vmem [resolvable:$true] %s41
      %47 = dma.hbm_to_vmem [thread:$0]  %s4, 8192, %s42, [#allocation8], 64, 64, 4
    $region21: #{forward.1} parent=1 // pred_fallthru
      _
    // Predicated region
    $region22: #{forward.1} parent=1 // pred_check
      _
    $region23: #{forward.1} parent=1 // pred_check_branch
      %49 = sbr.rel (0) target = $region25
    $region24: #{forward.1} parent=1 // pred_region
      %s51 = ssub.s32 32768, 32768
      %52 = vsyncadd [#allocation10], %s51
      %s53 = sshll.u32 [#allocation9], 4
      %s54 = int_to_ptr.vmem [resolvable:$true] %s53
      %59 = dma.hbm_to_vmem [thread:$0]  %s5, 32768, %s54, [#allocation10], 128, 128, 8
    $region25: #{forward.1} parent=1 // pred_fallthru
      _
    // Predicated region
    $region26: #{forward.1} parent=1 // pred_check
      _
    $region27: #{forward.1} parent=1 // pred_check_branch
      %61 = sbr.rel (0) target = $region29
    $region28: #{forward.1} parent=1 // pred_region
      %s63 = ssub.s32 8192, 8192
      %64 = vsyncadd [#allocation10], %s63
      %s65 = sshll.u32 [#allocation11], 4
      %s66 = int_to_ptr.vmem [resolvable:$true] %s65
      %71 = dma.hbm_to_vmem [thread:$0]  %s6, 8192, %s66, [#allocation10], 128, 128, 8
    $region29: #{forward.1} parent=1 // pred_fallthru
      _
    // Predicated region
    $region30: #{forward.1} parent=1 // pred_check
      _
    $region31: #{forward.1} parent=1 // pred_check_branch
      %73 = sbr.rel (0) target = $region33
    $region32: #{forward.1} parent=1 // pred_region
      %s75 = ssub.s32 16384, 16384
      %76 = vsyncadd [#allocation13], %s75
      %s77 = sshll.u32 [#allocation12], 4
      %s78 = int_to_ptr.vmem [resolvable:$true] %s77
      %83 = dma.hbm_to_vmem [thread:$0]  %s7, 16384, %s78, [#allocation13], 256, 256, 16
    $region33: #{forward.1} parent=1 // pred_fallthru
      _
    // Predicated region
    $region34: #{forward.1} parent=1 // pred_check
      _
    $region35: #{forward.1} parent=1 // pred_check_branch
      %85 = sbr.rel (0) target = $region37
    $region36: #{forward.1} parent=1 // pred_region
      _
    $region37: #{forward.1} parent=1 // pred_fallthru
      _
    // Predicated region
    $region38: #{forward.1} parent=1 // pred_check
      _
    $region39: #{forward.1} parent=1 // pred_check_branch
      %87 = sbr.rel (0) target = $region41
    $region40: #{forward.1} parent=1 // pred_region
      _
    $region41: #{forward.1} parent=1 // pred_fallthru
      _
    // Predicated region
    $region42: #{forward.1} parent=1 // pred_check
      _
    $region43: #{forward.1} parent=1 // pred_check_branch
      %89 = sbr.rel (0) target = $region45
    $region44: #{forward.1} parent=1 // pred_region
      %90 = dma.done [#allocation8], 8192
    $region45: #{forward.1} parent=1 // pred_fallthru
      _
    // Predicated region
    $region46: #{forward.1} parent=1 // pred_check
      _
    $region47: #{forward.1} parent=1 // pred_check_branch
      %92 = sbr.rel (0) target = $region49
    $region48: #{forward.1} parent=1 // pred_region
      %93 = dma.done [#allocation10], 32768
    $region49: #{forward.1} parent=1 // pred_fallthru
      _
    // Predicated region
    $region50: #{forward.1} parent=1 // pred_check
      _
    $region51: #{forward.1} parent=1 // pred_check_branch
      %95 = sbr.rel (0) target = $region53
    $region52: #{forward.1} parent=1 // pred_region
      %96 = dma.done [#allocation10], 8192
    $region53: #{forward.1} parent=1 // pred_fallthru
      _
    // Predicated region
    $region54: #{forward.1} parent=1 // pred_check
      _
    $region55: #{forward.1} parent=1 // pred_check_branch
      %98 = sbr.rel (0) target = $region57
    $region56: #{forward.1} parent=1 // pred_region
      %99 = dma.done [#allocation13], 16384
    $region57: #{forward.1} parent=1 // pred_fallthru
      _
    // Predicated region
    $region58: #{forward.1} parent=1 // pred_check
      _
    $region59: #{forward.1} parent=1 // pred_check_branch
      %102 = sbr.rel target = $region61
    $region60: #{forward.1} parent=1 // pred_region
      %103 = sst [smem:[#allocation16]] [#allocation15]
      %104 = sst [smem:[#allocation17]] [#allocation14]
    $region61: #{forward.1} parent=1 // pred_fallthru
      _
    %106 = shalt.err (0)
    %s108 = sshll.u32 [#allocation2], 4
    %s109 = int_to_ptr.vmem [resolvable:$true] %s108
    %111 = dma.hbm_to_vmem [thread:$0]  %s9, 8192, %s109, [#allocation6]
    %s112 = scalar_lea.sflag [#allocation6], 1
    %s114 = sshll.u32 1, 14
    %s115 = sxor.u32 4294967295, %s114
    %s117 = sld [smem:[#allocation0]]
    %s118 = sadd.s32 2, %s117
    %s120 = sshll.u32 7, 26
    %s121 = sxor.u32 4294967295, %s120
    %s122 = sand.u32 0, %s121
    %s123 = sshll.u32 %s118, 26
    %s124 = sor.u32 %s122, %s123
    %s125 = sshll.u32 [#allocation3], 4
    %s126 = int_to_ptr.vmem [resolvable:$true] %s125
    %129 = sst [smem:[#allocation19]] 256
    %s130 = scalar_lea.smem [#allocation19], 1
    %131 = sst [smem:[%s130]] 256
    %s132 = scalar_lea.smem [#allocation19], 2
    %133 = sst [smem:[%s132]] 2
    %s134 = scalar_lea.smem [#allocation19], 3
    %135 = sst [smem:[%s134]] 64
    %s136 = scalar_lea.smem [#allocation19], 4
    %137 = sst [smem:[%s136]] 128
    %s138 = scalar_lea.smem [#allocation19], 5
    %139 = sst [smem:[%s138]] 2
    %s140 = scalar_lea.smem [#allocation19], 6
    %141 = sst [smem:[%s140]] 128
    %s142 = scalar_lea.smem [#allocation19], 7
    %143 = sst [smem:[%s142]] 64
    %s144 = scalar_lea.smem [#allocation19], 8
    %145 = sst [smem:[%s144]] 4
    %147 = dma.general %s10, 16384, %s126, %s112, [#allocation18], [#allocation19], %s124, 0
    %s148 = scalar_lea.sflag [#allocation6], 2
    %s150 = sshll.u32 1, 14
    %s151 = sxor.u32 4294967295, %s150
    %s153 = sadd.s32 2, %s117
    %s155 = sshll.u32 7, 26
    %s156 = sxor.u32 4294967295, %s155
    %s157 = sand.u32 0, %s156
    %s158 = sshll.u32 %s153, 26
    %s159 = sor.u32 %s157, %s158
    %s160 = sshll.u32 [#allocation4], 4
    %s161 = int_to_ptr.vmem [resolvable:$true] %s160
    %164 = sst [smem:[#allocation21]] 512
    %s165 = scalar_lea.smem [#allocation21], 1
    %166 = sst [smem:[%s165]] 512
    %s167 = scalar_lea.smem [#allocation21], 2
    %168 = sst [smem:[%s167]] 4
    %s169 = scalar_lea.smem [#allocation21], 3
    %170 = sst [smem:[%s169]] 64
    %s171 = scalar_lea.smem [#allocation21], 4
    %172 = sst [smem:[%s171]] 128
    %s173 = scalar_lea.smem [#allocation21], 5
    %174 = sst [smem:[%s173]] 2
    %s175 = scalar_lea.smem [#allocation21], 6
    %176 = sst [smem:[%s175]] 256
    %s177 = scalar_lea.smem [#allocation21], 7
    %178 = sst [smem:[%s177]] 64
    %s179 = scalar_lea.smem [#allocation21], 8
    %180 = sst [smem:[%s179]] 4
    %182 = dma.general %s11, 8192, %s161, %s148, [#allocation20], [#allocation21], %s159, 0
    %s183 = scalar_lea.sflag [#allocation6], 3
    %s185 = sshll.u32 1, 14
    %s186 = sxor.u32 4294967295, %s185
    %s188 = sadd.s32 2, %s117
    %s190 = sshll.u32 7, 26
    %s191 = sxor.u32 4294967295, %s190
    %s192 = sand.u32 0, %s191
    %s193 = sshll.u32 %s188, 26
    %s194 = sor.u32 %s192, %s193
    %s195 = sshll.u32 [#allocation5], 4
    %s196 = int_to_ptr.vmem [resolvable:$true] %s195
    %199 = sst [smem:[#allocation23]] 256
    %s200 = scalar_lea.smem [#allocation23], 1
    %201 = sst [smem:[%s200]] 256
    %s202 = scalar_lea.smem [#allocation23], 2
    %203 = sst [smem:[%s202]] 2
    %s204 = scalar_lea.smem [#allocation23], 3
    %205 = sst [smem:[%s204]] 64
    %s206 = scalar_lea.smem [#allocation23], 4
    %207 = sst [smem:[%s206]] 128
    %s208 = scalar_lea.smem [#allocation23], 5
    %209 = sst [smem:[%s208]] 2
    %s210 = scalar_lea.smem [#allocation23], 6
    %211 = sst [smem:[%s210]] 128
    %s212 = scalar_lea.smem [#allocation23], 7
    %213 = sst [smem:[%s212]] 64
    %s214 = scalar_lea.smem [#allocation23], 8
    %215 = sst [smem:[%s214]] 4
    %217 = dma.general %s12, 24576, %s196, %s183, [#allocation22], [#allocation23], %s194, 0
    %v218 = vld [vmem:[%s0] sm:$0xff]
    %v219 = vld [vmem:[%s0 + $0x8] sm:$0xff]
    %v220 = vld [vmem:[%s2] sm:$0xff]
    %v221 = vld [vmem:[%s2 + $0x8] sm:$0xff]
    %v222 = vld [vmem:[%s1] sm:$0xff]
    %v223 = vld [vmem:[%s1 + $0x8] sm:$0xff]
    %v224 = vld [vmem:[%s1 + $0x10] sm:$0xff]
    %v225 = vld [vmem:[%s1 + $0x18] sm:$0xff]
    %v226 = vld [vmem:[%s3] sm:$0xff]
    %v227 = vld [vmem:[%s3 + $0x8] sm:$0xff]
    %v228 = vld [vmem:[%s3 + $0x10] sm:$0xff]
    %v229 = vld [vmem:[%s3 + $0x18] sm:$0xff]
    %v230 = vld [vmem:[#allocation9] sm:$0xff]
    %v231 = vld [vmem:[#allocation9 + $0x8] sm:$0xff]
    %v232 = vld [vmem:[#allocation9 + $0x10] sm:$0xff]
    %v233 = vld [vmem:[#allocation9 + $0x18] sm:$0xff]
    %v234 = vld [vmem:[#allocation9 + $0x20] sm:$0xff]
    %v235 = vld [vmem:[#allocation9 + $0x28] sm:$0xff]
    %v236 = vld [vmem:[#allocation9 + $0x30] sm:$0xff]
    %v237 = vld [vmem:[#allocation9 + $0x38] sm:$0xff]
    %v238 = vld [vmem:[#allocation9 + $0x40] sm:$0xff]
    %v239 = vld [vmem:[#allocation9 + $0x48] sm:$0xff]
    %v240 = vld [vmem:[#allocation9 + $0x50] sm:$0xff]
    %v241 = vld [vmem:[#allocation9 + $0x58] sm:$0xff]
    %v242 = vld [vmem:[#allocation9 + $0x60] sm:$0xff]
    %v243 = vld [vmem:[#allocation9 + $0x68] sm:$0xff]
    %v244 = vld [vmem:[#allocation9 + $0x70] sm:$0xff]
    %v245 = vld [vmem:[#allocation9 + $0x78] sm:$0xff]
    %v246 = vld [vmem:[#allocation9 + $0x80] sm:$0xff]
    %v247 = vld [vmem:[#allocation9 + $0x88] sm:$0xff]
    %v248 = vld [vmem:[#allocation9 + $0x90] sm:$0xff]
    %v249 = vld [vmem:[#allocation9 + $0x98] sm:$0xff]
    %v250 = vld [vmem:[#allocation9 + $0xa0] sm:$0xff]
    %v251 = vld [vmem:[#allocation9 + $0xa8] sm:$0xff]
    %v252 = vld [vmem:[#allocation9 + $0xb0] sm:$0xff]
    %v253 = vld [vmem:[#allocation9 + $0xb8] sm:$0xff]
    %v254 = vld [vmem:[#allocation9 + $0xc0] sm:$0xff]
    %v255 = vld [vmem:[#allocation9 + $0xc8] sm:$0xff]
    %v256 = vld [vmem:[#allocation9 + $0xd0] sm:$0xff]
    %v257 = vld [vmem:[#allocation9 + $0xd8] sm:$0xff]
    %v258 = vld [vmem:[#allocation9 + $0xe0] sm:$0xff]
    %v259 = vld [vmem:[#allocation9 + $0xe8] sm:$0xff]
    %v260 = vld [vmem:[#allocation9 + $0xf0] sm:$0xff]
    %v261 = vld [vmem:[#allocation9 + $0xf8] sm:$0xff]
    %v262 = vld [vmem:[%s8] ss:$8 sm:$0x3]
    %v263 = vpack.c.bf16 %v220, %v218
    %v264 = vpack.c.bf16 %v221, %v219
    %v266 = vlaneseq
    %v267 = vshrl.u32 %v266, 7
    %v268 = vsub.s32 0, %v267
    %v269 = vrot.slane %v262, %v268
    %v270 = vlaneseq
    %v271 = vshrl.u32 %v270, 7
    %v272 = vsub.s32 1, %v271
    %v273 = vrot.slane %v262, %v272
    %v308 = vunpack.c.l.b16 %v230
    %v309 = vunpack.c.h.b16 %v230
    %v310 = vunpack.c.l.b16 %v231
    %v311 = vunpack.c.h.b16 %v231
    %v312 = vunpack.c.l.b16 %v232
    %v313 = vunpack.c.h.b16 %v232
    %v314 = vunpack.c.l.b16 %v233
    %v315 = vunpack.c.h.b16 %v233
    %v316 = vunpack.c.l.b16 %v234
    %v317 = vunpack.c.h.b16 %v234
    %v318 = vunpack.c.l.b16 %v235
    %v319 = vunpack.c.h.b16 %v235
    %v320 = vunpack.c.l.b16 %v236
    %v321 = vunpack.c.h.b16 %v236
    %v322 = vunpack.c.l.b16 %v237
    %v323 = vunpack.c.h.b16 %v237
    %v324 = vunpack.c.l.b16 %v238
    %v325 = vunpack.c.h.b16 %v238
    %v326 = vunpack.c.l.b16 %v239
    %v327 = vunpack.c.h.b16 %v239
    %v328 = vunpack.c.l.b16 %v240
    %v329 = vunpack.c.h.b16 %v240
    %v330 = vunpack.c.l.b16 %v241
    %v331 = vunpack.c.h.b16 %v241
    %v332 = vunpack.c.l.b16 %v242
    %v333 = vunpack.c.h.b16 %v242
    %v334 = vunpack.c.l.b16 %v243
    %v335 = vunpack.c.h.b16 %v243
    %v336 = vunpack.c.l.b16 %v244
    %v337 = vunpack.c.h.b16 %v244
    %v338 = vunpack.c.l.b16 %v245
    %v339 = vunpack.c.h.b16 %v245
    %v340 = vunpack.c.l.b16 %v246
    %v341 = vunpack.c.h.b16 %v246
    %v342 = vunpack.c.l.b16 %v247
    %v343 = vunpack.c.h.b16 %v247
    %v344 = vunpack.c.l.b16 %v248
    %v345 = vunpack.c.h.b16 %v248
    %v346 = vunpack.c.l.b16 %v249
    %v347 = vunpack.c.h.b16 %v249
    %v348 = vunpack.c.l.b16 %v250
    %v349 = vunpack.c.h.b16 %v250
    %v350 = vunpack.c.l.b16 %v251
    %v351 = vunpack.c.h.b16 %v251
    %v352 = vunpack.c.l.b16 %v252
    %v353 = vunpack.c.h.b16 %v252
    %v354 = vunpack.c.l.b16 %v253
    %v355 = vunpack.c.h.b16 %v253
    %v356 = vunpack.c.l.b16 %v254
    %v357 = vunpack.c.h.b16 %v254
    %v358 = vunpack.c.l.b16 %v255
    %v359 = vunpack.c.h.b16 %v255
    %v360 = vunpack.c.l.b16 %v256
    %v361 = vunpack.c.h.b16 %v256
    %v362 = vunpack.c.l.b16 %v257
    %v363 = vunpack.c.h.b16 %v257
    %v364 = vunpack.c.l.b16 %v258
    %v365 = vunpack.c.h.b16 %v258
    %v366 = vunpack.c.l.b16 %v259
    %v367 = vunpack.c.h.b16 %v259
    %v368 = vunpack.c.l.b16 %v260
    %v369 = vunpack.c.h.b16 %v260
    %v370 = vunpack.c.l.b16 %v261
    %v371 = vunpack.c.h.b16 %v261
    %v372 = vpack.c.b16 %v310, %v308
    %v373 = vpack.c.b16 %v311, %v309
    %v374 = vpack.c.b16 %v314, %v312
    %v375 = vpack.c.b16 %v315, %v313
    %v376 = vpack.c.b16 %v318, %v316
    %v377 = vpack.c.b16 %v319, %v317
    %v378 = vpack.c.b16 %v322, %v320
    %v379 = vpack.c.b16 %v323, %v321
    %v380 = vpack.c.b16 %v326, %v324
    %v381 = vpack.c.b16 %v327, %v325
    %v382 = vpack.c.b16 %v330, %v328
    %v383 = vpack.c.b16 %v331, %v329
    %v384 = vpack.c.b16 %v334, %v332
    %v385 = vpack.c.b16 %v335, %v333
    %v386 = vpack.c.b16 %v338, %v336
    %v387 = vpack.c.b16 %v339, %v337
    %v388 = vpack.c.b16 %v342, %v340
    %v389 = vpack.c.b16 %v343, %v341
    %v390 = vpack.c.b16 %v346, %v344
    %v391 = vpack.c.b16 %v347, %v345
    %v392 = vpack.c.b16 %v350, %v348
    %v393 = vpack.c.b16 %v351, %v349
    %v394 = vpack.c.b16 %v354, %v352
    %v395 = vpack.c.b16 %v355, %v353
    %v396 = vpack.c.b16 %v358, %v356
    %v397 = vpack.c.b16 %v359, %v357
    %v398 = vpack.c.b16 %v362, %v360
    %v399 = vpack.c.b16 %v363, %v361
    %v400 = vpack.c.b16 %v366, %v364
    %v401 = vpack.c.b16 %v367, %v365
    %v402 = vpack.c.b16 %v370, %v368
    %v403 = vpack.c.b16 %v371, %v369
    %436 = vmatprep.subr.bf16.mxu0 %v373
    %437 = vmatpush1.bf16.msra.mxu0 %v372
    %438 = vmatprep.subr.bf16.mxu0 %v375
    %439 = vmatpush1.bf16.msra.mxu0 %v374
    %440 = vmatprep.subr.bf16.mxu0 %v377
    %441 = vmatpush1.bf16.msra.mxu0 %v376
    %442 = vmatprep.subr.bf16.mxu0 %v379
    %443 = vmatpush1.bf16.msra.mxu0 %v378
    %444 = vmatprep.subr.bf16.mxu0 %v381
    %445 = vmatpush1.bf16.msra.mxu0 %v380
    %446 = vmatprep.subr.bf16.mxu0 %v383
    %447 = vmatpush1.bf16.msra.mxu0 %v382
    %448 = vmatprep.subr.bf16.mxu0 %v385
    %449 = vmatpush1.bf16.msra.mxu0 %v384
    %450 = vmatprep.subr.bf16.mxu0 %v387
    %451 = vmatpush1.bf16.msra.mxu0 %v386
    %452 = vmatprep.subr.bf16.mxu0 %v389
    %453 = vmatpush1.bf16.msra.mxu0 %v388
    %454 = vmatprep.subr.bf16.mxu0 %v391
    %455 = vmatpush1.bf16.msra.mxu0 %v390
    %456 = vmatprep.subr.bf16.mxu0 %v393
    %457 = vmatpush1.bf16.msra.mxu0 %v392
    %458 = vmatprep.subr.bf16.mxu0 %v395
    %459 = vmatpush1.bf16.msra.mxu0 %v394
    %460 = vmatprep.subr.bf16.mxu0 %v397
    %461 = vmatpush1.bf16.msra.mxu0 %v396
    %462 = vmatprep.subr.bf16.mxu0 %v399
    %463 = vmatpush1.bf16.msra.mxu0 %v398
    %464 = vmatprep.subr.bf16.mxu0 %v401
    %465 = vmatpush1.bf16.msra.mxu0 %v400
    %466 = vmatprep.subr.bf16.mxu0 %v403
    %467 = vmatpush1.bf16.msra.mxu0 %v402
    %468 = vmatprep.mubr.bf16.mxu0 %v264
    %469 = vmatmul.mubr.bf16.gmra.mrb[0].mxu0 %v263
    %v470 = vpop.f32.mrb[0].mxu0
    %v471 = vadd.f32 %v269, %v470
    %v472 = vpop.f32.mrb[0].mxu0
    %v473 = vadd.f32 %v273, %v472
    %v474 = vpop.f32.mrb[0].mxu0
    %v475 = vadd.f32 %v269, %v474
    %v476 = vpop.f32.mrb[0].mxu0
    %v477 = vadd.f32 %v273, %v476
    %478 = vdwg.mxu0
    %v479 = vmul.f32 %v471, 0.2
    %v480 = vmul.f32 %v473, 0.2
    %v481 = vmul.f32 %v475, 0.2
    %v482 = vmul.f32 %v477, 0.2
    %v483 = vmax.f32 %v471, %v479
    %v484 = vmax.f32 %v473, %v480
    %v485 = vmax.f32 %v475, %v481
    %v486 = vmax.f32 %v477, %v482
    %s487 = scalar_lea.vmem [#allocation9], 256
    %v488 = vld [vmem:[%s487] sm:$0xff]
    %v489 = vld [vmem:[%s487 + $0x8] sm:$0xff]
    %v490 = vld [vmem:[%s487 + $0x10] sm:$0xff]
    %v491 = vld [vmem:[%s487 + $0x18] sm:$0xff]
    %v492 = vld [vmem:[%s487 + $0x20] sm:$0xff]
    %v493 = vld [vmem:[%s487 + $0x28] sm:$0xff]
    %v494 = vld [vmem:[%s487 + $0x30] sm:$0xff]
    %v495 = vld [vmem:[%s487 + $0x38] sm:$0xff]
    %v496 = vld [vmem:[%s487 + $0x40] sm:$0xff]
    %v497 = vld [vmem:[%s487 + $0x48] sm:$0xff]
    %v498 = vld [vmem:[%s487 + $0x50] sm:$0xff]
    %v499 = vld [vmem:[%s487 + $0x58] sm:$0xff]
    %v500 = vld [vmem:[%s487 + $0x60] sm:$0xff]
    %v501 = vld [vmem:[%s487 + $0x68] sm:$0xff]
    %v502 = vld [vmem:[%s487 + $0x70] sm:$0xff]
    %v503 = vld [vmem:[%s487 + $0x78] sm:$0xff]
    %v504 = vld [vmem:[%s487 + $0x80] sm:$0xff]
    %v505 = vld [vmem:[%s487 + $0x88] sm:$0xff]
    %v506 = vld [vmem:[%s487 + $0x90] sm:$0xff]
    %v507 = vld [vmem:[%s487 + $0x98] sm:$0xff]
    %v508 = vld [vmem:[%s487 + $0xa0] sm:$0xff]
    %v509 = vld [vmem:[%s487 + $0xa8] sm:$0xff]
    %v510 = vld [vmem:[%s487 + $0xb0] sm:$0xff]
    %v511 = vld [vmem:[%s487 + $0xb8] sm:$0xff]
    %v512 = vld [vmem:[%s487 + $0xc0] sm:$0xff]
    %v513 = vld [vmem:[%s487 + $0xc8] sm:$0xff]
    %v514 = vld [vmem:[%s487 + $0xd0] sm:$0xff]
    %v515 = vld [vmem:[%s487 + $0xd8] sm:$0xff]
    %v516 = vld [vmem:[%s487 + $0xe0] sm:$0xff]
    %v517 = vld [vmem:[%s487 + $0xe8] sm:$0xff]
    %v518 = vld [vmem:[%s487 + $0xf0] sm:$0xff]
    %v519 = vld [vmem:[%s487 + $0xf8] sm:$0xff]
    %s520 = scalar_lea.vmem %s8, 1
    %v521 = vld [vmem:[%s520] ss:$8 sm:$0x3]
    %v522 = vpack.c.bf16 %v485, %v483
    %v523 = vpack.c.bf16 %v486, %v484
    %v525 = vlaneseq
    %v526 = vshrl.u32 %v525, 7
    %v527 = vsub.s32 0, %v526
    %v528 = vrot.slane %v521, %v527
    %v529 = vlaneseq
    %v530 = vshrl.u32 %v529, 7
    %v531 = vsub.s32 1, %v530
    %v532 = vrot.slane %v521, %v531
    %v567 = vunpack.c.l.b16 %v488
    %v568 = vunpack.c.h.b16 %v488
    %v569 = vunpack.c.l.b16 %v489
    %v570 = vunpack.c.h.b16 %v489
    %v571 = vunpack.c.l.b16 %v490
    %v572 = vunpack.c.h.b16 %v490
    %v573 = vunpack.c.l.b16 %v491
    %v574 = vunpack.c.h.b16 %v491
    %v575 = vunpack.c.l.b16 %v492
    %v576 = vunpack.c.h.b16 %v492
    %v577 = vunpack.c.l.b16 %v493
    %v578 = vunpack.c.h.b16 %v493
    %v579 = vunpack.c.l.b16 %v494
    %v580 = vunpack.c.h.b16 %v494
    %v581 = vunpack.c.l.b16 %v495
    %v582 = vunpack.c.h.b16 %v495
    %v583 = vunpack.c.l.b16 %v496
    %v584 = vunpack.c.h.b16 %v496
    %v585 = vunpack.c.l.b16 %v497
    %v586 = vunpack.c.h.b16 %v497
    %v587 = vunpack.c.l.b16 %v498
    %v588 = vunpack.c.h.b16 %v498
    %v589 = vunpack.c.l.b16 %v499
    %v590 = vunpack.c.h.b16 %v499
    %v591 = vunpack.c.l.b16 %v500
    %v592 = vunpack.c.h.b16 %v500
    %v593 = vunpack.c.l.b16 %v501
    %v594 = vunpack.c.h.b16 %v501
    %v595 = vunpack.c.l.b16 %v502
    %v596 = vunpack.c.h.b16 %v502
    %v597 = vunpack.c.l.b16 %v503
    %v598 = vunpack.c.h.b16 %v503
    %v599 = vunpack.c.l.b16 %v504
    %v600 = vunpack.c.h.b16 %v504
    %v601 = vunpack.c.l.b16 %v505
    %v602 = vunpack.c.h.b16 %v505
    %v603 = vunpack.c.l.b16 %v506
    %v604 = vunpack.c.h.b16 %v506
    %v605 = vunpack.c.l.b16 %v507
    %v606 = vunpack.c.h.b16 %v507
    %v607 = vunpack.c.l.b16 %v508
    %v608 = vunpack.c.h.b16 %v508
    %v609 = vunpack.c.l.b16 %v509
    %v610 = vunpack.c.h.b16 %v509
    %v611 = vunpack.c.l.b16 %v510
    %v612 = vunpack.c.h.b16 %v510
    %v613 = vunpack.c.l.b16 %v511
    %v614 = vunpack.c.h.b16 %v511
    %v615 = vunpack.c.l.b16 %v512
    %v616 = vunpack.c.h.b16 %v512
    %v617 = vunpack.c.l.b16 %v513
    %v618 = vunpack.c.h.b16 %v513
    %v619 = vunpack.c.l.b16 %v514
    %v620 = vunpack.c.h.b16 %v514
    %v621 = vunpack.c.l.b16 %v515
    %v622 = vunpack.c.h.b16 %v515
    %v623 = vunpack.c.l.b16 %v516
    %v624 = vunpack.c.h.b16 %v516
    %v625 = vunpack.c.l.b16 %v517
    %v626 = vunpack.c.h.b16 %v517
    %v627 = vunpack.c.l.b16 %v518
    %v628 = vunpack.c.h.b16 %v518
    %v629 = vunpack.c.l.b16 %v519
    %v630 = vunpack.c.h.b16 %v519
    %v631 = vpack.c.b16 %v569, %v567
    %v632 = vpack.c.b16 %v570, %v568
    %v633 = vpack.c.b16 %v573, %v571
    %v634 = vpack.c.b16 %v574, %v572
    %v635 = vpack.c.b16 %v577, %v575
    %v636 = vpack.c.b16 %v578, %v576
    %v637 = vpack.c.b16 %v581, %v579
    %v638 = vpack.c.b16 %v582, %v580
    %v639 = vpack.c.b16 %v585, %v583
    %v640 = vpack.c.b16 %v586, %v584
    %v641 = vpack.c.b16 %v589, %v587
    %v642 = vpack.c.b16 %v590, %v588
    %v643 = vpack.c.b16 %v593, %v591
    %v644 = vpack.c.b16 %v594, %v592
    %v645 = vpack.c.b16 %v597, %v595
    %v646 = vpack.c.b16 %v598, %v596
    %v647 = vpack.c.b16 %v601, %v599
    %v648 = vpack.c.b16 %v602, %v600
    %v649 = vpack.c.b16 %v605, %v603
    %v650 = vpack.c.b16 %v606, %v604
    %v651 = vpack.c.b16 %v609, %v607
    %v652 = vpack.c.b16 %v610, %v608
    %v653 = vpack.c.b16 %v613, %v611
    %v654 = vpack.c.b16 %v614, %v612
    %v655 = vpack.c.b16 %v617, %v615
    %v656 = vpack.c.b16 %v618, %v616
    %v657 = vpack.c.b16 %v621, %v619
    %v658 = vpack.c.b16 %v622, %v620
    %v659 = vpack.c.b16 %v625, %v623
    %v660 = vpack.c.b16 %v626, %v624
    %v661 = vpack.c.b16 %v629, %v627
    %v662 = vpack.c.b16 %v630, %v628
    %695 = vmatprep.subr.bf16.mxu0 %v632
    %696 = vmatpush1.bf16.msra.mxu0 %v631
    %697 = vmatprep.subr.bf16.mxu0 %v634
    %698 = vmatpush1.bf16.msra.mxu0 %v633
    %699 = vmatprep.subr.bf16.mxu0 %v636
    %700 = vmatpush1.bf16.msra.mxu0 %v635
    %701 = vmatprep.subr.bf16.mxu0 %v638
    %702 = vmatpush1.bf16.msra.mxu0 %v637
    %703 = vmatprep.subr.bf16.mxu0 %v640
    %704 = vmatpush1.bf16.msra.mxu0 %v639
    %705 = vmatprep.subr.bf16.mxu0 %v642
    %706 = vmatpush1.bf16.msra.mxu0 %v641
    %707 = vmatprep.subr.bf16.mxu0 %v644
    %708 = vmatpush1.bf16.msra.mxu0 %v643
    %709 = vmatprep.subr.bf16.mxu0 %v646
    %710 = vmatpush1.bf16.msra.mxu0 %v645
    %711 = vmatprep.subr.bf16.mxu0 %v648
    %712 = vmatpush1.bf16.msra.mxu0 %v647
    %713 = vmatprep.subr.bf16.mxu0 %v650
    %714 = vmatpush1.bf16.msra.mxu0 %v649
    %715 = vmatprep.subr.bf16.mxu0 %v652
    %716 = vmatpush1.bf16.msra.mxu0 %v651
    %717 = vmatprep.subr.bf16.mxu0 %v654
    %718 = vmatpush1.bf16.msra.mxu0 %v653
    %719 = vmatprep.subr.bf16.mxu0 %v656
    %720 = vmatpush1.bf16.msra.mxu0 %v655
    %721 = vmatprep.subr.bf16.mxu0 %v658
    %722 = vmatpush1.bf16.msra.mxu0 %v657
    %723 = vmatprep.subr.bf16.mxu0 %v660
    %724 = vmatpush1.bf16.msra.mxu0 %v659
    %725 = vmatprep.subr.bf16.mxu0 %v662
    %726 = vmatpush1.bf16.msra.mxu0 %v661
    %727 = vmatprep.mubr.bf16.mxu0 %v523
    %728 = vmatmul.mubr.bf16.gmra.mrb[0].mxu0 %v522
    %v729 = vpop.f32.mrb[0].mxu0
    %v730 = vadd.f32 %v528, %v729
    %v731 = vpop.f32.mrb[0].mxu0
    %v732 = vadd.f32 %v532, %v731
    %v733 = vpop.f32.mrb[0].mxu0
    %v734 = vadd.f32 %v528, %v733
    %v735 = vpop.f32.mrb[0].mxu0
    %v736 = vadd.f32 %v532, %v735
    %737 = vdwg.mxu0
    %v738 = vmul.f32 %v730, 0.2
    %v739 = vmul.f32 %v732, 0.2
    %v740 = vmul.f32 %v734, 0.2
    %v741 = vmul.f32 %v736, 0.2
    %v742 = vmax.f32 %v730, %v738
    %v743 = vmax.f32 %v732, %v739
    %v744 = vmax.f32 %v734, %v740
    %v745 = vmax.f32 %v736, %v741
    %s746 = scalar_lea.vmem [#allocation9], 512
    %v747 = vld [vmem:[%s746] sm:$0xff]
    %v748 = vld [vmem:[%s746 + $0x8] sm:$0xff]
    %v749 = vld [vmem:[%s746 + $0x10] sm:$0xff]
    %v750 = vld [vmem:[%s746 + $0x18] sm:$0xff]
    %v751 = vld [vmem:[%s746 + $0x20] sm:$0xff]
    %v752 = vld [vmem:[%s746 + $0x28] sm:$0xff]
    %v753 = vld [vmem:[%s746 + $0x30] sm:$0xff]
    %v754 = vld [vmem:[%s746 + $0x38] sm:$0xff]
    %v755 = vld [vmem:[%s746 + $0x40] sm:$0xff]
    %v756 = vld [vmem:[%s746 + $0x48] sm:$0xff]
    %v757 = vld [vmem:[%s746 + $0x50] sm:$0xff]
    %v758 = vld [vmem:[%s746 + $0x58] sm:$0xff]
    %v759 = vld [vmem:[%s746 + $0x60] sm:$0xff]
    %v760 = vld [vmem:[%s746 + $0x68] sm:$0xff]
    %v761 = vld [vmem:[%s746 + $0x70] sm:$0xff]
    %v762 = vld [vmem:[%s746 + $0x78] sm:$0xff]
    %v763 = vld [vmem:[%s746 + $0x80] sm:$0xff]
    %v764 = vld [vmem:[%s746 + $0x88] sm:$0xff]
    %v765 = vld [vmem:[%s746 + $0x90] sm:$0xff]
    %v766 = vld [vmem:[%s746 + $0x98] sm:$0xff]
    %v767 = vld [vmem:[%s746 + $0xa0] sm:$0xff]
    %v768 = vld [vmem:[%s746 + $0xa8] sm:$0xff]
    %v769 = vld [vmem:[%s746 + $0xb0] sm:$0xff]
    %v770 = vld [vmem:[%s746 + $0xb8] sm:$0xff]
    %v771 = vld [vmem:[%s746 + $0xc0] sm:$0xff]
    %v772 = vld [vmem:[%s746 + $0xc8] sm:$0xff]
    %v773 = vld [vmem:[%s746 + $0xd0] sm:$0xff]
    %v774 = vld [vmem:[%s746 + $0xd8] sm:$0xff]
    %v775 = vld [vmem:[%s746 + $0xe0] sm:$0xff]
    %v776 = vld [vmem:[%s746 + $0xe8] sm:$0xff]
    %v777 = vld [vmem:[%s746 + $0xf0] sm:$0xff]
    %v778 = vld [vmem:[%s746 + $0xf8] sm:$0xff]
    %s779 = scalar_lea.vmem %s8, 2
    %v780 = vld [vmem:[%s779] ss:$8 sm:$0x3]
    %v781 = vpack.c.bf16 %v744, %v742
    %v782 = vpack.c.bf16 %v745, %v743
    %v784 = vlaneseq
    %v785 = vshrl.u32 %v784, 7
    %v786 = vsub.s32 0, %v785
    %v787 = vrot.slane %v780, %v786
    %v788 = vlaneseq
    %v789 = vshrl.u32 %v788, 7
    %v790 = vsub.s32 1, %v789
    %v791 = vrot.slane %v780, %v790
    %v826 = vunpack.c.l.b16 %v747
    %v827 = vunpack.c.h.b16 %v747
    %v828 = vunpack.c.l.b16 %v748
    %v829 = vunpack.c.h.b16 %v748
    %v830 = vunpack.c.l.b16 %v749
    %v831 = vunpack.c.h.b16 %v749
    %v832 = vunpack.c.l.b16 %v750
    %v833 = vunpack.c.h.b16 %v750
    %v834 = vunpack.c.l.b16 %v751
    %v835 = vunpack.c.h.b16 %v751
    %v836 = vunpack.c.l.b16 %v752
    %v837 = vunpack.c.h.b16 %v752
    %v838 = vunpack.c.l.b16 %v753
    %v839 = vunpack.c.h.b16 %v753
    %v840 = vunpack.c.l.b16 %v754
    %v841 = vunpack.c.h.b16 %v754
    %v842 = vunpack.c.l.b16 %v755
    %v843 = vunpack.c.h.b16 %v755
    %v844 = vunpack.c.l.b16 %v756
    %v845 = vunpack.c.h.b16 %v756
    %v846 = vunpack.c.l.b16 %v757
    %v847 = vunpack.c.h.b16 %v757
    %v848 = vunpack.c.l.b16 %v758
    %v849 = vunpack.c.h.b16 %v758
    %v850 = vunpack.c.l.b16 %v759
    %v851 = vunpack.c.h.b16 %v759
    %v852 = vunpack.c.l.b16 %v760
    %v853 = vunpack.c.h.b16 %v760
    %v854 = vunpack.c.l.b16 %v761
    %v855 = vunpack.c.h.b16 %v761
    %v856 = vunpack.c.l.b16 %v762
    %v857 = vunpack.c.h.b16 %v762
    %v858 = vunpack.c.l.b16 %v763
    %v859 = vunpack.c.h.b16 %v763
    %v860 = vunpack.c.l.b16 %v764
    %v861 = vunpack.c.h.b16 %v764
    %v862 = vunpack.c.l.b16 %v765
    %v863 = vunpack.c.h.b16 %v765
    %v864 = vunpack.c.l.b16 %v766
    %v865 = vunpack.c.h.b16 %v766
    %v866 = vunpack.c.l.b16 %v767
    %v867 = vunpack.c.h.b16 %v767
    %v868 = vunpack.c.l.b16 %v768
    %v869 = vunpack.c.h.b16 %v768
    %v870 = vunpack.c.l.b16 %v769
    %v871 = vunpack.c.h.b16 %v769
    %v872 = vunpack.c.l.b16 %v770
    %v873 = vunpack.c.h.b16 %v770
    %v874 = vunpack.c.l.b16 %v771
    %v875 = vunpack.c.h.b16 %v771
    %v876 = vunpack.c.l.b16 %v772
    %v877 = vunpack.c.h.b16 %v772
    %v878 = vunpack.c.l.b16 %v773
    %v879 = vunpack.c.h.b16 %v773
    %v880 = vunpack.c.l.b16 %v774
    %v881 = vunpack.c.h.b16 %v774
    %v882 = vunpack.c.l.b16 %v775
    %v883 = vunpack.c.h.b16 %v775
    %v884 = vunpack.c.l.b16 %v776
    %v885 = vunpack.c.h.b16 %v776
    %v886 = vunpack.c.l.b16 %v777
    %v887 = vunpack.c.h.b16 %v777
    %v888 = vunpack.c.l.b16 %v778
    %v889 = vunpack.c.h.b16 %v778
    %v890 = vpack.c.b16 %v828, %v826
    %v891 = vpack.c.b16 %v829, %v827
    %v892 = vpack.c.b16 %v832, %v830
    %v893 = vpack.c.b16 %v833, %v831
    %v894 = vpack.c.b16 %v836, %v834
    %v895 = vpack.c.b16 %v837, %v835
    %v896 = vpack.c.b16 %v840, %v838
    %v897 = vpack.c.b16 %v841, %v839
    %v898 = vpack.c.b16 %v844, %v842
    %v899 = vpack.c.b16 %v845, %v843
    %v900 = vpack.c.b16 %v848, %v846
    %v901 = vpack.c.b16 %v849, %v847
    %v902 = vpack.c.b16 %v852, %v850
    %v903 = vpack.c.b16 %v853, %v851
    %v904 = vpack.c.b16 %v856, %v854
    %v905 = vpack.c.b16 %v857, %v855
    %v906 = vpack.c.b16 %v860, %v858
    %v907 = vpack.c.b16 %v861, %v859
    %v908 = vpack.c.b16 %v864, %v862
    %v909 = vpack.c.b16 %v865, %v863
    %v910 = vpack.c.b16 %v868, %v866
    %v911 = vpack.c.b16 %v869, %v867
    %v912 = vpack.c.b16 %v872, %v870
    %v913 = vpack.c.b16 %v873, %v871
    %v914 = vpack.c.b16 %v876, %v874
    %v915 = vpack.c.b16 %v877, %v875
    %v916 = vpack.c.b16 %v880, %v878
    %v917 = vpack.c.b16 %v881, %v879
    %v918 = vpack.c.b16 %v884, %v882
    %v919 = vpack.c.b16 %v885, %v883
    %v920 = vpack.c.b16 %v888, %v886
    %v921 = vpack.c.b16 %v889, %v887
    %954 = vmatprep.subr.bf16.mxu0 %v891
    %955 = vmatpush1.bf16.msra.mxu0 %v890
    %956 = vmatprep.subr.bf16.mxu0 %v893
    %957 = vmatpush1.bf16.msra.mxu0 %v892
    %958 = vmatprep.subr.bf16.mxu0 %v895
    %959 = vmatpush1.bf16.msra.mxu0 %v894
    %960 = vmatprep.subr.bf16.mxu0 %v897
    %961 = vmatpush1.bf16.msra.mxu0 %v896
    %962 = vmatprep.subr.bf16.mxu0 %v899
    %963 = vmatpush1.bf16.msra.mxu0 %v898
    %964 = vmatprep.subr.bf16.mxu0 %v901
    %965 = vmatpush1.bf16.msra.mxu0 %v900
    %966 = vmatprep.subr.bf16.mxu0 %v903
    %967 = vmatpush1.bf16.msra.mxu0 %v902
    %968 = vmatprep.subr.bf16.mxu0 %v905
    %969 = vmatpush1.bf16.msra.mxu0 %v904
    %970 = vmatprep.subr.bf16.mxu0 %v907
    %971 = vmatpush1.bf16.msra.mxu0 %v906
    %972 = vmatprep.subr.bf16.mxu0 %v909
    %973 = vmatpush1.bf16.msra.mxu0 %v908
    %974 = vmatprep.subr.bf16.mxu0 %v911
    %975 = vmatpush1.bf16.msra.mxu0 %v910
    %976 = vmatprep.subr.bf16.mxu0 %v913
    %977 = vmatpush1.bf16.msra.mxu0 %v912
    %978 = vmatprep.subr.bf16.mxu0 %v915
    %979 = vmatpush1.bf16.msra.mxu0 %v914
    %980 = vmatprep.subr.bf16.mxu0 %v917
    %981 = vmatpush1.bf16.msra.mxu0 %v916
    %982 = vmatprep.subr.bf16.mxu0 %v919
    %983 = vmatpush1.bf16.msra.mxu0 %v918
    %984 = vmatprep.subr.bf16.mxu0 %v921
    %985 = vmatpush1.bf16.msra.mxu0 %v920
    %986 = vmatprep.mubr.bf16.mxu0 %v782
    %987 = vmatmul.mubr.bf16.gmra.mrb[0].mxu0 %v781
    %v988 = vpop.f32.mrb[0].mxu0
    %v989 = vadd.f32 %v787, %v988
    %v990 = vpop.f32.mrb[0].mxu0
    %v991 = vadd.f32 %v791, %v990
    %v992 = vpop.f32.mrb[0].mxu0
    %v993 = vadd.f32 %v787, %v992
    %v994 = vpop.f32.mrb[0].mxu0
    %v995 = vadd.f32 %v791, %v994
    %996 = vdwg.mxu0
    %v997 = vmul.f32 %v989, 0.2
    %v998 = vmul.f32 %v991, 0.2
    %v999 = vmul.f32 %v993, 0.2
    %v1000 = vmul.f32 %v995, 0.2
    %v1001 = vmax.f32 %v989, %v997
    %v1002 = vmax.f32 %v991, %v998
    %v1003 = vmax.f32 %v993, %v999
    %v1004 = vmax.f32 %v995, %v1000
    %v1005 = vld [vmem:[#allocation12] sm:$0xff]
    %v1006 = vld [vmem:[#allocation12 + $0x8] sm:$0xff]
    %v1007 = vld [vmem:[#allocation12 + $0x10] sm:$0xff]
    %v1008 = vld [vmem:[#allocation12 + $0x18] sm:$0xff]
    %v1009 = vld [vmem:[#allocation12 + $0x20] sm:$0xff]
    %v1010 = vld [vmem:[#allocation12 + $0x28] sm:$0xff]
    %v1011 = vld [vmem:[#allocation12 + $0x30] sm:$0xff]
    %v1012 = vld [vmem:[#allocation12 + $0x38] sm:$0xff]
    %v1013 = vld [vmem:[#allocation12 + $0x40] sm:$0xff]
    %v1014 = vld [vmem:[#allocation12 + $0x48] sm:$0xff]
    %v1015 = vld [vmem:[#allocation12 + $0x50] sm:$0xff]
    %v1016 = vld [vmem:[#allocation12 + $0x58] sm:$0xff]
    %v1017 = vld [vmem:[#allocation12 + $0x60] sm:$0xff]
    %v1018 = vld [vmem:[#allocation12 + $0x68] sm:$0xff]
    %v1019 = vld [vmem:[#allocation12 + $0x70] sm:$0xff]
    %v1020 = vld [vmem:[#allocation12 + $0x78] sm:$0xff]
    %v1021 = vld [vmem:[#allocation12 + $0x80] sm:$0xff]
    %v1022 = vld [vmem:[#allocation12 + $0x88] sm:$0xff]
    %v1023 = vld [vmem:[#allocation12 + $0x90] sm:$0xff]
    %v1024 = vld [vmem:[#allocation12 + $0x98] sm:$0xff]
    %v1025 = vld [vmem:[#allocation12 + $0xa0] sm:$0xff]
    %v1026 = vld [vmem:[#allocation12 + $0xa8] sm:$0xff]
    %v1027 = vld [vmem:[#allocation12 + $0xb0] sm:$0xff]
    %v1028 = vld [vmem:[#allocation12 + $0xb8] sm:$0xff]
    %v1029 = vld [vmem:[#allocation12 + $0xc0] sm:$0xff]
    %v1030 = vld [vmem:[#allocation12 + $0xc8] sm:$0xff]
    %v1031 = vld [vmem:[#allocation12 + $0xd0] sm:$0xff]
    %v1032 = vld [vmem:[#allocation12 + $0xd8] sm:$0xff]
    %v1033 = vld [vmem:[#allocation12 + $0xe0] sm:$0xff]
    %v1034 = vld [vmem:[#allocation12 + $0xe8] sm:$0xff]
    %v1035 = vld [vmem:[#allocation12 + $0xf0] sm:$0xff]
    %v1036 = vld [vmem:[#allocation12 + $0xf8] sm:$0xff]
    %v1037 = vld [vmem:[#allocation12 + $0x100] sm:$0xff]
    %v1038 = vld [vmem:[#allocation12 + $0x108] sm:$0xff]
    %v1039 = vld [vmem:[#allocation12 + $0x110] sm:$0xff]
    %v1040 = vld [vmem:[#allocation12 + $0x118] sm:$0xff]
    %v1041 = vld [vmem:[#allocation12 + $0x120] sm:$0xff]
    %v1042 = vld [vmem:[#allocation12 + $0x128] sm:$0xff]
    %v1043 = vld [vmem:[#allocation12 + $0x130] sm:$0xff]
    %v1044 = vld [vmem:[#allocation12 + $0x138] sm:$0xff]
    %v1045 = vld [vmem:[#allocation12 + $0x140] sm:$0xff]
    %v1046 = vld [vmem:[#allocation12 + $0x148] sm:$0xff]
    %v1047 = vld [vmem:[#allocation12 + $0x150] sm:$0xff]
    %v1048 = vld [vmem:[#allocation12 + $0x158] sm:$0xff]
    %v1049 = vld [vmem:[#allocation12 + $0x160] sm:$0xff]
    %v1050 = vld [vmem:[#allocation12 + $0x168] sm:$0xff]
    %v1051 = vld [vmem:[#allocation12 + $0x170] sm:$0xff]
    %v1052 = vld [vmem:[#allocation12 + $0x178] sm:$0xff]
    %v1053 = vld [vmem:[#allocation12 + $0x180] sm:$0xff]
    %v1054 = vld [vmem:[#allocation12 + $0x188] sm:$0xff]
    %v1055 = vld [vmem:[#allocation12 + $0x190] sm:$0xff]
    %v1056 = vld [vmem:[#allocation12 + $0x198] sm:$0xff]
    %v1057 = vld [vmem:[#allocation12 + $0x1a0] sm:$0xff]
    %v1058 = vld [vmem:[#allocation12 + $0x1a8] sm:$0xff]
    %v1059 = vld [vmem:[#allocation12 + $0x1b0] sm:$0xff]
    %v1060 = vld [vmem:[#allocation12 + $0x1b8] sm:$0xff]
    %v1061 = vld [vmem:[#allocation12 + $0x1c0] sm:$0xff]
    %v1062 = vld [vmem:[#allocation12 + $0x1c8] sm:$0xff]
    %v1063 = vld [vmem:[#allocation12 + $0x1d0] sm:$0xff]
    %v1064 = vld [vmem:[#allocation12 + $0x1d8] sm:$0xff]
    %v1065 = vld [vmem:[#allocation12 + $0x1e0] sm:$0xff]
    %v1066 = vld [vmem:[#allocation12 + $0x1e8] sm:$0xff]
    %v1067 = vld [vmem:[#allocation12 + $0x1f0] sm:$0xff]
    %v1068 = vld [vmem:[#allocation12 + $0x1f8] sm:$0xff]
    %v1069 = vld [vmem:[#allocation12 + $0x200] sm:$0xff]
    %v1070 = vld [vmem:[#allocation12 + $0x208] sm:$0xff]
    %v1071 = vld [vmem:[#allocation12 + $0x210] sm:$0xff]
    %v1072 = vld [vmem:[#allocation12 + $0x218] sm:$0xff]
    %v1073 = vld [vmem:[#allocation12 + $0x220] sm:$0xff]
    %v1074 = vld [vmem:[#allocation12 + $0x228] sm:$0xff]
    %v1075 = vld [vmem:[#allocation12 + $0x230] sm:$0xff]
    %v1076 = vld [vmem:[#allocation12 + $0x238] sm:$0xff]
    %v1077 = vld [vmem:[#allocation12 + $0x240] sm:$0xff]
    %v1078 = vld [vmem:[#allocation12 + $0x248] sm:$0xff]
    %v1079 = vld [vmem:[#allocation12 + $0x250] sm:$0xff]
    %v1080 = vld [vmem:[#allocation12 + $0x258] sm:$0xff]
    %v1081 = vld [vmem:[#allocation12 + $0x260] sm:$0xff]
    %v1082 = vld [vmem:[#allocation12 + $0x268] sm:$0xff]
    %v1083 = vld [vmem:[#allocation12 + $0x270] sm:$0xff]
    %v1084 = vld [vmem:[#allocation12 + $0x278] sm:$0xff]
    %v1085 = vld [vmem:[#allocation12 + $0x280] sm:$0xff]
    %v1086 = vld [vmem:[#allocation12 + $0x288] sm:$0xff]
    %v1087 = vld [vmem:[#allocation12 + $0x290] sm:$0xff]
    %v1088 = vld [vmem:[#allocation12 + $0x298] sm:$0xff]
    %v1089 = vld [vmem:[#allocation12 + $0x2a0] sm:$0xff]
    %v1090 = vld [vmem:[#allocation12 + $0x2a8] sm:$0xff]
    %v1091 = vld [vmem:[#allocation12 + $0x2b0] sm:$0xff]
    %v1092 = vld [vmem:[#allocation12 + $0x2b8] sm:$0xff]
    %v1093 = vld [vmem:[#allocation12 + $0x2c0] sm:$0xff]
    %v1094 = vld [vmem:[#allocation12 + $0x2c8] sm:$0xff]
    %v1095 = vld [vmem:[#allocation12 + $0x2d0] sm:$0xff]
    %v1096 = vld [vmem:[#allocation12 + $0x2d8] sm:$0xff]
    %v1097 = vld [vmem:[#allocation12 + $0x2e0] sm:$0xff]
    %v1098 = vld [vmem:[#allocation12 + $0x2e8] sm:$0xff]
    %v1099 = vld [vmem:[#allocation12 + $0x2f0] sm:$0xff]
    %v1100 = vld [vmem:[#allocation12 + $0x2f8] sm:$0xff]
    %v1101 = vld [vmem:[#allocation12 + $0x300] sm:$0xff]
    %v1102 = vld [vmem:[#allocation12 + $0x308] sm:$0xff]
    %v1103 = vld [vmem:[#allocation12 + $0x310] sm:$0xff]
    %v1104 = vld [vmem:[#allocation12 + $0x318] sm:$0xff]
    %v1105 = vld [vmem:[#allocation12 + $0x320] sm:$0xff]
    %v1106 = vld [vmem:[#allocation12 + $0x328] sm:$0xff]
    %v1107 = vld [vmem:[#allocation12 + $0x330] sm:$0xff]
    %v1108 = vld [vmem:[#allocation12 + $0x338] sm:$0xff]
    %v1109 = vld [vmem:[#allocation12 + $0x340] sm:$0xff]
    %v1110 = vld [vmem:[#allocation12 + $0x348] sm:$0xff]
    %v1111 = vld [vmem:[#allocation12 + $0x350] sm:$0xff]
    %v1112 = vld [vmem:[#allocation12 + $0x358] sm:$0xff]
    %v1113 = vld [vmem:[#allocation12 + $0x360] sm:$0xff]
    %v1114 = vld [vmem:[#allocation12 + $0x368] sm:$0xff]
    %v1115 = vld [vmem:[#allocation12 + $0x370] sm:$0xff]
    %v1116 = vld [vmem:[#allocation12 + $0x378] sm:$0xff]
    %v1117 = vld [vmem:[#allocation12 + $0x380] sm:$0xff]
    %v1118 = vld [vmem:[#allocation12 + $0x388] sm:$0xff]
    %v1119 = vld [vmem:[#allocation12 + $0x390] sm:$0xff]
    %v1120 = vld [vmem:[#allocation12 + $0x398] sm:$0xff]
    %v1121 = vld [vmem:[#allocation12 + $0x3a0] sm:$0xff]
    %v1122 = vld [vmem:[#allocation12 + $0x3a8] sm:$0xff]
    %v1123 = vld [vmem:[#allocation12 + $0x3b0] sm:$0xff]
    %v1124 = vld [vmem:[#allocation12 + $0x3b8] sm:$0xff]
    %v1125 = vld [vmem:[#allocation12 + $0x3c0] sm:$0xff]
    %v1126 = vld [vmem:[#allocation12 + $0x3c8] sm:$0xff]
    %v1127 = vld [vmem:[#allocation12 + $0x3d0] sm:$0xff]
    %v1128 = vld [vmem:[#allocation12 + $0x3d8] sm:$0xff]
    %v1129 = vld [vmem:[#allocation12 + $0x3e0] sm:$0xff]
    %v1130 = vld [vmem:[#allocation12 + $0x3e8] sm:$0xff]
    %v1131 = vld [vmem:[#allocation12 + $0x3f0] sm:$0xff]
    %v1132 = vld [vmem:[#allocation12 + $0x3f8] sm:$0xff]
    %s1133 = scalar_lea.vmem %s8, 7
    %v1134 = vld [vmem:[%s1133] ss:$8 sm:$0xf]
    %v1135 = vpack.c.bf16 %v226, %v222
    %v1136 = vpack.c.bf16 %v227, %v223
    %v1137 = vpack.c.bf16 %v228, %v224
    %v1138 = vpack.c.bf16 %v229, %v225
    %v1140 = vlaneseq
    %v1141 = vshrl.u32 %v1140, 7
    %v1142 = vsub.s32 0, %v1141
    %v1143 = vrot.slane %v1134, %v1142
    %v1144 = vlaneseq
    %v1145 = vshrl.u32 %v1144, 7
    %v1146 = vsub.s32 1, %v1145
    %v1147 = vrot.slane %v1134, %v1146
    %v1148 = vlaneseq
    %v1149 = vshrl.u32 %v1148, 7
    %v1150 = vsub.s32 2, %v1149
    %v1151 = vrot.slane %v1134, %v1150
    %v1152 = vlaneseq
    %v1153 = vshrl.u32 %v1152, 7
    %v1154 = vsub.s32 3, %v1153
    %v1155 = vrot.slane %v1134, %v1154
    %v1288 = vunpack.c.l.b16 %v1005
    %v1289 = vunpack.c.h.b16 %v1005
    %v1290 = vunpack.c.l.b16 %v1006
    %v1291 = vunpack.c.h.b16 %v1006
    %v1292 = vunpack.c.l.b16 %v1007
    %v1293 = vunpack.c.h.b16 %v1007
    %v1294 = vunpack.c.l.b16 %v1008
    %v1295 = vunpack.c.h.b16 %v1008
    %v1296 = vunpack.c.l.b16 %v1009
    %v1297 = vunpack.c.h.b16 %v1009
    %v1298 = vunpack.c.l.b16 %v1010
    %v1299 = vunpack.c.h.b16 %v1010
    %v1300 = vunpack.c.l.b16 %v1011
    %v1301 = vunpack.c.h.b16 %v1011
    %v1302 = vunpack.c.l.b16 %v1012
    %v1303 = vunpack.c.h.b16 %v1012
    %v1304 = vunpack.c.l.b16 %v1013
    %v1305 = vunpack.c.h.b16 %v1013
    %v1306 = vunpack.c.l.b16 %v1014
    %v1307 = vunpack.c.h.b16 %v1014
    %v1308 = vunpack.c.l.b16 %v1015
    %v1309 = vunpack.c.h.b16 %v1015
    %v1310 = vunpack.c.l.b16 %v1016
    %v1311 = vunpack.c.h.b16 %v1016
    %v1312 = vunpack.c.l.b16 %v1017
    %v1313 = vunpack.c.h.b16 %v1017
    %v1314 = vunpack.c.l.b16 %v1018
    %v1315 = vunpack.c.h.b16 %v1018
    %v1316 = vunpack.c.l.b16 %v1019
    %v1317 = vunpack.c.h.b16 %v1019
    %v1318 = vunpack.c.l.b16 %v1020
    %v1319 = vunpack.c.h.b16 %v1020
    %v1320 = vunpack.c.l.b16 %v1021
    %v1321 = vunpack.c.h.b16 %v1021
    %v1322 = vunpack.c.l.b16 %v1022
    %v1323 = vunpack.c.h.b16 %v1022
    %v1324 = vunpack.c.l.b16 %v1023
    %v1325 = vunpack.c.h.b16 %v1023
    %v1326 = vunpack.c.l.b16 %v1024
    %v1327 = vunpack.c.h.b16 %v1024
    %v1328 = vunpack.c.l.b16 %v1025
    %v1329 = vunpack.c.h.b16 %v1025
    %v1330 = vunpack.c.l.b16 %v1026
    %v1331 = vunpack.c.h.b16 %v1026
    %v1332 = vunpack.c.l.b16 %v1027
    %v1333 = vunpack.c.h.b16 %v1027
    %v1334 = vunpack.c.l.b16 %v1028
    %v1335 = vunpack.c.h.b16 %v1028
    %v1336 = vunpack.c.l.b16 %v1029
    %v1337 = vunpack.c.h.b16 %v1029
    %v1338 = vunpack.c.l.b16 %v1030
    %v1339 = vunpack.c.h.b16 %v1030
    %v1340 = vunpack.c.l.b16 %v1031
    %v1341 = vunpack.c.h.b16 %v1031
    %v1342 = vunpack.c.l.b16 %v1032
    %v1343 = vunpack.c.h.b16 %v1032
    %v1344 = vunpack.c.l.b16 %v1033
    %v1345 = vunpack.c.h.b16 %v1033
    %v1346 = vunpack.c.l.b16 %v1034
    %v1347 = vunpack.c.h.b16 %v1034
    %v1348 = vunpack.c.l.b16 %v1035
    %v1349 = vunpack.c.h.b16 %v1035
    %v1350 = vunpack.c.l.b16 %v1036
    %v1351 = vunpack.c.h.b16 %v1036
    %v1352 = vunpack.c.l.b16 %v1037
    %v1353 = vunpack.c.h.b16 %v1037
    %v1354 = vunpack.c.l.b16 %v1038
    %v1355 = vunpack.c.h.b16 %v1038
    %v1356 = vunpack.c.l.b16 %v1039
    %v1357 = vunpack.c.h.b16 %v1039
    %v1358 = vunpack.c.l.b16 %v1040
    %v1359 = vunpack.c.h.b16 %v1040
    %v1360 = vunpack.c.l.b16 %v1041
    %v1361 = vunpack.c.h.b16 %v1041
    %v1362 = vunpack.c.l.b16 %v1042
    %v1363 = vunpack.c.h.b16 %v1042
    %v1364 = vunpack.c.l.b16 %v1043
    %v1365 = vunpack.c.h.b16 %v1043
    %v1366 = vunpack.c.l.b16 %v1044
    %v1367 = vunpack.c.h.b16 %v1044
    %v1368 = vunpack.c.l.b16 %v1045
    %v1369 = vunpack.c.h.b16 %v1045
    %v1370 = vunpack.c.l.b16 %v1046
    %v1371 = vunpack.c.h.b16 %v1046
    %v1372 = vunpack.c.l.b16 %v1047
    %v1373 = vunpack.c.h.b16 %v1047
    %v1374 = vunpack.c.l.b16 %v1048
    %v1375 = vunpack.c.h.b16 %v1048
    %v1376 = vunpack.c.l.b16 %v1049
    %v1377 = vunpack.c.h.b16 %v1049
    %v1378 = vunpack.c.l.b16 %v1050
    %v1379 = vunpack.c.h.b16 %v1050
    %v1380 = vunpack.c.l.b16 %v1051
    %v1381 = vunpack.c.h.b16 %v1051
    %v1382 = vunpack.c.l.b16 %v1052
    %v1383 = vunpack.c.h.b16 %v1052
    %v1384 = vunpack.c.l.b16 %v1053
    %v1385 = vunpack.c.h.b16 %v1053
    %v1386 = vunpack.c.l.b16 %v1054
    %v1387 = vunpack.c.h.b16 %v1054
    %v1388 = vunpack.c.l.b16 %v1055
    %v1389 = vunpack.c.h.b16 %v1055
    %v1390 = vunpack.c.l.b16 %v1056
    %v1391 = vunpack.c.h.b16 %v1056
    %v1392 = vunpack.c.l.b16 %v1057
    %v1393 = vunpack.c.h.b16 %v1057
    %v1394 = vunpack.c.l.b16 %v1058
    %v1395 = vunpack.c.h.b16 %v1058
    %v1396 = vunpack.c.l.b16 %v1059
    %v1397 = vunpack.c.h.b16 %v1059
    %v1398 = vunpack.c.l.b16 %v1060
    %v1399 = vunpack.c.h.b16 %v1060
    %v1400 = vunpack.c.l.b16 %v1061
    %v1401 = vunpack.c.h.b16 %v1061
    %v1402 = vunpack.c.l.b16 %v1062
    %v1403 = vunpack.c.h.b16 %v1062
    %v1404 = vunpack.c.l.b16 %v1063
    %v1405 = vunpack.c.h.b16 %v1063
    %v1406 = vunpack.c.l.b16 %v1064
    %v1407 = vunpack.c.h.b16 %v1064
    %v1408 = vunpack.c.l.b16 %v1065
    %v1409 = vunpack.c.h.b16 %v1065
    %v1410 = vunpack.c.l.b16 %v1066
    %v1411 = vunpack.c.h.b16 %v1066
    %v1412 = vunpack.c.l.b16 %v1067
    %v1413 = vunpack.c.h.b16 %v1067
    %v1414 = vunpack.c.l.b16 %v1068
    %v1415 = vunpack.c.h.b16 %v1068
    %v1416 = vunpack.c.l.b16 %v1069
    %v1417 = vunpack.c.h.b16 %v1069
    %v1418 = vunpack.c.l.b16 %v1070
    %v1419 = vunpack.c.h.b16 %v1070
    %v1420 = vunpack.c.l.b16 %v1071
    %v1421 = vunpack.c.h.b16 %v1071
    %v1422 = vunpack.c.l.b16 %v1072
    %v1423 = vunpack.c.h.b16 %v1072
    %v1424 = vunpack.c.l.b16 %v1073
    %v1425 = vunpack.c.h.b16 %v1073
    %v1426 = vunpack.c.l.b16 %v1074
    %v1427 = vunpack.c.h.b16 %v1074
    %v1428 = vunpack.c.l.b16 %v1075
    %v1429 = vunpack.c.h.b16 %v1075
    %v1430 = vunpack.c.l.b16 %v1076
    %v1431 = vunpack.c.h.b16 %v1076
    %v1432 = vunpack.c.l.b16 %v1077
    %v1433 = vunpack.c.h.b16 %v1077
    %v1434 = vunpack.c.l.b16 %v1078
    %v1435 = vunpack.c.h.b16 %v1078
    %v1436 = vunpack.c.l.b16 %v1079
    %v1437 = vunpack.c.h.b16 %v1079
    %v1438 = vunpack.c.l.b16 %v1080
    %v1439 = vunpack.c.h.b16 %v1080
    %v1440 = vunpack.c.l.b16 %v1081
    %v1441 = vunpack.c.h.b16 %v1081
    %v1442 = vunpack.c.l.b16 %v1082
    %v1443 = vunpack.c.h.b16 %v1082
    %v1444 = vunpack.c.l.b16 %v1083
    %v1445 = vunpack.c.h.b16 %v1083
    %v1446 = vunpack.c.l.b16 %v1084
    %v1447 = vunpack.c.h.b16 %v1084
    %v1448 = vunpack.c.l.b16 %v1085
    %v1449 = vunpack.c.h.b16 %v1085
    %v1450 = vunpack.c.l.b16 %v1086
    %v1451 = vunpack.c.h.b16 %v1086
    %v1452 = vunpack.c.l.b16 %v1087
    %v1453 = vunpack.c.h.b16 %v1087
    %v1454 = vunpack.c.l.b16 %v1088
    %v1455 = vunpack.c.h.b16 %v1088
    %v1456 = vunpack.c.l.b16 %v1089
    %v1457 = vunpack.c.h.b16 %v1089
    %v1458 = vunpack.c.l.b16 %v1090
    %v1459 = vunpack.c.h.b16 %v1090
    %v1460 = vunpack.c.l.b16 %v1091
    %v1461 = vunpack.c.h.b16 %v1091
    %v1462 = vunpack.c.l.b16 %v1092
    %v1463 = vunpack.c.h.b16 %v1092
    %v1464 = vunpack.c.l.b16 %v1093
    %v1465 = vunpack.c.h.b16 %v1093
    %v1466 = vunpack.c.l.b16 %v1094
    %v1467 = vunpack.c.h.b16 %v1094
    %v1468 = vunpack.c.l.b16 %v1095
    %v1469 = vunpack.c.h.b16 %v1095
    %v1470 = vunpack.c.l.b16 %v1096
    %v1471 = vunpack.c.h.b16 %v1096
    %v1472 = vunpack.c.l.b16 %v1097
    %v1473 = vunpack.c.h.b16 %v1097
    %v1474 = vunpack.c.l.b16 %v1098
    %v1475 = vunpack.c.h.b16 %v1098
    %v1476 = vunpack.c.l.b16 %v1099
    %v1477 = vunpack.c.h.b16 %v1099
    %v1478 = vunpack.c.l.b16 %v1100
    %v1479 = vunpack.c.h.b16 %v1100
    %v1480 = vunpack.c.l.b16 %v1101
    %v1481 = vunpack.c.h.b16 %v1101
    %v1482 = vunpack.c.l.b16 %v1102
    %v1483 = vunpack.c.h.b16 %v1102
    %v1484 = vunpack.c.l.b16 %v1103
    %v1485 = vunpack.c.h.b16 %v1103
    %v1486 = vunpack.c.l.b16 %v1104
    %v1487 = vunpack.c.h.b16 %v1104
    %v1488 = vunpack.c.l.b16 %v1105
    %v1489 = vunpack.c.h.b16 %v1105
    %v1490 = vunpack.c.l.b16 %v1106
    %v1491 = vunpack.c.h.b16 %v1106
    %v1492 = vunpack.c.l.b16 %v1107
    %v1493 = vunpack.c.h.b16 %v1107
    %v1494 = vunpack.c.l.b16 %v1108
    %v1495 = vunpack.c.h.b16 %v1108
    %v1496 = vunpack.c.l.b16 %v1109
    %v1497 = vunpack.c.h.b16 %v1109
    %v1498 = vunpack.c.l.b16 %v1110
    %v1499 = vunpack.c.h.b16 %v1110
    %v1500 = vunpack.c.l.b16 %v1111
    %v1501 = vunpack.c.h.b16 %v1111
    %v1502 = vunpack.c.l.b16 %v1112
    %v1503 = vunpack.c.h.b16 %v1112
    %v1504 = vunpack.c.l.b16 %v1113
    %v1505 = vunpack.c.h.b16 %v1113
    %v1506 = vunpack.c.l.b16 %v1114
    %v1507 = vunpack.c.h.b16 %v1114
    %v1508 = vunpack.c.l.b16 %v1115
    %v1509 = vunpack.c.h.b16 %v1115
    %v1510 = vunpack.c.l.b16 %v1116
    %v1511 = vunpack.c.h.b16 %v1116
    %v1512 = vunpack.c.l.b16 %v1117
    %v1513 = vunpack.c.h.b16 %v1117
    %v1514 = vunpack.c.l.b16 %v1118
    %v1515 = vunpack.c.h.b16 %v1118
    %v1516 = vunpack.c.l.b16 %v1119
    %v1517 = vunpack.c.h.b16 %v1119
    %v1518 = vunpack.c.l.b16 %v1120
    %v1519 = vunpack.c.h.b16 %v1120
    %v1520 = vunpack.c.l.b16 %v1121
    %v1521 = vunpack.c.h.b16 %v1121
    %v1522 = vunpack.c.l.b16 %v1122
    %v1523 = vunpack.c.h.b16 %v1122
    %v1524 = vunpack.c.l.b16 %v1123
    %v1525 = vunpack.c.h.b16 %v1123
    %v1526 = vunpack.c.l.b16 %v1124
    %v1527 = vunpack.c.h.b16 %v1124
    %v1528 = vunpack.c.l.b16 %v1125
    %v1529 = vunpack.c.h.b16 %v1125
    %v1530 = vunpack.c.l.b16 %v1126
    %v1531 = vunpack.c.h.b16 %v1126
    %v1532 = vunpack.c.l.b16 %v1127
    %v1533 = vunpack.c.h.b16 %v1127
    %v1534 = vunpack.c.l.b16 %v1128
    %v1535 = vunpack.c.h.b16 %v1128
    %v1536 = vunpack.c.l.b16 %v1129
    %v1537 = vunpack.c.h.b16 %v1129
    %v1538 = vunpack.c.l.b16 %v1130
    %v1539 = vunpack.c.h.b16 %v1130
    %v1540 = vunpack.c.l.b16 %v1131
    %v1541 = vunpack.c.h.b16 %v1131
    %v1542 = vunpack.c.l.b16 %v1132
    %v1543 = vunpack.c.h.b16 %v1132
    %v1544 = vpack.c.b16 %v1292, %v1288
    %v1545 = vpack.c.b16 %v1293, %v1289
    %v1546 = vpack.c.b16 %v1294, %v1290
    %v1547 = vpack.c.b16 %v1295, %v1291
    %v1548 = vpack.c.b16 %v1300, %v1296
    %v1549 = vpack.c.b16 %v1301, %v1297
    %v1550 = vpack.c.b16 %v1302, %v1298
    %v1551 = vpack.c.b16 %v1303, %v1299
    %v1552 = vpack.c.b16 %v1308, %v1304
    %v1553 = vpack.c.b16 %v1309, %v1305
    %v1554 = vpack.c.b16 %v1310, %v1306
    %v1555 = vpack.c.b16 %v1311, %v1307
    %v1556 = vpack.c.b16 %v1316, %v1312
    %v1557 = vpack.c.b16 %v1317, %v1313
    %v1558 = vpack.c.b16 %v1318, %v1314
    %v1559 = vpack.c.b16 %v1319, %v1315
    %v1560 = vpack.c.b16 %v1324, %v1320
    %v1561 = vpack.c.b16 %v1325, %v1321
    %v1562 = vpack.c.b16 %v1326, %v1322
    %v1563 = vpack.c.b16 %v1327, %v1323
    %v1564 = vpack.c.b16 %v1332, %v1328
    %v1565 = vpack.c.b16 %v1333, %v1329
    %v1566 = vpack.c.b16 %v1334, %v1330
    %v1567 = vpack.c.b16 %v1335, %v1331
    %v1568 = vpack.c.b16 %v1340, %v1336
    %v1569 = vpack.c.b16 %v1341, %v1337
    %v1570 = vpack.c.b16 %v1342, %v1338
    %v1571 = vpack.c.b16 %v1343, %v1339
    %v1572 = vpack.c.b16 %v1348, %v1344
    %v1573 = vpack.c.b16 %v1349, %v1345
    %v1574 = vpack.c.b16 %v1350, %v1346
    %v1575 = vpack.c.b16 %v1351, %v1347
    %v1576 = vpack.c.b16 %v1356, %v1352
    %v1577 = vpack.c.b16 %v1357, %v1353
    %v1578 = vpack.c.b16 %v1358, %v1354
    %v1579 = vpack.c.b16 %v1359, %v1355
    %v1580 = vpack.c.b16 %v1364, %v1360
    %v1581 = vpack.c.b16 %v1365, %v1361
    %v1582 = vpack.c.b16 %v1366, %v1362
    %v1583 = vpack.c.b16 %v1367, %v1363
    %v1584 = vpack.c.b16 %v1372, %v1368
    %v1585 = vpack.c.b16 %v1373, %v1369
    %v1586 = vpack.c.b16 %v1374, %v1370
    %v1587 = vpack.c.b16 %v1375, %v1371
    %v1588 = vpack.c.b16 %v1380, %v1376
    %v1589 = vpack.c.b16 %v1381, %v1377
    %v1590 = vpack.c.b16 %v1382, %v1378
    %v1591 = vpack.c.b16 %v1383, %v1379
    %v1592 = vpack.c.b16 %v1388, %v1384
    %v1593 = vpack.c.b16 %v1389, %v1385
    %v1594 = vpack.c.b16 %v1390, %v1386
    %v1595 = vpack.c.b16 %v1391, %v1387
    %v1596 = vpack.c.b16 %v1396, %v1392
    %v1597 = vpack.c.b16 %v1397, %v1393
    %v1598 = vpack.c.b16 %v1398, %v1394
    %v1599 = vpack.c.b16 %v1399, %v1395
    %v1600 = vpack.c.b16 %v1404, %v1400
    %v1601 = vpack.c.b16 %v1405, %v1401
    %v1602 = vpack.c.b16 %v1406, %v1402
    %v1603 = vpack.c.b16 %v1407, %v1403
    %v1604 = vpack.c.b16 %v1412, %v1408
    %v1605 = vpack.c.b16 %v1413, %v1409
    %v1606 = vpack.c.b16 %v1414, %v1410
    %v1607 = vpack.c.b16 %v1415, %v1411
    %v1608 = vpack.c.b16 %v1420, %v1416
    %v1609 = vpack.c.b16 %v1421, %v1417
    %v1610 = vpack.c.b16 %v1422, %v1418
    %v1611 = vpack.c.b16 %v1423, %v1419
    %v1612 = vpack.c.b16 %v1428, %v1424
    %v1613 = vpack.c.b16 %v1429, %v1425
    %v1614 = vpack.c.b16 %v1430, %v1426
    %v1615 = vpack.c.b16 %v1431, %v1427
    %v1616 = vpack.c.b16 %v1436, %v1432
    %v1617 = vpack.c.b16 %v1437, %v1433
    %v1618 = vpack.c.b16 %v1438, %v1434
    %v1619 = vpack.c.b16 %v1439, %v1435
    %v1620 = vpack.c.b16 %v1444, %v1440
    %v1621 = vpack.c.b16 %v1445, %v1441
    %v1622 = vpack.c.b16 %v1446, %v1442
    %v1623 = vpack.c.b16 %v1447, %v1443
    %v1624 = vpack.c.b16 %v1452, %v1448
    %v1625 = vpack.c.b16 %v1453, %v1449
    %v1626 = vpack.c.b16 %v1454, %v1450
    %v1627 = vpack.c.b16 %v1455, %v1451
    %v1628 = vpack.c.b16 %v1460, %v1456
    %v1629 = vpack.c.b16 %v1461, %v1457
    %v1630 = vpack.c.b16 %v1462, %v1458
    %v1631 = vpack.c.b16 %v1463, %v1459
    %v1632 = vpack.c.b16 %v1468, %v1464
    %v1633 = vpack.c.b16 %v1469, %v1465
    %v1634 = vpack.c.b16 %v1470, %v1466
    %v1635 = vpack.c.b16 %v1471, %v1467
    %v1636 = vpack.c.b16 %v1476, %v1472
    %v1637 = vpack.c.b16 %v1477, %v1473
    %v1638 = vpack.c.b16 %v1478, %v1474
    %v1639 = vpack.c.b16 %v1479, %v1475
    %v1640 = vpack.c.b16 %v1484, %v1480
    %v1641 = vpack.c.b16 %v1485, %v1481
    %v1642 = vpack.c.b16 %v1486, %v1482
    %v1643 = vpack.c.b16 %v1487, %v1483
    %v1644 = vpack.c.b16 %v1492, %v1488
    %v1645 = vpack.c.b16 %v1493, %v1489
    %v1646 = vpack.c.b16 %v1494, %v1490
    %v1647 = vpack.c.b16 %v1495, %v1491
    %v1648 = vpack.c.b16 %v1500, %v1496
    %v1649 = vpack.c.b16 %v1501, %v1497
    %v1650 = vpack.c.b16 %v1502, %v1498
    %v1651 = vpack.c.b16 %v1503, %v1499
    %v1652 = vpack.c.b16 %v1508, %v1504
    %v1653 = vpack.c.b16 %v1509, %v1505
    %v1654 = vpack.c.b16 %v1510, %v1506
    %v1655 = vpack.c.b16 %v1511, %v1507
    %v1656 = vpack.c.b16 %v1516, %v1512
    %v1657 = vpack.c.b16 %v1517, %v1513
    %v1658 = vpack.c.b16 %v1518, %v1514
    %v1659 = vpack.c.b16 %v1519, %v1515
    %v1660 = vpack.c.b16 %v1524, %v1520
    %v1661 = vpack.c.b16 %v1525, %v1521
    %v1662 = vpack.c.b16 %v1526, %v1522
    %v1663 = vpack.c.b16 %v1527, %v1523
    %v1664 = vpack.c.b16 %v1532, %v1528
    %v1665 = vpack.c.b16 %v1533, %v1529
    %v1666 = vpack.c.b16 %v1534, %v1530
    %v1667 = vpack.c.b16 %v1535, %v1531
    %v1668 = vpack.c.b16 %v1540, %v1536
    %v1669 = vpack.c.b16 %v1541, %v1537
    %v1670 = vpack.c.b16 %v1542, %v1538
    %v1671 = vpack.c.b16 %v1543, %v1539
    %1800 = vmatprep.subr.bf16.mxu0 %v1545
    %1801 = vmatpush1.bf16.msra.mxu0 %v1544
    %1802 = vmatprep.subr.bf16.mxu0 %v1549
    %1803 = vmatpush1.bf16.msra.mxu0 %v1548
    %1804 = vmatprep.subr.bf16.mxu0 %v1553
    %1805 = vmatpush1.bf16.msra.mxu0 %v1552
    %1806 = vmatprep.subr.bf16.mxu0 %v1557
    %1807 = vmatpush1.bf16.msra.mxu0 %v1556
    %1808 = vmatprep.subr.bf16.mxu0 %v1561
    %1809 = vmatpush1.bf16.msra.mxu0 %v1560
    %1810 = vmatprep.subr.bf16.mxu0 %v1565
    %1811 = vmatpush1.bf16.msra.mxu0 %v1564
    %1812 = vmatprep.subr.bf16.mxu0 %v1569
    %1813 = vmatpush1.bf16.msra.mxu0 %v1568
    %1814 = vmatprep.subr.bf16.mxu0 %v1573
    %1815 = vmatpush1.bf16.msra.mxu0 %v1572
    %1816 = vmatprep.subr.bf16.mxu0 %v1577
    %1817 = vmatpush1.bf16.msra.mxu0 %v1576
    %1818 = vmatprep.subr.bf16.mxu0 %v1581
    %1819 = vmatpush1.bf16.msra.mxu0 %v1580
    %1820 = vmatprep.subr.bf16.mxu0 %v1585
    %1821 = vmatpush1.bf16.msra.mxu0 %v1584
    %1822 = vmatprep.subr.bf16.mxu0 %v1589
    %1823 = vmatpush1.bf16.msra.mxu0 %v1588
    %1824 = vmatprep.subr.bf16.mxu0 %v1593
    %1825 = vmatpush1.bf16.msra.mxu0 %v1592
    %1826 = vmatprep.subr.bf16.mxu0 %v1597
    %1827 = vmatpush1.bf16.msra.mxu0 %v1596
    %1828 = vmatprep.subr.bf16.mxu0 %v1601
    %1829 = vmatpush1.bf16.msra.mxu0 %v1600
    %1830 = vmatprep.subr.bf16.mxu0 %v1605
    %1831 = vmatpush1.bf16.msra.mxu0 %v1604
    %1832 = vmatprep.mubr.bf16.mxu0 %v1136
    %1833 = vmatmul.mubr.bf16.gmra.mrb[0].mxu0 %v1135
    %v1834 = vpop.f32.mrb[0].mxu0
    %v1835 = vadd.f32 %v1143, %v1834
    %v1836 = vpop.f32.mrb[0].mxu0
    %v1837 = vadd.f32 %v1147, %v1836
    %v1838 = vpop.f32.mrb[0].mxu0
    %v1839 = vadd.f32 %v1143, %v1838
    %v1840 = vpop.f32.mrb[0].mxu0
    %v1841 = vadd.f32 %v1147, %v1840
    %1842 = vdwg.mxu0
    %1843 = vmatprep.subr.bf16.mxu0 %v1609
    %1844 = vmatpush1.bf16.msra.mxu0 %v1608
    %1845 = vmatprep.subr.bf16.mxu0 %v1613
    %1846 = vmatpush1.bf16.msra.mxu0 %v1612
    %1847 = vmatprep.subr.bf16.mxu0 %v1617
    %1848 = vmatpush1.bf16.msra.mxu0 %v1616
    %1849 = vmatprep.subr.bf16.mxu0 %v1621
    %1850 = vmatpush1.bf16.msra.mxu0 %v1620
    %1851 = vmatprep.subr.bf16.mxu0 %v1625
    %1852 = vmatpush1.bf16.msra.mxu0 %v1624
    %1853 = vmatprep.subr.bf16.mxu0 %v1629
    %1854 = vmatpush1.bf16.msra.mxu0 %v1628
    %1855 = vmatprep.subr.bf16.mxu0 %v1633
    %1856 = vmatpush1.bf16.msra.mxu0 %v1632
    %1857 = vmatprep.subr.bf16.mxu0 %v1637
    %1858 = vmatpush1.bf16.msra.mxu0 %v1636
    %1859 = vmatprep.subr.bf16.mxu0 %v1641
    %1860 = vmatpush1.bf16.msra.mxu0 %v1640
    %1861 = vmatprep.subr.bf16.mxu0 %v1645
    %1862 = vmatpush1.bf16.msra.mxu0 %v1644
    %1863 = vmatprep.subr.bf16.mxu0 %v1649
    %1864 = vmatpush1.bf16.msra.mxu0 %v1648
    %1865 = vmatprep.subr.bf16.mxu0 %v1653
    %1866 = vmatpush1.bf16.msra.mxu0 %v1652
    %1867 = vmatprep.subr.bf16.mxu0 %v1657
    %1868 = vmatpush1.bf16.msra.mxu0 %v1656
    %1869 = vmatprep.subr.bf16.mxu0 %v1661
    %1870 = vmatpush1.bf16.msra.mxu0 %v1660
    %1871 = vmatprep.subr.bf16.mxu0 %v1665
    %1872 = vmatpush1.bf16.msra.mxu0 %v1664
    %1873 = vmatprep.subr.bf16.mxu0 %v1669
    %1874 = vmatpush1.bf16.msra.mxu0 %v1668
    %1875 = vmatprep.mubr.bf16.mxu0 %v1138
    %1876 = vmatmul.mubr.bf16.gmra.mrb[0].mxu0 %v1137
    %v1877 = vpop.f32.mrb[0].mxu0
    %v1878 = vadd.f32 %v1835, %v1877
    %v1879 = vpop.f32.mrb[0].mxu0
    %v1880 = vadd.f32 %v1837, %v1879
    %v1881 = vpop.f32.mrb[0].mxu0
    %v1882 = vadd.f32 %v1839, %v1881
    %v1883 = vpop.f32.mrb[0].mxu0
    %v1884 = vadd.f32 %v1841, %v1883
    %1885 = vdwg.mxu0
    %1886 = vmatprep.subr.bf16.mxu0 %v1547
    %1887 = vmatpush1.bf16.msra.mxu0 %v1546
    %1888 = vmatprep.subr.bf16.mxu0 %v1551
    %1889 = vmatpush1.bf16.msra.mxu0 %v1550
    %1890 = vmatprep.subr.bf16.mxu0 %v1555
    %1891 = vmatpush1.bf16.msra.mxu0 %v1554
    %1892 = vmatprep.subr.bf16.mxu0 %v1559
    %1893 = vmatpush1.bf16.msra.mxu0 %v1558
    %1894 = vmatprep.subr.bf16.mxu0 %v1563
    %1895 = vmatpush1.bf16.msra.mxu0 %v1562
    %1896 = vmatprep.subr.bf16.mxu0 %v1567
    %1897 = vmatpush1.bf16.msra.mxu0 %v1566
    %1898 = vmatprep.subr.bf16.mxu0 %v1571
    %1899 = vmatpush1.bf16.msra.mxu0 %v1570
    %1900 = vmatprep.subr.bf16.mxu0 %v1575
    %1901 = vmatpush1.bf16.msra.mxu0 %v1574
    %1902 = vmatprep.subr.bf16.mxu0 %v1579
    %1903 = vmatpush1.bf16.msra.mxu0 %v1578
    %1904 = vmatprep.subr.bf16.mxu0 %v1583
    %1905 = vmatpush1.bf16.msra.mxu0 %v1582
    %1906 = vmatprep.subr.bf16.mxu0 %v1587
    %1907 = vmatpush1.bf16.msra.mxu0 %v1586
    %1908 = vmatprep.subr.bf16.mxu0 %v1591
    %1909 = vmatpush1.bf16.msra.mxu0 %v1590
    %1910 = vmatprep.subr.bf16.mxu0 %v1595
    %1911 = vmatpush1.bf16.msra.mxu0 %v1594
    %1912 = vmatprep.subr.bf16.mxu0 %v1599
    %1913 = vmatpush1.bf16.msra.mxu0 %v1598
    %1914 = vmatprep.subr.bf16.mxu0 %v1603
    %1915 = vmatpush1.bf16.msra.mxu0 %v1602
    %1916 = vmatprep.subr.bf16.mxu0 %v1607
    %1917 = vmatpush1.bf16.msra.mxu0 %v1606
    %1918 = vmatprep.mubr.bf16.mxu0 %v1136
    %1919 = vmatmul.mubr.bf16.gmra.mrb[0].mxu0 %v1135
    %v1920 = vpop.f32.mrb[0].mxu0
    %v1921 = vadd.f32 %v1151, %v1920
    %v1922 = vpop.f32.mrb[0].mxu0
    %v1923 = vadd.f32 %v1155, %v1922
    %v1924 = vpop.f32.mrb[0].mxu0
    %v1925 = vadd.f32 %v1151, %v1924
    %v1926 = vpop.f32.mrb[0].mxu0
    %v1927 = vadd.f32 %v1155, %v1926
    %1928 = vdwg.mxu0
    %1929 = vmatprep.subr.bf16.mxu0 %v1611
    %1930 = vmatpush1.bf16.msra.mxu0 %v1610
    %1931 = vmatprep.subr.bf16.mxu0 %v1615
    %1932 = vmatpush1.bf16.msra.mxu0 %v1614
    %1933 = vmatprep.subr.bf16.mxu0 %v1619
    %1934 = vmatpush1.bf16.msra.mxu0 %v1618
    %1935 = vmatprep.subr.bf16.mxu0 %v1623
    %1936 = vmatpush1.bf16.msra.mxu0 %v1622
    %1937 = vmatprep.subr.bf16.mxu0 %v1627
    %1938 = vmatpush1.bf16.msra.mxu0 %v1626
    %1939 = vmatprep.subr.bf16.mxu0 %v1631
    %1940 = vmatpush1.bf16.msra.mxu0 %v1630
    %1941 = vmatprep.subr.bf16.mxu0 %v1635
    %1942 = vmatpush1.bf16.msra.mxu0 %v1634
    %1943 = vmatprep.subr.bf16.mxu0 %v1639
    %1944 = vmatpush1.bf16.msra.mxu0 %v1638
    %1945 = vmatprep.subr.bf16.mxu0 %v1643
    %1946 = vmatpush1.bf16.msra.mxu0 %v1642
    %1947 = vmatprep.subr.bf16.mxu0 %v1647
    %1948 = vmatpush1.bf16.msra.mxu0 %v1646
    %1949 = vmatprep.subr.bf16.mxu0 %v1651
    %1950 = vmatpush1.bf16.msra.mxu0 %v1650
    %1951 = vmatprep.subr.bf16.mxu0 %v1655
    %1952 = vmatpush1.bf16.msra.mxu0 %v1654
    %1953 = vmatprep.subr.bf16.mxu0 %v1659
    %1954 = vmatpush1.bf16.msra.mxu0 %v1658
    %1955 = vmatprep.subr.bf16.mxu0 %v1663
    %1956 = vmatpush1.bf16.msra.mxu0 %v1662
    %1957 = vmatprep.subr.bf16.mxu0 %v1667
    %1958 = vmatpush1.bf16.msra.mxu0 %v1666
    %1959 = vmatprep.subr.bf16.mxu0 %v1671
    %1960 = vmatpush1.bf16.msra.mxu0 %v1670
    %1961 = vmatprep.mubr.bf16.mxu0 %v1138
    %1962 = vmatmul.mubr.bf16.gmra.mrb[0].mxu0 %v1137
    %v1963 = vpop.f32.mrb[0].mxu0
    %v1964 = vadd.f32 %v1921, %v1963
    %v1965 = vpop.f32.mrb[0].mxu0
    %v1966 = vadd.f32 %v1923, %v1965
    %v1967 = vpop.f32.mrb[0].mxu0
    %v1968 = vadd.f32 %v1925, %v1967
    %v1969 = vpop.f32.mrb[0].mxu0
    %v1970 = vadd.f32 %v1927, %v1969
    %1971 = vdwg.mxu0
    %v1972 = vmul.f32 %v1878, 0.2
    %v1973 = vmul.f32 %v1880, 0.2
    %v1974 = vmul.f32 %v1964, 0.2
    %v1975 = vmul.f32 %v1966, 0.2
    %v1976 = vmul.f32 %v1882, 0.2
    %v1977 = vmul.f32 %v1884, 0.2
    %v1978 = vmul.f32 %v1968, 0.2
    %v1979 = vmul.f32 %v1970, 0.2
    %v1980 = vmax.f32 %v1878, %v1972
    %v1981 = vmax.f32 %v1880, %v1973
    %v1982 = vmax.f32 %v1964, %v1974
    %v1983 = vmax.f32 %v1966, %v1975
    %v1984 = vmax.f32 %v1882, %v1976
    %v1985 = vmax.f32 %v1884, %v1977
    %v1986 = vmax.f32 %v1968, %v1978
    %v1987 = vmax.f32 %v1970, %v1979
    %v1988 = vld [vmem:[#allocation11] sm:$0xff]
    %v1989 = vld [vmem:[#allocation11 + $0x8] sm:$0xff]
    %v1990 = vld [vmem:[#allocation11 + $0x10] sm:$0xff]
    %v1991 = vld [vmem:[#allocation11 + $0x18] sm:$0xff]
    %v1992 = vld [vmem:[#allocation11 + $0x20] sm:$0xff]
    %v1993 = vld [vmem:[#allocation11 + $0x28] sm:$0xff]
    %v1994 = vld [vmem:[#allocation11 + $0x30] sm:$0xff]
    %v1995 = vld [vmem:[#allocation11 + $0x38] sm:$0xff]
    %v1996 = vld [vmem:[#allocation11 + $0x40] sm:$0xff]
    %v1997 = vld [vmem:[#allocation11 + $0x48] sm:$0xff]
    %v1998 = vld [vmem:[#allocation11 + $0x50] sm:$0xff]
    %v1999 = vld [vmem:[#allocation11 + $0x58] sm:$0xff]
    %v2000 = vld [vmem:[#allocation11 + $0x60] sm:$0xff]
    %v2001 = vld [vmem:[#allocation11 + $0x68] sm:$0xff]
    %v2002 = vld [vmem:[#allocation11 + $0x70] sm:$0xff]
    %v2003 = vld [vmem:[#allocation11 + $0x78] sm:$0xff]
    %v2004 = vld [vmem:[#allocation11 + $0x80] sm:$0xff]
    %v2005 = vld [vmem:[#allocation11 + $0x88] sm:$0xff]
    %v2006 = vld [vmem:[#allocation11 + $0x90] sm:$0xff]
    %v2007 = vld [vmem:[#allocation11 + $0x98] sm:$0xff]
    %v2008 = vld [vmem:[#allocation11 + $0xa0] sm:$0xff]
    %v2009 = vld [vmem:[#allocation11 + $0xa8] sm:$0xff]
    %v2010 = vld [vmem:[#allocation11 + $0xb0] sm:$0xff]
    %v2011 = vld [vmem:[#allocation11 + $0xb8] sm:$0xff]
    %v2012 = vld [vmem:[#allocation11 + $0xc0] sm:$0xff]
    %v2013 = vld [vmem:[#allocation11 + $0xc8] sm:$0xff]
    %v2014 = vld [vmem:[#allocation11 + $0xd0] sm:$0xff]
    %v2015 = vld [vmem:[#allocation11 + $0xd8] sm:$0xff]
    %v2016 = vld [vmem:[#allocation11 + $0xe0] sm:$0xff]
    %v2017 = vld [vmem:[#allocation11 + $0xe8] sm:$0xff]
    %v2018 = vld [vmem:[#allocation11 + $0xf0] sm:$0xff]
    %v2019 = vld [vmem:[#allocation11 + $0xf8] sm:$0xff]
    %v2020 = vld [vmem:[#allocation11 + $0x100] sm:$0xff]
    %v2021 = vld [vmem:[#allocation11 + $0x108] sm:$0xff]
    %v2022 = vld [vmem:[#allocation11 + $0x110] sm:$0xff]
    %v2023 = vld [vmem:[#allocation11 + $0x118] sm:$0xff]
    %v2024 = vld [vmem:[#allocation11 + $0x120] sm:$0xff]
    %v2025 = vld [vmem:[#allocation11 + $0x128] sm:$0xff]
    %v2026 = vld [vmem:[#allocation11 + $0x130] sm:$0xff]
    %v2027 = vld [vmem:[#allocation11 + $0x138] sm:$0xff]
    %v2028 = vld [vmem:[#allocation11 + $0x140] sm:$0xff]
    %v2029 = vld [vmem:[#allocation11 + $0x148] sm:$0xff]
    %v2030 = vld [vmem:[#allocation11 + $0x150] sm:$0xff]
    %v2031 = vld [vmem:[#allocation11 + $0x158] sm:$0xff]
    %v2032 = vld [vmem:[#allocation11 + $0x160] sm:$0xff]
    %v2033 = vld [vmem:[#allocation11 + $0x168] sm:$0xff]
    %v2034 = vld [vmem:[#allocation11 + $0x170] sm:$0xff]
    %v2035 = vld [vmem:[#allocation11 + $0x178] sm:$0xff]
    %v2036 = vld [vmem:[#allocation11 + $0x180] sm:$0xff]
    %v2037 = vld [vmem:[#allocation11 + $0x188] sm:$0xff]
    %v2038 = vld [vmem:[#allocation11 + $0x190] sm:$0xff]
    %v2039 = vld [vmem:[#allocation11 + $0x198] sm:$0xff]
    %v2040 = vld [vmem:[#allocation11 + $0x1a0] sm:$0xff]
    %v2041 = vld [vmem:[#allocation11 + $0x1a8] sm:$0xff]
    %v2042 = vld [vmem:[#allocation11 + $0x1b0] sm:$0xff]
    %v2043 = vld [vmem:[#allocation11 + $0x1b8] sm:$0xff]
    %v2044 = vld [vmem:[#allocation11 + $0x1c0] sm:$0xff]
    %v2045 = vld [vmem:[#allocation11 + $0x1c8] sm:$0xff]
    %v2046 = vld [vmem:[#allocation11 + $0x1d0] sm:$0xff]
    %v2047 = vld [vmem:[#allocation11 + $0x1d8] sm:$0xff]
    %v2048 = vld [vmem:[#allocation11 + $0x1e0] sm:$0xff]
    %v2049 = vld [vmem:[#allocation11 + $0x1e8] sm:$0xff]
    %v2050 = vld [vmem:[#allocation11 + $0x1f0] sm:$0xff]
    %v2051 = vld [vmem:[#allocation11 + $0x1f8] sm:$0xff]
    %s2052 = scalar_lea.vmem %s8, 32
    %v2053 = vld [vmem:[%s2052] ss:$8 sm:$0x3]
    %v2054 = vpack.c.bf16 %v1984, %v1980
    %v2055 = vpack.c.bf16 %v1985, %v1981
    %v2056 = vpack.c.bf16 %v1986, %v1982
    %v2057 = vpack.c.bf16 %v1987, %v1983
    %v2059 = vlaneseq
    %v2060 = vshrl.u32 %v2059, 7
    %v2061 = vsub.s32 0, %v2060
    %v2062 = vrot.slane %v2053, %v2061
    %v2063 = vlaneseq
    %v2064 = vshrl.u32 %v2063, 7
    %v2065 = vsub.s32 1, %v2064
    %v2066 = vrot.slane %v2053, %v2065
    %v2133 = vunpack.c.l.b16 %v1988
    %v2134 = vunpack.c.h.b16 %v1988
    %v2135 = vunpack.c.l.b16 %v1989
    %v2136 = vunpack.c.h.b16 %v1989
    %v2137 = vunpack.c.l.b16 %v1990
    %v2138 = vunpack.c.h.b16 %v1990
    %v2139 = vunpack.c.l.b16 %v1991
    %v2140 = vunpack.c.h.b16 %v1991
    %v2141 = vunpack.c.l.b16 %v1992
    %v2142 = vunpack.c.h.b16 %v1992
    %v2143 = vunpack.c.l.b16 %v1993
    %v2144 = vunpack.c.h.b16 %v1993
    %v2145 = vunpack.c.l.b16 %v1994
    %v2146 = vunpack.c.h.b16 %v1994
    %v2147 = vunpack.c.l.b16 %v1995
    %v2148 = vunpack.c.h.b16 %v1995
    %v2149 = vunpack.c.l.b16 %v1996
    %v2150 = vunpack.c.h.b16 %v1996
    %v2151 = vunpack.c.l.b16 %v1997
    %v2152 = vunpack.c.h.b16 %v1997
    %v2153 = vunpack.c.l.b16 %v1998
    %v2154 = vunpack.c.h.b16 %v1998
    %v2155 = vunpack.c.l.b16 %v1999
    %v2156 = vunpack.c.h.b16 %v1999
    %v2157 = vunpack.c.l.b16 %v2000
    %v2158 = vunpack.c.h.b16 %v2000
    %v2159 = vunpack.c.l.b16 %v2001
    %v2160 = vunpack.c.h.b16 %v2001
    %v2161 = vunpack.c.l.b16 %v2002
    %v2162 = vunpack.c.h.b16 %v2002
    %v2163 = vunpack.c.l.b16 %v2003
    %v2164 = vunpack.c.h.b16 %v2003
    %v2165 = vunpack.c.l.b16 %v2004
    %v2166 = vunpack.c.h.b16 %v2004
    %v2167 = vunpack.c.l.b16 %v2005
    %v2168 = vunpack.c.h.b16 %v2005
    %v2169 = vunpack.c.l.b16 %v2006
    %v2170 = vunpack.c.h.b16 %v2006
    %v2171 = vunpack.c.l.b16 %v2007
    %v2172 = vunpack.c.h.b16 %v2007
    %v2173 = vunpack.c.l.b16 %v2008
    %v2174 = vunpack.c.h.b16 %v2008
    %v2175 = vunpack.c.l.b16 %v2009
    %v2176 = vunpack.c.h.b16 %v2009
    %v2177 = vunpack.c.l.b16 %v2010
    %v2178 = vunpack.c.h.b16 %v2010
    %v2179 = vunpack.c.l.b16 %v2011
    %v2180 = vunpack.c.h.b16 %v2011
    %v2181 = vunpack.c.l.b16 %v2012
    %v2182 = vunpack.c.h.b16 %v2012
    %v2183 = vunpack.c.l.b16 %v2013
    %v2184 = vunpack.c.h.b16 %v2013
    %v2185 = vunpack.c.l.b16 %v2014
    %v2186 = vunpack.c.h.b16 %v2014
    %v2187 = vunpack.c.l.b16 %v2015
    %v2188 = vunpack.c.h.b16 %v2015
    %v2189 = vunpack.c.l.b16 %v2016
    %v2190 = vunpack.c.h.b16 %v2016
    %v2191 = vunpack.c.l.b16 %v2017
    %v2192 = vunpack.c.h.b16 %v2017
    %v2193 = vunpack.c.l.b16 %v2018
    %v2194 = vunpack.c.h.b16 %v2018
    %v2195 = vunpack.c.l.b16 %v2019
    %v2196 = vunpack.c.h.b16 %v2019
    %v2197 = vunpack.c.l.b16 %v2020
    %v2198 = vunpack.c.h.b16 %v2020
    %v2199 = vunpack.c.l.b16 %v2021
    %v2200 = vunpack.c.h.b16 %v2021
    %v2201 = vunpack.c.l.b16 %v2022
    %v2202 = vunpack.c.h.b16 %v2022
    %v2203 = vunpack.c.l.b16 %v2023
    %v2204 = vunpack.c.h.b16 %v2023
    %v2205 = vunpack.c.l.b16 %v2024
    %v2206 = vunpack.c.h.b16 %v2024
    %v2207 = vunpack.c.l.b16 %v2025
    %v2208 = vunpack.c.h.b16 %v2025
    %v2209 = vunpack.c.l.b16 %v2026
    %v2210 = vunpack.c.h.b16 %v2026
    %v2211 = vunpack.c.l.b16 %v2027
    %v2212 = vunpack.c.h.b16 %v2027
    %v2213 = vunpack.c.l.b16 %v2028
    %v2214 = vunpack.c.h.b16 %v2028
    %v2215 = vunpack.c.l.b16 %v2029
    %v2216 = vunpack.c.h.b16 %v2029
    %v2217 = vunpack.c.l.b16 %v2030
    %v2218 = vunpack.c.h.b16 %v2030
    %v2219 = vunpack.c.l.b16 %v2031
    %v2220 = vunpack.c.h.b16 %v2031
    %v2221 = vunpack.c.l.b16 %v2032
    %v2222 = vunpack.c.h.b16 %v2032
    %v2223 = vunpack.c.l.b16 %v2033
    %v2224 = vunpack.c.h.b16 %v2033
    %v2225 = vunpack.c.l.b16 %v2034
    %v2226 = vunpack.c.h.b16 %v2034
    %v2227 = vunpack.c.l.b16 %v2035
    %v2228 = vunpack.c.h.b16 %v2035
    %v2229 = vunpack.c.l.b16 %v2036
    %v2230 = vunpack.c.h.b16 %v2036
    %v2231 = vunpack.c.l.b16 %v2037
    %v2232 = vunpack.c.h.b16 %v2037
    %v2233 = vunpack.c.l.b16 %v2038
    %v2234 = vunpack.c.h.b16 %v2038
    %v2235 = vunpack.c.l.b16 %v2039
    %v2236 = vunpack.c.h.b16 %v2039
    %v2237 = vunpack.c.l.b16 %v2040
    %v2238 = vunpack.c.h.b16 %v2040
    %v2239 = vunpack.c.l.b16 %v2041
    %v2240 = vunpack.c.h.b16 %v2041
    %v2241 = vunpack.c.l.b16 %v2042
    %v2242 = vunpack.c.h.b16 %v2042
    %v2243 = vunpack.c.l.b16 %v2043
    %v2244 = vunpack.c.h.b16 %v2043
    %v2245 = vunpack.c.l.b16 %v2044
    %v2246 = vunpack.c.h.b16 %v2044
    %v2247 = vunpack.c.l.b16 %v2045
    %v2248 = vunpack.c.h.b16 %v2045
    %v2249 = vunpack.c.l.b16 %v2046
    %v2250 = vunpack.c.h.b16 %v2046
    %v2251 = vunpack.c.l.b16 %v2047
    %v2252 = vunpack.c.h.b16 %v2047
    %v2253 = vunpack.c.l.b16 %v2048
    %v2254 = vunpack.c.h.b16 %v2048
    %v2255 = vunpack.c.l.b16 %v2049
    %v2256 = vunpack.c.h.b16 %v2049
    %v2257 = vunpack.c.l.b16 %v2050
    %v2258 = vunpack.c.h.b16 %v2050
    %v2259 = vunpack.c.l.b16 %v2051
    %v2260 = vunpack.c.h.b16 %v2051
    %v2261 = vpack.c.b16 %v2135, %v2133
    %v2262 = vpack.c.b16 %v2136, %v2134
    %v2263 = vpack.c.b16 %v2139, %v2137
    %v2264 = vpack.c.b16 %v2140, %v2138
    %v2265 = vpack.c.b16 %v2143, %v2141
    %v2266 = vpack.c.b16 %v2144, %v2142
    %v2267 = vpack.c.b16 %v2147, %v2145
    %v2268 = vpack.c.b16 %v2148, %v2146
    %v2269 = vpack.c.b16 %v2151, %v2149
    %v2270 = vpack.c.b16 %v2152, %v2150
    %v2271 = vpack.c.b16 %v2155, %v2153
    %v2272 = vpack.c.b16 %v2156, %v2154
    %v2273 = vpack.c.b16 %v2159, %v2157
    %v2274 = vpack.c.b16 %v2160, %v2158
    %v2275 = vpack.c.b16 %v2163, %v2161
    %v2276 = vpack.c.b16 %v2164, %v2162
    %v2277 = vpack.c.b16 %v2167, %v2165
    %v2278 = vpack.c.b16 %v2168, %v2166
    %v2279 = vpack.c.b16 %v2171, %v2169
    %v2280 = vpack.c.b16 %v2172, %v2170
    %v2281 = vpack.c.b16 %v2175, %v2173
    %v2282 = vpack.c.b16 %v2176, %v2174
    %v2283 = vpack.c.b16 %v2179, %v2177
    %v2284 = vpack.c.b16 %v2180, %v2178
    %v2285 = vpack.c.b16 %v2183, %v2181
    %v2286 = vpack.c.b16 %v2184, %v2182
    %v2287 = vpack.c.b16 %v2187, %v2185
    %v2288 = vpack.c.b16 %v2188, %v2186
    %v2289 = vpack.c.b16 %v2191, %v2189
    %v2290 = vpack.c.b16 %v2192, %v2190
    %v2291 = vpack.c.b16 %v2195, %v2193
    %v2292 = vpack.c.b16 %v2196, %v2194
    %v2293 = vpack.c.b16 %v2199, %v2197
    %v2294 = vpack.c.b16 %v2200, %v2198
    %v2295 = vpack.c.b16 %v2203, %v2201
    %v2296 = vpack.c.b16 %v2204, %v2202
    %v2297 = vpack.c.b16 %v2207, %v2205
    %v2298 = vpack.c.b16 %v2208, %v2206
    %v2299 = vpack.c.b16 %v2211, %v2209
    %v2300 = vpack.c.b16 %v2212, %v2210
    %v2301 = vpack.c.b16 %v2215, %v2213
    %v2302 = vpack.c.b16 %v2216, %v2214
    %v2303 = vpack.c.b16 %v2219, %v2217
    %v2304 = vpack.c.b16 %v2220, %v2218
    %v2305 = vpack.c.b16 %v2223, %v2221
    %v2306 = vpack.c.b16 %v2224, %v2222
    %v2307 = vpack.c.b16 %v2227, %v2225
    %v2308 = vpack.c.b16 %v2228, %v2226
    %v2309 = vpack.c.b16 %v2231, %v2229
    %v2310 = vpack.c.b16 %v2232, %v2230
    %v2311 = vpack.c.b16 %v2235, %v2233
    %v2312 = vpack.c.b16 %v2236, %v2234
    %v2313 = vpack.c.b16 %v2239, %v2237
    %v2314 = vpack.c.b16 %v2240, %v2238
    %v2315 = vpack.c.b16 %v2243, %v2241
    %v2316 = vpack.c.b16 %v2244, %v2242
    %v2317 = vpack.c.b16 %v2247, %v2245
    %v2318 = vpack.c.b16 %v2248, %v2246
    %v2319 = vpack.c.b16 %v2251, %v2249
    %v2320 = vpack.c.b16 %v2252, %v2250
    %v2321 = vpack.c.b16 %v2255, %v2253
    %v2322 = vpack.c.b16 %v2256, %v2254
    %v2323 = vpack.c.b16 %v2259, %v2257
    %v2324 = vpack.c.b16 %v2260, %v2258
    %2389 = vmatprep.subr.bf16.mxu0 %v2262
    %2390 = vmatpush1.bf16.msra.mxu0 %v2261
    %2391 = vmatprep.subr.bf16.mxu0 %v2264
    %2392 = vmatpush1.bf16.msra.mxu0 %v2263
    %2393 = vmatprep.subr.bf16.mxu0 %v2266
    %2394 = vmatpush1.bf16.msra.mxu0 %v2265
    %2395 = vmatprep.subr.bf16.mxu0 %v2268
    %2396 = vmatpush1.bf16.msra.mxu0 %v2267
    %2397 = vmatprep.subr.bf16.mxu0 %v2270
    %2398 = vmatpush1.bf16.msra.mxu0 %v2269
    %2399 = vmatprep.subr.bf16.mxu0 %v2272
    %2400 = vmatpush1.bf16.msra.mxu0 %v2271
    %2401 = vmatprep.subr.bf16.mxu0 %v2274
    %2402 = vmatpush1.bf16.msra.mxu0 %v2273
    %2403 = vmatprep.subr.bf16.mxu0 %v2276
    %2404 = vmatpush1.bf16.msra.mxu0 %v2275
    %2405 = vmatprep.subr.bf16.mxu0 %v2278
    %2406 = vmatpush1.bf16.msra.mxu0 %v2277
    %2407 = vmatprep.subr.bf16.mxu0 %v2280
    %2408 = vmatpush1.bf16.msra.mxu0 %v2279
    %2409 = vmatprep.subr.bf16.mxu0 %v2282
    %2410 = vmatpush1.bf16.msra.mxu0 %v2281
    %2411 = vmatprep.subr.bf16.mxu0 %v2284
    %2412 = vmatpush1.bf16.msra.mxu0 %v2283
    %2413 = vmatprep.subr.bf16.mxu0 %v2286
    %2414 = vmatpush1.bf16.msra.mxu0 %v2285
    %2415 = vmatprep.subr.bf16.mxu0 %v2288
    %2416 = vmatpush1.bf16.msra.mxu0 %v2287
    %2417 = vmatprep.subr.bf16.mxu0 %v2290
    %2418 = vmatpush1.bf16.msra.mxu0 %v2289
    %2419 = vmatprep.subr.bf16.mxu0 %v2292
    %2420 = vmatpush1.bf16.msra.mxu0 %v2291
    %2421 = vmatprep.mubr.bf16.mxu0 %v2055
    %2422 = vmatmul.mubr.bf16.gmra.mrb[0].mxu0 %v2054
    %v2423 = vpop.f32.mrb[0].mxu0
    %v2424 = vadd.f32 %v2062, %v2423
    %v2425 = vpop.f32.mrb[0].mxu0
    %v2426 = vadd.f32 %v2066, %v2425
    %v2427 = vpop.f32.mrb[0].mxu0
    %v2428 = vadd.f32 %v2062, %v2427
    %v2429 = vpop.f32.mrb[0].mxu0
    %v2430 = vadd.f32 %v2066, %v2429
    %2431 = vdwg.mxu0
    %2432 = vmatprep.subr.bf16.mxu0 %v2294
    %2433 = vmatpush1.bf16.msra.mxu0 %v2293
    %2434 = vmatprep.subr.bf16.mxu0 %v2296
    %2435 = vmatpush1.bf16.msra.mxu0 %v2295
    %2436 = vmatprep.subr.bf16.mxu0 %v2298
    %2437 = vmatpush1.bf16.msra.mxu0 %v2297
    %2438 = vmatprep.subr.bf16.mxu0 %v2300
    %2439 = vmatpush1.bf16.msra.mxu0 %v2299
    %2440 = vmatprep.subr.bf16.mxu0 %v2302
    %2441 = vmatpush1.bf16.msra.mxu0 %v2301
    %2442 = vmatprep.subr.bf16.mxu0 %v2304
    %2443 = vmatpush1.bf16.msra.mxu0 %v2303
    %2444 = vmatprep.subr.bf16.mxu0 %v2306
    %2445 = vmatpush1.bf16.msra.mxu0 %v2305
    %2446 = vmatprep.subr.bf16.mxu0 %v2308
    %2447 = vmatpush1.bf16.msra.mxu0 %v2307
    %2448 = vmatprep.subr.bf16.mxu0 %v2310
    %2449 = vmatpush1.bf16.msra.mxu0 %v2309
    %2450 = vmatprep.subr.bf16.mxu0 %v2312
    %2451 = vmatpush1.bf16.msra.mxu0 %v2311
    %2452 = vmatprep.subr.bf16.mxu0 %v2314
    %2453 = vmatpush1.bf16.msra.mxu0 %v2313
    %2454 = vmatprep.subr.bf16.mxu0 %v2316
    %2455 = vmatpush1.bf16.msra.mxu0 %v2315
    %2456 = vmatprep.subr.bf16.mxu0 %v2318
    %2457 = vmatpush1.bf16.msra.mxu0 %v2317
    %2458 = vmatprep.subr.bf16.mxu0 %v2320
    %2459 = vmatpush1.bf16.msra.mxu0 %v2319
    %2460 = vmatprep.subr.bf16.mxu0 %v2322
    %2461 = vmatpush1.bf16.msra.mxu0 %v2321
    %2462 = vmatprep.subr.bf16.mxu0 %v2324
    %2463 = vmatpush1.bf16.msra.mxu0 %v2323
    %2464 = vmatprep.mubr.bf16.mxu0 %v2057
    %2465 = vmatmul.mubr.bf16.gmra.mrb[0].mxu0 %v2056
    %v2466 = vpop.f32.mrb[0].mxu0
    %v2467 = vadd.f32 %v2424, %v2466
    %v2468 = vpop.f32.mrb[0].mxu0
    %v2469 = vadd.f32 %v2426, %v2468
    %v2470 = vpop.f32.mrb[0].mxu0
    %v2471 = vadd.f32 %v2428, %v2470
    %v2472 = vpop.f32.mrb[0].mxu0
    %v2473 = vadd.f32 %v2430, %v2472
    %2474 = vdwg.mxu0
    %v2475 = vmul.f32 %v2467, 0.2
    %v2476 = vmul.f32 %v2469, 0.2
    %v2477 = vmul.f32 %v2471, 0.2
    %v2478 = vmul.f32 %v2473, 0.2
    %v2479 = vmax.f32 %v2467, %v2475
    %v2480 = vmax.f32 %v2469, %v2476
    %v2481 = vmax.f32 %v2471, %v2477
    %v2482 = vmax.f32 %v2473, %v2478
    %s2483 = scalar_lea.vmem [#allocation9], 1280
    %v2484 = vld [vmem:[%s2483] sm:$0xff]
    %v2485 = vld [vmem:[%s2483 + $0x8] sm:$0xff]
    %v2486 = vld [vmem:[%s2483 + $0x10] sm:$0xff]
    %v2487 = vld [vmem:[%s2483 + $0x18] sm:$0xff]
    %v2488 = vld [vmem:[%s2483 + $0x20] sm:$0xff]
    %v2489 = vld [vmem:[%s2483 + $0x28] sm:$0xff]
    %v2490 = vld [vmem:[%s2483 + $0x30] sm:$0xff]
    %v2491 = vld [vmem:[%s2483 + $0x38] sm:$0xff]
    %v2492 = vld [vmem:[%s2483 + $0x40] sm:$0xff]
    %v2493 = vld [vmem:[%s2483 + $0x48] sm:$0xff]
    %v2494 = vld [vmem:[%s2483 + $0x50] sm:$0xff]
    %v2495 = vld [vmem:[%s2483 + $0x58] sm:$0xff]
    %v2496 = vld [vmem:[%s2483 + $0x60] sm:$0xff]
    %v2497 = vld [vmem:[%s2483 + $0x68] sm:$0xff]
    %v2498 = vld [vmem:[%s2483 + $0x70] sm:$0xff]
    %v2499 = vld [vmem:[%s2483 + $0x78] sm:$0xff]
    %v2500 = vld [vmem:[%s2483 + $0x80] sm:$0xff]
    %v2501 = vld [vmem:[%s2483 + $0x88] sm:$0xff]
    %v2502 = vld [vmem:[%s2483 + $0x90] sm:$0xff]
    %v2503 = vld [vmem:[%s2483 + $0x98] sm:$0xff]
    %v2504 = vld [vmem:[%s2483 + $0xa0] sm:$0xff]
    %v2505 = vld [vmem:[%s2483 + $0xa8] sm:$0xff]
    %v2506 = vld [vmem:[%s2483 + $0xb0] sm:$0xff]
    %v2507 = vld [vmem:[%s2483 + $0xb8] sm:$0xff]
    %v2508 = vld [vmem:[%s2483 + $0xc0] sm:$0xff]
    %v2509 = vld [vmem:[%s2483 + $0xc8] sm:$0xff]
    %v2510 = vld [vmem:[%s2483 + $0xd0] sm:$0xff]
    %v2511 = vld [vmem:[%s2483 + $0xd8] sm:$0xff]
    %v2512 = vld [vmem:[%s2483 + $0xe0] sm:$0xff]
    %v2513 = vld [vmem:[%s2483 + $0xe8] sm:$0xff]
    %v2514 = vld [vmem:[%s2483 + $0xf0] sm:$0xff]
    %v2515 = vld [vmem:[%s2483 + $0xf8] sm:$0xff]
    %s2516 = scalar_lea.vmem %s8, 33
    %v2517 = vld [vmem:[%s2516] ss:$8 sm:$0x3]
    %v2518 = vpack.c.bf16 %v2481, %v2479
    %v2519 = vpack.c.bf16 %v2482, %v2480
    %v2521 = vlaneseq
    %v2522 = vshrl.u32 %v2521, 7
    %v2523 = vsub.s32 0, %v2522
    %v2524 = vrot.slane %v2517, %v2523
    %v2525 = vlaneseq
    %v2526 = vshrl.u32 %v2525, 7
    %v2527 = vsub.s32 1, %v2526
    %v2528 = vrot.slane %v2517, %v2527
    %v2563 = vunpack.c.l.b16 %v2484
    %v2564 = vunpack.c.h.b16 %v2484
    %v2565 = vunpack.c.l.b16 %v2485
    %v2566 = vunpack.c.h.b16 %v2485
    %v2567 = vunpack.c.l.b16 %v2486
    %v2568 = vunpack.c.h.b16 %v2486
    %v2569 = vunpack.c.l.b16 %v2487
    %v2570 = vunpack.c.h.b16 %v2487
    %v2571 = vunpack.c.l.b16 %v2488
    %v2572 = vunpack.c.h.b16 %v2488
    %v2573 = vunpack.c.l.b16 %v2489
    %v2574 = vunpack.c.h.b16 %v2489
    %v2575 = vunpack.c.l.b16 %v2490
    %v2576 = vunpack.c.h.b16 %v2490
    %v2577 = vunpack.c.l.b16 %v2491
    %v2578 = vunpack.c.h.b16 %v2491
    %v2579 = vunpack.c.l.b16 %v2492
    %v2580 = vunpack.c.h.b16 %v2492
    %v2581 = vunpack.c.l.b16 %v2493
    %v2582 = vunpack.c.h.b16 %v2493
    %v2583 = vunpack.c.l.b16 %v2494
    %v2584 = vunpack.c.h.b16 %v2494
    %v2585 = vunpack.c.l.b16 %v2495
    %v2586 = vunpack.c.h.b16 %v2495
    %v2587 = vunpack.c.l.b16 %v2496
    %v2588 = vunpack.c.h.b16 %v2496
    %v2589 = vunpack.c.l.b16 %v2497
    %v2590 = vunpack.c.h.b16 %v2497
    %v2591 = vunpack.c.l.b16 %v2498
    %v2592 = vunpack.c.h.b16 %v2498
    %v2593 = vunpack.c.l.b16 %v2499
    %v2594 = vunpack.c.h.b16 %v2499
    %v2595 = vunpack.c.l.b16 %v2500
    %v2596 = vunpack.c.h.b16 %v2500
    %v2597 = vunpack.c.l.b16 %v2501
    %v2598 = vunpack.c.h.b16 %v2501
    %v2599 = vunpack.c.l.b16 %v2502
    %v2600 = vunpack.c.h.b16 %v2502
    %v2601 = vunpack.c.l.b16 %v2503
    %v2602 = vunpack.c.h.b16 %v2503
    %v2603 = vunpack.c.l.b16 %v2504
    %v2604 = vunpack.c.h.b16 %v2504
    %v2605 = vunpack.c.l.b16 %v2505
    %v2606 = vunpack.c.h.b16 %v2505
    %v2607 = vunpack.c.l.b16 %v2506
    %v2608 = vunpack.c.h.b16 %v2506
    %v2609 = vunpack.c.l.b16 %v2507
    %v2610 = vunpack.c.h.b16 %v2507
    %v2611 = vunpack.c.l.b16 %v2508
    %v2612 = vunpack.c.h.b16 %v2508
    %v2613 = vunpack.c.l.b16 %v2509
    %v2614 = vunpack.c.h.b16 %v2509
    %v2615 = vunpack.c.l.b16 %v2510
    %v2616 = vunpack.c.h.b16 %v2510
    %v2617 = vunpack.c.l.b16 %v2511
    %v2618 = vunpack.c.h.b16 %v2511
    %v2619 = vunpack.c.l.b16 %v2512
    %v2620 = vunpack.c.h.b16 %v2512
    %v2621 = vunpack.c.l.b16 %v2513
    %v2622 = vunpack.c.h.b16 %v2513
    %v2623 = vunpack.c.l.b16 %v2514
    %v2624 = vunpack.c.h.b16 %v2514
    %v2625 = vunpack.c.l.b16 %v2515
    %v2626 = vunpack.c.h.b16 %v2515
    %v2627 = vpack.c.b16 %v2565, %v2563
    %v2628 = vpack.c.b16 %v2566, %v2564
    %v2629 = vpack.c.b16 %v2569, %v2567
    %v2630 = vpack.c.b16 %v2570, %v2568
    %v2631 = vpack.c.b16 %v2573, %v2571
    %v2632 = vpack.c.b16 %v2574, %v2572
    %v2633 = vpack.c.b16 %v2577, %v2575
    %v2634 = vpack.c.b16 %v2578, %v2576
    %v2635 = vpack.c.b16 %v2581, %v2579
    %v2636 = vpack.c.b16 %v2582, %v2580
    %v2637 = vpack.c.b16 %v2585, %v2583
    %v2638 = vpack.c.b16 %v2586, %v2584
    %v2639 = vpack.c.b16 %v2589, %v2587
    %v2640 = vpack.c.b16 %v2590, %v2588
    %v2641 = vpack.c.b16 %v2593, %v2591
    %v2642 = vpack.c.b16 %v2594, %v2592
    %v2643 = vpack.c.b16 %v2597, %v2595
    %v2644 = vpack.c.b16 %v2598, %v2596
    %v2645 = vpack.c.b16 %v2601, %v2599
    %v2646 = vpack.c.b16 %v2602, %v2600
    %v2647 = vpack.c.b16 %v2605, %v2603
    %v2648 = vpack.c.b16 %v2606, %v2604
    %v2649 = vpack.c.b16 %v2609, %v2607
    %v2650 = vpack.c.b16 %v2610, %v2608
    %v2651 = vpack.c.b16 %v2613, %v2611
    %v2652 = vpack.c.b16 %v2614, %v2612
    %v2653 = vpack.c.b16 %v2617, %v2615
    %v2654 = vpack.c.b16 %v2618, %v2616
    %v2655 = vpack.c.b16 %v2621, %v2619
    %v2656 = vpack.c.b16 %v2622, %v2620
    %v2657 = vpack.c.b16 %v2625, %v2623
    %v2658 = vpack.c.b16 %v2626, %v2624
    %2691 = vmatprep.subr.bf16.mxu0 %v2628
    %2692 = vmatpush1.bf16.msra.mxu0 %v2627
    %2693 = vmatprep.subr.bf16.mxu0 %v2630
    %2694 = vmatpush1.bf16.msra.mxu0 %v2629
    %2695 = vmatprep.subr.bf16.mxu0 %v2632
    %2696 = vmatpush1.bf16.msra.mxu0 %v2631
    %2697 = vmatprep.subr.bf16.mxu0 %v2634
    %2698 = vmatpush1.bf16.msra.mxu0 %v2633
    %2699 = vmatprep.subr.bf16.mxu0 %v2636
    %2700 = vmatpush1.bf16.msra.mxu0 %v2635
    %2701 = vmatprep.subr.bf16.mxu0 %v2638
    %2702 = vmatpush1.bf16.msra.mxu0 %v2637
    %2703 = vmatprep.subr.bf16.mxu0 %v2640
    %2704 = vmatpush1.bf16.msra.mxu0 %v2639
    %2705 = vmatprep.subr.bf16.mxu0 %v2642
    %2706 = vmatpush1.bf16.msra.mxu0 %v2641
    %2707 = vmatprep.subr.bf16.mxu0 %v2644
    %2708 = vmatpush1.bf16.msra.mxu0 %v2643
    %2709 = vmatprep.subr.bf16.mxu0 %v2646
    %2710 = vmatpush1.bf16.msra.mxu0 %v2645
    %2711 = vmatprep.subr.bf16.mxu0 %v2648
    %2712 = vmatpush1.bf16.msra.mxu0 %v2647
    %2713 = vmatprep.subr.bf16.mxu0 %v2650
    %2714 = vmatpush1.bf16.msra.mxu0 %v2649
    %2715 = vmatprep.subr.bf16.mxu0 %v2652
    %2716 = vmatpush1.bf16.msra.mxu0 %v2651
    %2717 = vmatprep.subr.bf16.mxu0 %v2654
    %2718 = vmatpush1.bf16.msra.mxu0 %v2653
    %2719 = vmatprep.subr.bf16.mxu0 %v2656
    %2720 = vmatpush1.bf16.msra.mxu0 %v2655
    %2721 = vmatprep.subr.bf16.mxu0 %v2658
    %2722 = vmatpush1.bf16.msra.mxu0 %v2657
    %2723 = vmatprep.mubr.bf16.mxu0 %v2519
    %2724 = vmatmul.mubr.bf16.gmra.mrb[0].mxu0 %v2518
    %v2725 = vpop.f32.mrb[0].mxu0
    %v2726 = vadd.f32 %v2524, %v2725
    %v2727 = vpop.f32.mrb[0].mxu0
    %v2728 = vadd.f32 %v2528, %v2727
    %v2729 = vpop.f32.mrb[0].mxu0
    %v2730 = vadd.f32 %v2524, %v2729
    %v2731 = vpop.f32.mrb[0].mxu0
    %v2732 = vadd.f32 %v2528, %v2731
    %2733 = vdwg.mxu0
    %v2734 = vmul.f32 %v2726, 0.2
    %v2735 = vmul.f32 %v2728, 0.2
    %v2736 = vmul.f32 %v2730, 0.2
    %v2737 = vmul.f32 %v2732, 0.2
    %v2738 = vmax.f32 %v2726, %v2734
    %v2739 = vmax.f32 %v2728, %v2735
    %v2740 = vmax.f32 %v2730, %v2736
    %v2741 = vmax.f32 %v2732, %v2737
    %s2742 = scalar_lea.vmem [#allocation9], 768
    %v2743 = vld [vmem:[%s2742] sm:$0xff]
    %v2744 = vld [vmem:[%s2742 + $0x8] sm:$0xff]
    %v2745 = vld [vmem:[%s2742 + $0x10] sm:$0xff]
    %v2746 = vld [vmem:[%s2742 + $0x18] sm:$0xff]
    %v2747 = vld [vmem:[%s2742 + $0x20] sm:$0xff]
    %v2748 = vld [vmem:[%s2742 + $0x28] sm:$0xff]
    %v2749 = vld [vmem:[%s2742 + $0x30] sm:$0xff]
    %v2750 = vld [vmem:[%s2742 + $0x38] sm:$0xff]
    %v2751 = vld [vmem:[%s2742 + $0x40] sm:$0xff]
    %v2752 = vld [vmem:[%s2742 + $0x48] sm:$0xff]
    %v2753 = vld [vmem:[%s2742 + $0x50] sm:$0xff]
    %v2754 = vld [vmem:[%s2742 + $0x58] sm:$0xff]
    %v2755 = vld [vmem:[%s2742 + $0x60] sm:$0xff]
    %v2756 = vld [vmem:[%s2742 + $0x68] sm:$0xff]
    %v2757 = vld [vmem:[%s2742 + $0x70] sm:$0xff]
    %v2758 = vld [vmem:[%s2742 + $0x78] sm:$0xff]
    %v2759 = vld [vmem:[%s2742 + $0x80] sm:$0xff]
    %v2760 = vld [vmem:[%s2742 + $0x88] sm:$0xff]
    %v2761 = vld [vmem:[%s2742 + $0x90] sm:$0xff]
    %v2762 = vld [vmem:[%s2742 + $0x98] sm:$0xff]
    %v2763 = vld [vmem:[%s2742 + $0xa0] sm:$0xff]
    %v2764 = vld [vmem:[%s2742 + $0xa8] sm:$0xff]
    %v2765 = vld [vmem:[%s2742 + $0xb0] sm:$0xff]
    %v2766 = vld [vmem:[%s2742 + $0xb8] sm:$0xff]
    %v2767 = vld [vmem:[%s2742 + $0xc0] sm:$0xff]
    %v2768 = vld [vmem:[%s2742 + $0xc8] sm:$0xff]
    %v2769 = vld [vmem:[%s2742 + $0xd0] sm:$0xff]
    %v2770 = vld [vmem:[%s2742 + $0xd8] sm:$0xff]
    %v2771 = vld [vmem:[%s2742 + $0xe0] sm:$0xff]
    %v2772 = vld [vmem:[%s2742 + $0xe8] sm:$0xff]
    %v2773 = vld [vmem:[%s2742 + $0xf0] sm:$0xff]
    %v2774 = vld [vmem:[%s2742 + $0xf8] sm:$0xff]
    %s2775 = scalar_lea.vmem %s8, 3
    %v2776 = vld [vmem:[%s2775] ss:$8 sm:$0x3]
    %v2777 = vpack.c.bf16 %v1003, %v1001
    %v2778 = vpack.c.bf16 %v1004, %v1002
    %v2780 = vlaneseq
    %v2781 = vshrl.u32 %v2780, 7
    %v2782 = vsub.s32 0, %v2781
    %v2783 = vrot.slane %v2776, %v2782
    %v2784 = vlaneseq
    %v2785 = vshrl.u32 %v2784, 7
    %v2786 = vsub.s32 1, %v2785
    %v2787 = vrot.slane %v2776, %v2786
    %v2822 = vunpack.c.l.b16 %v2743
    %v2823 = vunpack.c.h.b16 %v2743
    %v2824 = vunpack.c.l.b16 %v2744
    %v2825 = vunpack.c.h.b16 %v2744
    %v2826 = vunpack.c.l.b16 %v2745
    %v2827 = vunpack.c.h.b16 %v2745
    %v2828 = vunpack.c.l.b16 %v2746
    %v2829 = vunpack.c.h.b16 %v2746
    %v2830 = vunpack.c.l.b16 %v2747
    %v2831 = vunpack.c.h.b16 %v2747
    %v2832 = vunpack.c.l.b16 %v2748
    %v2833 = vunpack.c.h.b16 %v2748
    %v2834 = vunpack.c.l.b16 %v2749
    %v2835 = vunpack.c.h.b16 %v2749
    %v2836 = vunpack.c.l.b16 %v2750
    %v2837 = vunpack.c.h.b16 %v2750
    %v2838 = vunpack.c.l.b16 %v2751
    %v2839 = vunpack.c.h.b16 %v2751
    %v2840 = vunpack.c.l.b16 %v2752
    %v2841 = vunpack.c.h.b16 %v2752
    %v2842 = vunpack.c.l.b16 %v2753
    %v2843 = vunpack.c.h.b16 %v2753
    %v2844 = vunpack.c.l.b16 %v2754
    %v2845 = vunpack.c.h.b16 %v2754
    %v2846 = vunpack.c.l.b16 %v2755
    %v2847 = vunpack.c.h.b16 %v2755
    %v2848 = vunpack.c.l.b16 %v2756
    %v2849 = vunpack.c.h.b16 %v2756
    %v2850 = vunpack.c.l.b16 %v2757
    %v2851 = vunpack.c.h.b16 %v2757
    %v2852 = vunpack.c.l.b16 %v2758
    %v2853 = vunpack.c.h.b16 %v2758
    %v2854 = vunpack.c.l.b16 %v2759
    %v2855 = vunpack.c.h.b16 %v2759
    %v2856 = vunpack.c.l.b16 %v2760
    %v2857 = vunpack.c.h.b16 %v2760
    %v2858 = vunpack.c.l.b16 %v2761
    %v2859 = vunpack.c.h.b16 %v2761
    %v2860 = vunpack.c.l.b16 %v2762
    %v2861 = vunpack.c.h.b16 %v2762
    %v2862 = vunpack.c.l.b16 %v2763
    %v2863 = vunpack.c.h.b16 %v2763
    %v2864 = vunpack.c.l.b16 %v2764
    %v2865 = vunpack.c.h.b16 %v2764
    %v2866 = vunpack.c.l.b16 %v2765
    %v2867 = vunpack.c.h.b16 %v2765
    %v2868 = vunpack.c.l.b16 %v2766
    %v2869 = vunpack.c.h.b16 %v2766
    %v2870 = vunpack.c.l.b16 %v2767
    %v2871 = vunpack.c.h.b16 %v2767
    %v2872 = vunpack.c.l.b16 %v2768
    %v2873 = vunpack.c.h.b16 %v2768
    %v2874 = vunpack.c.l.b16 %v2769
    %v2875 = vunpack.c.h.b16 %v2769
    %v2876 = vunpack.c.l.b16 %v2770
    %v2877 = vunpack.c.h.b16 %v2770
    %v2878 = vunpack.c.l.b16 %v2771
    %v2879 = vunpack.c.h.b16 %v2771
    %v2880 = vunpack.c.l.b16 %v2772
    %v2881 = vunpack.c.h.b16 %v2772
    %v2882 = vunpack.c.l.b16 %v2773
    %v2883 = vunpack.c.h.b16 %v2773
    %v2884 = vunpack.c.l.b16 %v2774
    %v2885 = vunpack.c.h.b16 %v2774
    %v2886 = vpack.c.b16 %v2824, %v2822
    %v2887 = vpack.c.b16 %v2825, %v2823
    %v2888 = vpack.c.b16 %v2828, %v2826
    %v2889 = vpack.c.b16 %v2829, %v2827
    %v2890 = vpack.c.b16 %v2832, %v2830
    %v2891 = vpack.c.b16 %v2833, %v2831
    %v2892 = vpack.c.b16 %v2836, %v2834
    %v2893 = vpack.c.b16 %v2837, %v2835
    %v2894 = vpack.c.b16 %v2840, %v2838
    %v2895 = vpack.c.b16 %v2841, %v2839
    %v2896 = vpack.c.b16 %v2844, %v2842
    %v2897 = vpack.c.b16 %v2845, %v2843
    %v2898 = vpack.c.b16 %v2848, %v2846
    %v2899 = vpack.c.b16 %v2849, %v2847
    %v2900 = vpack.c.b16 %v2852, %v2850
    %v2901 = vpack.c.b16 %v2853, %v2851
    %v2902 = vpack.c.b16 %v2856, %v2854
    %v2903 = vpack.c.b16 %v2857, %v2855
    %v2904 = vpack.c.b16 %v2860, %v2858
    %v2905 = vpack.c.b16 %v2861, %v2859
    %v2906 = vpack.c.b16 %v2864, %v2862
    %v2907 = vpack.c.b16 %v2865, %v2863
    %v2908 = vpack.c.b16 %v2868, %v2866
    %v2909 = vpack.c.b16 %v2869, %v2867
    %v2910 = vpack.c.b16 %v2872, %v2870
    %v2911 = vpack.c.b16 %v2873, %v2871
    %v2912 = vpack.c.b16 %v2876, %v2874
    %v2913 = vpack.c.b16 %v2877, %v2875
    %v2914 = vpack.c.b16 %v2880, %v2878
    %v2915 = vpack.c.b16 %v2881, %v2879
    %v2916 = vpack.c.b16 %v2884, %v2882
    %v2917 = vpack.c.b16 %v2885, %v2883
    %2950 = vmatprep.subr.bf16.mxu0 %v2887
    %2951 = vmatpush1.bf16.msra.mxu0 %v2886
    %2952 = vmatprep.subr.bf16.mxu0 %v2889
    %2953 = vmatpush1.bf16.msra.mxu0 %v2888
    %2954 = vmatprep.subr.bf16.mxu0 %v2891
    %2955 = vmatpush1.bf16.msra.mxu0 %v2890
    %2956 = vmatprep.subr.bf16.mxu0 %v2893
    %2957 = vmatpush1.bf16.msra.mxu0 %v2892
    %2958 = vmatprep.subr.bf16.mxu0 %v2895
    %2959 = vmatpush1.bf16.msra.mxu0 %v2894
    %2960 = vmatprep.subr.bf16.mxu0 %v2897
    %2961 = vmatpush1.bf16.msra.mxu0 %v2896
    %2962 = vmatprep.subr.bf16.mxu0 %v2899
    %2963 = vmatpush1.bf16.msra.mxu0 %v2898
    %2964 = vmatprep.subr.bf16.mxu0 %v2901
    %2965 = vmatpush1.bf16.msra.mxu0 %v2900
    %2966 = vmatprep.subr.bf16.mxu0 %v2903
    %2967 = vmatpush1.bf16.msra.mxu0 %v2902
    %2968 = vmatprep.subr.bf16.mxu0 %v2905
    %2969 = vmatpush1.bf16.msra.mxu0 %v2904
    %2970 = vmatprep.subr.bf16.mxu0 %v2907
    %2971 = vmatpush1.bf16.msra.mxu0 %v2906
    %2972 = vmatprep.subr.bf16.mxu0 %v2909
    %2973 = vmatpush1.bf16.msra.mxu0 %v2908
    %2974 = vmatprep.subr.bf16.mxu0 %v2911
    %2975 = vmatpush1.bf16.msra.mxu0 %v2910
    %2976 = vmatprep.subr.bf16.mxu0 %v2913
    %2977 = vmatpush1.bf16.msra.mxu0 %v2912
    %2978 = vmatprep.subr.bf16.mxu0 %v2915
    %2979 = vmatpush1.bf16.msra.mxu0 %v2914
    %2980 = vmatprep.subr.bf16.mxu0 %v2917
    %2981 = vmatpush1.bf16.msra.mxu0 %v2916
    %2982 = vmatprep.mubr.bf16.mxu0 %v2778
    %2983 = vmatmul.mubr.bf16.gmra.mrb[0].mxu0 %v2777
    %v2984 = vpop.f32.mrb[0].mxu0
    %v2985 = vadd.f32 %v2783, %v2984
    %v2986 = vpop.f32.mrb[0].mxu0
    %v2987 = vadd.f32 %v2787, %v2986
    %v2988 = vpop.f32.mrb[0].mxu0
    %v2989 = vadd.f32 %v2783, %v2988
    %v2990 = vpop.f32.mrb[0].mxu0
    %v2991 = vadd.f32 %v2787, %v2990
    %2992 = vdwg.mxu0
    %v2993 = vmul.f32 %v2985, 0.2
    %v2994 = vmul.f32 %v2987, 0.2
    %v2995 = vmul.f32 %v2989, 0.2
    %v2996 = vmul.f32 %v2991, 0.2
    %v2997 = vmax.f32 %v2985, %v2993
    %v2998 = vmax.f32 %v2987, %v2994
    %v2999 = vmax.f32 %v2989, %v2995
    %v3000 = vmax.f32 %v2991, %v2996
    %v3001 = vld [vmem:[#allocation7] sm:$0xf]
    %v3002 = vld [vmem:[#allocation7 + $0x4] sm:$0xf]
    %v3003 = vld [vmem:[#allocation7 + $0x8] sm:$0xf]
    %v3004 = vld [vmem:[#allocation7 + $0xc] sm:$0xf]
    %v3005 = vld [vmem:[#allocation7 + $0x10] sm:$0xf]
    %v3006 = vld [vmem:[#allocation7 + $0x14] sm:$0xf]
    %v3007 = vld [vmem:[#allocation7 + $0x18] sm:$0xf]
    %v3008 = vld [vmem:[#allocation7 + $0x1c] sm:$0xf]
    %v3009 = vld [vmem:[#allocation7 + $0x20] sm:$0xf]
    %v3010 = vld [vmem:[#allocation7 + $0x24] sm:$0xf]
    %v3011 = vld [vmem:[#allocation7 + $0x28] sm:$0xf]
    %v3012 = vld [vmem:[#allocation7 + $0x2c] sm:$0xf]
    %v3013 = vld [vmem:[#allocation7 + $0x30] sm:$0xf]
    %v3014 = vld [vmem:[#allocation7 + $0x34] sm:$0xf]
    %v3015 = vld [vmem:[#allocation7 + $0x38] sm:$0xf]
    %v3016 = vld [vmem:[#allocation7 + $0x3c] sm:$0xf]
    %v3017 = vld [vmem:[#allocation7 + $0x40] sm:$0xf]
    %v3018 = vld [vmem:[#allocation7 + $0x44] sm:$0xf]
    %v3019 = vld [vmem:[#allocation7 + $0x48] sm:$0xf]
    %v3020 = vld [vmem:[#allocation7 + $0x4c] sm:$0xf]
    %v3021 = vld [vmem:[#allocation7 + $0x50] sm:$0xf]
    %v3022 = vld [vmem:[#allocation7 + $0x54] sm:$0xf]
    %v3023 = vld [vmem:[#allocation7 + $0x58] sm:$0xf]
    %v3024 = vld [vmem:[#allocation7 + $0x5c] sm:$0xf]
    %v3025 = vld [vmem:[#allocation7 + $0x60] sm:$0xf]
    %v3026 = vld [vmem:[#allocation7 + $0x64] sm:$0xf]
    %v3027 = vld [vmem:[#allocation7 + $0x68] sm:$0xf]
    %v3028 = vld [vmem:[#allocation7 + $0x6c] sm:$0xf]
    %v3029 = vld [vmem:[#allocation7 + $0x70] sm:$0xf]
    %v3030 = vld [vmem:[#allocation7 + $0x74] sm:$0xf]
    %v3031 = vld [vmem:[#allocation7 + $0x78] sm:$0xf]
    %v3032 = vld [vmem:[#allocation7 + $0x7c] sm:$0xf]
    %v3033 = vld [vmem:[%s8 + $0x4] ss:$0 sm:$0xff]
    %v3034 = vpack.c.bf16 %v2999, %v2997
    %v3035 = vpack.c.bf16 %v3000, %v2998
    %v3068 = vunpack.c.l.b16 %v3001
    %v3069 = vunpack.c.l.b16 %v3002
    %v3070 = vunpack.c.l.b16 %v3003
    %v3071 = vunpack.c.l.b16 %v3004
    %v3072 = vunpack.c.l.b16 %v3005
    %v3073 = vunpack.c.l.b16 %v3006
    %v3074 = vunpack.c.l.b16 %v3007
    %v3075 = vunpack.c.l.b16 %v3008
    %v3076 = vunpack.c.l.b16 %v3009
    %v3077 = vunpack.c.l.b16 %v3010
    %v3078 = vunpack.c.l.b16 %v3011
    %v3079 = vunpack.c.l.b16 %v3012
    %v3080 = vunpack.c.l.b16 %v3013
    %v3081 = vunpack.c.l.b16 %v3014
    %v3082 = vunpack.c.l.b16 %v3015
    %v3083 = vunpack.c.l.b16 %v3016
    %v3084 = vunpack.c.l.b16 %v3017
    %v3085 = vunpack.c.l.b16 %v3018
    %v3086 = vunpack.c.l.b16 %v3019
    %v3087 = vunpack.c.l.b16 %v3020
    %v3088 = vunpack.c.l.b16 %v3021
    %v3089 = vunpack.c.l.b16 %v3022
    %v3090 = vunpack.c.l.b16 %v3023
    %v3091 = vunpack.c.l.b16 %v3024
    %v3092 = vunpack.c.l.b16 %v3025
    %v3093 = vunpack.c.l.b16 %v3026
    %v3094 = vunpack.c.l.b16 %v3027
    %v3095 = vunpack.c.l.b16 %v3028
    %v3096 = vunpack.c.l.b16 %v3029
    %v3097 = vunpack.c.l.b16 %v3030
    %v3098 = vunpack.c.l.b16 %v3031
    %v3099 = vunpack.c.l.b16 %v3032
    %v3100 = vpack.c.b16 %v3069, %v3068
    %v3101 = vpack.c.b16 %v3071, %v3070
    %v3102 = vpack.c.b16 %v3073, %v3072
    %v3103 = vpack.c.b16 %v3075, %v3074
    %v3104 = vpack.c.b16 %v3077, %v3076
    %v3105 = vpack.c.b16 %v3079, %v3078
    %v3106 = vpack.c.b16 %v3081, %v3080
    %v3107 = vpack.c.b16 %v3083, %v3082
    %v3108 = vpack.c.b16 %v3085, %v3084
    %v3109 = vpack.c.b16 %v3087, %v3086
    %v3110 = vpack.c.b16 %v3089, %v3088
    %v3111 = vpack.c.b16 %v3091, %v3090
    %v3112 = vpack.c.b16 %v3093, %v3092
    %v3113 = vpack.c.b16 %v3095, %v3094
    %v3114 = vpack.c.b16 %v3097, %v3096
    %v3115 = vpack.c.b16 %v3099, %v3098
    %3132 = vmatprep.subr.bf16.mxu0 0
    %3133 = vmatpush1.bf16.msra.mxu0 %v3100
    %3134 = vmatprep.subr.bf16.mxu0 0
    %3135 = vmatpush1.bf16.msra.mxu0 %v3101
    %3136 = vmatprep.subr.bf16.mxu0 0
    %3137 = vmatpush1.bf16.msra.mxu0 %v3102
    %3138 = vmatprep.subr.bf16.mxu0 0
    %3139 = vmatpush1.bf16.msra.mxu0 %v3103
    %3140 = vmatprep.subr.bf16.mxu0 0
    %3141 = vmatpush1.bf16.msra.mxu0 %v3104
    %3142 = vmatprep.subr.bf16.mxu0 0
    %3143 = vmatpush1.bf16.msra.mxu0 %v3105
    %3144 = vmatprep.subr.bf16.mxu0 0
    %3145 = vmatpush1.bf16.msra.mxu0 %v3106
    %3146 = vmatprep.subr.bf16.mxu0 0
    %3147 = vmatpush1.bf16.msra.mxu0 %v3107
    %3148 = vmatprep.subr.bf16.mxu0 0
    %3149 = vmatpush1.bf16.msra.mxu0 %v3108
    %3150 = vmatprep.subr.bf16.mxu0 0
    %3151 = vmatpush1.bf16.msra.mxu0 %v3109
    %3152 = vmatprep.subr.bf16.mxu0 0
    %3153 = vmatpush1.bf16.msra.mxu0 %v3110
    %3154 = vmatprep.subr.bf16.mxu0 0
    %3155 = vmatpush1.bf16.msra.mxu0 %v3111
    %3156 = vmatprep.subr.bf16.mxu0 0
    %3157 = vmatpush1.bf16.msra.mxu0 %v3112
    %3158 = vmatprep.subr.bf16.mxu0 0
    %3159 = vmatpush1.bf16.msra.mxu0 %v3113
    %3160 = vmatprep.subr.bf16.mxu0 0
    %3161 = vmatpush1.bf16.msra.mxu0 %v3114
    %3162 = vmatprep.subr.bf16.mxu0 0
    %3163 = vmatpush1.bf16.msra.mxu0 %v3115
    %3164 = vmatprep.mubr.bf16.mxu0 %v3035
    %3165 = vmatmul.mubr.bf16.gmra.mrb[0].mxu0 %v3034
    %v3166 = vpop.f32.mrb[0].mxu0
    %v3167 = vadd.f32 %v3033, %v3166
    %v3168 = vpop.f32.mrb[0].mxu0
    %v3169 = vpop.f32.mrb[0].mxu0
    %v3170 = vadd.f32 %v3033, %v3169
    %v3171 = vpop.f32.mrb[0].mxu0
    %3172 = vdwg.mxu0
    %3173 = vst [vmem:[%s14] sm:$0xff] %v3167
    %3174 = vst [vmem:[%s15] sm:$0xff] %v3170
    %s3175 = scalar_lea.vmem [#allocation9], 1024
    %v3176 = vld [vmem:[%s3175] sm:$0xff]
    %v3177 = vld [vmem:[%s3175 + $0x8] sm:$0xff]
    %v3178 = vld [vmem:[%s3175 + $0x10] sm:$0xff]
    %v3179 = vld [vmem:[%s3175 + $0x18] sm:$0xff]
    %v3180 = vld [vmem:[%s3175 + $0x20] sm:$0xff]
    %v3181 = vld [vmem:[%s3175 + $0x28] sm:$0xff]
    %v3182 = vld [vmem:[%s3175 + $0x30] sm:$0xff]
    %v3183 = vld [vmem:[%s3175 + $0x38] sm:$0xff]
    %v3184 = vld [vmem:[%s3175 + $0x40] sm:$0xff]
    %v3185 = vld [vmem:[%s3175 + $0x48] sm:$0xff]
    %v3186 = vld [vmem:[%s3175 + $0x50] sm:$0xff]
    %v3187 = vld [vmem:[%s3175 + $0x58] sm:$0xff]
    %v3188 = vld [vmem:[%s3175 + $0x60] sm:$0xff]
    %v3189 = vld [vmem:[%s3175 + $0x68] sm:$0xff]
    %v3190 = vld [vmem:[%s3175 + $0x70] sm:$0xff]
    %v3191 = vld [vmem:[%s3175 + $0x78] sm:$0xff]
    %v3192 = vld [vmem:[%s3175 + $0x80] sm:$0xff]
    %v3193 = vld [vmem:[%s3175 + $0x88] sm:$0xff]
    %v3194 = vld [vmem:[%s3175 + $0x90] sm:$0xff]
    %v3195 = vld [vmem:[%s3175 + $0x98] sm:$0xff]
    %v3196 = vld [vmem:[%s3175 + $0xa0] sm:$0xff]
    %v3197 = vld [vmem:[%s3175 + $0xa8] sm:$0xff]
    %v3198 = vld [vmem:[%s3175 + $0xb0] sm:$0xff]
    %v3199 = vld [vmem:[%s3175 + $0xb8] sm:$0xff]
    %v3200 = vld [vmem:[%s3175 + $0xc0] sm:$0xff]
    %v3201 = vld [vmem:[%s3175 + $0xc8] sm:$0xff]
    %v3202 = vld [vmem:[%s3175 + $0xd0] sm:$0xff]
    %v3203 = vld [vmem:[%s3175 + $0xd8] sm:$0xff]
    %v3204 = vld [vmem:[%s3175 + $0xe0] sm:$0xff]
    %v3205 = vld [vmem:[%s3175 + $0xe8] sm:$0xff]
    %v3206 = vld [vmem:[%s3175 + $0xf0] sm:$0xff]
    %v3207 = vld [vmem:[%s3175 + $0xf8] sm:$0xff]
    %s3208 = scalar_lea.vmem %s8, 5
    %v3209 = vld [vmem:[%s3208] ss:$8 sm:$0x3]
    %v3211 = vlaneseq
    %v3212 = vshrl.u32 %v3211, 7
    %v3213 = vsub.s32 0, %v3212
    %v3214 = vrot.slane %v3209, %v3213
    %v3215 = vlaneseq
    %v3216 = vshrl.u32 %v3215, 7
    %v3217 = vsub.s32 1, %v3216
    %v3218 = vrot.slane %v3209, %v3217
    %v3253 = vunpack.c.l.b16 %v3176
    %v3254 = vunpack.c.h.b16 %v3176
    %v3255 = vunpack.c.l.b16 %v3177
    %v3256 = vunpack.c.h.b16 %v3177
    %v3257 = vunpack.c.l.b16 %v3178
    %v3258 = vunpack.c.h.b16 %v3178
    %v3259 = vunpack.c.l.b16 %v3179
    %v3260 = vunpack.c.h.b16 %v3179
    %v3261 = vunpack.c.l.b16 %v3180
    %v3262 = vunpack.c.h.b16 %v3180
    %v3263 = vunpack.c.l.b16 %v3181
    %v3264 = vunpack.c.h.b16 %v3181
    %v3265 = vunpack.c.l.b16 %v3182
    %v3266 = vunpack.c.h.b16 %v3182
    %v3267 = vunpack.c.l.b16 %v3183
    %v3268 = vunpack.c.h.b16 %v3183
    %v3269 = vunpack.c.l.b16 %v3184
    %v3270 = vunpack.c.h.b16 %v3184
    %v3271 = vunpack.c.l.b16 %v3185
    %v3272 = vunpack.c.h.b16 %v3185
    %v3273 = vunpack.c.l.b16 %v3186
    %v3274 = vunpack.c.h.b16 %v3186
    %v3275 = vunpack.c.l.b16 %v3187
    %v3276 = vunpack.c.h.b16 %v3187
    %v3277 = vunpack.c.l.b16 %v3188
    %v3278 = vunpack.c.h.b16 %v3188
    %v3279 = vunpack.c.l.b16 %v3189
    %v3280 = vunpack.c.h.b16 %v3189
    %v3281 = vunpack.c.l.b16 %v3190
    %v3282 = vunpack.c.h.b16 %v3190
    %v3283 = vunpack.c.l.b16 %v3191
    %v3284 = vunpack.c.h.b16 %v3191
    %v3285 = vunpack.c.l.b16 %v3192
    %v3286 = vunpack.c.h.b16 %v3192
    %v3287 = vunpack.c.l.b16 %v3193
    %v3288 = vunpack.c.h.b16 %v3193
    %v3289 = vunpack.c.l.b16 %v3194
    %v3290 = vunpack.c.h.b16 %v3194
    %v3291 = vunpack.c.l.b16 %v3195
    %v3292 = vunpack.c.h.b16 %v3195
    %v3293 = vunpack.c.l.b16 %v3196
    %v3294 = vunpack.c.h.b16 %v3196
    %v3295 = vunpack.c.l.b16 %v3197
    %v3296 = vunpack.c.h.b16 %v3197
    %v3297 = vunpack.c.l.b16 %v3198
    %v3298 = vunpack.c.h.b16 %v3198
    %v3299 = vunpack.c.l.b16 %v3199
    %v3300 = vunpack.c.h.b16 %v3199
    %v3301 = vunpack.c.l.b16 %v3200
    %v3302 = vunpack.c.h.b16 %v3200
    %v3303 = vunpack.c.l.b16 %v3201
    %v3304 = vunpack.c.h.b16 %v3201
    %v3305 = vunpack.c.l.b16 %v3202
    %v3306 = vunpack.c.h.b16 %v3202
    %v3307 = vunpack.c.l.b16 %v3203
    %v3308 = vunpack.c.h.b16 %v3203
    %v3309 = vunpack.c.l.b16 %v3204
    %v3310 = vunpack.c.h.b16 %v3204
    %v3311 = vunpack.c.l.b16 %v3205
    %v3312 = vunpack.c.h.b16 %v3205
    %v3313 = vunpack.c.l.b16 %v3206
    %v3314 = vunpack.c.h.b16 %v3206
    %v3315 = vunpack.c.l.b16 %v3207
    %v3316 = vunpack.c.h.b16 %v3207
    %v3317 = vpack.c.b16 %v3255, %v3253
    %v3318 = vpack.c.b16 %v3256, %v3254
    %v3319 = vpack.c.b16 %v3259, %v3257
    %v3320 = vpack.c.b16 %v3260, %v3258
    %v3321 = vpack.c.b16 %v3263, %v3261
    %v3322 = vpack.c.b16 %v3264, %v3262
    %v3323 = vpack.c.b16 %v3267, %v3265
    %v3324 = vpack.c.b16 %v3268, %v3266
    %v3325 = vpack.c.b16 %v3271, %v3269
    %v3326 = vpack.c.b16 %v3272, %v3270
    %v3327 = vpack.c.b16 %v3275, %v3273
    %v3328 = vpack.c.b16 %v3276, %v3274
    %v3329 = vpack.c.b16 %v3279, %v3277
    %v3330 = vpack.c.b16 %v3280, %v3278
    %v3331 = vpack.c.b16 %v3283, %v3281
    %v3332 = vpack.c.b16 %v3284, %v3282
    %v3333 = vpack.c.b16 %v3287, %v3285
    %v3334 = vpack.c.b16 %v3288, %v3286
    %v3335 = vpack.c.b16 %v3291, %v3289
    %v3336 = vpack.c.b16 %v3292, %v3290
    %v3337 = vpack.c.b16 %v3295, %v3293
    %v3338 = vpack.c.b16 %v3296, %v3294
    %v3339 = vpack.c.b16 %v3299, %v3297
    %v3340 = vpack.c.b16 %v3300, %v3298
    %v3341 = vpack.c.b16 %v3303, %v3301
    %v3342 = vpack.c.b16 %v3304, %v3302
    %v3343 = vpack.c.b16 %v3307, %v3305
    %v3344 = vpack.c.b16 %v3308, %v3306
    %v3345 = vpack.c.b16 %v3311, %v3309
    %v3346 = vpack.c.b16 %v3312, %v3310
    %v3347 = vpack.c.b16 %v3315, %v3313
    %v3348 = vpack.c.b16 %v3316, %v3314
    %3381 = vmatprep.subr.bf16.mxu0 %v3318
    %3382 = vmatpush1.bf16.msra.mxu0 %v3317
    %3383 = vmatprep.subr.bf16.mxu0 %v3320
    %3384 = vmatpush1.bf16.msra.mxu0 %v3319
    %3385 = vmatprep.subr.bf16.mxu0 %v3322
    %3386 = vmatpush1.bf16.msra.mxu0 %v3321
    %3387 = vmatprep.subr.bf16.mxu0 %v3324
    %3388 = vmatpush1.bf16.msra.mxu0 %v3323
    %3389 = vmatprep.subr.bf16.mxu0 %v3326
    %3390 = vmatpush1.bf16.msra.mxu0 %v3325
    %3391 = vmatprep.subr.bf16.mxu0 %v3328
    %3392 = vmatpush1.bf16.msra.mxu0 %v3327
    %3393 = vmatprep.subr.bf16.mxu0 %v3330
    %3394 = vmatpush1.bf16.msra.mxu0 %v3329
    %3395 = vmatprep.subr.bf16.mxu0 %v3332
    %3396 = vmatpush1.bf16.msra.mxu0 %v3331
    %3397 = vmatprep.subr.bf16.mxu0 %v3334
    %3398 = vmatpush1.bf16.msra.mxu0 %v3333
    %3399 = vmatprep.subr.bf16.mxu0 %v3336
    %3400 = vmatpush1.bf16.msra.mxu0 %v3335
    %3401 = vmatprep.subr.bf16.mxu0 %v3338
    %3402 = vmatpush1.bf16.msra.mxu0 %v3337
    %3403 = vmatprep.subr.bf16.mxu0 %v3340
    %3404 = vmatpush1.bf16.msra.mxu0 %v3339
    %3405 = vmatprep.subr.bf16.mxu0 %v3342
    %3406 = vmatpush1.bf16.msra.mxu0 %v3341
    %3407 = vmatprep.subr.bf16.mxu0 %v3344
    %3408 = vmatpush1.bf16.msra.mxu0 %v3343
    %3409 = vmatprep.subr.bf16.mxu0 %v3346
    %3410 = vmatpush1.bf16.msra.mxu0 %v3345
    %3411 = vmatprep.subr.bf16.mxu0 %v3348
    %3412 = vmatpush1.bf16.msra.mxu0 %v3347
    %3413 = vmatprep.mubr.bf16.mxu0 %v2778
    %3414 = vmatmul.mubr.bf16.gmra.mrb[0].mxu0 %v2777
    %v3415 = vpop.f32.mrb[0].mxu0
    %v3416 = vadd.f32 %v3214, %v3415
    %v3417 = vpop.f32.mrb[0].mxu0
    %v3418 = vadd.f32 %v3218, %v3417
    %v3419 = vpop.f32.mrb[0].mxu0
    %v3420 = vadd.f32 %v3214, %v3419
    %v3421 = vpop.f32.mrb[0].mxu0
    %v3422 = vadd.f32 %v3218, %v3421
    %3423 = vdwg.mxu0
    %v3424 = vmul.f32 %v3416, 0.2
    %v3425 = vmul.f32 %v3418, 0.2
    %v3426 = vmul.f32 %v3420, 0.2
    %v3427 = vmul.f32 %v3422, 0.2
    %v3428 = vmax.f32 %v3416, %v3424
    %v3429 = vmax.f32 %v3418, %v3425
    %v3430 = vmax.f32 %v3420, %v3426
    %v3431 = vmax.f32 %v3422, %v3427
    %s3432 = scalar_lea.vmem [#allocation7], 128
    %v3433 = vld [vmem:[%s3432] sm:$0xf]
    %v3434 = vld [vmem:[%s3432 + $0x4] sm:$0xf]
    %v3435 = vld [vmem:[%s3432 + $0x8] sm:$0xf]
    %v3436 = vld [vmem:[%s3432 + $0xc] sm:$0xf]
    %v3437 = vld [vmem:[%s3432 + $0x10] sm:$0xf]
    %v3438 = vld [vmem:[%s3432 + $0x14] sm:$0xf]
    %v3439 = vld [vmem:[%s3432 + $0x18] sm:$0xf]
    %v3440 = vld [vmem:[%s3432 + $0x1c] sm:$0xf]
    %v3441 = vld [vmem:[%s3432 + $0x20] sm:$0xf]
    %v3442 = vld [vmem:[%s3432 + $0x24] sm:$0xf]
    %v3443 = vld [vmem:[%s3432 + $0x28] sm:$0xf]
    %v3444 = vld [vmem:[%s3432 + $0x2c] sm:$0xf]
    %v3445 = vld [vmem:[%s3432 + $0x30] sm:$0xf]
    %v3446 = vld [vmem:[%s3432 + $0x34] sm:$0xf]
    %v3447 = vld [vmem:[%s3432 + $0x38] sm:$0xf]
    %v3448 = vld [vmem:[%s3432 + $0x3c] sm:$0xf]
    %v3449 = vld [vmem:[%s3432 + $0x40] sm:$0xf]
    %v3450 = vld [vmem:[%s3432 + $0x44] sm:$0xf]
    %v3451 = vld [vmem:[%s3432 + $0x48] sm:$0xf]
    %v3452 = vld [vmem:[%s3432 + $0x4c] sm:$0xf]
    %v3453 = vld [vmem:[%s3432 + $0x50] sm:$0xf]
    %v3454 = vld [vmem:[%s3432 + $0x54] sm:$0xf]
    %v3455 = vld [vmem:[%s3432 + $0x58] sm:$0xf]
    %v3456 = vld [vmem:[%s3432 + $0x5c] sm:$0xf]
    %v3457 = vld [vmem:[%s3432 + $0x60] sm:$0xf]
    %v3458 = vld [vmem:[%s3432 + $0x64] sm:$0xf]
    %v3459 = vld [vmem:[%s3432 + $0x68] sm:$0xf]
    %v3460 = vld [vmem:[%s3432 + $0x6c] sm:$0xf]
    %v3461 = vld [vmem:[%s3432 + $0x70] sm:$0xf]
    %v3462 = vld [vmem:[%s3432 + $0x74] sm:$0xf]
    %v3463 = vld [vmem:[%s3432 + $0x78] sm:$0xf]
    %v3464 = vld [vmem:[%s3432 + $0x7c] sm:$0xf]
    %v3465 = vld [vmem:[%s8 + $0x6] ss:$0 sm:$0xff]
    %v3466 = vpack.c.bf16 %v3430, %v3428
    %v3467 = vpack.c.bf16 %v3431, %v3429
    %v3500 = vunpack.c.l.b16 %v3433
    %v3501 = vunpack.c.l.b16 %v3434
    %v3502 = vunpack.c.l.b16 %v3435
    %v3503 = vunpack.c.l.b16 %v3436
    %v3504 = vunpack.c.l.b16 %v3437
    %v3505 = vunpack.c.l.b16 %v3438
    %v3506 = vunpack.c.l.b16 %v3439
    %v3507 = vunpack.c.l.b16 %v3440
    %v3508 = vunpack.c.l.b16 %v3441
    %v3509 = vunpack.c.l.b16 %v3442
    %v3510 = vunpack.c.l.b16 %v3443
    %v3511 = vunpack.c.l.b16 %v3444
    %v3512 = vunpack.c.l.b16 %v3445
    %v3513 = vunpack.c.l.b16 %v3446
    %v3514 = vunpack.c.l.b16 %v3447
    %v3515 = vunpack.c.l.b16 %v3448
    %v3516 = vunpack.c.l.b16 %v3449
    %v3517 = vunpack.c.l.b16 %v3450
    %v3518 = vunpack.c.l.b16 %v3451
    %v3519 = vunpack.c.l.b16 %v3452
    %v3520 = vunpack.c.l.b16 %v3453
    %v3521 = vunpack.c.l.b16 %v3454
    %v3522 = vunpack.c.l.b16 %v3455
    %v3523 = vunpack.c.l.b16 %v3456
    %v3524 = vunpack.c.l.b16 %v3457
    %v3525 = vunpack.c.l.b16 %v3458
    %v3526 = vunpack.c.l.b16 %v3459
    %v3527 = vunpack.c.l.b16 %v3460
    %v3528 = vunpack.c.l.b16 %v3461
    %v3529 = vunpack.c.l.b16 %v3462
    %v3530 = vunpack.c.l.b16 %v3463
    %v3531 = vunpack.c.l.b16 %v3464
    %v3532 = vpack.c.b16 %v3501, %v3500
    %v3533 = vpack.c.b16 %v3503, %v3502
    %v3534 = vpack.c.b16 %v3505, %v3504
    %v3535 = vpack.c.b16 %v3507, %v3506
    %v3536 = vpack.c.b16 %v3509, %v3508
    %v3537 = vpack.c.b16 %v3511, %v3510
    %v3538 = vpack.c.b16 %v3513, %v3512
    %v3539 = vpack.c.b16 %v3515, %v3514
    %v3540 = vpack.c.b16 %v3517, %v3516
    %v3541 = vpack.c.b16 %v3519, %v3518
    %v3542 = vpack.c.b16 %v3521, %v3520
    %v3543 = vpack.c.b16 %v3523, %v3522
    %v3544 = vpack.c.b16 %v3525, %v3524
    %v3545 = vpack.c.b16 %v3527, %v3526
    %v3546 = vpack.c.b16 %v3529, %v3528
    %v3547 = vpack.c.b16 %v3531, %v3530
    %3564 = vmatprep.subr.bf16.mxu0 0
    %3565 = vmatpush1.bf16.msra.mxu0 %v3532
    %3566 = vmatprep.subr.bf16.mxu0 0
    %3567 = vmatpush1.bf16.msra.mxu0 %v3533
    %3568 = vmatprep.subr.bf16.mxu0 0
    %3569 = vmatpush1.bf16.msra.mxu0 %v3534
    %3570 = vmatprep.subr.bf16.mxu0 0
    %3571 = vmatpush1.bf16.msra.mxu0 %v3535
    %3572 = vmatprep.subr.bf16.mxu0 0
    %3573 = vmatpush1.bf16.msra.mxu0 %v3536
    %3574 = vmatprep.subr.bf16.mxu0 0
    %3575 = vmatpush1.bf16.msra.mxu0 %v3537
    %3576 = vmatprep.subr.bf16.mxu0 0
    %3577 = vmatpush1.bf16.msra.mxu0 %v3538
    %3578 = vmatprep.subr.bf16.mxu0 0
    %3579 = vmatpush1.bf16.msra.mxu0 %v3539
    %3580 = vmatprep.subr.bf16.mxu0 0
    %3581 = vmatpush1.bf16.msra.mxu0 %v3540
    %3582 = vmatprep.subr.bf16.mxu0 0
    %3583 = vmatpush1.bf16.msra.mxu0 %v3541
    %3584 = vmatprep.subr.bf16.mxu0 0
    %3585 = vmatpush1.bf16.msra.mxu0 %v3542
    %3586 = vmatprep.subr.bf16.mxu0 0
    %3587 = vmatpush1.bf16.msra.mxu0 %v3543
    %3588 = vmatprep.subr.bf16.mxu0 0
    %3589 = vmatpush1.bf16.msra.mxu0 %v3544
    %3590 = vmatprep.subr.bf16.mxu0 0
    %3591 = vmatpush1.bf16.msra.mxu0 %v3545
    %3592 = vmatprep.subr.bf16.mxu0 0
    %3593 = vmatpush1.bf16.msra.mxu0 %v3546
    %3594 = vmatprep.subr.bf16.mxu0 0
    %3595 = vmatpush1.bf16.msra.mxu0 %v3547
    %3596 = vmatprep.mubr.bf16.mxu0 %v3467
    %3597 = vmatmul.mubr.bf16.gmra.mrb[0].mxu0 %v3466
    %v3598 = vpop.f32.mrb[0].mxu0
    %v3599 = vadd.f32 %v3465, %v3598
    %v3600 = vpop.f32.mrb[0].mxu0
    %v3601 = vpop.f32.mrb[0].mxu0
    %v3602 = vadd.f32 %v3465, %v3601
    %v3603 = vpop.f32.mrb[0].mxu0
    %3604 = vdwg.mxu0
    %3605 = vst [vmem:[%s14 + $0x8] sm:$0xff] %v3599
    %3606 = vst [vmem:[%s15 + $0x8] sm:$0xff] %v3602
    %s3607 = scalar_lea.vmem [#allocation9], 1536
    %v3608 = vld [vmem:[%s3607] sm:$0xff]
    %v3609 = vld [vmem:[%s3607 + $0x8] sm:$0xff]
    %v3610 = vld [vmem:[%s3607 + $0x10] sm:$0xff]
    %v3611 = vld [vmem:[%s3607 + $0x18] sm:$0xff]
    %v3612 = vld [vmem:[%s3607 + $0x20] sm:$0xff]
    %v3613 = vld [vmem:[%s3607 + $0x28] sm:$0xff]
    %v3614 = vld [vmem:[%s3607 + $0x30] sm:$0xff]
    %v3615 = vld [vmem:[%s3607 + $0x38] sm:$0xff]
    %v3616 = vld [vmem:[%s3607 + $0x40] sm:$0xff]
    %v3617 = vld [vmem:[%s3607 + $0x48] sm:$0xff]
    %v3618 = vld [vmem:[%s3607 + $0x50] sm:$0xff]
    %v3619 = vld [vmem:[%s3607 + $0x58] sm:$0xff]
    %v3620 = vld [vmem:[%s3607 + $0x60] sm:$0xff]
    %v3621 = vld [vmem:[%s3607 + $0x68] sm:$0xff]
    %v3622 = vld [vmem:[%s3607 + $0x70] sm:$0xff]
    %v3623 = vld [vmem:[%s3607 + $0x78] sm:$0xff]
    %v3624 = vld [vmem:[%s3607 + $0x80] sm:$0xff]
    %v3625 = vld [vmem:[%s3607 + $0x88] sm:$0xff]
    %v3626 = vld [vmem:[%s3607 + $0x90] sm:$0xff]
    %v3627 = vld [vmem:[%s3607 + $0x98] sm:$0xff]
    %v3628 = vld [vmem:[%s3607 + $0xa0] sm:$0xff]
    %v3629 = vld [vmem:[%s3607 + $0xa8] sm:$0xff]
    %v3630 = vld [vmem:[%s3607 + $0xb0] sm:$0xff]
    %v3631 = vld [vmem:[%s3607 + $0xb8] sm:$0xff]
    %v3632 = vld [vmem:[%s3607 + $0xc0] sm:$0xff]
    %v3633 = vld [vmem:[%s3607 + $0xc8] sm:$0xff]
    %v3634 = vld [vmem:[%s3607 + $0xd0] sm:$0xff]
    %v3635 = vld [vmem:[%s3607 + $0xd8] sm:$0xff]
    %v3636 = vld [vmem:[%s3607 + $0xe0] sm:$0xff]
    %v3637 = vld [vmem:[%s3607 + $0xe8] sm:$0xff]
    %v3638 = vld [vmem:[%s3607 + $0xf0] sm:$0xff]
    %v3639 = vld [vmem:[%s3607 + $0xf8] sm:$0xff]
    %s3640 = scalar_lea.vmem %s8, 34
    %v3641 = vld [vmem:[%s3640] ss:$8 sm:$0x3]
    %v3642 = vpack.c.bf16 %v2740, %v2738
    %v3643 = vpack.c.bf16 %v2741, %v2739
    %v3645 = vlaneseq
    %v3646 = vshrl.u32 %v3645, 7
    %v3647 = vsub.s32 0, %v3646
    %v3648 = vrot.slane %v3641, %v3647
    %v3649 = vlaneseq
    %v3650 = vshrl.u32 %v3649, 7
    %v3651 = vsub.s32 1, %v3650
    %v3652 = vrot.slane %v3641, %v3651
    %v3687 = vunpack.c.l.b16 %v3608
    %v3688 = vunpack.c.h.b16 %v3608
    %v3689 = vunpack.c.l.b16 %v3609
    %v3690 = vunpack.c.h.b16 %v3609
    %v3691 = vunpack.c.l.b16 %v3610
    %v3692 = vunpack.c.h.b16 %v3610
    %v3693 = vunpack.c.l.b16 %v3611
    %v3694 = vunpack.c.h.b16 %v3611
    %v3695 = vunpack.c.l.b16 %v3612
    %v3696 = vunpack.c.h.b16 %v3612
    %v3697 = vunpack.c.l.b16 %v3613
    %v3698 = vunpack.c.h.b16 %v3613
    %v3699 = vunpack.c.l.b16 %v3614
    %v3700 = vunpack.c.h.b16 %v3614
    %v3701 = vunpack.c.l.b16 %v3615
    %v3702 = vunpack.c.h.b16 %v3615
    %v3703 = vunpack.c.l.b16 %v3616
    %v3704 = vunpack.c.h.b16 %v3616
    %v3705 = vunpack.c.l.b16 %v3617
    %v3706 = vunpack.c.h.b16 %v3617
    %v3707 = vunpack.c.l.b16 %v3618
    %v3708 = vunpack.c.h.b16 %v3618
    %v3709 = vunpack.c.l.b16 %v3619
    %v3710 = vunpack.c.h.b16 %v3619
    %v3711 = vunpack.c.l.b16 %v3620
    %v3712 = vunpack.c.h.b16 %v3620
    %v3713 = vunpack.c.l.b16 %v3621
    %v3714 = vunpack.c.h.b16 %v3621
    %v3715 = vunpack.c.l.b16 %v3622
    %v3716 = vunpack.c.h.b16 %v3622
    %v3717 = vunpack.c.l.b16 %v3623
    %v3718 = vunpack.c.h.b16 %v3623
    %v3719 = vunpack.c.l.b16 %v3624
    %v3720 = vunpack.c.h.b16 %v3624
    %v3721 = vunpack.c.l.b16 %v3625
    %v3722 = vunpack.c.h.b16 %v3625
    %v3723 = vunpack.c.l.b16 %v3626
    %v3724 = vunpack.c.h.b16 %v3626
    %v3725 = vunpack.c.l.b16 %v3627
    %v3726 = vunpack.c.h.b16 %v3627
    %v3727 = vunpack.c.l.b16 %v3628
    %v3728 = vunpack.c.h.b16 %v3628
    %v3729 = vunpack.c.l.b16 %v3629
    %v3730 = vunpack.c.h.b16 %v3629
    %v3731 = vunpack.c.l.b16 %v3630
    %v3732 = vunpack.c.h.b16 %v3630
    %v3733 = vunpack.c.l.b16 %v3631
    %v3734 = vunpack.c.h.b16 %v3631
    %v3735 = vunpack.c.l.b16 %v3632
    %v3736 = vunpack.c.h.b16 %v3632
    %v3737 = vunpack.c.l.b16 %v3633
    %v3738 = vunpack.c.h.b16 %v3633
    %v3739 = vunpack.c.l.b16 %v3634
    %v3740 = vunpack.c.h.b16 %v3634
    %v3741 = vunpack.c.l.b16 %v3635
    %v3742 = vunpack.c.h.b16 %v3635
    %v3743 = vunpack.c.l.b16 %v3636
    %v3744 = vunpack.c.h.b16 %v3636
    %v3745 = vunpack.c.l.b16 %v3637
    %v3746 = vunpack.c.h.b16 %v3637
    %v3747 = vunpack.c.l.b16 %v3638
    %v3748 = vunpack.c.h.b16 %v3638
    %v3749 = vunpack.c.l.b16 %v3639
    %v3750 = vunpack.c.h.b16 %v3639
    %v3751 = vpack.c.b16 %v3689, %v3687
    %v3752 = vpack.c.b16 %v3690, %v3688
    %v3753 = vpack.c.b16 %v3693, %v3691
    %v3754 = vpack.c.b16 %v3694, %v3692
    %v3755 = vpack.c.b16 %v3697, %v3695
    %v3756 = vpack.c.b16 %v3698, %v3696
    %v3757 = vpack.c.b16 %v3701, %v3699
    %v3758 = vpack.c.b16 %v3702, %v3700
    %v3759 = vpack.c.b16 %v3705, %v3703
    %v3760 = vpack.c.b16 %v3706, %v3704
    %v3761 = vpack.c.b16 %v3709, %v3707
    %v3762 = vpack.c.b16 %v3710, %v3708
    %v3763 = vpack.c.b16 %v3713, %v3711
    %v3764 = vpack.c.b16 %v3714, %v3712
    %v3765 = vpack.c.b16 %v3717, %v3715
    %v3766 = vpack.c.b16 %v3718, %v3716
    %v3767 = vpack.c.b16 %v3721, %v3719
    %v3768 = vpack.c.b16 %v3722, %v3720
    %v3769 = vpack.c.b16 %v3725, %v3723
    %v3770 = vpack.c.b16 %v3726, %v3724
    %v3771 = vpack.c.b16 %v3729, %v3727
    %v3772 = vpack.c.b16 %v3730, %v3728
    %v3773 = vpack.c.b16 %v3733, %v3731
    %v3774 = vpack.c.b16 %v3734, %v3732
    %v3775 = vpack.c.b16 %v3737, %v3735
    %v3776 = vpack.c.b16 %v3738, %v3736
    %v3777 = vpack.c.b16 %v3741, %v3739
    %v3778 = vpack.c.b16 %v3742, %v3740
    %v3779 = vpack.c.b16 %v3745, %v3743
    %v3780 = vpack.c.b16 %v3746, %v3744
    %v3781 = vpack.c.b16 %v3749, %v3747
    %v3782 = vpack.c.b16 %v3750, %v3748
    %3815 = vmatprep.subr.bf16.mxu0 %v3752
    %3816 = vmatpush1.bf16.msra.mxu0 %v3751
    %3817 = vmatprep.subr.bf16.mxu0 %v3754
    %3818 = vmatpush1.bf16.msra.mxu0 %v3753
    %3819 = vmatprep.subr.bf16.mxu0 %v3756
    %3820 = vmatpush1.bf16.msra.mxu0 %v3755
    %3821 = vmatprep.subr.bf16.mxu0 %v3758
    %3822 = vmatpush1.bf16.msra.mxu0 %v3757
    %3823 = vmatprep.subr.bf16.mxu0 %v3760
    %3824 = vmatpush1.bf16.msra.mxu0 %v3759
    %3825 = vmatprep.subr.bf16.mxu0 %v3762
    %3826 = vmatpush1.bf16.msra.mxu0 %v3761
    %3827 = vmatprep.subr.bf16.mxu0 %v3764
    %3828 = vmatpush1.bf16.msra.mxu0 %v3763
    %3829 = vmatprep.subr.bf16.mxu0 %v3766
    %3830 = vmatpush1.bf16.msra.mxu0 %v3765
    %3831 = vmatprep.subr.bf16.mxu0 %v3768
    %3832 = vmatpush1.bf16.msra.mxu0 %v3767
    %3833 = vmatprep.subr.bf16.mxu0 %v3770
    %3834 = vmatpush1.bf16.msra.mxu0 %v3769
    %3835 = vmatprep.subr.bf16.mxu0 %v3772
    %3836 = vmatpush1.bf16.msra.mxu0 %v3771
    %3837 = vmatprep.subr.bf16.mxu0 %v3774
    %3838 = vmatpush1.bf16.msra.mxu0 %v3773
    %3839 = vmatprep.subr.bf16.mxu0 %v3776
    %3840 = vmatpush1.bf16.msra.mxu0 %v3775
    %3841 = vmatprep.subr.bf16.mxu0 %v3778
    %3842 = vmatpush1.bf16.msra.mxu0 %v3777
    %3843 = vmatprep.subr.bf16.mxu0 %v3780
    %3844 = vmatpush1.bf16.msra.mxu0 %v3779
    %3845 = vmatprep.subr.bf16.mxu0 %v3782
    %3846 = vmatpush1.bf16.msra.mxu0 %v3781
    %3847 = vmatprep.mubr.bf16.mxu0 %v3643
    %3848 = vmatmul.mubr.bf16.gmra.mrb[0].mxu0 %v3642
    %v3849 = vpop.f32.mrb[0].mxu0
    %v3850 = vadd.f32 %v3648, %v3849
    %v3851 = vpop.f32.mrb[0].mxu0
    %v3852 = vadd.f32 %v3652, %v3851
    %v3853 = vpop.f32.mrb[0].mxu0
    %v3854 = vadd.f32 %v3648, %v3853
    %v3855 = vpop.f32.mrb[0].mxu0
    %v3856 = vadd.f32 %v3652, %v3855
    %3857 = vdwg.mxu0
    %v3858 = vmul.f32 %v3850, 0.2
    %v3859 = vmul.f32 %v3852, 0.2
    %v3860 = vmul.f32 %v3854, 0.2
    %v3861 = vmul.f32 %v3856, 0.2
    %v3862 = vmax.f32 %v3850, %v3858
    %v3863 = vmax.f32 %v3852, %v3859
    %v3864 = vmax.f32 %v3854, %v3860
    %v3865 = vmax.f32 %v3856, %v3861
    %s3866 = scalar_lea.vmem [#allocation7], 256
    %v3867 = vld [vmem:[%s3866] sm:$0xf]
    %v3868 = vld [vmem:[%s3866 + $0x4] sm:$0xf]
    %v3869 = vld [vmem:[%s3866 + $0x8] sm:$0xf]
    %v3870 = vld [vmem:[%s3866 + $0xc] sm:$0xf]
    %v3871 = vld [vmem:[%s3866 + $0x10] sm:$0xf]
    %v3872 = vld [vmem:[%s3866 + $0x14] sm:$0xf]
    %v3873 = vld [vmem:[%s3866 + $0x18] sm:$0xf]
    %v3874 = vld [vmem:[%s3866 + $0x1c] sm:$0xf]
    %v3875 = vld [vmem:[%s3866 + $0x20] sm:$0xf]
    %v3876 = vld [vmem:[%s3866 + $0x24] sm:$0xf]
    %v3877 = vld [vmem:[%s3866 + $0x28] sm:$0xf]
    %v3878 = vld [vmem:[%s3866 + $0x2c] sm:$0xf]
    %v3879 = vld [vmem:[%s3866 + $0x30] sm:$0xf]
    %v3880 = vld [vmem:[%s3866 + $0x34] sm:$0xf]
    %v3881 = vld [vmem:[%s3866 + $0x38] sm:$0xf]
    %v3882 = vld [vmem:[%s3866 + $0x3c] sm:$0xf]
    %v3883 = vld [vmem:[%s3866 + $0x40] sm:$0xf]
    %v3884 = vld [vmem:[%s3866 + $0x44] sm:$0xf]
    %v3885 = vld [vmem:[%s3866 + $0x48] sm:$0xf]
    %v3886 = vld [vmem:[%s3866 + $0x4c] sm:$0xf]
    %v3887 = vld [vmem:[%s3866 + $0x50] sm:$0xf]
    %v3888 = vld [vmem:[%s3866 + $0x54] sm:$0xf]
    %v3889 = vld [vmem:[%s3866 + $0x58] sm:$0xf]
    %v3890 = vld [vmem:[%s3866 + $0x5c] sm:$0xf]
    %v3891 = vld [vmem:[%s3866 + $0x60] sm:$0xf]
    %v3892 = vld [vmem:[%s3866 + $0x64] sm:$0xf]
    %v3893 = vld [vmem:[%s3866 + $0x68] sm:$0xf]
    %v3894 = vld [vmem:[%s3866 + $0x6c] sm:$0xf]
    %v3895 = vld [vmem:[%s3866 + $0x70] sm:$0xf]
    %v3896 = vld [vmem:[%s3866 + $0x74] sm:$0xf]
    %v3897 = vld [vmem:[%s3866 + $0x78] sm:$0xf]
    %v3898 = vld [vmem:[%s3866 + $0x7c] sm:$0xf]
    %v3899 = vld [vmem:[%s8 + $0x23] ss:$0 sm:$0xff]
    %v3900 = vpack.c.bf16 %v3864, %v3862
    %v3901 = vpack.c.bf16 %v3865, %v3863
    %v3934 = vunpack.c.l.b16 %v3867
    %v3935 = vunpack.c.l.b16 %v3868
    %v3936 = vunpack.c.l.b16 %v3869
    %v3937 = vunpack.c.l.b16 %v3870
    %v3938 = vunpack.c.l.b16 %v3871
    %v3939 = vunpack.c.l.b16 %v3872
    %v3940 = vunpack.c.l.b16 %v3873
    %v3941 = vunpack.c.l.b16 %v3874
    %v3942 = vunpack.c.l.b16 %v3875
    %v3943 = vunpack.c.l.b16 %v3876
    %v3944 = vunpack.c.l.b16 %v3877
    %v3945 = vunpack.c.l.b16 %v3878
    %v3946 = vunpack.c.l.b16 %v3879
    %v3947 = vunpack.c.l.b16 %v3880
    %v3948 = vunpack.c.l.b16 %v3881
    %v3949 = vunpack.c.l.b16 %v3882
    %v3950 = vunpack.c.l.b16 %v3883
    %v3951 = vunpack.c.l.b16 %v3884
    %v3952 = vunpack.c.l.b16 %v3885
    %v3953 = vunpack.c.l.b16 %v3886
    %v3954 = vunpack.c.l.b16 %v3887
    %v3955 = vunpack.c.l.b16 %v3888
    %v3956 = vunpack.c.l.b16 %v3889
    %v3957 = vunpack.c.l.b16 %v3890
    %v3958 = vunpack.c.l.b16 %v3891
    %v3959 = vunpack.c.l.b16 %v3892
    %v3960 = vunpack.c.l.b16 %v3893
    %v3961 = vunpack.c.l.b16 %v3894
    %v3962 = vunpack.c.l.b16 %v3895
    %v3963 = vunpack.c.l.b16 %v3896
    %v3964 = vunpack.c.l.b16 %v3897
    %v3965 = vunpack.c.l.b16 %v3898
    %v3966 = vpack.c.b16 %v3935, %v3934
    %v3967 = vpack.c.b16 %v3937, %v3936
    %v3968 = vpack.c.b16 %v3939, %v3938
    %v3969 = vpack.c.b16 %v3941, %v3940
    %v3970 = vpack.c.b16 %v3943, %v3942
    %v3971 = vpack.c.b16 %v3945, %v3944
    %v3972 = vpack.c.b16 %v3947, %v3946
    %v3973 = vpack.c.b16 %v3949, %v3948
    %v3974 = vpack.c.b16 %v3951, %v3950
    %v3975 = vpack.c.b16 %v3953, %v3952
    %v3976 = vpack.c.b16 %v3955, %v3954
    %v3977 = vpack.c.b16 %v3957, %v3956
    %v3978 = vpack.c.b16 %v3959, %v3958
    %v3979 = vpack.c.b16 %v3961, %v3960
    %v3980 = vpack.c.b16 %v3963, %v3962
    %v3981 = vpack.c.b16 %v3965, %v3964
    %3998 = vmatprep.subr.bf16.mxu0 0
    %3999 = vmatpush1.bf16.msra.mxu0 %v3966
    %4000 = vmatprep.subr.bf16.mxu0 0
    %4001 = vmatpush1.bf16.msra.mxu0 %v3967
    %4002 = vmatprep.subr.bf16.mxu0 0
    %4003 = vmatpush1.bf16.msra.mxu0 %v3968
    %4004 = vmatprep.subr.bf16.mxu0 0
    %4005 = vmatpush1.bf16.msra.mxu0 %v3969
    %4006 = vmatprep.subr.bf16.mxu0 0
    %4007 = vmatpush1.bf16.msra.mxu0 %v3970
    %4008 = vmatprep.subr.bf16.mxu0 0
    %4009 = vmatpush1.bf16.msra.mxu0 %v3971
    %4010 = vmatprep.subr.bf16.mxu0 0
    %4011 = vmatpush1.bf16.msra.mxu0 %v3972
    %4012 = vmatprep.subr.bf16.mxu0 0
    %4013 = vmatpush1.bf16.msra.mxu0 %v3973
    %4014 = vmatprep.subr.bf16.mxu0 0
    %4015 = vmatpush1.bf16.msra.mxu0 %v3974
    %4016 = vmatprep.subr.bf16.mxu0 0
    %4017 = vmatpush1.bf16.msra.mxu0 %v3975
    %4018 = vmatprep.subr.bf16.mxu0 0
    %4019 = vmatpush1.bf16.msra.mxu0 %v3976
    %4020 = vmatprep.subr.bf16.mxu0 0
    %4021 = vmatpush1.bf16.msra.mxu0 %v3977
    %4022 = vmatprep.subr.bf16.mxu0 0
    %4023 = vmatpush1.bf16.msra.mxu0 %v3978
    %4024 = vmatprep.subr.bf16.mxu0 0
    %4025 = vmatpush1.bf16.msra.mxu0 %v3979
    %4026 = vmatprep.subr.bf16.mxu0 0
    %4027 = vmatpush1.bf16.msra.mxu0 %v3980
    %4028 = vmatprep.subr.bf16.mxu0 0
    %4029 = vmatpush1.bf16.msra.mxu0 %v3981
    %4030 = vmatprep.mubr.bf16.mxu0 %v3901
    %4031 = vmatmul.mubr.bf16.gmra.mrb[0].mxu0 %v3900
    %v4032 = vpop.f32.mrb[0].mxu0
    %v4033 = vadd.f32 %v3899, %v4032
    %v4034 = vpop.f32.mrb[0].mxu0
    %v4035 = vpop.f32.mrb[0].mxu0
    %v4036 = vadd.f32 %v3899, %v4035
    %v4037 = vpop.f32.mrb[0].mxu0
    %4038 = vdwg.mxu0
    %4039 = vst [vmem:[%s14 + $0x10] sm:$0xff] %v4033
    %4040 = vst [vmem:[%s15 + $0x10] sm:$0xff] %v4036
    %s4041 = scalar_lea.vmem [#allocation9], 1792
    %v4042 = vld [vmem:[%s4041] sm:$0xff]
    %v4043 = vld [vmem:[%s4041 + $0x8] sm:$0xff]
    %v4044 = vld [vmem:[%s4041 + $0x10] sm:$0xff]
    %v4045 = vld [vmem:[%s4041 + $0x18] sm:$0xff]
    %v4046 = vld [vmem:[%s4041 + $0x20] sm:$0xff]
    %v4047 = vld [vmem:[%s4041 + $0x28] sm:$0xff]
    %v4048 = vld [vmem:[%s4041 + $0x30] sm:$0xff]
    %v4049 = vld [vmem:[%s4041 + $0x38] sm:$0xff]
    %v4050 = vld [vmem:[%s4041 + $0x40] sm:$0xff]
    %v4051 = vld [vmem:[%s4041 + $0x48] sm:$0xff]
    %v4052 = vld [vmem:[%s4041 + $0x50] sm:$0xff]
    %v4053 = vld [vmem:[%s4041 + $0x58] sm:$0xff]
    %v4054 = vld [vmem:[%s4041 + $0x60] sm:$0xff]
    %v4055 = vld [vmem:[%s4041 + $0x68] sm:$0xff]
    %v4056 = vld [vmem:[%s4041 + $0x70] sm:$0xff]
    %v4057 = vld [vmem:[%s4041 + $0x78] sm:$0xff]
    %v4058 = vld [vmem:[%s4041 + $0x80] sm:$0xff]
    %v4059 = vld [vmem:[%s4041 + $0x88] sm:$0xff]
    %v4060 = vld [vmem:[%s4041 + $0x90] sm:$0xff]
    %v4061 = vld [vmem:[%s4041 + $0x98] sm:$0xff]
    %v4062 = vld [vmem:[%s4041 + $0xa0] sm:$0xff]
    %v4063 = vld [vmem:[%s4041 + $0xa8] sm:$0xff]
    %v4064 = vld [vmem:[%s4041 + $0xb0] sm:$0xff]
    %v4065 = vld [vmem:[%s4041 + $0xb8] sm:$0xff]
    %v4066 = vld [vmem:[%s4041 + $0xc0] sm:$0xff]
    %v4067 = vld [vmem:[%s4041 + $0xc8] sm:$0xff]
    %v4068 = vld [vmem:[%s4041 + $0xd0] sm:$0xff]
    %v4069 = vld [vmem:[%s4041 + $0xd8] sm:$0xff]
    %v4070 = vld [vmem:[%s4041 + $0xe0] sm:$0xff]
    %v4071 = vld [vmem:[%s4041 + $0xe8] sm:$0xff]
    %v4072 = vld [vmem:[%s4041 + $0xf0] sm:$0xff]
    %v4073 = vld [vmem:[%s4041 + $0xf8] sm:$0xff]
    %s4074 = scalar_lea.vmem %s8, 36
    %v4075 = vld [vmem:[%s4074] ss:$8 sm:$0x3]
    %v4077 = vlaneseq
    %v4078 = vshrl.u32 %v4077, 7
    %v4079 = vsub.s32 0, %v4078
    %v4080 = vrot.slane %v4075, %v4079
    %v4081 = vlaneseq
    %v4082 = vshrl.u32 %v4081, 7
    %v4083 = vsub.s32 1, %v4082
    %v4084 = vrot.slane %v4075, %v4083
    %v4119 = vunpack.c.l.b16 %v4042
    %v4120 = vunpack.c.h.b16 %v4042
    %v4121 = vunpack.c.l.b16 %v4043
    %v4122 = vunpack.c.h.b16 %v4043
    %v4123 = vunpack.c.l.b16 %v4044
    %v4124 = vunpack.c.h.b16 %v4044
    %v4125 = vunpack.c.l.b16 %v4045
    %v4126 = vunpack.c.h.b16 %v4045
    %v4127 = vunpack.c.l.b16 %v4046
    %v4128 = vunpack.c.h.b16 %v4046
    %v4129 = vunpack.c.l.b16 %v4047
    %v4130 = vunpack.c.h.b16 %v4047
    %v4131 = vunpack.c.l.b16 %v4048
    %v4132 = vunpack.c.h.b16 %v4048
    %v4133 = vunpack.c.l.b16 %v4049
    %v4134 = vunpack.c.h.b16 %v4049
    %v4135 = vunpack.c.l.b16 %v4050
    %v4136 = vunpack.c.h.b16 %v4050
    %v4137 = vunpack.c.l.b16 %v4051
    %v4138 = vunpack.c.h.b16 %v4051
    %v4139 = vunpack.c.l.b16 %v4052
    %v4140 = vunpack.c.h.b16 %v4052
    %v4141 = vunpack.c.l.b16 %v4053
    %v4142 = vunpack.c.h.b16 %v4053
    %v4143 = vunpack.c.l.b16 %v4054
    %v4144 = vunpack.c.h.b16 %v4054
    %v4145 = vunpack.c.l.b16 %v4055
    %v4146 = vunpack.c.h.b16 %v4055
    %v4147 = vunpack.c.l.b16 %v4056
    %v4148 = vunpack.c.h.b16 %v4056
    %v4149 = vunpack.c.l.b16 %v4057
    %v4150 = vunpack.c.h.b16 %v4057
    %v4151 = vunpack.c.l.b16 %v4058
    %v4152 = vunpack.c.h.b16 %v4058
    %v4153 = vunpack.c.l.b16 %v4059
    %v4154 = vunpack.c.h.b16 %v4059
    %v4155 = vunpack.c.l.b16 %v4060
    %v4156 = vunpack.c.h.b16 %v4060
    %v4157 = vunpack.c.l.b16 %v4061
    %v4158 = vunpack.c.h.b16 %v4061
    %v4159 = vunpack.c.l.b16 %v4062
    %v4160 = vunpack.c.h.b16 %v4062
    %v4161 = vunpack.c.l.b16 %v4063
    %v4162 = vunpack.c.h.b16 %v4063
    %v4163 = vunpack.c.l.b16 %v4064
    %v4164 = vunpack.c.h.b16 %v4064
    %v4165 = vunpack.c.l.b16 %v4065
    %v4166 = vunpack.c.h.b16 %v4065
    %v4167 = vunpack.c.l.b16 %v4066
    %v4168 = vunpack.c.h.b16 %v4066
    %v4169 = vunpack.c.l.b16 %v4067
    %v4170 = vunpack.c.h.b16 %v4067
    %v4171 = vunpack.c.l.b16 %v4068
    %v4172 = vunpack.c.h.b16 %v4068
    %v4173 = vunpack.c.l.b16 %v4069
    %v4174 = vunpack.c.h.b16 %v4069
    %v4175 = vunpack.c.l.b16 %v4070
    %v4176 = vunpack.c.h.b16 %v4070
    %v4177 = vunpack.c.l.b16 %v4071
    %v4178 = vunpack.c.h.b16 %v4071
    %v4179 = vunpack.c.l.b16 %v4072
    %v4180 = vunpack.c.h.b16 %v4072
    %v4181 = vunpack.c.l.b16 %v4073
    %v4182 = vunpack.c.h.b16 %v4073
    %v4183 = vpack.c.b16 %v4121, %v4119
    %v4184 = vpack.c.b16 %v4122, %v4120
    %v4185 = vpack.c.b16 %v4125, %v4123
    %v4186 = vpack.c.b16 %v4126, %v4124
    %v4187 = vpack.c.b16 %v4129, %v4127
    %v4188 = vpack.c.b16 %v4130, %v4128
    %v4189 = vpack.c.b16 %v4133, %v4131
    %v4190 = vpack.c.b16 %v4134, %v4132
    %v4191 = vpack.c.b16 %v4137, %v4135
    %v4192 = vpack.c.b16 %v4138, %v4136
    %v4193 = vpack.c.b16 %v4141, %v4139
    %v4194 = vpack.c.b16 %v4142, %v4140
    %v4195 = vpack.c.b16 %v4145, %v4143
    %v4196 = vpack.c.b16 %v4146, %v4144
    %v4197 = vpack.c.b16 %v4149, %v4147
    %v4198 = vpack.c.b16 %v4150, %v4148
    %v4199 = vpack.c.b16 %v4153, %v4151
    %v4200 = vpack.c.b16 %v4154, %v4152
    %v4201 = vpack.c.b16 %v4157, %v4155
    %v4202 = vpack.c.b16 %v4158, %v4156
    %v4203 = vpack.c.b16 %v4161, %v4159
    %v4204 = vpack.c.b16 %v4162, %v4160
    %v4205 = vpack.c.b16 %v4165, %v4163
    %v4206 = vpack.c.b16 %v4166, %v4164
    %v4207 = vpack.c.b16 %v4169, %v4167
    %v4208 = vpack.c.b16 %v4170, %v4168
    %v4209 = vpack.c.b16 %v4173, %v4171
    %v4210 = vpack.c.b16 %v4174, %v4172
    %v4211 = vpack.c.b16 %v4177, %v4175
    %v4212 = vpack.c.b16 %v4178, %v4176
    %v4213 = vpack.c.b16 %v4181, %v4179
    %v4214 = vpack.c.b16 %v4182, %v4180
    %4247 = vmatprep.subr.bf16.mxu0 %v4184
    %4248 = vmatpush1.bf16.msra.mxu0 %v4183
    %4249 = vmatprep.subr.bf16.mxu0 %v4186
    %4250 = vmatpush1.bf16.msra.mxu0 %v4185
    %4251 = vmatprep.subr.bf16.mxu0 %v4188
    %4252 = vmatpush1.bf16.msra.mxu0 %v4187
    %4253 = vmatprep.subr.bf16.mxu0 %v4190
    %4254 = vmatpush1.bf16.msra.mxu0 %v4189
    %4255 = vmatprep.subr.bf16.mxu0 %v4192
    %4256 = vmatpush1.bf16.msra.mxu0 %v4191
    %4257 = vmatprep.subr.bf16.mxu0 %v4194
    %4258 = vmatpush1.bf16.msra.mxu0 %v4193
    %4259 = vmatprep.subr.bf16.mxu0 %v4196
    %4260 = vmatpush1.bf16.msra.mxu0 %v4195
    %4261 = vmatprep.subr.bf16.mxu0 %v4198
    %4262 = vmatpush1.bf16.msra.mxu0 %v4197
    %4263 = vmatprep.subr.bf16.mxu0 %v4200
    %4264 = vmatpush1.bf16.msra.mxu0 %v4199
    %4265 = vmatprep.subr.bf16.mxu0 %v4202
    %4266 = vmatpush1.bf16.msra.mxu0 %v4201
    %4267 = vmatprep.subr.bf16.mxu0 %v4204
    %4268 = vmatpush1.bf16.msra.mxu0 %v4203
    %4269 = vmatprep.subr.bf16.mxu0 %v4206
    %4270 = vmatpush1.bf16.msra.mxu0 %v4205
    %4271 = vmatprep.subr.bf16.mxu0 %v4208
    %4272 = vmatpush1.bf16.msra.mxu0 %v4207
    %4273 = vmatprep.subr.bf16.mxu0 %v4210
    %4274 = vmatpush1.bf16.msra.mxu0 %v4209
    %4275 = vmatprep.subr.bf16.mxu0 %v4212
    %4276 = vmatpush1.bf16.msra.mxu0 %v4211
    %4277 = vmatprep.subr.bf16.mxu0 %v4214
    %4278 = vmatpush1.bf16.msra.mxu0 %v4213
    %4279 = vmatprep.mubr.bf16.mxu0 %v3643
    %4280 = vmatmul.mubr.bf16.gmra.mrb[0].mxu0 %v3642
    %v4281 = vpop.f32.mrb[0].mxu0
    %v4282 = vadd.f32 %v4080, %v4281
    %v4283 = vpop.f32.mrb[0].mxu0
    %v4284 = vadd.f32 %v4084, %v4283
    %v4285 = vpop.f32.mrb[0].mxu0
    %v4286 = vadd.f32 %v4080, %v4285
    %v4287 = vpop.f32.mrb[0].mxu0
    %v4288 = vadd.f32 %v4084, %v4287
    %4289 = vdwg.mxu0
    %v4290 = vmul.f32 %v4282, 0.2
    %v4291 = vmul.f32 %v4284, 0.2
    %v4292 = vmul.f32 %v4286, 0.2
    %v4293 = vmul.f32 %v4288, 0.2
    %v4294 = vmax.f32 %v4282, %v4290
    %v4295 = vmax.f32 %v4284, %v4291
    %v4296 = vmax.f32 %v4286, %v4292
    %v4297 = vmax.f32 %v4288, %v4293
    %s4298 = scalar_lea.vmem [#allocation7], 384
    %v4299 = vld [vmem:[%s4298] sm:$0xf]
    %v4300 = vld [vmem:[%s4298 + $0x4] sm:$0xf]
    %v4301 = vld [vmem:[%s4298 + $0x8] sm:$0xf]
    %v4302 = vld [vmem:[%s4298 + $0xc] sm:$0xf]
    %v4303 = vld [vmem:[%s4298 + $0x10] sm:$0xf]
    %v4304 = vld [vmem:[%s4298 + $0x14] sm:$0xf]
    %v4305 = vld [vmem:[%s4298 + $0x18] sm:$0xf]
    %v4306 = vld [vmem:[%s4298 + $0x1c] sm:$0xf]
    %v4307 = vld [vmem:[%s4298 + $0x20] sm:$0xf]
    %v4308 = vld [vmem:[%s4298 + $0x24] sm:$0xf]
    %v4309 = vld [vmem:[%s4298 + $0x28] sm:$0xf]
    %v4310 = vld [vmem:[%s4298 + $0x2c] sm:$0xf]
    %v4311 = vld [vmem:[%s4298 + $0x30] sm:$0xf]
    %v4312 = vld [vmem:[%s4298 + $0x34] sm:$0xf]
    %v4313 = vld [vmem:[%s4298 + $0x38] sm:$0xf]
    %v4314 = vld [vmem:[%s4298 + $0x3c] sm:$0xf]
    %v4315 = vld [vmem:[%s4298 + $0x40] sm:$0xf]
    %v4316 = vld [vmem:[%s4298 + $0x44] sm:$0xf]
    %v4317 = vld [vmem:[%s4298 + $0x48] sm:$0xf]
    %v4318 = vld [vmem:[%s4298 + $0x4c] sm:$0xf]
    %v4319 = vld [vmem:[%s4298 + $0x50] sm:$0xf]
    %v4320 = vld [vmem:[%s4298 + $0x54] sm:$0xf]
    %v4321 = vld [vmem:[%s4298 + $0x58] sm:$0xf]
    %v4322 = vld [vmem:[%s4298 + $0x5c] sm:$0xf]
    %v4323 = vld [vmem:[%s4298 + $0x60] sm:$0xf]
    %v4324 = vld [vmem:[%s4298 + $0x64] sm:$0xf]
    %v4325 = vld [vmem:[%s4298 + $0x68] sm:$0xf]
    %v4326 = vld [vmem:[%s4298 + $0x6c] sm:$0xf]
    %v4327 = vld [vmem:[%s4298 + $0x70] sm:$0xf]
    %v4328 = vld [vmem:[%s4298 + $0x74] sm:$0xf]
    %v4329 = vld [vmem:[%s4298 + $0x78] sm:$0xf]
    %v4330 = vld [vmem:[%s4298 + $0x7c] sm:$0xf]
    %v4331 = vld [vmem:[%s8 + $0x25] ss:$0 sm:$0xff]
    %v4332 = vpack.c.bf16 %v4296, %v4294
    %v4333 = vpack.c.bf16 %v4297, %v4295
    %v4366 = vunpack.c.l.b16 %v4299
    %v4367 = vunpack.c.l.b16 %v4300
    %v4368 = vunpack.c.l.b16 %v4301
    %v4369 = vunpack.c.l.b16 %v4302
    %v4370 = vunpack.c.l.b16 %v4303
    %v4371 = vunpack.c.l.b16 %v4304
    %v4372 = vunpack.c.l.b16 %v4305
    %v4373 = vunpack.c.l.b16 %v4306
    %v4374 = vunpack.c.l.b16 %v4307
    %v4375 = vunpack.c.l.b16 %v4308
    %v4376 = vunpack.c.l.b16 %v4309
    %v4377 = vunpack.c.l.b16 %v4310
    %v4378 = vunpack.c.l.b16 %v4311
    %v4379 = vunpack.c.l.b16 %v4312
    %v4380 = vunpack.c.l.b16 %v4313
    %v4381 = vunpack.c.l.b16 %v4314
    %v4382 = vunpack.c.l.b16 %v4315
    %v4383 = vunpack.c.l.b16 %v4316
    %v4384 = vunpack.c.l.b16 %v4317
    %v4385 = vunpack.c.l.b16 %v4318
    %v4386 = vunpack.c.l.b16 %v4319
    %v4387 = vunpack.c.l.b16 %v4320
    %v4388 = vunpack.c.l.b16 %v4321
    %v4389 = vunpack.c.l.b16 %v4322
    %v4390 = vunpack.c.l.b16 %v4323
    %v4391 = vunpack.c.l.b16 %v4324
    %v4392 = vunpack.c.l.b16 %v4325
    %v4393 = vunpack.c.l.b16 %v4326
    %v4394 = vunpack.c.l.b16 %v4327
    %v4395 = vunpack.c.l.b16 %v4328
    %v4396 = vunpack.c.l.b16 %v4329
    %v4397 = vunpack.c.l.b16 %v4330
    %v4398 = vpack.c.b16 %v4367, %v4366
    %v4399 = vpack.c.b16 %v4369, %v4368
    %v4400 = vpack.c.b16 %v4371, %v4370
    %v4401 = vpack.c.b16 %v4373, %v4372
    %v4402 = vpack.c.b16 %v4375, %v4374
    %v4403 = vpack.c.b16 %v4377, %v4376
    %v4404 = vpack.c.b16 %v4379, %v4378
    %v4405 = vpack.c.b16 %v4381, %v4380
    %v4406 = vpack.c.b16 %v4383, %v4382
    %v4407 = vpack.c.b16 %v4385, %v4384
    %v4408 = vpack.c.b16 %v4387, %v4386
    %v4409 = vpack.c.b16 %v4389, %v4388
    %v4410 = vpack.c.b16 %v4391, %v4390
    %v4411 = vpack.c.b16 %v4393, %v4392
    %v4412 = vpack.c.b16 %v4395, %v4394
    %v4413 = vpack.c.b16 %v4397, %v4396
    %4430 = vmatprep.subr.bf16.mxu0 0
    %4431 = vmatpush1.bf16.msra.mxu0 %v4398
    %4432 = vmatprep.subr.bf16.mxu0 0
    %4433 = vmatpush1.bf16.msra.mxu0 %v4399
    %4434 = vmatprep.subr.bf16.mxu0 0
    %4435 = vmatpush1.bf16.msra.mxu0 %v4400
    %4436 = vmatprep.subr.bf16.mxu0 0
    %4437 = vmatpush1.bf16.msra.mxu0 %v4401
    %4438 = vmatprep.subr.bf16.mxu0 0
    %4439 = vmatpush1.bf16.msra.mxu0 %v4402
    %4440 = vmatprep.subr.bf16.mxu0 0
    %4441 = vmatpush1.bf16.msra.mxu0 %v4403
    %4442 = vmatprep.subr.bf16.mxu0 0
    %4443 = vmatpush1.bf16.msra.mxu0 %v4404
    %4444 = vmatprep.subr.bf16.mxu0 0
    %4445 = vmatpush1.bf16.msra.mxu0 %v4405
    %4446 = vmatprep.subr.bf16.mxu0 0
    %4447 = vmatpush1.bf16.msra.mxu0 %v4406
    %4448 = vmatprep.subr.bf16.mxu0 0
    %4449 = vmatpush1.bf16.msra.mxu0 %v4407
    %4450 = vmatprep.subr.bf16.mxu0 0
    %4451 = vmatpush1.bf16.msra.mxu0 %v4408
    %4452 = vmatprep.subr.bf16.mxu0 0
    %4453 = vmatpush1.bf16.msra.mxu0 %v4409
    %4454 = vmatprep.subr.bf16.mxu0 0
    %4455 = vmatpush1.bf16.msra.mxu0 %v4410
    %4456 = vmatprep.subr.bf16.mxu0 0
    %4457 = vmatpush1.bf16.msra.mxu0 %v4411
    %4458 = vmatprep.subr.bf16.mxu0 0
    %4459 = vmatpush1.bf16.msra.mxu0 %v4412
    %4460 = vmatprep.subr.bf16.mxu0 0
    %4461 = vmatpush1.bf16.msra.mxu0 %v4413
    %4462 = vmatprep.mubr.bf16.mxu0 %v4333
    %4463 = vmatmul.mubr.bf16.gmra.mrb[0].mxu0 %v4332
    %v4464 = vpop.f32.mrb[0].mxu0
    %v4465 = vadd.f32 %v4331, %v4464
    %v4466 = vpop.f32.mrb[0].mxu0
    %v4467 = vpop.f32.mrb[0].mxu0
    %v4468 = vadd.f32 %v4331, %v4467
    %v4469 = vpop.f32.mrb[0].mxu0
    %4470 = vdwg.mxu0
    %4471 = vst [vmem:[%s14 + $0x18] sm:$0xff] %v4465
    %4472 = vst [vmem:[%s15 + $0x18] sm:$0xff] %v4468
    %s4473 = smul.u32 4, 8
    %s4474 = smul.u32 %s4473, 16
    %s4475 = smul.u32 %s4474, 1
    %s4476 = sshll.u32 %s4475, 4
    %4477 = dma.done [#allocation6], %s4476
    %s4478 = smul.u32 4, 4
    %s4479 = smul.u32 %s4478, 32
    %s4480 = smul.u32 %s4479, 2
    %s4481 = sshll.u32 %s4480, 4
    %4482 = dma.done %s112, %s4481
    %s4483 = smul.u32 4, 1
    %s4484 = smul.u32 %s4483, 32
    %s4485 = smul.u32 %s4484, 4
    %s4486 = sshll.u32 %s4485, 4
    %4487 = dma.done %s148, %s4486
    %s4488 = smul.u32 4, 3
    %s4489 = smul.u32 %s4488, 64
    %s4490 = smul.u32 %s4489, 2
    %s4491 = sshll.u32 %s4490, 4
    %4492 = dma.done %s183, %s4491
    %v4493 = vld [vmem:[%s3] sm:$0xff]
    %v4494 = vld [vmem:[%s3 + $0x8] sm:$0xff]
    %v4495 = vld [vmem:[%s3 + $0x10] sm:$0xff]
    %v4496 = vld [vmem:[%s3 + $0x18] sm:$0xff]
    %v4497 = vld [vmem:[%s2] sm:$0xff]
    %v4498 = vld [vmem:[%s2 + $0x8] sm:$0xff]
    %v4499 = vld [vmem:[#allocation5] sm:$0xff]
    %v4500 = vld [vmem:[#allocation5 + $0x8] sm:$0xff]
    %v4501 = vld [vmem:[#allocation5 + $0x10] sm:$0xff]
    %v4502 = vld [vmem:[#allocation5 + $0x18] sm:$0xff]
    %v4503 = vld [vmem:[#allocation5 + $0x20] sm:$0xff]
    %v4504 = vld [vmem:[#allocation5 + $0x28] sm:$0xff]
    %v4505 = vld [vmem:[#allocation5 + $0x30] sm:$0xff]
    %v4506 = vld [vmem:[#allocation5 + $0x38] sm:$0xff]
    %v4507 = vld [vmem:[#allocation5 + $0x40] sm:$0xff]
    %v4508 = vld [vmem:[#allocation5 + $0x48] sm:$0xff]
    %v4509 = vld [vmem:[#allocation5 + $0x50] sm:$0xff]
    %v4510 = vld [vmem:[#allocation5 + $0x58] sm:$0xff]
    %v4511 = vld [vmem:[#allocation5 + $0x60] sm:$0xff]
    %v4512 = vld [vmem:[#allocation5 + $0x68] sm:$0xff]
    %v4513 = vld [vmem:[#allocation5 + $0x70] sm:$0xff]
    %v4514 = vld [vmem:[#allocation5 + $0x78] sm:$0xff]
    %v4515 = vld [vmem:[#allocation5 + $0x80] sm:$0xff]
    %v4516 = vld [vmem:[#allocation5 + $0x88] sm:$0xff]
    %v4517 = vld [vmem:[#allocation5 + $0x90] sm:$0xff]
    %v4518 = vld [vmem:[#allocation5 + $0x98] sm:$0xff]
    %v4519 = vld [vmem:[#allocation5 + $0xa0] sm:$0xff]
    %v4520 = vld [vmem:[#allocation5 + $0xa8] sm:$0xff]
    %v4521 = vld [vmem:[#allocation5 + $0xb0] sm:$0xff]
    %v4522 = vld [vmem:[#allocation5 + $0xb8] sm:$0xff]
    %v4523 = vld [vmem:[#allocation5 + $0xc0] sm:$0xff]
    %v4524 = vld [vmem:[#allocation5 + $0xc8] sm:$0xff]
    %v4525 = vld [vmem:[#allocation5 + $0xd0] sm:$0xff]
    %v4526 = vld [vmem:[#allocation5 + $0xd8] sm:$0xff]
    %v4527 = vld [vmem:[#allocation5 + $0xe0] sm:$0xff]
    %v4528 = vld [vmem:[#allocation5 + $0xe8] sm:$0xff]
    %v4529 = vld [vmem:[#allocation5 + $0xf0] sm:$0xff]
    %v4530 = vld [vmem:[#allocation5 + $0xf8] sm:$0xff]
    %v4531 = vld [vmem:[#allocation5 + $0x100] sm:$0xff]
    %v4532 = vld [vmem:[#allocation5 + $0x108] sm:$0xff]
    %v4533 = vld [vmem:[#allocation5 + $0x110] sm:$0xff]
    %v4534 = vld [vmem:[#allocation5 + $0x118] sm:$0xff]
    %v4535 = vld [vmem:[#allocation5 + $0x120] sm:$0xff]
    %v4536 = vld [vmem:[#allocation5 + $0x128] sm:$0xff]
    %v4537 = vld [vmem:[#allocation5 + $0x130] sm:$0xff]
    %v4538 = vld [vmem:[#allocation5 + $0x138] sm:$0xff]
    %v4539 = vld [vmem:[#allocation5 + $0x140] sm:$0xff]
    %v4540 = vld [vmem:[#allocation5 + $0x148] sm:$0xff]
    %v4541 = vld [vmem:[#allocation5 + $0x150] sm:$0xff]
    %v4542 = vld [vmem:[#allocation5 + $0x158] sm:$0xff]
    %v4543 = vld [vmem:[#allocation5 + $0x160] sm:$0xff]
    %v4544 = vld [vmem:[#allocation5 + $0x168] sm:$0xff]
    %v4545 = vld [vmem:[#allocation5 + $0x170] sm:$0xff]
    %v4546 = vld [vmem:[#allocation5 + $0x178] sm:$0xff]
    %v4547 = vld [vmem:[#allocation5 + $0x180] sm:$0xff]
    %v4548 = vld [vmem:[#allocation5 + $0x188] sm:$0xff]
    %v4549 = vld [vmem:[#allocation5 + $0x190] sm:$0xff]
    %v4550 = vld [vmem:[#allocation5 + $0x198] sm:$0xff]
    %v4551 = vld [vmem:[#allocation5 + $0x1a0] sm:$0xff]
    %v4552 = vld [vmem:[#allocation5 + $0x1a8] sm:$0xff]
    %v4553 = vld [vmem:[#allocation5 + $0x1b0] sm:$0xff]
    %v4554 = vld [vmem:[#allocation5 + $0x1b8] sm:$0xff]
    %v4555 = vld [vmem:[#allocation5 + $0x1c0] sm:$0xff]
    %v4556 = vld [vmem:[#allocation5 + $0x1c8] sm:$0xff]
    %v4557 = vld [vmem:[#allocation5 + $0x1d0] sm:$0xff]
    %v4558 = vld [vmem:[#allocation5 + $0x1d8] sm:$0xff]
    %v4559 = vld [vmem:[#allocation5 + $0x1e0] sm:$0xff]
    %v4560 = vld [vmem:[#allocation5 + $0x1e8] sm:$0xff]
    %v4561 = vld [vmem:[#allocation5 + $0x1f0] sm:$0xff]
    %v4562 = vld [vmem:[#allocation5 + $0x1f8] sm:$0xff]
    %v4563 = vld [vmem:[%s13] ss:$8 sm:$0x3]
    %v4564 = vpack.c.bf16 %v4493, %v4493
    %v4565 = vpack.c.bf16 %v4494, %v4494
    %v4566 = vpack.c.bf16 %v4495, %v4495
    %v4567 = vpack.c.bf16 %v4496, %v4496
    %v4569 = vlaneseq
    %v4570 = vshrl.u32 %v4569, 7
    %v4571 = vsub.s32 0, %v4570
    %v4572 = vrot.slane %v4563, %v4571
    %v4573 = vlaneseq
    %v4574 = vshrl.u32 %v4573, 7
    %v4575 = vsub.s32 1, %v4574
    %v4576 = vrot.slane %v4563, %v4575
    %4579 = vmatprep.subr.bf16.mxu0 %v4500
    %4580 = vmatpush1.bf16.msra.mxu0 %v4499
    %4581 = vmatprep.subr.bf16.mxu0 %v4502
    %4582 = vmatpush1.bf16.msra.mxu0 %v4501
    %4583 = vmatprep.subr.bf16.mxu0 %v4504
    %4584 = vmatpush1.bf16.msra.mxu0 %v4503
    %4585 = vmatprep.subr.bf16.mxu0 %v4506
    %4586 = vmatpush1.bf16.msra.mxu0 %v4505
    %4587 = vmatprep.subr.bf16.mxu0 %v4508
    %4588 = vmatpush1.bf16.msra.mxu0 %v4507
    %4589 = vmatprep.subr.bf16.mxu0 %v4510
    %4590 = vmatpush1.bf16.msra.mxu0 %v4509
    %4591 = vmatprep.subr.bf16.mxu0 %v4512
    %4592 = vmatpush1.bf16.msra.mxu0 %v4511
    %4593 = vmatprep.subr.bf16.mxu0 %v4514
    %4594 = vmatpush1.bf16.msra.mxu0 %v4513
    %4595 = vmatprep.subr.bf16.mxu0 %v4516
    %4596 = vmatpush1.bf16.msra.mxu0 %v4515
    %4597 = vmatprep.subr.bf16.mxu0 %v4518
    %4598 = vmatpush1.bf16.msra.mxu0 %v4517
    %4599 = vmatprep.subr.bf16.mxu0 %v4520
    %4600 = vmatpush1.bf16.msra.mxu0 %v4519
    %4601 = vmatprep.subr.bf16.mxu0 %v4522
    %4602 = vmatpush1.bf16.msra.mxu0 %v4521
    %4603 = vmatprep.subr.bf16.mxu0 %v4524
    %4604 = vmatpush1.bf16.msra.mxu0 %v4523
    %4605 = vmatprep.subr.bf16.mxu0 %v4526
    %4606 = vmatpush1.bf16.msra.mxu0 %v4525
    %4607 = vmatprep.subr.bf16.mxu0 %v4528
    %4608 = vmatpush1.bf16.msra.mxu0 %v4527
    %4609 = vmatprep.subr.bf16.mxu0 %v4530
    %4610 = vmatpush1.bf16.msra.mxu0 %v4529
    %4611 = vmatprep.mubr.bf16.mxu0 %v4565
    %4612 = vmatmul.mubr.bf16.gmra.mrb[0].mxu0 %v4564
    %v4613 = vpop.f32.mrb[0].mxu0
    %v4614 = vadd.f32 %v4572, %v4613
    %v4615 = vpop.f32.mrb[0].mxu0
    %v4616 = vadd.f32 %v4576, %v4615
    %v4617 = vpop.f32.mrb[0].mxu0
    %v4618 = vadd.f32 %v4572, %v4617
    %v4619 = vpop.f32.mrb[0].mxu0
    %v4620 = vadd.f32 %v4576, %v4619
    %4621 = vdwg.mxu0
    %4622 = vmatprep.subr.bf16.mxu0 %v4532
    %4623 = vmatpush1.bf16.msra.mxu0 %v4531
    %4624 = vmatprep.subr.bf16.mxu0 %v4534
    %4625 = vmatpush1.bf16.msra.mxu0 %v4533
    %4626 = vmatprep.subr.bf16.mxu0 %v4536
    %4627 = vmatpush1.bf16.msra.mxu0 %v4535
    %4628 = vmatprep.subr.bf16.mxu0 %v4538
    %4629 = vmatpush1.bf16.msra.mxu0 %v4537
    %4630 = vmatprep.subr.bf16.mxu0 %v4540
    %4631 = vmatpush1.bf16.msra.mxu0 %v4539
    %4632 = vmatprep.subr.bf16.mxu0 %v4542
    %4633 = vmatpush1.bf16.msra.mxu0 %v4541
    %4634 = vmatprep.subr.bf16.mxu0 %v4544
    %4635 = vmatpush1.bf16.msra.mxu0 %v4543
    %4636 = vmatprep.subr.bf16.mxu0 %v4546
    %4637 = vmatpush1.bf16.msra.mxu0 %v4545
    %4638 = vmatprep.subr.bf16.mxu0 %v4548
    %4639 = vmatpush1.bf16.msra.mxu0 %v4547
    %4640 = vmatprep.subr.bf16.mxu0 %v4550
    %4641 = vmatpush1.bf16.msra.mxu0 %v4549
    %4642 = vmatprep.subr.bf16.mxu0 %v4552
    %4643 = vmatpush1.bf16.msra.mxu0 %v4551
    %4644 = vmatprep.subr.bf16.mxu0 %v4554
    %4645 = vmatpush1.bf16.msra.mxu0 %v4553
    %4646 = vmatprep.subr.bf16.mxu0 %v4556
    %4647 = vmatpush1.bf16.msra.mxu0 %v4555
    %4648 = vmatprep.subr.bf16.mxu0 %v4558
    %4649 = vmatpush1.bf16.msra.mxu0 %v4557
    %4650 = vmatprep.subr.bf16.mxu0 %v4560
    %4651 = vmatpush1.bf16.msra.mxu0 %v4559
    %4652 = vmatprep.subr.bf16.mxu0 %v4562
    %4653 = vmatpush1.bf16.msra.mxu0 %v4561
    %4654 = vmatprep.mubr.bf16.mxu0 %v4567
    %4655 = vmatmul.mubr.bf16.gmra.mrb[0].mxu0 %v4566
    %v4656 = vpop.f32.mrb[0].mxu0
    %v4657 = vadd.f32 %v4614, %v4656
    %v4658 = vpop.f32.mrb[0].mxu0
    %v4659 = vadd.f32 %v4616, %v4658
    %v4660 = vpop.f32.mrb[0].mxu0
    %v4661 = vadd.f32 %v4618, %v4660
    %v4662 = vpop.f32.mrb[0].mxu0
    %v4663 = vadd.f32 %v4620, %v4662
    %4664 = vdwg.mxu0
    %v4665 = vmul.f32 %v4657, 0.2
    %v4666 = vmul.f32 %v4659, 0.2
    %v4667 = vmul.f32 %v4661, 0.2
    %v4668 = vmul.f32 %v4663, 0.2
    %v4669 = vmax.f32 %v4657, %v4665
    %v4670 = vmax.f32 %v4659, %v4666
    %v4671 = vmax.f32 %v4661, %v4667
    %v4672 = vmax.f32 %v4663, %v4668
    %v4673 = vld [vmem:[#allocation3] sm:$0xff]
    %v4674 = vld [vmem:[#allocation3 + $0x8] sm:$0xff]
    %v4675 = vld [vmem:[#allocation3 + $0x10] sm:$0xff]
    %v4676 = vld [vmem:[#allocation3 + $0x18] sm:$0xff]
    %v4677 = vld [vmem:[#allocation3 + $0x20] sm:$0xff]
    %v4678 = vld [vmem:[#allocation3 + $0x28] sm:$0xff]
    %v4679 = vld [vmem:[#allocation3 + $0x30] sm:$0xff]
    %v4680 = vld [vmem:[#allocation3 + $0x38] sm:$0xff]
    %v4681 = vld [vmem:[#allocation3 + $0x40] sm:$0xff]
    %v4682 = vld [vmem:[#allocation3 + $0x48] sm:$0xff]
    %v4683 = vld [vmem:[#allocation3 + $0x50] sm:$0xff]
    %v4684 = vld [vmem:[#allocation3 + $0x58] sm:$0xff]
    %v4685 = vld [vmem:[#allocation3 + $0x60] sm:$0xff]
    %v4686 = vld [vmem:[#allocation3 + $0x68] sm:$0xff]
    %v4687 = vld [vmem:[#allocation3 + $0x70] sm:$0xff]
    %v4688 = vld [vmem:[#allocation3 + $0x78] sm:$0xff]
    %v4689 = vld [vmem:[#allocation3 + $0x80] sm:$0xff]
    %v4690 = vld [vmem:[#allocation3 + $0x88] sm:$0xff]
    %v4691 = vld [vmem:[#allocation3 + $0x90] sm:$0xff]
    %v4692 = vld [vmem:[#allocation3 + $0x98] sm:$0xff]
    %v4693 = vld [vmem:[#allocation3 + $0xa0] sm:$0xff]
    %v4694 = vld [vmem:[#allocation3 + $0xa8] sm:$0xff]
    %v4695 = vld [vmem:[#allocation3 + $0xb0] sm:$0xff]
    %v4696 = vld [vmem:[#allocation3 + $0xb8] sm:$0xff]
    %v4697 = vld [vmem:[#allocation3 + $0xc0] sm:$0xff]
    %v4698 = vld [vmem:[#allocation3 + $0xc8] sm:$0xff]
    %v4699 = vld [vmem:[#allocation3 + $0xd0] sm:$0xff]
    %v4700 = vld [vmem:[#allocation3 + $0xd8] sm:$0xff]
    %v4701 = vld [vmem:[#allocation3 + $0xe0] sm:$0xff]
    %v4702 = vld [vmem:[#allocation3 + $0xe8] sm:$0xff]
    %v4703 = vld [vmem:[#allocation3 + $0xf0] sm:$0xff]
    %v4704 = vld [vmem:[#allocation3 + $0xf8] sm:$0xff]
    %s4705 = scalar_lea.vmem %s13, 1
    %v4706 = vld [vmem:[%s4705] ss:$8 sm:$0x3]
    %v4707 = vpack.c.bf16 %v4671, %v4669
    %v4708 = vpack.c.bf16 %v4672, %v4670
    %v4710 = vlaneseq
    %v4711 = vshrl.u32 %v4710, 7
    %v4712 = vsub.s32 0, %v4711
    %v4713 = vrot.slane %v4706, %v4712
    %v4714 = vlaneseq
    %v4715 = vshrl.u32 %v4714, 7
    %v4716 = vsub.s32 1, %v4715
    %v4717 = vrot.slane %v4706, %v4716
    %4720 = vmatprep.subr.bf16.mxu0 %v4674
    %4721 = vmatpush1.bf16.msra.mxu0 %v4673
    %4722 = vmatprep.subr.bf16.mxu0 %v4676
    %4723 = vmatpush1.bf16.msra.mxu0 %v4675
    %4724 = vmatprep.subr.bf16.mxu0 %v4678
    %4725 = vmatpush1.bf16.msra.mxu0 %v4677
    %4726 = vmatprep.subr.bf16.mxu0 %v4680
    %4727 = vmatpush1.bf16.msra.mxu0 %v4679
    %4728 = vmatprep.subr.bf16.mxu0 %v4682
    %4729 = vmatpush1.bf16.msra.mxu0 %v4681
    %4730 = vmatprep.subr.bf16.mxu0 %v4684
    %4731 = vmatpush1.bf16.msra.mxu0 %v4683
    %4732 = vmatprep.subr.bf16.mxu0 %v4686
    %4733 = vmatpush1.bf16.msra.mxu0 %v4685
    %4734 = vmatprep.subr.bf16.mxu0 %v4688
    %4735 = vmatpush1.bf16.msra.mxu0 %v4687
    %4736 = vmatprep.subr.bf16.mxu0 %v4690
    %4737 = vmatpush1.bf16.msra.mxu0 %v4689
    %4738 = vmatprep.subr.bf16.mxu0 %v4692
    %4739 = vmatpush1.bf16.msra.mxu0 %v4691
    %4740 = vmatprep.subr.bf16.mxu0 %v4694
    %4741 = vmatpush1.bf16.msra.mxu0 %v4693
    %4742 = vmatprep.subr.bf16.mxu0 %v4696
    %4743 = vmatpush1.bf16.msra.mxu0 %v4695
    %4744 = vmatprep.subr.bf16.mxu0 %v4698
    %4745 = vmatpush1.bf16.msra.mxu0 %v4697
    %4746 = vmatprep.subr.bf16.mxu0 %v4700
    %4747 = vmatpush1.bf16.msra.mxu0 %v4699
    %4748 = vmatprep.subr.bf16.mxu0 %v4702
    %4749 = vmatpush1.bf16.msra.mxu0 %v4701
    %4750 = vmatprep.subr.bf16.mxu0 %v4704
    %4751 = vmatpush1.bf16.msra.mxu0 %v4703
    %4752 = vmatprep.mubr.bf16.mxu0 %v4708
    %4753 = vmatmul.mubr.bf16.gmra.mrb[0].mxu0 %v4707
    %v4754 = vpop.f32.mrb[0].mxu0
    %v4755 = vadd.f32 %v4713, %v4754
    %v4756 = vpop.f32.mrb[0].mxu0
    %v4757 = vadd.f32 %v4717, %v4756
    %v4758 = vpop.f32.mrb[0].mxu0
    %v4759 = vadd.f32 %v4713, %v4758
    %v4760 = vpop.f32.mrb[0].mxu0
    %v4761 = vadd.f32 %v4717, %v4760
    %4762 = vdwg.mxu0
    %v4763 = vmul.f32 %v4755, 0.2
    %v4764 = vmul.f32 %v4757, 0.2
    %v4765 = vmul.f32 %v4759, 0.2
    %v4766 = vmul.f32 %v4761, 0.2
    %v4767 = vmax.f32 %v4755, %v4763
    %v4768 = vmax.f32 %v4757, %v4764
    %v4769 = vmax.f32 %v4759, %v4765
    %v4770 = vmax.f32 %v4761, %v4766
    %v4771 = vld [vmem:[%s15] sm:$0xff]
    %v4772 = vld [vmem:[%s14] sm:$0xff]
    %v4773 = vld [vmem:[#allocation2] sm:$0xff]
    %v4774 = vld [vmem:[#allocation2 + $0x8] sm:$0xff]
    %v4775 = vld [vmem:[#allocation2 + $0x10] sm:$0xff]
    %v4776 = vld [vmem:[#allocation2 + $0x18] sm:$0xff]
    %v4777 = vld [vmem:[#allocation2 + $0x20] sm:$0xff]
    %v4778 = vld [vmem:[#allocation2 + $0x28] sm:$0xff]
    %v4779 = vld [vmem:[#allocation2 + $0x30] sm:$0xff]
    %v4780 = vld [vmem:[#allocation2 + $0x38] sm:$0xff]
    %v4781 = vld [vmem:[%s13 + $0x2] ss:$0 sm:$0xff]
    %v4782 = vpack.c.bf16 %v4772, %v4771
    %4783 = vmatprep.subr.bf16.mxu0 0
    %4784 = vmatpush1.bf16.msra.mxu0 %v4773
    %4785 = vmatprep.subr.bf16.mxu0 0
    %4786 = vmatpush1.bf16.msra.mxu0 %v4774
    %4787 = vmatprep.subr.bf16.mxu0 0
    %4788 = vmatpush1.bf16.msra.mxu0 %v4775
    %4789 = vmatprep.subr.bf16.mxu0 0
    %4790 = vmatpush1.bf16.msra.mxu0 %v4776
    %4791 = vmatprep.subr.bf16.mxu0 0
    %4792 = vmatpush1.bf16.msra.mxu0 %v4777
    %4793 = vmatprep.subr.bf16.mxu0 0
    %4794 = vmatpush1.bf16.msra.mxu0 %v4778
    %4795 = vmatprep.subr.bf16.mxu0 0
    %4796 = vmatpush1.bf16.msra.mxu0 %v4779
    %4797 = vmatprep.subr.bf16.mxu0 0
    %4798 = vmatpush1.bf16.msra.mxu0 %v4780
    %4799 = vmatprep.subr.bf16.mxu0 0
    %4800 = vmatpush1.bf16.msra.mxu0 0
    %4801 = vmatprep.subr.bf16.mxu0 0
    %4802 = vmatpush1.bf16.msra.mxu0 0
    %4803 = vmatprep.subr.bf16.mxu0 0
    %4804 = vmatpush1.bf16.msra.mxu0 0
    %4805 = vmatprep.subr.bf16.mxu0 0
    %4806 = vmatpush1.bf16.msra.mxu0 0
    %4807 = vmatprep.subr.bf16.mxu0 0
    %4808 = vmatpush1.bf16.msra.mxu0 0
    %4809 = vmatprep.subr.bf16.mxu0 0
    %4810 = vmatpush1.bf16.msra.mxu0 0
    %4811 = vmatprep.subr.bf16.mxu0 0
    %4812 = vmatpush1.bf16.msra.mxu0 0
    %4813 = vmatprep.subr.bf16.mxu0 0
    %4814 = vmatpush1.bf16.msra.mxu0 0
    %4815 = vmatprep.mubr.bf16.mxu0 0
    %4816 = vmatmul.mubr.bf16.gmra.mrb[0].mxu0 %v4782
    %v4817 = vpop.f32.mrb[0].mxu0
    %v4818 = vadd.f32 %v4781, %v4817
    %v4819 = vpop.f32.mrb[0].mxu0
    %v4820 = vpop.f32.mrb[0].mxu0
    %v4821 = vadd.f32 %v4781, %v4820
    %v4822 = vpop.f32.mrb[0].mxu0
    %4823 = vdwg.mxu0
    %v4824 = vmul.f32 %v4818, 0.2
    %v4825 = vmul.f32 %v4821, 0.2
    %v4826 = vmax.f32 %v4818, %v4824
    %v4827 = vmax.f32 %v4821, %v4825
    %s4828 = scalar_lea.vmem [#allocation2], 64
    %v4829 = vld [vmem:[%s4828] sm:$0xff]
    %v4830 = vld [vmem:[%s4828 + $0x8] sm:$0xff]
    %v4831 = vld [vmem:[%s4828 + $0x10] sm:$0xff]
    %v4832 = vld [vmem:[%s4828 + $0x18] sm:$0xff]
    %v4833 = vld [vmem:[%s4828 + $0x20] sm:$0xff]
    %v4834 = vld [vmem:[%s4828 + $0x28] sm:$0xff]
    %v4835 = vld [vmem:[%s4828 + $0x30] sm:$0xff]
    %v4836 = vld [vmem:[%s4828 + $0x38] sm:$0xff]
    %v4837 = vld [vmem:[%s13 + $0x3] ss:$0 sm:$0xff]
    %v4838 = vpack.c.bf16 %v4827, %v4826
    %4839 = vmatprep.subr.bf16.mxu0 0
    %4840 = vmatpush1.bf16.msra.mxu0 %v4829
    %4841 = vmatprep.subr.bf16.mxu0 0
    %4842 = vmatpush1.bf16.msra.mxu0 %v4830
    %4843 = vmatprep.subr.bf16.mxu0 0
    %4844 = vmatpush1.bf16.msra.mxu0 %v4831
    %4845 = vmatprep.subr.bf16.mxu0 0
    %4846 = vmatpush1.bf16.msra.mxu0 %v4832
    %4847 = vmatprep.subr.bf16.mxu0 0
    %4848 = vmatpush1.bf16.msra.mxu0 %v4833
    %4849 = vmatprep.subr.bf16.mxu0 0
    %4850 = vmatpush1.bf16.msra.mxu0 %v4834
    %4851 = vmatprep.subr.bf16.mxu0 0
    %4852 = vmatpush1.bf16.msra.mxu0 %v4835
    %4853 = vmatprep.subr.bf16.mxu0 0
    %4854 = vmatpush1.bf16.msra.mxu0 %v4836
    %4855 = vmatprep.subr.bf16.mxu0 0
    %4856 = vmatpush1.bf16.msra.mxu0 0
    %4857 = vmatprep.subr.bf16.mxu0 0
    %4858 = vmatpush1.bf16.msra.mxu0 0
    %4859 = vmatprep.subr.bf16.mxu0 0
    %4860 = vmatpush1.bf16.msra.mxu0 0
    %4861 = vmatprep.subr.bf16.mxu0 0
    %4862 = vmatpush1.bf16.msra.mxu0 0
    %4863 = vmatprep.subr.bf16.mxu0 0
    %4864 = vmatpush1.bf16.msra.mxu0 0
    %4865 = vmatprep.subr.bf16.mxu0 0
    %4866 = vmatpush1.bf16.msra.mxu0 0
    %4867 = vmatprep.subr.bf16.mxu0 0
    %4868 = vmatpush1.bf16.msra.mxu0 0
    %4869 = vmatprep.subr.bf16.mxu0 0
    %4870 = vmatpush1.bf16.msra.mxu0 0
    %4871 = vmatprep.mubr.bf16.mxu0 0
    %4872 = vmatmul.mubr.bf16.gmra.mrb[0].mxu0 %v4838
    %v4873 = vpop.f32.mrb[0].mxu0
    %v4874 = vadd.f32 %v4837, %v4873
    %v4875 = vpop.f32.mrb[0].mxu0
    %v4876 = vpop.f32.mrb[0].mxu0
    %v4877 = vadd.f32 %v4837, %v4876
    %v4878 = vpop.f32.mrb[0].mxu0
    %4879 = vdwg.mxu0
    %v4880 = vmul.f32 %v4874, 0.2
    %v4881 = vmul.f32 %v4877, 0.2
    %v4882 = vmax.f32 %v4874, %v4880
    %v4883 = vmax.f32 %v4877, %v4881
    %v4884 = vld [vmem:[%s15 + $0x8] sm:$0xff]
    %s4885 = scalar_lea.vmem [#allocation2], 128
    %v4886 = vld [vmem:[%s4885] sm:$0xff]
    %v4887 = vld [vmem:[%s4885 + $0x8] sm:$0xff]
    %v4888 = vld [vmem:[%s4885 + $0x10] sm:$0xff]
    %v4889 = vld [vmem:[%s4885 + $0x18] sm:$0xff]
    %v4890 = vld [vmem:[%s4885 + $0x20] sm:$0xff]
    %v4891 = vld [vmem:[%s4885 + $0x28] sm:$0xff]
    %v4892 = vld [vmem:[%s4885 + $0x30] sm:$0xff]
    %v4893 = vld [vmem:[%s4885 + $0x38] sm:$0xff]
    %v4894 = vld [vmem:[%s13 + $0x4] ss:$0 sm:$0xff]
    %v4895 = vpack.c.bf16 %v4884, %v4884
    %4896 = vmatprep.subr.bf16.mxu0 0
    %4897 = vmatpush1.bf16.msra.mxu0 %v4886
    %4898 = vmatprep.subr.bf16.mxu0 0
    %4899 = vmatpush1.bf16.msra.mxu0 %v4887
    %4900 = vmatprep.subr.bf16.mxu0 0
    %4901 = vmatpush1.bf16.msra.mxu0 %v4888
    %4902 = vmatprep.subr.bf16.mxu0 0
    %4903 = vmatpush1.bf16.msra.mxu0 %v4889
    %4904 = vmatprep.subr.bf16.mxu0 0
    %4905 = vmatpush1.bf16.msra.mxu0 %v4890
    %4906 = vmatprep.subr.bf16.mxu0 0
    %4907 = vmatpush1.bf16.msra.mxu0 %v4891
    %4908 = vmatprep.subr.bf16.mxu0 0
    %4909 = vmatpush1.bf16.msra.mxu0 %v4892
    %4910 = vmatprep.subr.bf16.mxu0 0
    %4911 = vmatpush1.bf16.msra.mxu0 %v4893
    %4912 = vmatprep.subr.bf16.mxu0 0
    %4913 = vmatpush1.bf16.msra.mxu0 0
    %4914 = vmatprep.subr.bf16.mxu0 0
    %4915 = vmatpush1.bf16.msra.mxu0 0
    %4916 = vmatprep.subr.bf16.mxu0 0
    %4917 = vmatpush1.bf16.msra.mxu0 0
    %4918 = vmatprep.subr.bf16.mxu0 0
    %4919 = vmatpush1.bf16.msra.mxu0 0
    %4920 = vmatprep.subr.bf16.mxu0 0
    %4921 = vmatpush1.bf16.msra.mxu0 0
    %4922 = vmatprep.subr.bf16.mxu0 0
    %4923 = vmatpush1.bf16.msra.mxu0 0
    %4924 = vmatprep.subr.bf16.mxu0 0
    %4925 = vmatpush1.bf16.msra.mxu0 0
    %4926 = vmatprep.subr.bf16.mxu0 0
    %4927 = vmatpush1.bf16.msra.mxu0 0
    %4928 = vmatprep.mubr.bf16.mxu0 0
    %4929 = vmatmul.mubr.bf16.gmra.mrb[0].mxu0 %v4895
    %v4930 = vpop.f32.mrb[0].mxu0
    %v4931 = vadd.f32 %v4894, %v4930
    %v4932 = vpop.f32.mrb[0].mxu0
    %v4933 = vpop.f32.mrb[0].mxu0
    %v4934 = vadd.f32 %v4894, %v4933
    %v4935 = vpop.f32.mrb[0].mxu0
    %4936 = vdwg.mxu0
    %v4937 = vmul.f32 %v4931, 0.2
    %v4938 = vmul.f32 %v4934, 0.2
    %v4939 = vmax.f32 %v4931, %v4937
    %v4940 = vmax.f32 %v4934, %v4938
    %s4941 = scalar_lea.vmem [#allocation2], 192
    %v4942 = vld [vmem:[%s4941] sm:$0xff]
    %v4943 = vld [vmem:[%s4941 + $0x8] sm:$0xff]
    %v4944 = vld [vmem:[%s4941 + $0x10] sm:$0xff]
    %v4945 = vld [vmem:[%s4941 + $0x18] sm:$0xff]
    %v4946 = vld [vmem:[%s4941 + $0x20] sm:$0xff]
    %v4947 = vld [vmem:[%s4941 + $0x28] sm:$0xff]
    %v4948 = vld [vmem:[%s4941 + $0x30] sm:$0xff]
    %v4949 = vld [vmem:[%s4941 + $0x38] sm:$0xff]
    %v4950 = vld [vmem:[%s13 + $0x5] ss:$0 sm:$0xff]
    %v4951 = vpack.c.bf16 %v4940, %v4939
    %4952 = vmatprep.subr.bf16.mxu0 0
    %4953 = vmatpush1.bf16.msra.mxu0 %v4942
    %4954 = vmatprep.subr.bf16.mxu0 0
    %4955 = vmatpush1.bf16.msra.mxu0 %v4943
    %4956 = vmatprep.subr.bf16.mxu0 0
    %4957 = vmatpush1.bf16.msra.mxu0 %v4944
    %4958 = vmatprep.subr.bf16.mxu0 0
    %4959 = vmatpush1.bf16.msra.mxu0 %v4945
    %4960 = vmatprep.subr.bf16.mxu0 0
    %4961 = vmatpush1.bf16.msra.mxu0 %v4946
    %4962 = vmatprep.subr.bf16.mxu0 0
    %4963 = vmatpush1.bf16.msra.mxu0 %v4947
    %4964 = vmatprep.subr.bf16.mxu0 0
    %4965 = vmatpush1.bf16.msra.mxu0 %v4948
    %4966 = vmatprep.subr.bf16.mxu0 0
    %4967 = vmatpush1.bf16.msra.mxu0 %v4949
    %4968 = vmatprep.subr.bf16.mxu0 0
    %4969 = vmatpush1.bf16.msra.mxu0 0
    %4970 = vmatprep.subr.bf16.mxu0 0
    %4971 = vmatpush1.bf16.msra.mxu0 0
    %4972 = vmatprep.subr.bf16.mxu0 0
    %4973 = vmatpush1.bf16.msra.mxu0 0
    %4974 = vmatprep.subr.bf16.mxu0 0
    %4975 = vmatpush1.bf16.msra.mxu0 0
    %4976 = vmatprep.subr.bf16.mxu0 0
    %4977 = vmatpush1.bf16.msra.mxu0 0
    %4978 = vmatprep.subr.bf16.mxu0 0
    %4979 = vmatpush1.bf16.msra.mxu0 0
    %4980 = vmatprep.subr.bf16.mxu0 0
    %4981 = vmatpush1.bf16.msra.mxu0 0
    %4982 = vmatprep.subr.bf16.mxu0 0
    %4983 = vmatpush1.bf16.msra.mxu0 0
    %4984 = vmatprep.mubr.bf16.mxu0 0
    %4985 = vmatmul.mubr.bf16.gmra.mrb[0].mxu0 %v4951
    %v4986 = vpop.f32.mrb[0].mxu0
    %v4987 = vadd.f32 %v4950, %v4986
    %v4988 = vpop.f32.mrb[0].mxu0
    %v4989 = vpop.f32.mrb[0].mxu0
    %v4990 = vadd.f32 %v4950, %v4989
    %v4991 = vpop.f32.mrb[0].mxu0
    %4992 = vdwg.mxu0
    %v4993 = vmul.f32 %v4987, 0.2
    %v4994 = vmul.f32 %v4990, 0.2
    %v4995 = vmax.f32 %v4987, %v4993
    %v4996 = vmax.f32 %v4990, %v4994
    %s4997 = scalar_lea.vmem [#allocation5], 512
    %v4998 = vld [vmem:[%s4997] sm:$0xff]
    %v4999 = vld [vmem:[%s4997 + $0x8] sm:$0xff]
    %v5000 = vld [vmem:[%s4997 + $0x10] sm:$0xff]
    %v5001 = vld [vmem:[%s4997 + $0x18] sm:$0xff]
    %v5002 = vld [vmem:[%s4997 + $0x20] sm:$0xff]
    %v5003 = vld [vmem:[%s4997 + $0x28] sm:$0xff]
    %v5004 = vld [vmem:[%s4997 + $0x30] sm:$0xff]
    %v5005 = vld [vmem:[%s4997 + $0x38] sm:$0xff]
    %v5006 = vld [vmem:[%s4997 + $0x40] sm:$0xff]
    %v5007 = vld [vmem:[%s4997 + $0x48] sm:$0xff]
    %v5008 = vld [vmem:[%s4997 + $0x50] sm:$0xff]
    %v5009 = vld [vmem:[%s4997 + $0x58] sm:$0xff]
    %v5010 = vld [vmem:[%s4997 + $0x60] sm:$0xff]
    %v5011 = vld [vmem:[%s4997 + $0x68] sm:$0xff]
    %v5012 = vld [vmem:[%s4997 + $0x70] sm:$0xff]
    %v5013 = vld [vmem:[%s4997 + $0x78] sm:$0xff]
    %v5014 = vld [vmem:[%s4997 + $0x80] sm:$0xff]
    %v5015 = vld [vmem:[%s4997 + $0x88] sm:$0xff]
    %v5016 = vld [vmem:[%s4997 + $0x90] sm:$0xff]
    %v5017 = vld [vmem:[%s4997 + $0x98] sm:$0xff]
    %v5018 = vld [vmem:[%s4997 + $0xa0] sm:$0xff]
    %v5019 = vld [vmem:[%s4997 + $0xa8] sm:$0xff]
    %v5020 = vld [vmem:[%s4997 + $0xb0] sm:$0xff]
    %v5021 = vld [vmem:[%s4997 + $0xb8] sm:$0xff]
    %v5022 = vld [vmem:[%s4997 + $0xc0] sm:$0xff]
    %v5023 = vld [vmem:[%s4997 + $0xc8] sm:$0xff]
    %v5024 = vld [vmem:[%s4997 + $0xd0] sm:$0xff]
    %v5025 = vld [vmem:[%s4997 + $0xd8] sm:$0xff]
    %v5026 = vld [vmem:[%s4997 + $0xe0] sm:$0xff]
    %v5027 = vld [vmem:[%s4997 + $0xe8] sm:$0xff]
    %v5028 = vld [vmem:[%s4997 + $0xf0] sm:$0xff]
    %v5029 = vld [vmem:[%s4997 + $0xf8] sm:$0xff]
    %v5030 = vld [vmem:[%s4997 + $0x100] sm:$0xff]
    %v5031 = vld [vmem:[%s4997 + $0x108] sm:$0xff]
    %v5032 = vld [vmem:[%s4997 + $0x110] sm:$0xff]
    %v5033 = vld [vmem:[%s4997 + $0x118] sm:$0xff]
    %v5034 = vld [vmem:[%s4997 + $0x120] sm:$0xff]
    %v5035 = vld [vmem:[%s4997 + $0x128] sm:$0xff]
    %v5036 = vld [vmem:[%s4997 + $0x130] sm:$0xff]
    %v5037 = vld [vmem:[%s4997 + $0x138] sm:$0xff]
    %v5038 = vld [vmem:[%s4997 + $0x140] sm:$0xff]
    %v5039 = vld [vmem:[%s4997 + $0x148] sm:$0xff]
    %v5040 = vld [vmem:[%s4997 + $0x150] sm:$0xff]
    %v5041 = vld [vmem:[%s4997 + $0x158] sm:$0xff]
    %v5042 = vld [vmem:[%s4997 + $0x160] sm:$0xff]
    %v5043 = vld [vmem:[%s4997 + $0x168] sm:$0xff]
    %v5044 = vld [vmem:[%s4997 + $0x170] sm:$0xff]
    %v5045 = vld [vmem:[%s4997 + $0x178] sm:$0xff]
    %v5046 = vld [vmem:[%s4997 + $0x180] sm:$0xff]
    %v5047 = vld [vmem:[%s4997 + $0x188] sm:$0xff]
    %v5048 = vld [vmem:[%s4997 + $0x190] sm:$0xff]
    %v5049 = vld [vmem:[%s4997 + $0x198] sm:$0xff]
    %v5050 = vld [vmem:[%s4997 + $0x1a0] sm:$0xff]
    %v5051 = vld [vmem:[%s4997 + $0x1a8] sm:$0xff]
    %v5052 = vld [vmem:[%s4997 + $0x1b0] sm:$0xff]
    %v5053 = vld [vmem:[%s4997 + $0x1b8] sm:$0xff]
    %v5054 = vld [vmem:[%s4997 + $0x1c0] sm:$0xff]
    %v5055 = vld [vmem:[%s4997 + $0x1c8] sm:$0xff]
    %v5056 = vld [vmem:[%s4997 + $0x1d0] sm:$0xff]
    %v5057 = vld [vmem:[%s4997 + $0x1d8] sm:$0xff]
    %v5058 = vld [vmem:[%s4997 + $0x1e0] sm:$0xff]
    %v5059 = vld [vmem:[%s4997 + $0x1e8] sm:$0xff]
    %v5060 = vld [vmem:[%s4997 + $0x1f0] sm:$0xff]
    %v5061 = vld [vmem:[%s4997 + $0x1f8] sm:$0xff]
    %s5062 = scalar_lea.vmem %s13, 32
    %v5063 = vld [vmem:[%s5062] ss:$8 sm:$0x3]
    %v5064 = vpack.c.bf16 %v4769, %v4767
    %v5065 = vpack.c.bf16 %v4770, %v4768
    %5066 = vmatprep.subr.bf16.mxu0 %v4999
    %5067 = vmatpush1.bf16.msra.mxu0 %v4998
    %5068 = vmatprep.subr.bf16.mxu0 %v5001
    %5069 = vmatpush1.bf16.msra.mxu0 %v5000
    %5070 = vmatprep.subr.bf16.mxu0 %v5003
    %5071 = vmatpush1.bf16.msra.mxu0 %v5002
    %5072 = vmatprep.subr.bf16.mxu0 %v5005
    %5073 = vmatpush1.bf16.msra.mxu0 %v5004
    %5074 = vmatprep.subr.bf16.mxu0 %v5007
    %5075 = vmatpush1.bf16.msra.mxu0 %v5006
    %5076 = vmatprep.subr.bf16.mxu0 %v5009
    %5077 = vmatpush1.bf16.msra.mxu0 %v5008
    %5078 = vmatprep.subr.bf16.mxu0 %v5011
    %5079 = vmatpush1.bf16.msra.mxu0 %v5010
    %5080 = vmatprep.subr.bf16.mxu0 %v5013
    %5081 = vmatpush1.bf16.msra.mxu0 %v5012
    %5082 = vmatprep.subr.bf16.mxu0 %v5015
    %5083 = vmatpush1.bf16.msra.mxu0 %v5014
    %5084 = vmatprep.subr.bf16.mxu0 %v5017
    %5085 = vmatpush1.bf16.msra.mxu0 %v5016
    %5086 = vmatprep.subr.bf16.mxu0 %v5019
    %5087 = vmatpush1.bf16.msra.mxu0 %v5018
    %5088 = vmatprep.subr.bf16.mxu0 %v5021
    %5089 = vmatpush1.bf16.msra.mxu0 %v5020
    %5090 = vmatprep.subr.bf16.mxu0 %v5023
    %5091 = vmatpush1.bf16.msra.mxu0 %v5022
    %5092 = vmatprep.subr.bf16.mxu0 %v5025
    %5093 = vmatpush1.bf16.msra.mxu0 %v5024
    %5094 = vmatprep.subr.bf16.mxu0 %v5027
    %5095 = vmatpush1.bf16.msra.mxu0 %v5026
    %5096 = vmatprep.subr.bf16.mxu0 %v5029
    %5097 = vmatpush1.bf16.msra.mxu0 %v5028
    %5098 = vmatprep.mubr.bf16.mxu0 %v5065
    %5099 = vmatmul.mubr.bf16.gmra.mrb[0].mxu0 %v5064
    %v5100 = vpop.f32.mrb[0].mxu0
    %v5101 = vadd.f32 0.0, %v5100
    %v5102 = vpop.f32.mrb[0].mxu0
    %v5103 = vadd.f32 0.0, %v5102
    %v5104 = vpop.f32.mrb[0].mxu0
    %v5105 = vadd.f32 0.0, %v5104
    %v5106 = vpop.f32.mrb[0].mxu0
    %v5107 = vadd.f32 0.0, %v5106
    %5108 = vdwg.mxu0
    %v5110 = vlaneseq
    %v5111 = vshrl.u32 %v5110, 7
    %v5112 = vsub.s32 0, %v5111
    %v5113 = vrot.slane %v5063, %v5112
    %v5114 = vlaneseq
    %v5115 = vshrl.u32 %v5114, 7
    %v5116 = vsub.s32 1, %v5115
    %v5117 = vrot.slane %v5063, %v5116
    %v5120 = vadd.f32 %v5113, %v5101
    %v5121 = vadd.f32 %v5117, %v5103
    %v5122 = vadd.f32 %v5113, %v5105
    %v5123 = vadd.f32 %v5117, %v5107
    %v5124 = vpack.c.bf16 %v4883, %v4882
    %5125 = vmatprep.subr.bf16.mxu0 %v5031
    %5126 = vmatpush1.bf16.msra.mxu0 %v5030
    %5127 = vmatprep.subr.bf16.mxu0 %v5033
    %5128 = vmatpush1.bf16.msra.mxu0 %v5032
    %5129 = vmatprep.subr.bf16.mxu0 %v5035
    %5130 = vmatpush1.bf16.msra.mxu0 %v5034
    %5131 = vmatprep.subr.bf16.mxu0 %v5037
    %5132 = vmatpush1.bf16.msra.mxu0 %v5036
    %5133 = vmatprep.subr.bf16.mxu0 %v5039
    %5134 = vmatpush1.bf16.msra.mxu0 %v5038
    %5135 = vmatprep.subr.bf16.mxu0 %v5041
    %5136 = vmatpush1.bf16.msra.mxu0 %v5040
    %5137 = vmatprep.subr.bf16.mxu0 %v5043
    %5138 = vmatpush1.bf16.msra.mxu0 %v5042
    %5139 = vmatprep.subr.bf16.mxu0 %v5045
    %5140 = vmatpush1.bf16.msra.mxu0 %v5044
    %5141 = vmatprep.subr.bf16.mxu0 0
    %5142 = vmatpush1.bf16.msra.mxu0 0
    %5143 = vmatprep.subr.bf16.mxu0 0
    %5144 = vmatpush1.bf16.msra.mxu0 0
    %5145 = vmatprep.subr.bf16.mxu0 0
    %5146 = vmatpush1.bf16.msra.mxu0 0
    %5147 = vmatprep.subr.bf16.mxu0 0
    %5148 = vmatpush1.bf16.msra.mxu0 0
    %5149 = vmatprep.subr.bf16.mxu0 0
    %5150 = vmatpush1.bf16.msra.mxu0 0
    %5151 = vmatprep.subr.bf16.mxu0 0
    %5152 = vmatpush1.bf16.msra.mxu0 0
    %5153 = vmatprep.subr.bf16.mxu0 0
    %5154 = vmatpush1.bf16.msra.mxu0 0
    %5155 = vmatprep.subr.bf16.mxu0 0
    %5156 = vmatpush1.bf16.msra.mxu0 0
    %5157 = vmatprep.mubr.bf16.mxu0 0
    %5158 = vmatmul.mubr.bf16.gmra.mrb[0].mxu0 %v5124
    %v5159 = vpop.f32.mrb[0].mxu0
    %v5160 = vadd.f32 0.0, %v5159
    %v5161 = vpop.f32.mrb[0].mxu0
    %v5162 = vadd.f32 0.0, %v5161
    %v5163 = vpop.f32.mrb[0].mxu0
    %v5164 = vadd.f32 0.0, %v5163
    %v5165 = vpop.f32.mrb[0].mxu0
    %v5166 = vadd.f32 0.0, %v5165
    %5167 = vdwg.mxu0
    %v5168 = vadd.f32 %v5120, %v5160
    %v5169 = vadd.f32 %v5121, %v5162
    %v5170 = vadd.f32 %v5122, %v5164
    %v5171 = vadd.f32 %v5123, %v5166
    %v5172 = vpack.c.bf16 %v4996, %v4995
    %5173 = vmatprep.subr.bf16.mxu0 %v5047
    %5174 = vmatpush1.bf16.msra.mxu0 %v5046
    %5175 = vmatprep.subr.bf16.mxu0 %v5049
    %5176 = vmatpush1.bf16.msra.mxu0 %v5048
    %5177 = vmatprep.subr.bf16.mxu0 %v5051
    %5178 = vmatpush1.bf16.msra.mxu0 %v5050
    %5179 = vmatprep.subr.bf16.mxu0 %v5053
    %5180 = vmatpush1.bf16.msra.mxu0 %v5052
    %5181 = vmatprep.subr.bf16.mxu0 %v5055
    %5182 = vmatpush1.bf16.msra.mxu0 %v5054
    %5183 = vmatprep.subr.bf16.mxu0 %v5057
    %5184 = vmatpush1.bf16.msra.mxu0 %v5056
    %5185 = vmatprep.subr.bf16.mxu0 %v5059
    %5186 = vmatpush1.bf16.msra.mxu0 %v5058
    %5187 = vmatprep.subr.bf16.mxu0 %v5061
    %5188 = vmatpush1.bf16.msra.mxu0 %v5060
    %5189 = vmatprep.subr.bf16.mxu0 0
    %5190 = vmatpush1.bf16.msra.mxu0 0
    %5191 = vmatprep.subr.bf16.mxu0 0
    %5192 = vmatpush1.bf16.msra.mxu0 0
    %5193 = vmatprep.subr.bf16.mxu0 0
    %5194 = vmatpush1.bf16.msra.mxu0 0
    %5195 = vmatprep.subr.bf16.mxu0 0
    %5196 = vmatpush1.bf16.msra.mxu0 0
    %5197 = vmatprep.subr.bf16.mxu0 0
    %5198 = vmatpush1.bf16.msra.mxu0 0
    %5199 = vmatprep.subr.bf16.mxu0 0
    %5200 = vmatpush1.bf16.msra.mxu0 0
    %5201 = vmatprep.subr.bf16.mxu0 0
    %5202 = vmatpush1.bf16.msra.mxu0 0
    %5203 = vmatprep.subr.bf16.mxu0 0
    %5204 = vmatpush1.bf16.msra.mxu0 0
    %5205 = vmatprep.mubr.bf16.mxu0 0
    %5206 = vmatmul.mubr.bf16.gmra.mrb[0].mxu0 %v5172
    %v5207 = vpop.f32.mrb[0].mxu0
    %v5208 = vadd.f32 0.0, %v5207
    %v5209 = vpop.f32.mrb[0].mxu0
    %v5210 = vadd.f32 0.0, %v5209
    %v5211 = vpop.f32.mrb[0].mxu0
    %v5212 = vadd.f32 0.0, %v5211
    %v5213 = vpop.f32.mrb[0].mxu0
    %v5214 = vadd.f32 0.0, %v5213
    %5215 = vdwg.mxu0
    %v5216 = vadd.f32 %v5168, %v5208
    %v5217 = vadd.f32 %v5169, %v5210
    %v5218 = vadd.f32 %v5170, %v5212
    %v5219 = vadd.f32 %v5171, %v5214
    %v5220 = vmul.f32 %v5216, 0.2
    %v5221 = vmul.f32 %v5217, 0.2
    %v5222 = vmul.f32 %v5218, 0.2
    %v5223 = vmul.f32 %v5219, 0.2
    %v5224 = vmax.f32 %v5216, %v5220
    %v5225 = vmax.f32 %v5217, %v5221
    %v5226 = vmax.f32 %v5218, %v5222
    %v5227 = vmax.f32 %v5219, %v5223
    %v5228 = vld [vmem:[#allocation4] sm:$0xff]
    %v5229 = vld [vmem:[#allocation4 + $0x8] sm:$0xff]
    %v5230 = vld [vmem:[#allocation4 + $0x10] sm:$0xff]
    %v5231 = vld [vmem:[#allocation4 + $0x18] sm:$0xff]
    %v5232 = vld [vmem:[#allocation4 + $0x20] sm:$0xff]
    %v5233 = vld [vmem:[#allocation4 + $0x28] sm:$0xff]
    %v5234 = vld [vmem:[#allocation4 + $0x30] sm:$0xff]
    %v5235 = vld [vmem:[#allocation4 + $0x38] sm:$0xff]
    %v5236 = vld [vmem:[#allocation4 + $0x40] sm:$0xff]
    %v5237 = vld [vmem:[#allocation4 + $0x48] sm:$0xff]
    %v5238 = vld [vmem:[#allocation4 + $0x50] sm:$0xff]
    %v5239 = vld [vmem:[#allocation4 + $0x58] sm:$0xff]
    %v5240 = vld [vmem:[#allocation4 + $0x60] sm:$0xff]
    %v5241 = vld [vmem:[#allocation4 + $0x68] sm:$0xff]
    %v5242 = vld [vmem:[#allocation4 + $0x70] sm:$0xff]
    %v5243 = vld [vmem:[#allocation4 + $0x78] sm:$0xff]
    %v5244 = vld [vmem:[#allocation4 + $0x80] sm:$0xff]
    %v5245 = vld [vmem:[#allocation4 + $0x88] sm:$0xff]
    %v5246 = vld [vmem:[#allocation4 + $0x90] sm:$0xff]
    %v5247 = vld [vmem:[#allocation4 + $0x98] sm:$0xff]
    %v5248 = vld [vmem:[#allocation4 + $0xa0] sm:$0xff]
    %v5249 = vld [vmem:[#allocation4 + $0xa8] sm:$0xff]
    %v5250 = vld [vmem:[#allocation4 + $0xb0] sm:$0xff]
    %v5251 = vld [vmem:[#allocation4 + $0xb8] sm:$0xff]
    %v5252 = vld [vmem:[#allocation4 + $0xc0] sm:$0xff]
    %v5253 = vld [vmem:[#allocation4 + $0xc8] sm:$0xff]
    %v5254 = vld [vmem:[#allocation4 + $0xd0] sm:$0xff]
    %v5255 = vld [vmem:[#allocation4 + $0xd8] sm:$0xff]
    %v5256 = vld [vmem:[#allocation4 + $0xe0] sm:$0xff]
    %v5257 = vld [vmem:[#allocation4 + $0xe8] sm:$0xff]
    %v5258 = vld [vmem:[#allocation4 + $0xf0] sm:$0xff]
    %v5259 = vld [vmem:[#allocation4 + $0xf8] sm:$0xff]
    %v5260 = vld [vmem:[#allocation4 + $0x100] sm:$0xff]
    %v5261 = vld [vmem:[#allocation4 + $0x108] sm:$0xff]
    %v5262 = vld [vmem:[#allocation4 + $0x110] sm:$0xff]
    %v5263 = vld [vmem:[#allocation4 + $0x118] sm:$0xff]
    %v5264 = vld [vmem:[#allocation4 + $0x120] sm:$0xff]
    %v5265 = vld [vmem:[#allocation4 + $0x128] sm:$0xff]
    %v5266 = vld [vmem:[#allocation4 + $0x130] sm:$0xff]
    %v5267 = vld [vmem:[#allocation4 + $0x138] sm:$0xff]
    %v5268 = vld [vmem:[#allocation4 + $0x140] sm:$0xff]
    %v5269 = vld [vmem:[#allocation4 + $0x148] sm:$0xff]
    %v5270 = vld [vmem:[#allocation4 + $0x150] sm:$0xff]
    %v5271 = vld [vmem:[#allocation4 + $0x158] sm:$0xff]
    %v5272 = vld [vmem:[#allocation4 + $0x160] sm:$0xff]
    %v5273 = vld [vmem:[#allocation4 + $0x168] sm:$0xff]
    %v5274 = vld [vmem:[#allocation4 + $0x170] sm:$0xff]
    %v5275 = vld [vmem:[#allocation4 + $0x178] sm:$0xff]
    %v5276 = vld [vmem:[#allocation4 + $0x180] sm:$0xff]
    %v5277 = vld [vmem:[#allocation4 + $0x188] sm:$0xff]
    %v5278 = vld [vmem:[#allocation4 + $0x190] sm:$0xff]
    %v5279 = vld [vmem:[#allocation4 + $0x198] sm:$0xff]
    %v5280 = vld [vmem:[#allocation4 + $0x1a0] sm:$0xff]
    %v5281 = vld [vmem:[#allocation4 + $0x1a8] sm:$0xff]
    %v5282 = vld [vmem:[#allocation4 + $0x1b0] sm:$0xff]
    %v5283 = vld [vmem:[#allocation4 + $0x1b8] sm:$0xff]
    %v5284 = vld [vmem:[#allocation4 + $0x1c0] sm:$0xff]
    %v5285 = vld [vmem:[#allocation4 + $0x1c8] sm:$0xff]
    %v5286 = vld [vmem:[#allocation4 + $0x1d0] sm:$0xff]
    %v5287 = vld [vmem:[#allocation4 + $0x1d8] sm:$0xff]
    %v5288 = vld [vmem:[#allocation4 + $0x1e0] sm:$0xff]
    %v5289 = vld [vmem:[#allocation4 + $0x1e8] sm:$0xff]
    %v5290 = vld [vmem:[#allocation4 + $0x1f0] sm:$0xff]
    %v5291 = vld [vmem:[#allocation4 + $0x1f8] sm:$0xff]
    %s5292 = scalar_lea.vmem %s13, 33
    %v5293 = vld [vmem:[%s5292] ss:$8 sm:$0xf]
    %v5294 = vpack.c.bf16 %v5226, %v5224
    %v5295 = vpack.c.bf16 %v5227, %v5225
    %v5297 = vlaneseq
    %v5298 = vshrl.u32 %v5297, 7
    %v5299 = vsub.s32 0, %v5298
    %v5300 = vrot.slane %v5293, %v5299
    %v5301 = vlaneseq
    %v5302 = vshrl.u32 %v5301, 7
    %v5303 = vsub.s32 1, %v5302
    %v5304 = vrot.slane %v5293, %v5303
    %v5305 = vlaneseq
    %v5306 = vshrl.u32 %v5305, 7
    %v5307 = vsub.s32 2, %v5306
    %v5308 = vrot.slane %v5293, %v5307
    %v5309 = vlaneseq
    %v5310 = vshrl.u32 %v5309, 7
    %v5311 = vsub.s32 3, %v5310
    %v5312 = vrot.slane %v5293, %v5311
    %5317 = vmatprep.subr.bf16.mxu0 %v5229
    %5318 = vmatpush1.bf16.msra.mxu0 %v5228
    %5319 = vmatprep.subr.bf16.mxu0 %v5233
    %5320 = vmatpush1.bf16.msra.mxu0 %v5232
    %5321 = vmatprep.subr.bf16.mxu0 %v5237
    %5322 = vmatpush1.bf16.msra.mxu0 %v5236
    %5323 = vmatprep.subr.bf16.mxu0 %v5241
    %5324 = vmatpush1.bf16.msra.mxu0 %v5240
    %5325 = vmatprep.subr.bf16.mxu0 %v5245
    %5326 = vmatpush1.bf16.msra.mxu0 %v5244
    %5327 = vmatprep.subr.bf16.mxu0 %v5249
    %5328 = vmatpush1.bf16.msra.mxu0 %v5248
    %5329 = vmatprep.subr.bf16.mxu0 %v5253
    %5330 = vmatpush1.bf16.msra.mxu0 %v5252
    %5331 = vmatprep.subr.bf16.mxu0 %v5257
    %5332 = vmatpush1.bf16.msra.mxu0 %v5256
    %5333 = vmatprep.subr.bf16.mxu0 %v5261
    %5334 = vmatpush1.bf16.msra.mxu0 %v5260
    %5335 = vmatprep.subr.bf16.mxu0 %v5265
    %5336 = vmatpush1.bf16.msra.mxu0 %v5264
    %5337 = vmatprep.subr.bf16.mxu0 %v5269
    %5338 = vmatpush1.bf16.msra.mxu0 %v5268
    %5339 = vmatprep.subr.bf16.mxu0 %v5273
    %5340 = vmatpush1.bf16.msra.mxu0 %v5272
    %5341 = vmatprep.subr.bf16.mxu0 %v5277
    %5342 = vmatpush1.bf16.msra.mxu0 %v5276
    %5343 = vmatprep.subr.bf16.mxu0 %v5281
    %5344 = vmatpush1.bf16.msra.mxu0 %v5280
    %5345 = vmatprep.subr.bf16.mxu0 %v5285
    %5346 = vmatpush1.bf16.msra.mxu0 %v5284
    %5347 = vmatprep.subr.bf16.mxu0 %v5289
    %5348 = vmatpush1.bf16.msra.mxu0 %v5288
    %5349 = vmatprep.mubr.bf16.mxu0 %v5295
    %5350 = vmatmul.mubr.bf16.gmra.mrb[0].mxu0 %v5294
    %v5351 = vpop.f32.mrb[0].mxu0
    %v5352 = vadd.f32 %v5300, %v5351
    %v5353 = vpop.f32.mrb[0].mxu0
    %v5354 = vadd.f32 %v5304, %v5353
    %v5355 = vpop.f32.mrb[0].mxu0
    %v5356 = vadd.f32 %v5300, %v5355
    %v5357 = vpop.f32.mrb[0].mxu0
    %v5358 = vadd.f32 %v5304, %v5357
    %5359 = vdwg.mxu0
    %5360 = vmatprep.subr.bf16.mxu0 %v5231
    %5361 = vmatpush1.bf16.msra.mxu0 %v5230
    %5362 = vmatprep.subr.bf16.mxu0 %v5235
    %5363 = vmatpush1.bf16.msra.mxu0 %v5234
    %5364 = vmatprep.subr.bf16.mxu0 %v5239
    %5365 = vmatpush1.bf16.msra.mxu0 %v5238
    %5366 = vmatprep.subr.bf16.mxu0 %v5243
    %5367 = vmatpush1.bf16.msra.mxu0 %v5242
    %5368 = vmatprep.subr.bf16.mxu0 %v5247
    %5369 = vmatpush1.bf16.msra.mxu0 %v5246
    %5370 = vmatprep.subr.bf16.mxu0 %v5251
    %5371 = vmatpush1.bf16.msra.mxu0 %v5250
    %5372 = vmatprep.subr.bf16.mxu0 %v5255
    %5373 = vmatpush1.bf16.msra.mxu0 %v5254
    %5374 = vmatprep.subr.bf16.mxu0 %v5259
    %5375 = vmatpush1.bf16.msra.mxu0 %v5258
    %5376 = vmatprep.subr.bf16.mxu0 %v5263
    %5377 = vmatpush1.bf16.msra.mxu0 %v5262
    %5378 = vmatprep.subr.bf16.mxu0 %v5267
    %5379 = vmatpush1.bf16.msra.mxu0 %v5266
    %5380 = vmatprep.subr.bf16.mxu0 %v5271
    %5381 = vmatpush1.bf16.msra.mxu0 %v5270
    %5382 = vmatprep.subr.bf16.mxu0 %v5275
    %5383 = vmatpush1.bf16.msra.mxu0 %v5274
    %5384 = vmatprep.subr.bf16.mxu0 %v5279
    %5385 = vmatpush1.bf16.msra.mxu0 %v5278
    %5386 = vmatprep.subr.bf16.mxu0 %v5283
    %5387 = vmatpush1.bf16.msra.mxu0 %v5282
    %5388 = vmatprep.subr.bf16.mxu0 %v5287
    %5389 = vmatpush1.bf16.msra.mxu0 %v5286
    %5390 = vmatprep.subr.bf16.mxu0 %v5291
    %5391 = vmatpush1.bf16.msra.mxu0 %v5290
    %5392 = vmatprep.mubr.bf16.mxu0 %v5295
    %5393 = vmatmul.mubr.bf16.gmra.mrb[0].mxu0 %v5294
    %v5394 = vpop.f32.mrb[0].mxu0
    %v5395 = vadd.f32 %v5308, %v5394
    %v5396 = vpop.f32.mrb[0].mxu0
    %v5397 = vadd.f32 %v5312, %v5396
    %v5398 = vpop.f32.mrb[0].mxu0
    %v5399 = vadd.f32 %v5308, %v5398
    %v5400 = vpop.f32.mrb[0].mxu0
    %v5401 = vadd.f32 %v5312, %v5400
    %5402 = vdwg.mxu0
    %s5403 = scalar_lea.vmem [#allocation3], 256
    %v5404 = vld [vmem:[%s5403] sm:$0xff]
    %v5405 = vld [vmem:[%s5403 + $0x8] sm:$0xff]
    %v5406 = vld [vmem:[%s5403 + $0x10] sm:$0xff]
    %v5407 = vld [vmem:[%s5403 + $0x18] sm:$0xff]
    %v5408 = vld [vmem:[%s5403 + $0x20] sm:$0xff]
    %v5409 = vld [vmem:[%s5403 + $0x28] sm:$0xff]
    %v5410 = vld [vmem:[%s5403 + $0x30] sm:$0xff]
    %v5411 = vld [vmem:[%s5403 + $0x38] sm:$0xff]
    %v5412 = vld [vmem:[%s5403 + $0x40] sm:$0xff]
    %v5413 = vld [vmem:[%s5403 + $0x48] sm:$0xff]
    %v5414 = vld [vmem:[%s5403 + $0x50] sm:$0xff]
    %v5415 = vld [vmem:[%s5403 + $0x58] sm:$0xff]
    %v5416 = vld [vmem:[%s5403 + $0x60] sm:$0xff]
    %v5417 = vld [vmem:[%s5403 + $0x68] sm:$0xff]
    %v5418 = vld [vmem:[%s5403 + $0x70] sm:$0xff]
    %v5419 = vld [vmem:[%s5403 + $0x78] sm:$0xff]
    %v5420 = vld [vmem:[%s5403 + $0x80] sm:$0xff]
    %v5421 = vld [vmem:[%s5403 + $0x88] sm:$0xff]
    %v5422 = vld [vmem:[%s5403 + $0x90] sm:$0xff]
    %v5423 = vld [vmem:[%s5403 + $0x98] sm:$0xff]
    %v5424 = vld [vmem:[%s5403 + $0xa0] sm:$0xff]
    %v5425 = vld [vmem:[%s5403 + $0xa8] sm:$0xff]
    %v5426 = vld [vmem:[%s5403 + $0xb0] sm:$0xff]
    %v5427 = vld [vmem:[%s5403 + $0xb8] sm:$0xff]
    %v5428 = vld [vmem:[%s5403 + $0xc0] sm:$0xff]
    %v5429 = vld [vmem:[%s5403 + $0xc8] sm:$0xff]
    %v5430 = vld [vmem:[%s5403 + $0xd0] sm:$0xff]
    %v5431 = vld [vmem:[%s5403 + $0xd8] sm:$0xff]
    %v5432 = vld [vmem:[%s5403 + $0xe0] sm:$0xff]
    %v5433 = vld [vmem:[%s5403 + $0xe8] sm:$0xff]
    %v5434 = vld [vmem:[%s5403 + $0xf0] sm:$0xff]
    %v5435 = vld [vmem:[%s5403 + $0xf8] sm:$0xff]
    %s5436 = scalar_lea.vmem %s13, 6
    %v5437 = vld [vmem:[%s5436] ss:$8 sm:$0x3]
    %v5438 = vpack.c.bf16 %v4497, %v4497
    %v5439 = vpack.c.bf16 %v4498, %v4498
    %v5441 = vlaneseq
    %v5442 = vshrl.u32 %v5441, 7
    %v5443 = vsub.s32 0, %v5442
    %v5444 = vrot.slane %v5437, %v5443
    %v5445 = vlaneseq
    %v5446 = vshrl.u32 %v5445, 7
    %v5447 = vsub.s32 1, %v5446
    %v5448 = vrot.slane %v5437, %v5447
    %5451 = vmatprep.subr.bf16.mxu0 %v5405
    %5452 = vmatpush1.bf16.msra.mxu0 %v5404
    %5453 = vmatprep.subr.bf16.mxu0 %v5407
    %5454 = vmatpush1.bf16.msra.mxu0 %v5406
    %5455 = vmatprep.subr.bf16.mxu0 %v5409
    %5456 = vmatpush1.bf16.msra.mxu0 %v5408
    %5457 = vmatprep.subr.bf16.mxu0 %v5411
    %5458 = vmatpush1.bf16.msra.mxu0 %v5410
    %5459 = vmatprep.subr.bf16.mxu0 %v5413
    %5460 = vmatpush1.bf16.msra.mxu0 %v5412
    %5461 = vmatprep.subr.bf16.mxu0 %v5415
    %5462 = vmatpush1.bf16.msra.mxu0 %v5414
    %5463 = vmatprep.subr.bf16.mxu0 %v5417
    %5464 = vmatpush1.bf16.msra.mxu0 %v5416
    %5465 = vmatprep.subr.bf16.mxu0 %v5419
    %5466 = vmatpush1.bf16.msra.mxu0 %v5418
    %5467 = vmatprep.subr.bf16.mxu0 %v5421
    %5468 = vmatpush1.bf16.msra.mxu0 %v5420
    %5469 = vmatprep.subr.bf16.mxu0 %v5423
    %5470 = vmatpush1.bf16.msra.mxu0 %v5422
    %5471 = vmatprep.subr.bf16.mxu0 %v5425
    %5472 = vmatpush1.bf16.msra.mxu0 %v5424
    %5473 = vmatprep.subr.bf16.mxu0 %v5427
    %5474 = vmatpush1.bf16.msra.mxu0 %v5426
    %5475 = vmatprep.subr.bf16.mxu0 %v5429
    %5476 = vmatpush1.bf16.msra.mxu0 %v5428
    %5477 = vmatprep.subr.bf16.mxu0 %v5431
    %5478 = vmatpush1.bf16.msra.mxu0 %v5430
    %5479 = vmatprep.subr.bf16.mxu0 %v5433
    %5480 = vmatpush1.bf16.msra.mxu0 %v5432
    %5481 = vmatprep.subr.bf16.mxu0 %v5435
    %5482 = vmatpush1.bf16.msra.mxu0 %v5434
    %5483 = vmatprep.mubr.bf16.mxu0 %v5439
    %5484 = vmatmul.mubr.bf16.gmra.mrb[0].mxu0 %v5438
    %v5485 = vpop.f32.mrb[0].mxu0
    %v5486 = vadd.f32 %v5444, %v5485
    %v5487 = vpop.f32.mrb[0].mxu0
    %v5488 = vadd.f32 %v5448, %v5487
    %v5489 = vpop.f32.mrb[0].mxu0
    %v5490 = vadd.f32 %v5444, %v5489
    %v5491 = vpop.f32.mrb[0].mxu0
    %v5492 = vadd.f32 %v5448, %v5491
    %5493 = vdwg.mxu0
    %v5494 = vmul.f32 %v5486, 0.2
    %v5495 = vmul.f32 %v5488, 0.2
    %v5496 = vmul.f32 %v5490, 0.2
    %v5497 = vmul.f32 %v5492, 0.2
    %v5498 = vmax.f32 %v5486, %v5494
    %v5499 = vmax.f32 %v5488, %v5495
    %v5500 = vmax.f32 %v5490, %v5496
    %v5501 = vmax.f32 %v5492, %v5497
    %s5502 = scalar_lea.vmem [#allocation3], 512
    %v5503 = vld [vmem:[%s5502] sm:$0xff]
    %v5504 = vld [vmem:[%s5502 + $0x8] sm:$0xff]
    %v5505 = vld [vmem:[%s5502 + $0x10] sm:$0xff]
    %v5506 = vld [vmem:[%s5502 + $0x18] sm:$0xff]
    %v5507 = vld [vmem:[%s5502 + $0x20] sm:$0xff]
    %v5508 = vld [vmem:[%s5502 + $0x28] sm:$0xff]
    %v5509 = vld [vmem:[%s5502 + $0x30] sm:$0xff]
    %v5510 = vld [vmem:[%s5502 + $0x38] sm:$0xff]
    %v5511 = vld [vmem:[%s5502 + $0x40] sm:$0xff]
    %v5512 = vld [vmem:[%s5502 + $0x48] sm:$0xff]
    %v5513 = vld [vmem:[%s5502 + $0x50] sm:$0xff]
    %v5514 = vld [vmem:[%s5502 + $0x58] sm:$0xff]
    %v5515 = vld [vmem:[%s5502 + $0x60] sm:$0xff]
    %v5516 = vld [vmem:[%s5502 + $0x68] sm:$0xff]
    %v5517 = vld [vmem:[%s5502 + $0x70] sm:$0xff]
    %v5518 = vld [vmem:[%s5502 + $0x78] sm:$0xff]
    %v5519 = vld [vmem:[%s5502 + $0x80] sm:$0xff]
    %v5520 = vld [vmem:[%s5502 + $0x88] sm:$0xff]
    %v5521 = vld [vmem:[%s5502 + $0x90] sm:$0xff]
    %v5522 = vld [vmem:[%s5502 + $0x98] sm:$0xff]
    %v5523 = vld [vmem:[%s5502 + $0xa0] sm:$0xff]
    %v5524 = vld [vmem:[%s5502 + $0xa8] sm:$0xff]
    %v5525 = vld [vmem:[%s5502 + $0xb0] sm:$0xff]
    %v5526 = vld [vmem:[%s5502 + $0xb8] sm:$0xff]
    %v5527 = vld [vmem:[%s5502 + $0xc0] sm:$0xff]
    %v5528 = vld [vmem:[%s5502 + $0xc8] sm:$0xff]
    %v5529 = vld [vmem:[%s5502 + $0xd0] sm:$0xff]
    %v5530 = vld [vmem:[%s5502 + $0xd8] sm:$0xff]
    %v5531 = vld [vmem:[%s5502 + $0xe0] sm:$0xff]
    %v5532 = vld [vmem:[%s5502 + $0xe8] sm:$0xff]
    %v5533 = vld [vmem:[%s5502 + $0xf0] sm:$0xff]
    %v5534 = vld [vmem:[%s5502 + $0xf8] sm:$0xff]
    %s5535 = scalar_lea.vmem %s13, 7
    %v5536 = vld [vmem:[%s5535] ss:$8 sm:$0x3]
    %v5537 = vpack.c.bf16 %v5500, %v5498
    %v5538 = vpack.c.bf16 %v5501, %v5499
    %v5540 = vlaneseq
    %v5541 = vshrl.u32 %v5540, 7
    %v5542 = vsub.s32 0, %v5541
    %v5543 = vrot.slane %v5536, %v5542
    %v5544 = vlaneseq
    %v5545 = vshrl.u32 %v5544, 7
    %v5546 = vsub.s32 1, %v5545
    %v5547 = vrot.slane %v5536, %v5546
    %5550 = vmatprep.subr.bf16.mxu0 %v5504
    %5551 = vmatpush1.bf16.msra.mxu0 %v5503
    %5552 = vmatprep.subr.bf16.mxu0 %v5506
    %5553 = vmatpush1.bf16.msra.mxu0 %v5505
    %5554 = vmatprep.subr.bf16.mxu0 %v5508
    %5555 = vmatpush1.bf16.msra.mxu0 %v5507
    %5556 = vmatprep.subr.bf16.mxu0 %v5510
    %5557 = vmatpush1.bf16.msra.mxu0 %v5509
    %5558 = vmatprep.subr.bf16.mxu0 %v5512
    %5559 = vmatpush1.bf16.msra.mxu0 %v5511
    %5560 = vmatprep.subr.bf16.mxu0 %v5514
    %5561 = vmatpush1.bf16.msra.mxu0 %v5513
    %5562 = vmatprep.subr.bf16.mxu0 %v5516
    %5563 = vmatpush1.bf16.msra.mxu0 %v5515
    %5564 = vmatprep.subr.bf16.mxu0 %v5518
    %5565 = vmatpush1.bf16.msra.mxu0 %v5517
    %5566 = vmatprep.subr.bf16.mxu0 %v5520
    %5567 = vmatpush1.bf16.msra.mxu0 %v5519
    %5568 = vmatprep.subr.bf16.mxu0 %v5522
    %5569 = vmatpush1.bf16.msra.mxu0 %v5521
    %5570 = vmatprep.subr.bf16.mxu0 %v5524
    %5571 = vmatpush1.bf16.msra.mxu0 %v5523
    %5572 = vmatprep.subr.bf16.mxu0 %v5526
    %5573 = vmatpush1.bf16.msra.mxu0 %v5525
    %5574 = vmatprep.subr.bf16.mxu0 %v5528
    %5575 = vmatpush1.bf16.msra.mxu0 %v5527
    %5576 = vmatprep.subr.bf16.mxu0 %v5530
    %5577 = vmatpush1.bf16.msra.mxu0 %v5529
    %5578 = vmatprep.subr.bf16.mxu0 %v5532
    %5579 = vmatpush1.bf16.msra.mxu0 %v5531
    %5580 = vmatprep.subr.bf16.mxu0 %v5534
    %5581 = vmatpush1.bf16.msra.mxu0 %v5533
    %5582 = vmatprep.mubr.bf16.mxu0 %v5538
    %5583 = vmatmul.mubr.bf16.gmra.mrb[0].mxu0 %v5537
    %v5584 = vpop.f32.mrb[0].mxu0
    %v5585 = vadd.f32 %v5543, %v5584
    %v5586 = vpop.f32.mrb[0].mxu0
    %v5587 = vadd.f32 %v5547, %v5586
    %v5588 = vpop.f32.mrb[0].mxu0
    %v5589 = vadd.f32 %v5543, %v5588
    %v5590 = vpop.f32.mrb[0].mxu0
    %v5591 = vadd.f32 %v5547, %v5590
    %5592 = vdwg.mxu0
    %v5593 = vmul.f32 %v5585, 0.2
    %v5594 = vmul.f32 %v5587, 0.2
    %v5595 = vmul.f32 %v5589, 0.2
    %v5596 = vmul.f32 %v5591, 0.2
    %v5597 = vmax.f32 %v5585, %v5593
    %v5598 = vmax.f32 %v5587, %v5594
    %v5599 = vmax.f32 %v5589, %v5595
    %v5600 = vmax.f32 %v5591, %v5596
    %v5601 = vld [vmem:[%s15 + $0x10] sm:$0xff]
    %s5602 = scalar_lea.vmem [#allocation2], 256
    %v5603 = vld [vmem:[%s5602] sm:$0xff]
    %v5604 = vld [vmem:[%s5602 + $0x8] sm:$0xff]
    %v5605 = vld [vmem:[%s5602 + $0x10] sm:$0xff]
    %v5606 = vld [vmem:[%s5602 + $0x18] sm:$0xff]
    %v5607 = vld [vmem:[%s5602 + $0x20] sm:$0xff]
    %v5608 = vld [vmem:[%s5602 + $0x28] sm:$0xff]
    %v5609 = vld [vmem:[%s5602 + $0x30] sm:$0xff]
    %v5610 = vld [vmem:[%s5602 + $0x38] sm:$0xff]
    %v5611 = vld [vmem:[%s13 + $0x22] ss:$0 sm:$0xff]
    %v5612 = vpack.c.bf16 %v5601, %v5601
    %5613 = vmatprep.subr.bf16.mxu0 0
    %5614 = vmatpush1.bf16.msra.mxu0 %v5603
    %5615 = vmatprep.subr.bf16.mxu0 0
    %5616 = vmatpush1.bf16.msra.mxu0 %v5604
    %5617 = vmatprep.subr.bf16.mxu0 0
    %5618 = vmatpush1.bf16.msra.mxu0 %v5605
    %5619 = vmatprep.subr.bf16.mxu0 0
    %5620 = vmatpush1.bf16.msra.mxu0 %v5606
    %5621 = vmatprep.subr.bf16.mxu0 0
    %5622 = vmatpush1.bf16.msra.mxu0 %v5607
    %5623 = vmatprep.subr.bf16.mxu0 0
    %5624 = vmatpush1.bf16.msra.mxu0 %v5608
    %5625 = vmatprep.subr.bf16.mxu0 0
    %5626 = vmatpush1.bf16.msra.mxu0 %v5609
    %5627 = vmatprep.subr.bf16.mxu0 0
    %5628 = vmatpush1.bf16.msra.mxu0 %v5610
    %5629 = vmatprep.subr.bf16.mxu0 0
    %5630 = vmatpush1.bf16.msra.mxu0 0
    %5631 = vmatprep.subr.bf16.mxu0 0
    %5632 = vmatpush1.bf16.msra.mxu0 0
    %5633 = vmatprep.subr.bf16.mxu0 0
    %5634 = vmatpush1.bf16.msra.mxu0 0
    %5635 = vmatprep.subr.bf16.mxu0 0
    %5636 = vmatpush1.bf16.msra.mxu0 0
    %5637 = vmatprep.subr.bf16.mxu0 0
    %5638 = vmatpush1.bf16.msra.mxu0 0
    %5639 = vmatprep.subr.bf16.mxu0 0
    %5640 = vmatpush1.bf16.msra.mxu0 0
    %5641 = vmatprep.subr.bf16.mxu0 0
    %5642 = vmatpush1.bf16.msra.mxu0 0
    %5643 = vmatprep.subr.bf16.mxu0 0
    %5644 = vmatpush1.bf16.msra.mxu0 0
    %5645 = vmatprep.mubr.bf16.mxu0 0
    %5646 = vmatmul.mubr.bf16.gmra.mrb[0].mxu0 %v5612
    %v5647 = vpop.f32.mrb[0].mxu0
    %v5648 = vadd.f32 %v5611, %v5647
    %v5649 = vpop.f32.mrb[0].mxu0
    %v5650 = vpop.f32.mrb[0].mxu0
    %v5651 = vadd.f32 %v5611, %v5650
    %v5652 = vpop.f32.mrb[0].mxu0
    %5653 = vdwg.mxu0
    %v5654 = vmul.f32 %v5648, 0.2
    %v5655 = vmul.f32 %v5651, 0.2
    %v5656 = vmax.f32 %v5648, %v5654
    %v5657 = vmax.f32 %v5651, %v5655
    %s5658 = scalar_lea.vmem [#allocation2], 320
    %v5659 = vld [vmem:[%s5658] sm:$0xff]
    %v5660 = vld [vmem:[%s5658 + $0x8] sm:$0xff]
    %v5661 = vld [vmem:[%s5658 + $0x10] sm:$0xff]
    %v5662 = vld [vmem:[%s5658 + $0x18] sm:$0xff]
    %v5663 = vld [vmem:[%s5658 + $0x20] sm:$0xff]
    %v5664 = vld [vmem:[%s5658 + $0x28] sm:$0xff]
    %v5665 = vld [vmem:[%s5658 + $0x30] sm:$0xff]
    %v5666 = vld [vmem:[%s5658 + $0x38] sm:$0xff]
    %v5667 = vld [vmem:[%s13 + $0x23] ss:$0 sm:$0xff]
    %v5668 = vpack.c.bf16 %v5657, %v5656
    %5669 = vmatprep.subr.bf16.mxu0 0
    %5670 = vmatpush1.bf16.msra.mxu0 %v5659
    %5671 = vmatprep.subr.bf16.mxu0 0
    %5672 = vmatpush1.bf16.msra.mxu0 %v5660
    %5673 = vmatprep.subr.bf16.mxu0 0
    %5674 = vmatpush1.bf16.msra.mxu0 %v5661
    %5675 = vmatprep.subr.bf16.mxu0 0
    %5676 = vmatpush1.bf16.msra.mxu0 %v5662
    %5677 = vmatprep.subr.bf16.mxu0 0
    %5678 = vmatpush1.bf16.msra.mxu0 %v5663
    %5679 = vmatprep.subr.bf16.mxu0 0
    %5680 = vmatpush1.bf16.msra.mxu0 %v5664
    %5681 = vmatprep.subr.bf16.mxu0 0
    %5682 = vmatpush1.bf16.msra.mxu0 %v5665
    %5683 = vmatprep.subr.bf16.mxu0 0
    %5684 = vmatpush1.bf16.msra.mxu0 %v5666
    %5685 = vmatprep.subr.bf16.mxu0 0
    %5686 = vmatpush1.bf16.msra.mxu0 0
    %5687 = vmatprep.subr.bf16.mxu0 0
    %5688 = vmatpush1.bf16.msra.mxu0 0
    %5689 = vmatprep.subr.bf16.mxu0 0
    %5690 = vmatpush1.bf16.msra.mxu0 0
    %5691 = vmatprep.subr.bf16.mxu0 0
    %5692 = vmatpush1.bf16.msra.mxu0 0
    %5693 = vmatprep.subr.bf16.mxu0 0
    %5694 = vmatpush1.bf16.msra.mxu0 0
    %5695 = vmatprep.subr.bf16.mxu0 0
    %5696 = vmatpush1.bf16.msra.mxu0 0
    %5697 = vmatprep.subr.bf16.mxu0 0
    %5698 = vmatpush1.bf16.msra.mxu0 0
    %5699 = vmatprep.subr.bf16.mxu0 0
    %5700 = vmatpush1.bf16.msra.mxu0 0
    %5701 = vmatprep.mubr.bf16.mxu0 0
    %5702 = vmatmul.mubr.bf16.gmra.mrb[0].mxu0 %v5668
    %v5703 = vpop.f32.mrb[0].mxu0
    %v5704 = vadd.f32 %v5667, %v5703
    %v5705 = vpop.f32.mrb[0].mxu0
    %v5706 = vpop.f32.mrb[0].mxu0
    %v5707 = vadd.f32 %v5667, %v5706
    %v5708 = vpop.f32.mrb[0].mxu0
    %5709 = vdwg.mxu0
    %v5710 = vmul.f32 %v5704, 0.2
    %v5711 = vmul.f32 %v5707, 0.2
    %v5712 = vmax.f32 %v5704, %v5710
    %v5713 = vmax.f32 %v5707, %v5711
    %v5714 = vld [vmem:[%s15 + $0x18] sm:$0xff]
    %s5715 = scalar_lea.vmem [#allocation2], 384
    %v5716 = vld [vmem:[%s5715] sm:$0xff]
    %v5717 = vld [vmem:[%s5715 + $0x8] sm:$0xff]
    %v5718 = vld [vmem:[%s5715 + $0x10] sm:$0xff]
    %v5719 = vld [vmem:[%s5715 + $0x18] sm:$0xff]
    %v5720 = vld [vmem:[%s5715 + $0x20] sm:$0xff]
    %v5721 = vld [vmem:[%s5715 + $0x28] sm:$0xff]
    %v5722 = vld [vmem:[%s5715 + $0x30] sm:$0xff]
    %v5723 = vld [vmem:[%s5715 + $0x38] sm:$0xff]
    %v5724 = vld [vmem:[%s13 + $0x24] ss:$0 sm:$0xff]
    %v5725 = vpack.c.bf16 %v5714, %v5714
    %5726 = vmatprep.subr.bf16.mxu0 0
    %5727 = vmatpush1.bf16.msra.mxu0 %v5716
    %5728 = vmatprep.subr.bf16.mxu0 0
    %5729 = vmatpush1.bf16.msra.mxu0 %v5717
    %5730 = vmatprep.subr.bf16.mxu0 0
    %5731 = vmatpush1.bf16.msra.mxu0 %v5718
    %5732 = vmatprep.subr.bf16.mxu0 0
    %5733 = vmatpush1.bf16.msra.mxu0 %v5719
    %5734 = vmatprep.subr.bf16.mxu0 0
    %5735 = vmatpush1.bf16.msra.mxu0 %v5720
    %5736 = vmatprep.subr.bf16.mxu0 0
    %5737 = vmatpush1.bf16.msra.mxu0 %v5721
    %5738 = vmatprep.subr.bf16.mxu0 0
    %5739 = vmatpush1.bf16.msra.mxu0 %v5722
    %5740 = vmatprep.subr.bf16.mxu0 0
    %5741 = vmatpush1.bf16.msra.mxu0 %v5723
    %5742 = vmatprep.subr.bf16.mxu0 0
    %5743 = vmatpush1.bf16.msra.mxu0 0
    %5744 = vmatprep.subr.bf16.mxu0 0
    %5745 = vmatpush1.bf16.msra.mxu0 0
    %5746 = vmatprep.subr.bf16.mxu0 0
    %5747 = vmatpush1.bf16.msra.mxu0 0
    %5748 = vmatprep.subr.bf16.mxu0 0
    %5749 = vmatpush1.bf16.msra.mxu0 0
    %5750 = vmatprep.subr.bf16.mxu0 0
    %5751 = vmatpush1.bf16.msra.mxu0 0
    %5752 = vmatprep.subr.bf16.mxu0 0
    %5753 = vmatpush1.bf16.msra.mxu0 0
    %5754 = vmatprep.subr.bf16.mxu0 0
    %5755 = vmatpush1.bf16.msra.mxu0 0
    %5756 = vmatprep.subr.bf16.mxu0 0
    %5757 = vmatpush1.bf16.msra.mxu0 0
    %5758 = vmatprep.mubr.bf16.mxu0 0
    %5759 = vmatmul.mubr.bf16.gmra.mrb[0].mxu0 %v5725
    %v5760 = vpop.f32.mrb[0].mxu0
    %v5761 = vadd.f32 %v5724, %v5760
    %v5762 = vpop.f32.mrb[0].mxu0
    %v5763 = vpop.f32.mrb[0].mxu0
    %v5764 = vadd.f32 %v5724, %v5763
    %v5765 = vpop.f32.mrb[0].mxu0
    %5766 = vdwg.mxu0
    %v5767 = vmul.f32 %v5761, 0.2
    %v5768 = vmul.f32 %v5764, 0.2
    %v5769 = vmax.f32 %v5761, %v5767
    %v5770 = vmax.f32 %v5764, %v5768
    %s5771 = scalar_lea.vmem [#allocation2], 448
    %v5772 = vld [vmem:[%s5771] sm:$0xff]
    %v5773 = vld [vmem:[%s5771 + $0x8] sm:$0xff]
    %v5774 = vld [vmem:[%s5771 + $0x10] sm:$0xff]
    %v5775 = vld [vmem:[%s5771 + $0x18] sm:$0xff]
    %v5776 = vld [vmem:[%s5771 + $0x20] sm:$0xff]
    %v5777 = vld [vmem:[%s5771 + $0x28] sm:$0xff]
    %v5778 = vld [vmem:[%s5771 + $0x30] sm:$0xff]
    %v5779 = vld [vmem:[%s5771 + $0x38] sm:$0xff]
    %v5780 = vld [vmem:[%s13 + $0x25] ss:$0 sm:$0xff]
    %v5781 = vpack.c.bf16 %v5770, %v5769
    %5782 = vmatprep.subr.bf16.mxu0 0
    %5783 = vmatpush1.bf16.msra.mxu0 %v5772
    %5784 = vmatprep.subr.bf16.mxu0 0
    %5785 = vmatpush1.bf16.msra.mxu0 %v5773
    %5786 = vmatprep.subr.bf16.mxu0 0
    %5787 = vmatpush1.bf16.msra.mxu0 %v5774
    %5788 = vmatprep.subr.bf16.mxu0 0
    %5789 = vmatpush1.bf16.msra.mxu0 %v5775
    %5790 = vmatprep.subr.bf16.mxu0 0
    %5791 = vmatpush1.bf16.msra.mxu0 %v5776
    %5792 = vmatprep.subr.bf16.mxu0 0
    %5793 = vmatpush1.bf16.msra.mxu0 %v5777
    %5794 = vmatprep.subr.bf16.mxu0 0
    %5795 = vmatpush1.bf16.msra.mxu0 %v5778
    %5796 = vmatprep.subr.bf16.mxu0 0
    %5797 = vmatpush1.bf16.msra.mxu0 %v5779
    %5798 = vmatprep.subr.bf16.mxu0 0
    %5799 = vmatpush1.bf16.msra.mxu0 0
    %5800 = vmatprep.subr.bf16.mxu0 0
    %5801 = vmatpush1.bf16.msra.mxu0 0
    %5802 = vmatprep.subr.bf16.mxu0 0
    %5803 = vmatpush1.bf16.msra.mxu0 0
    %5804 = vmatprep.subr.bf16.mxu0 0
    %5805 = vmatpush1.bf16.msra.mxu0 0
    %5806 = vmatprep.subr.bf16.mxu0 0
    %5807 = vmatpush1.bf16.msra.mxu0 0
    %5808 = vmatprep.subr.bf16.mxu0 0
    %5809 = vmatpush1.bf16.msra.mxu0 0
    %5810 = vmatprep.subr.bf16.mxu0 0
    %5811 = vmatpush1.bf16.msra.mxu0 0
    %5812 = vmatprep.subr.bf16.mxu0 0
    %5813 = vmatpush1.bf16.msra.mxu0 0
    %5814 = vmatprep.mubr.bf16.mxu0 0
    %5815 = vmatmul.mubr.bf16.gmra.mrb[0].mxu0 %v5781
    %v5816 = vpop.f32.mrb[0].mxu0
    %v5817 = vadd.f32 %v5780, %v5816
    %v5818 = vpop.f32.mrb[0].mxu0
    %v5819 = vpop.f32.mrb[0].mxu0
    %v5820 = vadd.f32 %v5780, %v5819
    %v5821 = vpop.f32.mrb[0].mxu0
    %5822 = vdwg.mxu0
    %v5823 = vmul.f32 %v5817, 0.2
    %v5824 = vmul.f32 %v5820, 0.2
    %v5825 = vmax.f32 %v5817, %v5823
    %v5826 = vmax.f32 %v5820, %v5824
    %s5827 = scalar_lea.vmem [#allocation5], 1024
    %v5828 = vld [vmem:[%s5827] sm:$0xff]
    %v5829 = vld [vmem:[%s5827 + $0x8] sm:$0xff]
    %v5830 = vld [vmem:[%s5827 + $0x10] sm:$0xff]
    %v5831 = vld [vmem:[%s5827 + $0x18] sm:$0xff]
    %v5832 = vld [vmem:[%s5827 + $0x20] sm:$0xff]
    %v5833 = vld [vmem:[%s5827 + $0x28] sm:$0xff]
    %v5834 = vld [vmem:[%s5827 + $0x30] sm:$0xff]
    %v5835 = vld [vmem:[%s5827 + $0x38] sm:$0xff]
    %v5836 = vld [vmem:[%s5827 + $0x40] sm:$0xff]
    %v5837 = vld [vmem:[%s5827 + $0x48] sm:$0xff]
    %v5838 = vld [vmem:[%s5827 + $0x50] sm:$0xff]
    %v5839 = vld [vmem:[%s5827 + $0x58] sm:$0xff]
    %v5840 = vld [vmem:[%s5827 + $0x60] sm:$0xff]
    %v5841 = vld [vmem:[%s5827 + $0x68] sm:$0xff]
    %v5842 = vld [vmem:[%s5827 + $0x70] sm:$0xff]
    %v5843 = vld [vmem:[%s5827 + $0x78] sm:$0xff]
    %v5844 = vld [vmem:[%s5827 + $0x80] sm:$0xff]
    %v5845 = vld [vmem:[%s5827 + $0x88] sm:$0xff]
    %v5846 = vld [vmem:[%s5827 + $0x90] sm:$0xff]
    %v5847 = vld [vmem:[%s5827 + $0x98] sm:$0xff]
    %v5848 = vld [vmem:[%s5827 + $0xa0] sm:$0xff]
    %v5849 = vld [vmem:[%s5827 + $0xa8] sm:$0xff]
    %v5850 = vld [vmem:[%s5827 + $0xb0] sm:$0xff]
    %v5851 = vld [vmem:[%s5827 + $0xb8] sm:$0xff]
    %v5852 = vld [vmem:[%s5827 + $0xc0] sm:$0xff]
    %v5853 = vld [vmem:[%s5827 + $0xc8] sm:$0xff]
    %v5854 = vld [vmem:[%s5827 + $0xd0] sm:$0xff]
    %v5855 = vld [vmem:[%s5827 + $0xd8] sm:$0xff]
    %v5856 = vld [vmem:[%s5827 + $0xe0] sm:$0xff]
    %v5857 = vld [vmem:[%s5827 + $0xe8] sm:$0xff]
    %v5858 = vld [vmem:[%s5827 + $0xf0] sm:$0xff]
    %v5859 = vld [vmem:[%s5827 + $0xf8] sm:$0xff]
    %v5860 = vld [vmem:[%s5827 + $0x100] sm:$0xff]
    %v5861 = vld [vmem:[%s5827 + $0x108] sm:$0xff]
    %v5862 = vld [vmem:[%s5827 + $0x110] sm:$0xff]
    %v5863 = vld [vmem:[%s5827 + $0x118] sm:$0xff]
    %v5864 = vld [vmem:[%s5827 + $0x120] sm:$0xff]
    %v5865 = vld [vmem:[%s5827 + $0x128] sm:$0xff]
    %v5866 = vld [vmem:[%s5827 + $0x130] sm:$0xff]
    %v5867 = vld [vmem:[%s5827 + $0x138] sm:$0xff]
    %v5868 = vld [vmem:[%s5827 + $0x140] sm:$0xff]
    %v5869 = vld [vmem:[%s5827 + $0x148] sm:$0xff]
    %v5870 = vld [vmem:[%s5827 + $0x150] sm:$0xff]
    %v5871 = vld [vmem:[%s5827 + $0x158] sm:$0xff]
    %v5872 = vld [vmem:[%s5827 + $0x160] sm:$0xff]
    %v5873 = vld [vmem:[%s5827 + $0x168] sm:$0xff]
    %v5874 = vld [vmem:[%s5827 + $0x170] sm:$0xff]
    %v5875 = vld [vmem:[%s5827 + $0x178] sm:$0xff]
    %v5876 = vld [vmem:[%s5827 + $0x180] sm:$0xff]
    %v5877 = vld [vmem:[%s5827 + $0x188] sm:$0xff]
    %v5878 = vld [vmem:[%s5827 + $0x190] sm:$0xff]
    %v5879 = vld [vmem:[%s5827 + $0x198] sm:$0xff]
    %v5880 = vld [vmem:[%s5827 + $0x1a0] sm:$0xff]
    %v5881 = vld [vmem:[%s5827 + $0x1a8] sm:$0xff]
    %v5882 = vld [vmem:[%s5827 + $0x1b0] sm:$0xff]
    %v5883 = vld [vmem:[%s5827 + $0x1b8] sm:$0xff]
    %v5884 = vld [vmem:[%s5827 + $0x1c0] sm:$0xff]
    %v5885 = vld [vmem:[%s5827 + $0x1c8] sm:$0xff]
    %v5886 = vld [vmem:[%s5827 + $0x1d0] sm:$0xff]
    %v5887 = vld [vmem:[%s5827 + $0x1d8] sm:$0xff]
    %v5888 = vld [vmem:[%s5827 + $0x1e0] sm:$0xff]
    %v5889 = vld [vmem:[%s5827 + $0x1e8] sm:$0xff]
    %v5890 = vld [vmem:[%s5827 + $0x1f0] sm:$0xff]
    %v5891 = vld [vmem:[%s5827 + $0x1f8] sm:$0xff]
    %s5892 = scalar_lea.vmem %s13, 38
    %v5893 = vld [vmem:[%s5892] ss:$8 sm:$0x3]
    %v5894 = vpack.c.bf16 %v5599, %v5597
    %v5895 = vpack.c.bf16 %v5600, %v5598
    %5896 = vmatprep.subr.bf16.mxu0 %v5829
    %5897 = vmatpush1.bf16.msra.mxu0 %v5828
    %5898 = vmatprep.subr.bf16.mxu0 %v5831
    %5899 = vmatpush1.bf16.msra.mxu0 %v5830
    %5900 = vmatprep.subr.bf16.mxu0 %v5833
    %5901 = vmatpush1.bf16.msra.mxu0 %v5832
    %5902 = vmatprep.subr.bf16.mxu0 %v5835
    %5903 = vmatpush1.bf16.msra.mxu0 %v5834
    %5904 = vmatprep.subr.bf16.mxu0 %v5837
    %5905 = vmatpush1.bf16.msra.mxu0 %v5836
    %5906 = vmatprep.subr.bf16.mxu0 %v5839
    %5907 = vmatpush1.bf16.msra.mxu0 %v5838
    %5908 = vmatprep.subr.bf16.mxu0 %v5841
    %5909 = vmatpush1.bf16.msra.mxu0 %v5840
    %5910 = vmatprep.subr.bf16.mxu0 %v5843
    %5911 = vmatpush1.bf16.msra.mxu0 %v5842
    %5912 = vmatprep.subr.bf16.mxu0 %v5845
    %5913 = vmatpush1.bf16.msra.mxu0 %v5844
    %5914 = vmatprep.subr.bf16.mxu0 %v5847
    %5915 = vmatpush1.bf16.msra.mxu0 %v5846
    %5916 = vmatprep.subr.bf16.mxu0 %v5849
    %5917 = vmatpush1.bf16.msra.mxu0 %v5848
    %5918 = vmatprep.subr.bf16.mxu0 %v5851
    %5919 = vmatpush1.bf16.msra.mxu0 %v5850
    %5920 = vmatprep.subr.bf16.mxu0 %v5853
    %5921 = vmatpush1.bf16.msra.mxu0 %v5852
    %5922 = vmatprep.subr.bf16.mxu0 %v5855
    %5923 = vmatpush1.bf16.msra.mxu0 %v5854
    %5924 = vmatprep.subr.bf16.mxu0 %v5857
    %5925 = vmatpush1.bf16.msra.mxu0 %v5856
    %5926 = vmatprep.subr.bf16.mxu0 %v5859
    %5927 = vmatpush1.bf16.msra.mxu0 %v5858
    %5928 = vmatprep.mubr.bf16.mxu0 %v5895
    %5929 = vmatmul.mubr.bf16.gmra.mrb[0].mxu0 %v5894
    %v5930 = vpop.f32.mrb[0].mxu0
    %v5931 = vadd.f32 0.0, %v5930
    %v5932 = vpop.f32.mrb[0].mxu0
    %v5933 = vadd.f32 0.0, %v5932
    %v5934 = vpop.f32.mrb[0].mxu0
    %v5935 = vadd.f32 0.0, %v5934
    %v5936 = vpop.f32.mrb[0].mxu0
    %v5937 = vadd.f32 0.0, %v5936
    %5938 = vdwg.mxu0
    %v5940 = vlaneseq
    %v5941 = vshrl.u32 %v5940, 7
    %v5942 = vsub.s32 0, %v5941
    %v5943 = vrot.slane %v5893, %v5942
    %v5944 = vlaneseq
    %v5945 = vshrl.u32 %v5944, 7
    %v5946 = vsub.s32 1, %v5945
    %v5947 = vrot.slane %v5893, %v5946
    %v5950 = vadd.f32 %v5943, %v5931
    %v5951 = vadd.f32 %v5947, %v5933
    %v5952 = vadd.f32 %v5943, %v5935
    %v5953 = vadd.f32 %v5947, %v5937
    %v5954 = vpack.c.bf16 %v5713, %v5712
    %5955 = vmatprep.subr.bf16.mxu0 %v5861
    %5956 = vmatpush1.bf16.msra.mxu0 %v5860
    %5957 = vmatprep.subr.bf16.mxu0 %v5863
    %5958 = vmatpush1.bf16.msra.mxu0 %v5862
    %5959 = vmatprep.subr.bf16.mxu0 %v5865
    %5960 = vmatpush1.bf16.msra.mxu0 %v5864
    %5961 = vmatprep.subr.bf16.mxu0 %v5867
    %5962 = vmatpush1.bf16.msra.mxu0 %v5866
    %5963 = vmatprep.subr.bf16.mxu0 %v5869
    %5964 = vmatpush1.bf16.msra.mxu0 %v5868
    %5965 = vmatprep.subr.bf16.mxu0 %v5871
    %5966 = vmatpush1.bf16.msra.mxu0 %v5870
    %5967 = vmatprep.subr.bf16.mxu0 %v5873
    %5968 = vmatpush1.bf16.msra.mxu0 %v5872
    %5969 = vmatprep.subr.bf16.mxu0 %v5875
    %5970 = vmatpush1.bf16.msra.mxu0 %v5874
    %5971 = vmatprep.subr.bf16.mxu0 0
    %5972 = vmatpush1.bf16.msra.mxu0 0
    %5973 = vmatprep.subr.bf16.mxu0 0
    %5974 = vmatpush1.bf16.msra.mxu0 0
    %5975 = vmatprep.subr.bf16.mxu0 0
    %5976 = vmatpush1.bf16.msra.mxu0 0
    %5977 = vmatprep.subr.bf16.mxu0 0
    %5978 = vmatpush1.bf16.msra.mxu0 0
    %5979 = vmatprep.subr.bf16.mxu0 0
    %5980 = vmatpush1.bf16.msra.mxu0 0
    %5981 = vmatprep.subr.bf16.mxu0 0
    %5982 = vmatpush1.bf16.msra.mxu0 0
    %5983 = vmatprep.subr.bf16.mxu0 0
    %5984 = vmatpush1.bf16.msra.mxu0 0
    %5985 = vmatprep.subr.bf16.mxu0 0
    %5986 = vmatpush1.bf16.msra.mxu0 0
    %5987 = vmatprep.mubr.bf16.mxu0 0
    %5988 = vmatmul.mubr.bf16.gmra.mrb[0].mxu0 %v5954
    %v5989 = vpop.f32.mrb[0].mxu0
    %v5990 = vadd.f32 0.0, %v5989
    %v5991 = vpop.f32.mrb[0].mxu0
    %v5992 = vadd.f32 0.0, %v5991
    %v5993 = vpop.f32.mrb[0].mxu0
    %v5994 = vadd.f32 0.0, %v5993
    %v5995 = vpop.f32.mrb[0].mxu0
    %v5996 = vadd.f32 0.0, %v5995
    %5997 = vdwg.mxu0
    %v5998 = vadd.f32 %v5950, %v5990
    %v5999 = vadd.f32 %v5951, %v5992
    %v6000 = vadd.f32 %v5952, %v5994
    %v6001 = vadd.f32 %v5953, %v5996
    %v6002 = vpack.c.bf16 %v5826, %v5825
    %6003 = vmatprep.subr.bf16.mxu0 %v5877
    %6004 = vmatpush1.bf16.msra.mxu0 %v5876
    %6005 = vmatprep.subr.bf16.mxu0 %v5879
    %6006 = vmatpush1.bf16.msra.mxu0 %v5878
    %6007 = vmatprep.subr.bf16.mxu0 %v5881
    %6008 = vmatpush1.bf16.msra.mxu0 %v5880
    %6009 = vmatprep.subr.bf16.mxu0 %v5883
    %6010 = vmatpush1.bf16.msra.mxu0 %v5882
    %6011 = vmatprep.subr.bf16.mxu0 %v5885
    %6012 = vmatpush1.bf16.msra.mxu0 %v5884
    %6013 = vmatprep.subr.bf16.mxu0 %v5887
    %6014 = vmatpush1.bf16.msra.mxu0 %v5886
    %6015 = vmatprep.subr.bf16.mxu0 %v5889
    %6016 = vmatpush1.bf16.msra.mxu0 %v5888
    %6017 = vmatprep.subr.bf16.mxu0 %v5891
    %6018 = vmatpush1.bf16.msra.mxu0 %v5890
    %6019 = vmatprep.subr.bf16.mxu0 0
    %6020 = vmatpush1.bf16.msra.mxu0 0
    %6021 = vmatprep.subr.bf16.mxu0 0
    %6022 = vmatpush1.bf16.msra.mxu0 0
    %6023 = vmatprep.subr.bf16.mxu0 0
    %6024 = vmatpush1.bf16.msra.mxu0 0
    %6025 = vmatprep.subr.bf16.mxu0 0
    %6026 = vmatpush1.bf16.msra.mxu0 0
    %6027 = vmatprep.subr.bf16.mxu0 0
    %6028 = vmatpush1.bf16.msra.mxu0 0
    %6029 = vmatprep.subr.bf16.mxu0 0
    %6030 = vmatpush1.bf16.msra.mxu0 0
    %6031 = vmatprep.subr.bf16.mxu0 0
    %6032 = vmatpush1.bf16.msra.mxu0 0
    %6033 = vmatprep.subr.bf16.mxu0 0
    %6034 = vmatpush1.bf16.msra.mxu0 0
    %6035 = vmatprep.mubr.bf16.mxu0 0
    %6036 = vmatmul.mubr.bf16.gmra.mrb[0].mxu0 %v6002
    %v6037 = vpop.f32.mrb[0].mxu0
    %v6038 = vadd.f32 0.0, %v6037
    %v6039 = vpop.f32.mrb[0].mxu0
    %v6040 = vadd.f32 0.0, %v6039
    %v6041 = vpop.f32.mrb[0].mxu0
    %v6042 = vadd.f32 0.0, %v6041
    %v6043 = vpop.f32.mrb[0].mxu0
    %v6044 = vadd.f32 0.0, %v6043
    %6045 = vdwg.mxu0
    %v6046 = vadd.f32 %v5998, %v6038
    %v6047 = vadd.f32 %v5999, %v6040
    %v6048 = vadd.f32 %v6000, %v6042
    %v6049 = vadd.f32 %v6001, %v6044
    %v6050 = vmul.f32 %v6046, 0.2
    %v6051 = vmul.f32 %v6047, 0.2
    %v6052 = vmul.f32 %v6048, 0.2
    %v6053 = vmul.f32 %v6049, 0.2
    %v6054 = vmax.f32 %v6046, %v6050
    %v6055 = vmax.f32 %v6047, %v6051
    %v6056 = vmax.f32 %v6048, %v6052
    %v6057 = vmax.f32 %v6049, %v6053
    %s6058 = scalar_lea.vmem [#allocation3], 768
    %v6059 = vld [vmem:[%s6058] sm:$0xff]
    %v6060 = vld [vmem:[%s6058 + $0x8] sm:$0xff]
    %v6061 = vld [vmem:[%s6058 + $0x10] sm:$0xff]
    %v6062 = vld [vmem:[%s6058 + $0x18] sm:$0xff]
    %v6063 = vld [vmem:[%s6058 + $0x20] sm:$0xff]
    %v6064 = vld [vmem:[%s6058 + $0x28] sm:$0xff]
    %v6065 = vld [vmem:[%s6058 + $0x30] sm:$0xff]
    %v6066 = vld [vmem:[%s6058 + $0x38] sm:$0xff]
    %v6067 = vld [vmem:[%s6058 + $0x40] sm:$0xff]
    %v6068 = vld [vmem:[%s6058 + $0x48] sm:$0xff]
    %v6069 = vld [vmem:[%s6058 + $0x50] sm:$0xff]
    %v6070 = vld [vmem:[%s6058 + $0x58] sm:$0xff]
    %v6071 = vld [vmem:[%s6058 + $0x60] sm:$0xff]
    %v6072 = vld [vmem:[%s6058 + $0x68] sm:$0xff]
    %v6073 = vld [vmem:[%s6058 + $0x70] sm:$0xff]
    %v6074 = vld [vmem:[%s6058 + $0x78] sm:$0xff]
    %v6075 = vld [vmem:[%s6058 + $0x80] sm:$0xff]
    %v6076 = vld [vmem:[%s6058 + $0x88] sm:$0xff]
    %v6077 = vld [vmem:[%s6058 + $0x90] sm:$0xff]
    %v6078 = vld [vmem:[%s6058 + $0x98] sm:$0xff]
    %v6079 = vld [vmem:[%s6058 + $0xa0] sm:$0xff]
    %v6080 = vld [vmem:[%s6058 + $0xa8] sm:$0xff]
    %v6081 = vld [vmem:[%s6058 + $0xb0] sm:$0xff]
    %v6082 = vld [vmem:[%s6058 + $0xb8] sm:$0xff]
    %v6083 = vld [vmem:[%s6058 + $0xc0] sm:$0xff]
    %v6084 = vld [vmem:[%s6058 + $0xc8] sm:$0xff]
    %v6085 = vld [vmem:[%s6058 + $0xd0] sm:$0xff]
    %v6086 = vld [vmem:[%s6058 + $0xd8] sm:$0xff]
    %v6087 = vld [vmem:[%s6058 + $0xe0] sm:$0xff]
    %v6088 = vld [vmem:[%s6058 + $0xe8] sm:$0xff]
    %v6089 = vld [vmem:[%s6058 + $0xf0] sm:$0xff]
    %v6090 = vld [vmem:[%s6058 + $0xf8] sm:$0xff]
    %s6091 = scalar_lea.vmem %s13, 39
    %v6092 = vld [vmem:[%s6091] ss:$8 sm:$0x3]
    %v6093 = vpack.c.bf16 %v6056, %v6054
    %v6094 = vpack.c.bf16 %v6057, %v6055
    %v6096 = vlaneseq
    %v6097 = vshrl.u32 %v6096, 7
    %v6098 = vsub.s32 0, %v6097
    %v6099 = vrot.slane %v6092, %v6098
    %v6100 = vlaneseq
    %v6101 = vshrl.u32 %v6100, 7
    %v6102 = vsub.s32 1, %v6101
    %v6103 = vrot.slane %v6092, %v6102
    %6106 = vmatprep.subr.bf16.mxu0 %v6060
    %6107 = vmatpush1.bf16.msra.mxu0 %v6059
    %6108 = vmatprep.subr.bf16.mxu0 %v6062
    %6109 = vmatpush1.bf16.msra.mxu0 %v6061
    %6110 = vmatprep.subr.bf16.mxu0 %v6064
    %6111 = vmatpush1.bf16.msra.mxu0 %v6063
    %6112 = vmatprep.subr.bf16.mxu0 %v6066
    %6113 = vmatpush1.bf16.msra.mxu0 %v6065
    %6114 = vmatprep.subr.bf16.mxu0 %v6068
    %6115 = vmatpush1.bf16.msra.mxu0 %v6067
    %6116 = vmatprep.subr.bf16.mxu0 %v6070
    %6117 = vmatpush1.bf16.msra.mxu0 %v6069
    %6118 = vmatprep.subr.bf16.mxu0 %v6072
    %6119 = vmatpush1.bf16.msra.mxu0 %v6071
    %6120 = vmatprep.subr.bf16.mxu0 %v6074
    %6121 = vmatpush1.bf16.msra.mxu0 %v6073
    %6122 = vmatprep.subr.bf16.mxu0 %v6076
    %6123 = vmatpush1.bf16.msra.mxu0 %v6075
    %6124 = vmatprep.subr.bf16.mxu0 %v6078
    %6125 = vmatpush1.bf16.msra.mxu0 %v6077
    %6126 = vmatprep.subr.bf16.mxu0 %v6080
    %6127 = vmatpush1.bf16.msra.mxu0 %v6079
    %6128 = vmatprep.subr.bf16.mxu0 %v6082
    %6129 = vmatpush1.bf16.msra.mxu0 %v6081
    %6130 = vmatprep.subr.bf16.mxu0 %v6084
    %6131 = vmatpush1.bf16.msra.mxu0 %v6083
    %6132 = vmatprep.subr.bf16.mxu0 %v6086
    %6133 = vmatpush1.bf16.msra.mxu0 %v6085
    %6134 = vmatprep.subr.bf16.mxu0 %v6088
    %6135 = vmatpush1.bf16.msra.mxu0 %v6087
    %6136 = vmatprep.subr.bf16.mxu0 %v6090
    %6137 = vmatpush1.bf16.msra.mxu0 %v6089
    %6138 = vmatprep.mubr.bf16.mxu0 %v6094
    %6139 = vmatmul.mubr.bf16.gmra.mrb[0].mxu0 %v6093
    %v6140 = vpop.f32.mrb[0].mxu0
    %v6141 = vadd.f32 %v6099, %v6140
    %v6142 = vpop.f32.mrb[0].mxu0
    %v6143 = vadd.f32 %v6103, %v6142
    %v6144 = vpop.f32.mrb[0].mxu0
    %v6145 = vadd.f32 %v6099, %v6144
    %v6146 = vpop.f32.mrb[0].mxu0
    %v6147 = vadd.f32 %v6103, %v6146
    %6148 = vdwg.mxu0
    %v6149 = vadd.f32 %v6141, %v4497
    %v6150 = vadd.f32 %v6143, %v4498
    %v6151 = vadd.f32 %v6145, %v4497
    %v6152 = vadd.f32 %v6147, %v4498
    %v6153 = vadd.f32 %v5352, %v4493
    %v6154 = vadd.f32 %v5354, %v4494
    %v6155 = vadd.f32 %v5395, %v4495
    %v6156 = vadd.f32 %v5397, %v4496
    %v6157 = vadd.f32 %v5356, %v4493
    %v6158 = vadd.f32 %v5358, %v4494
    %v6159 = vadd.f32 %v5399, %v4495
    %v6160 = vadd.f32 %v5401, %v4496
    %6161 = vst [vmem:[%s18] sm:$0xff] %v6149
    %6162 = vst [vmem:[%s18 + $0x8] sm:$0xff] %v6150
    %6163 = vst [vmem:[%s19] sm:$0xff] %v6153
    %6164 = vst [vmem:[%s19 + $0x8] sm:$0xff] %v6154
    %6165 = vst [vmem:[%s19 + $0x10] sm:$0xff] %v6155
    %6166 = vst [vmem:[%s19 + $0x18] sm:$0xff] %v6156
    %v6167 = vld [vmem:[#allocation9] sm:$0xff]
    %v6168 = vld [vmem:[#allocation9 + $0x8] sm:$0xff]
    %v6169 = vld [vmem:[#allocation9 + $0x10] sm:$0xff]
    %v6170 = vld [vmem:[#allocation9 + $0x18] sm:$0xff]
    %v6171 = vld [vmem:[#allocation9 + $0x20] sm:$0xff]
    %v6172 = vld [vmem:[#allocation9 + $0x28] sm:$0xff]
    %v6173 = vld [vmem:[#allocation9 + $0x30] sm:$0xff]
    %v6174 = vld [vmem:[#allocation9 + $0x38] sm:$0xff]
    %v6175 = vld [vmem:[#allocation9 + $0x40] sm:$0xff]
    %v6176 = vld [vmem:[#allocation9 + $0x48] sm:$0xff]
    %v6177 = vld [vmem:[#allocation9 + $0x50] sm:$0xff]
    %v6178 = vld [vmem:[#allocation9 + $0x58] sm:$0xff]
    %v6179 = vld [vmem:[#allocation9 + $0x60] sm:$0xff]
    %v6180 = vld [vmem:[#allocation9 + $0x68] sm:$0xff]
    %v6181 = vld [vmem:[#allocation9 + $0x70] sm:$0xff]
    %v6182 = vld [vmem:[#allocation9 + $0x78] sm:$0xff]
    %v6183 = vld [vmem:[#allocation9 + $0x80] sm:$0xff]
    %v6184 = vld [vmem:[#allocation9 + $0x88] sm:$0xff]
    %v6185 = vld [vmem:[#allocation9 + $0x90] sm:$0xff]
    %v6186 = vld [vmem:[#allocation9 + $0x98] sm:$0xff]
    %v6187 = vld [vmem:[#allocation9 + $0xa0] sm:$0xff]
    %v6188 = vld [vmem:[#allocation9 + $0xa8] sm:$0xff]
    %v6189 = vld [vmem:[#allocation9 + $0xb0] sm:$0xff]
    %v6190 = vld [vmem:[#allocation9 + $0xb8] sm:$0xff]
    %v6191 = vld [vmem:[#allocation9 + $0xc0] sm:$0xff]
    %v6192 = vld [vmem:[#allocation9 + $0xc8] sm:$0xff]
    %v6193 = vld [vmem:[#allocation9 + $0xd0] sm:$0xff]
    %v6194 = vld [vmem:[#allocation9 + $0xd8] sm:$0xff]
    %v6195 = vld [vmem:[#allocation9 + $0xe0] sm:$0xff]
    %v6196 = vld [vmem:[#allocation9 + $0xe8] sm:$0xff]
    %v6197 = vld [vmem:[#allocation9 + $0xf0] sm:$0xff]
    %v6198 = vld [vmem:[#allocation9 + $0xf8] sm:$0xff]
    %v6199 = vld [vmem:[%s8] ss:$8 sm:$0x3]
    %v6200 = vpack.c.bf16 %v6151, %v6149
    %v6201 = vpack.c.bf16 %v6152, %v6150
    %v6203 = vlaneseq
    %v6204 = vshrl.u32 %v6203, 7
    %v6205 = vsub.s32 0, %v6204
    %v6206 = vrot.slane %v6199, %v6205
    %v6207 = vlaneseq
    %v6208 = vshrl.u32 %v6207, 7
    %v6209 = vsub.s32 1, %v6208
    %v6210 = vrot.slane %v6199, %v6209
    %v6245 = vunpack.c.l.b16 %v6167
    %v6246 = vunpack.c.h.b16 %v6167
    %v6247 = vunpack.c.l.b16 %v6168
    %v6248 = vunpack.c.h.b16 %v6168
    %v6249 = vunpack.c.l.b16 %v6169
    %v6250 = vunpack.c.h.b16 %v6169
    %v6251 = vunpack.c.l.b16 %v6170
    %v6252 = vunpack.c.h.b16 %v6170
    %v6253 = vunpack.c.l.b16 %v6171
    %v6254 = vunpack.c.h.b16 %v6171
    %v6255 = vunpack.c.l.b16 %v6172
    %v6256 = vunpack.c.h.b16 %v6172
    %v6257 = vunpack.c.l.b16 %v6173
    %v6258 = vunpack.c.h.b16 %v6173
    %v6259 = vunpack.c.l.b16 %v6174
    %v6260 = vunpack.c.h.b16 %v6174
    %v6261 = vunpack.c.l.b16 %v6175
    %v6262 = vunpack.c.h.b16 %v6175
    %v6263 = vunpack.c.l.b16 %v6176
    %v6264 = vunpack.c.h.b16 %v6176
    %v6265 = vunpack.c.l.b16 %v6177
    %v6266 = vunpack.c.h.b16 %v6177
    %v6267 = vunpack.c.l.b16 %v6178
    %v6268 = vunpack.c.h.b16 %v6178
    %v6269 = vunpack.c.l.b16 %v6179
    %v6270 = vunpack.c.h.b16 %v6179
    %v6271 = vunpack.c.l.b16 %v6180
    %v6272 = vunpack.c.h.b16 %v6180
    %v6273 = vunpack.c.l.b16 %v6181
    %v6274 = vunpack.c.h.b16 %v6181
    %v6275 = vunpack.c.l.b16 %v6182
    %v6276 = vunpack.c.h.b16 %v6182
    %v6277 = vunpack.c.l.b16 %v6183
    %v6278 = vunpack.c.h.b16 %v6183
    %v6279 = vunpack.c.l.b16 %v6184
    %v6280 = vunpack.c.h.b16 %v6184
    %v6281 = vunpack.c.l.b16 %v6185
    %v6282 = vunpack.c.h.b16 %v6185
    %v6283 = vunpack.c.l.b16 %v6186
    %v6284 = vunpack.c.h.b16 %v6186
    %v6285 = vunpack.c.l.b16 %v6187
    %v6286 = vunpack.c.h.b16 %v6187
    %v6287 = vunpack.c.l.b16 %v6188
    %v6288 = vunpack.c.h.b16 %v6188
    %v6289 = vunpack.c.l.b16 %v6189
    %v6290 = vunpack.c.h.b16 %v6189
    %v6291 = vunpack.c.l.b16 %v6190
    %v6292 = vunpack.c.h.b16 %v6190
    %v6293 = vunpack.c.l.b16 %v6191
    %v6294 = vunpack.c.h.b16 %v6191
    %v6295 = vunpack.c.l.b16 %v6192
    %v6296 = vunpack.c.h.b16 %v6192
    %v6297 = vunpack.c.l.b16 %v6193
    %v6298 = vunpack.c.h.b16 %v6193
    %v6299 = vunpack.c.l.b16 %v6194
    %v6300 = vunpack.c.h.b16 %v6194
    %v6301 = vunpack.c.l.b16 %v6195
    %v6302 = vunpack.c.h.b16 %v6195
    %v6303 = vunpack.c.l.b16 %v6196
    %v6304 = vunpack.c.h.b16 %v6196
    %v6305 = vunpack.c.l.b16 %v6197
    %v6306 = vunpack.c.h.b16 %v6197
    %v6307 = vunpack.c.l.b16 %v6198
    %v6308 = vunpack.c.h.b16 %v6198
    %v6309 = vpack.c.b16 %v6247, %v6245
    %v6310 = vpack.c.b16 %v6248, %v6246
    %v6311 = vpack.c.b16 %v6251, %v6249
    %v6312 = vpack.c.b16 %v6252, %v6250
    %v6313 = vpack.c.b16 %v6255, %v6253
    %v6314 = vpack.c.b16 %v6256, %v6254
    %v6315 = vpack.c.b16 %v6259, %v6257
    %v6316 = vpack.c.b16 %v6260, %v6258
    %v6317 = vpack.c.b16 %v6263, %v6261
    %v6318 = vpack.c.b16 %v6264, %v6262
    %v6319 = vpack.c.b16 %v6267, %v6265
    %v6320 = vpack.c.b16 %v6268, %v6266
    %v6321 = vpack.c.b16 %v6271, %v6269
    %v6322 = vpack.c.b16 %v6272, %v6270
    %v6323 = vpack.c.b16 %v6275, %v6273
    %v6324 = vpack.c.b16 %v6276, %v6274
    %v6325 = vpack.c.b16 %v6279, %v6277
    %v6326 = vpack.c.b16 %v6280, %v6278
    %v6327 = vpack.c.b16 %v6283, %v6281
    %v6328 = vpack.c.b16 %v6284, %v6282
    %v6329 = vpack.c.b16 %v6287, %v6285
    %v6330 = vpack.c.b16 %v6288, %v6286
    %v6331 = vpack.c.b16 %v6291, %v6289
    %v6332 = vpack.c.b16 %v6292, %v6290
    %v6333 = vpack.c.b16 %v6295, %v6293
    %v6334 = vpack.c.b16 %v6296, %v6294
    %v6335 = vpack.c.b16 %v6299, %v6297
    %v6336 = vpack.c.b16 %v6300, %v6298
    %v6337 = vpack.c.b16 %v6303, %v6301
    %v6338 = vpack.c.b16 %v6304, %v6302
    %v6339 = vpack.c.b16 %v6307, %v6305
    %v6340 = vpack.c.b16 %v6308, %v6306
    %6373 = vmatprep.subr.bf16.mxu0 %v6310
    %6374 = vmatpush1.bf16.msra.mxu0 %v6309
    %6375 = vmatprep.subr.bf16.mxu0 %v6312
    %6376 = vmatpush1.bf16.msra.mxu0 %v6311
    %6377 = vmatprep.subr.bf16.mxu0 %v6314
    %6378 = vmatpush1.bf16.msra.mxu0 %v6313
    %6379 = vmatprep.subr.bf16.mxu0 %v6316
    %6380 = vmatpush1.bf16.msra.mxu0 %v6315
    %6381 = vmatprep.subr.bf16.mxu0 %v6318
    %6382 = vmatpush1.bf16.msra.mxu0 %v6317
    %6383 = vmatprep.subr.bf16.mxu0 %v6320
    %6384 = vmatpush1.bf16.msra.mxu0 %v6319
    %6385 = vmatprep.subr.bf16.mxu0 %v6322
    %6386 = vmatpush1.bf16.msra.mxu0 %v6321
    %6387 = vmatprep.subr.bf16.mxu0 %v6324
    %6388 = vmatpush1.bf16.msra.mxu0 %v6323
    %6389 = vmatprep.subr.bf16.mxu0 %v6326
    %6390 = vmatpush1.bf16.msra.mxu0 %v6325
    %6391 = vmatprep.subr.bf16.mxu0 %v6328
    %6392 = vmatpush1.bf16.msra.mxu0 %v6327
    %6393 = vmatprep.subr.bf16.mxu0 %v6330
    %6394 = vmatpush1.bf16.msra.mxu0 %v6329
    %6395 = vmatprep.subr.bf16.mxu0 %v6332
    %6396 = vmatpush1.bf16.msra.mxu0 %v6331
    %6397 = vmatprep.subr.bf16.mxu0 %v6334
    %6398 = vmatpush1.bf16.msra.mxu0 %v6333
    %6399 = vmatprep.subr.bf16.mxu0 %v6336
    %6400 = vmatpush1.bf16.msra.mxu0 %v6335
    %6401 = vmatprep.subr.bf16.mxu0 %v6338
    %6402 = vmatpush1.bf16.msra.mxu0 %v6337
    %6403 = vmatprep.subr.bf16.mxu0 %v6340
    %6404 = vmatpush1.bf16.msra.mxu0 %v6339
    %6405 = vmatprep.mubr.bf16.mxu0 %v6201
    %6406 = vmatmul.mubr.bf16.gmra.mrb[0].mxu0 %v6200
    %v6407 = vpop.f32.mrb[0].mxu0
    %v6408 = vadd.f32 %v6206, %v6407
    %v6409 = vpop.f32.mrb[0].mxu0
    %v6410 = vadd.f32 %v6210, %v6409
    %v6411 = vpop.f32.mrb[0].mxu0
    %v6412 = vadd.f32 %v6206, %v6411
    %v6413 = vpop.f32.mrb[0].mxu0
    %v6414 = vadd.f32 %v6210, %v6413
    %6415 = vdwg.mxu0
    %v6416 = vmul.f32 %v6408, 0.2
    %v6417 = vmul.f32 %v6410, 0.2
    %v6418 = vmul.f32 %v6412, 0.2
    %v6419 = vmul.f32 %v6414, 0.2
    %v6420 = vmax.f32 %v6408, %v6416
    %v6421 = vmax.f32 %v6410, %v6417
    %v6422 = vmax.f32 %v6412, %v6418
    %v6423 = vmax.f32 %v6414, %v6419
    %v6424 = vld [vmem:[%s487] sm:$0xff]
    %v6425 = vld [vmem:[%s487 + $0x8] sm:$0xff]
    %v6426 = vld [vmem:[%s487 + $0x10] sm:$0xff]
    %v6427 = vld [vmem:[%s487 + $0x18] sm:$0xff]
    %v6428 = vld [vmem:[%s487 + $0x20] sm:$0xff]
    %v6429 = vld [vmem:[%s487 + $0x28] sm:$0xff]
    %v6430 = vld [vmem:[%s487 + $0x30] sm:$0xff]
    %v6431 = vld [vmem:[%s487 + $0x38] sm:$0xff]
    %v6432 = vld [vmem:[%s487 + $0x40] sm:$0xff]
    %v6433 = vld [vmem:[%s487 + $0x48] sm:$0xff]
    %v6434 = vld [vmem:[%s487 + $0x50] sm:$0xff]
    %v6435 = vld [vmem:[%s487 + $0x58] sm:$0xff]
    %v6436 = vld [vmem:[%s487 + $0x60] sm:$0xff]
    %v6437 = vld [vmem:[%s487 + $0x68] sm:$0xff]
    %v6438 = vld [vmem:[%s487 + $0x70] sm:$0xff]
    %v6439 = vld [vmem:[%s487 + $0x78] sm:$0xff]
    %v6440 = vld [vmem:[%s487 + $0x80] sm:$0xff]
    %v6441 = vld [vmem:[%s487 + $0x88] sm:$0xff]
    %v6442 = vld [vmem:[%s487 + $0x90] sm:$0xff]
    %v6443 = vld [vmem:[%s487 + $0x98] sm:$0xff]
    %v6444 = vld [vmem:[%s487 + $0xa0] sm:$0xff]
    %v6445 = vld [vmem:[%s487 + $0xa8] sm:$0xff]
    %v6446 = vld [vmem:[%s487 + $0xb0] sm:$0xff]
    %v6447 = vld [vmem:[%s487 + $0xb8] sm:$0xff]
    %v6448 = vld [vmem:[%s487 + $0xc0] sm:$0xff]
    %v6449 = vld [vmem:[%s487 + $0xc8] sm:$0xff]
    %v6450 = vld [vmem:[%s487 + $0xd0] sm:$0xff]
    %v6451 = vld [vmem:[%s487 + $0xd8] sm:$0xff]
    %v6452 = vld [vmem:[%s487 + $0xe0] sm:$0xff]
    %v6453 = vld [vmem:[%s487 + $0xe8] sm:$0xff]
    %v6454 = vld [vmem:[%s487 + $0xf0] sm:$0xff]
    %v6455 = vld [vmem:[%s487 + $0xf8] sm:$0xff]
    %v6456 = vld [vmem:[%s520] ss:$8 sm:$0x3]
    %v6457 = vpack.c.bf16 %v6422, %v6420
    %v6458 = vpack.c.bf16 %v6423, %v6421
    %v6460 = vlaneseq
    %v6461 = vshrl.u32 %v6460, 7
    %v6462 = vsub.s32 0, %v6461
    %v6463 = vrot.slane %v6456, %v6462
    %v6464 = vlaneseq
    %v6465 = vshrl.u32 %v6464, 7
    %v6466 = vsub.s32 1, %v6465
    %v6467 = vrot.slane %v6456, %v6466
    %v6502 = vunpack.c.l.b16 %v6424
    %v6503 = vunpack.c.h.b16 %v6424
    %v6504 = vunpack.c.l.b16 %v6425
    %v6505 = vunpack.c.h.b16 %v6425
    %v6506 = vunpack.c.l.b16 %v6426
    %v6507 = vunpack.c.h.b16 %v6426
    %v6508 = vunpack.c.l.b16 %v6427
    %v6509 = vunpack.c.h.b16 %v6427
    %v6510 = vunpack.c.l.b16 %v6428
    %v6511 = vunpack.c.h.b16 %v6428
    %v6512 = vunpack.c.l.b16 %v6429
    %v6513 = vunpack.c.h.b16 %v6429
    %v6514 = vunpack.c.l.b16 %v6430
    %v6515 = vunpack.c.h.b16 %v6430
    %v6516 = vunpack.c.l.b16 %v6431
    %v6517 = vunpack.c.h.b16 %v6431
    %v6518 = vunpack.c.l.b16 %v6432
    %v6519 = vunpack.c.h.b16 %v6432
    %v6520 = vunpack.c.l.b16 %v6433
    %v6521 = vunpack.c.h.b16 %v6433
    %v6522 = vunpack.c.l.b16 %v6434
    %v6523 = vunpack.c.h.b16 %v6434
    %v6524 = vunpack.c.l.b16 %v6435
    %v6525 = vunpack.c.h.b16 %v6435
    %v6526 = vunpack.c.l.b16 %v6436
    %v6527 = vunpack.c.h.b16 %v6436
    %v6528 = vunpack.c.l.b16 %v6437
    %v6529 = vunpack.c.h.b16 %v6437
    %v6530 = vunpack.c.l.b16 %v6438
    %v6531 = vunpack.c.h.b16 %v6438
    %v6532 = vunpack.c.l.b16 %v6439
    %v6533 = vunpack.c.h.b16 %v6439
    %v6534 = vunpack.c.l.b16 %v6440
    %v6535 = vunpack.c.h.b16 %v6440
    %v6536 = vunpack.c.l.b16 %v6441
    %v6537 = vunpack.c.h.b16 %v6441
    %v6538 = vunpack.c.l.b16 %v6442
    %v6539 = vunpack.c.h.b16 %v6442
    %v6540 = vunpack.c.l.b16 %v6443
    %v6541 = vunpack.c.h.b16 %v6443
    %v6542 = vunpack.c.l.b16 %v6444
    %v6543 = vunpack.c.h.b16 %v6444
    %v6544 = vunpack.c.l.b16 %v6445
    %v6545 = vunpack.c.h.b16 %v6445
    %v6546 = vunpack.c.l.b16 %v6446
    %v6547 = vunpack.c.h.b16 %v6446
    %v6548 = vunpack.c.l.b16 %v6447
    %v6549 = vunpack.c.h.b16 %v6447
    %v6550 = vunpack.c.l.b16 %v6448
    %v6551 = vunpack.c.h.b16 %v6448
    %v6552 = vunpack.c.l.b16 %v6449
    %v6553 = vunpack.c.h.b16 %v6449
    %v6554 = vunpack.c.l.b16 %v6450
    %v6555 = vunpack.c.h.b16 %v6450
    %v6556 = vunpack.c.l.b16 %v6451
    %v6557 = vunpack.c.h.b16 %v6451
    %v6558 = vunpack.c.l.b16 %v6452
    %v6559 = vunpack.c.h.b16 %v6452
    %v6560 = vunpack.c.l.b16 %v6453
    %v6561 = vunpack.c.h.b16 %v6453
    %v6562 = vunpack.c.l.b16 %v6454
    %v6563 = vunpack.c.h.b16 %v6454
    %v6564 = vunpack.c.l.b16 %v6455
    %v6565 = vunpack.c.h.b16 %v6455
    %v6566 = vpack.c.b16 %v6504, %v6502
    %v6567 = vpack.c.b16 %v6505, %v6503
    %v6568 = vpack.c.b16 %v6508, %v6506
    %v6569 = vpack.c.b16 %v6509, %v6507
    %v6570 = vpack.c.b16 %v6512, %v6510
    %v6571 = vpack.c.b16 %v6513, %v6511
    %v6572 = vpack.c.b16 %v6516, %v6514
    %v6573 = vpack.c.b16 %v6517, %v6515
    %v6574 = vpack.c.b16 %v6520, %v6518
    %v6575 = vpack.c.b16 %v6521, %v6519
    %v6576 = vpack.c.b16 %v6524, %v6522
    %v6577 = vpack.c.b16 %v6525, %v6523
    %v6578 = vpack.c.b16 %v6528, %v6526
    %v6579 = vpack.c.b16 %v6529, %v6527
    %v6580 = vpack.c.b16 %v6532, %v6530
    %v6581 = vpack.c.b16 %v6533, %v6531
    %v6582 = vpack.c.b16 %v6536, %v6534
    %v6583 = vpack.c.b16 %v6537, %v6535
    %v6584 = vpack.c.b16 %v6540, %v6538
    %v6585 = vpack.c.b16 %v6541, %v6539
    %v6586 = vpack.c.b16 %v6544, %v6542
    %v6587 = vpack.c.b16 %v6545, %v6543
    %v6588 = vpack.c.b16 %v6548, %v6546
    %v6589 = vpack.c.b16 %v6549, %v6547
    %v6590 = vpack.c.b16 %v6552, %v6550
    %v6591 = vpack.c.b16 %v6553, %v6551
    %v6592 = vpack.c.b16 %v6556, %v6554
    %v6593 = vpack.c.b16 %v6557, %v6555
    %v6594 = vpack.c.b16 %v6560, %v6558
    %v6595 = vpack.c.b16 %v6561, %v6559
    %v6596 = vpack.c.b16 %v6564, %v6562
    %v6597 = vpack.c.b16 %v6565, %v6563
    %6630 = vmatprep.subr.bf16.mxu0 %v6567
    %6631 = vmatpush1.bf16.msra.mxu0 %v6566
    %6632 = vmatprep.subr.bf16.mxu0 %v6569
    %6633 = vmatpush1.bf16.msra.mxu0 %v6568
    %6634 = vmatprep.subr.bf16.mxu0 %v6571
    %6635 = vmatpush1.bf16.msra.mxu0 %v6570
    %6636 = vmatprep.subr.bf16.mxu0 %v6573
    %6637 = vmatpush1.bf16.msra.mxu0 %v6572
    %6638 = vmatprep.subr.bf16.mxu0 %v6575
    %6639 = vmatpush1.bf16.msra.mxu0 %v6574
    %6640 = vmatprep.subr.bf16.mxu0 %v6577
    %6641 = vmatpush1.bf16.msra.mxu0 %v6576
    %6642 = vmatprep.subr.bf16.mxu0 %v6579
    %6643 = vmatpush1.bf16.msra.mxu0 %v6578
    %6644 = vmatprep.subr.bf16.mxu0 %v6581
    %6645 = vmatpush1.bf16.msra.mxu0 %v6580
    %6646 = vmatprep.subr.bf16.mxu0 %v6583
    %6647 = vmatpush1.bf16.msra.mxu0 %v6582
    %6648 = vmatprep.subr.bf16.mxu0 %v6585
    %6649 = vmatpush1.bf16.msra.mxu0 %v6584
    %6650 = vmatprep.subr.bf16.mxu0 %v6587
    %6651 = vmatpush1.bf16.msra.mxu0 %v6586
    %6652 = vmatprep.subr.bf16.mxu0 %v6589
    %6653 = vmatpush1.bf16.msra.mxu0 %v6588
    %6654 = vmatprep.subr.bf16.mxu0 %v6591
    %6655 = vmatpush1.bf16.msra.mxu0 %v6590
    %6656 = vmatprep.subr.bf16.mxu0 %v6593
    %6657 = vmatpush1.bf16.msra.mxu0 %v6592
    %6658 = vmatprep.subr.bf16.mxu0 %v6595
    %6659 = vmatpush1.bf16.msra.mxu0 %v6594
    %6660 = vmatprep.subr.bf16.mxu0 %v6597
    %6661 = vmatpush1.bf16.msra.mxu0 %v6596
    %6662 = vmatprep.mubr.bf16.mxu0 %v6458
    %6663 = vmatmul.mubr.bf16.gmra.mrb[0].mxu0 %v6457
    %v6664 = vpop.f32.mrb[0].mxu0
    %v6665 = vadd.f32 %v6463, %v6664
    %v6666 = vpop.f32.mrb[0].mxu0
    %v6667 = vadd.f32 %v6467, %v6666
    %v6668 = vpop.f32.mrb[0].mxu0
    %v6669 = vadd.f32 %v6463, %v6668
    %v6670 = vpop.f32.mrb[0].mxu0
    %v6671 = vadd.f32 %v6467, %v6670
    %6672 = vdwg.mxu0
    %v6673 = vmul.f32 %v6665, 0.2
    %v6674 = vmul.f32 %v6667, 0.2
    %v6675 = vmul.f32 %v6669, 0.2
    %v6676 = vmul.f32 %v6671, 0.2
    %v6677 = vmax.f32 %v6665, %v6673
    %v6678 = vmax.f32 %v6667, %v6674
    %v6679 = vmax.f32 %v6669, %v6675
    %v6680 = vmax.f32 %v6671, %v6676
    %v6681 = vld [vmem:[%s746] sm:$0xff]
    %v6682 = vld [vmem:[%s746 + $0x8] sm:$0xff]
    %v6683 = vld [vmem:[%s746 + $0x10] sm:$0xff]
    %v6684 = vld [vmem:[%s746 + $0x18] sm:$0xff]
    %v6685 = vld [vmem:[%s746 + $0x20] sm:$0xff]
    %v6686 = vld [vmem:[%s746 + $0x28] sm:$0xff]
    %v6687 = vld [vmem:[%s746 + $0x30] sm:$0xff]
    %v6688 = vld [vmem:[%s746 + $0x38] sm:$0xff]
    %v6689 = vld [vmem:[%s746 + $0x40] sm:$0xff]
    %v6690 = vld [vmem:[%s746 + $0x48] sm:$0xff]
    %v6691 = vld [vmem:[%s746 + $0x50] sm:$0xff]
    %v6692 = vld [vmem:[%s746 + $0x58] sm:$0xff]
    %v6693 = vld [vmem:[%s746 + $0x60] sm:$0xff]
    %v6694 = vld [vmem:[%s746 + $0x68] sm:$0xff]
    %v6695 = vld [vmem:[%s746 + $0x70] sm:$0xff]
    %v6696 = vld [vmem:[%s746 + $0x78] sm:$0xff]
    %v6697 = vld [vmem:[%s746 + $0x80] sm:$0xff]
    %v6698 = vld [vmem:[%s746 + $0x88] sm:$0xff]
    %v6699 = vld [vmem:[%s746 + $0x90] sm:$0xff]
    %v6700 = vld [vmem:[%s746 + $0x98] sm:$0xff]
    %v6701 = vld [vmem:[%s746 + $0xa0] sm:$0xff]
    %v6702 = vld [vmem:[%s746 + $0xa8] sm:$0xff]
    %v6703 = vld [vmem:[%s746 + $0xb0] sm:$0xff]
    %v6704 = vld [vmem:[%s746 + $0xb8] sm:$0xff]
    %v6705 = vld [vmem:[%s746 + $0xc0] sm:$0xff]
    %v6706 = vld [vmem:[%s746 + $0xc8] sm:$0xff]
    %v6707 = vld [vmem:[%s746 + $0xd0] sm:$0xff]
    %v6708 = vld [vmem:[%s746 + $0xd8] sm:$0xff]
    %v6709 = vld [vmem:[%s746 + $0xe0] sm:$0xff]
    %v6710 = vld [vmem:[%s746 + $0xe8] sm:$0xff]
    %v6711 = vld [vmem:[%s746 + $0xf0] sm:$0xff]
    %v6712 = vld [vmem:[%s746 + $0xf8] sm:$0xff]
    %v6713 = vld [vmem:[%s779] ss:$8 sm:$0x3]
    %v6714 = vpack.c.bf16 %v6679, %v6677
    %v6715 = vpack.c.bf16 %v6680, %v6678
    %v6717 = vlaneseq
    %v6718 = vshrl.u32 %v6717, 7
    %v6719 = vsub.s32 0, %v6718
    %v6720 = vrot.slane %v6713, %v6719
    %v6721 = vlaneseq
    %v6722 = vshrl.u32 %v6721, 7
    %v6723 = vsub.s32 1, %v6722
    %v6724 = vrot.slane %v6713, %v6723
    %v6759 = vunpack.c.l.b16 %v6681
    %v6760 = vunpack.c.h.b16 %v6681
    %v6761 = vunpack.c.l.b16 %v6682
    %v6762 = vunpack.c.h.b16 %v6682
    %v6763 = vunpack.c.l.b16 %v6683
    %v6764 = vunpack.c.h.b16 %v6683
    %v6765 = vunpack.c.l.b16 %v6684
    %v6766 = vunpack.c.h.b16 %v6684
    %v6767 = vunpack.c.l.b16 %v6685
    %v6768 = vunpack.c.h.b16 %v6685
    %v6769 = vunpack.c.l.b16 %v6686
    %v6770 = vunpack.c.h.b16 %v6686
    %v6771 = vunpack.c.l.b16 %v6687
    %v6772 = vunpack.c.h.b16 %v6687
    %v6773 = vunpack.c.l.b16 %v6688
    %v6774 = vunpack.c.h.b16 %v6688
    %v6775 = vunpack.c.l.b16 %v6689
    %v6776 = vunpack.c.h.b16 %v6689
    %v6777 = vunpack.c.l.b16 %v6690
    %v6778 = vunpack.c.h.b16 %v6690
    %v6779 = vunpack.c.l.b16 %v6691
    %v6780 = vunpack.c.h.b16 %v6691
    %v6781 = vunpack.c.l.b16 %v6692
    %v6782 = vunpack.c.h.b16 %v6692
    %v6783 = vunpack.c.l.b16 %v6693
    %v6784 = vunpack.c.h.b16 %v6693
    %v6785 = vunpack.c.l.b16 %v6694
    %v6786 = vunpack.c.h.b16 %v6694
    %v6787 = vunpack.c.l.b16 %v6695
    %v6788 = vunpack.c.h.b16 %v6695
    %v6789 = vunpack.c.l.b16 %v6696
    %v6790 = vunpack.c.h.b16 %v6696
    %v6791 = vunpack.c.l.b16 %v6697
    %v6792 = vunpack.c.h.b16 %v6697
    %v6793 = vunpack.c.l.b16 %v6698
    %v6794 = vunpack.c.h.b16 %v6698
    %v6795 = vunpack.c.l.b16 %v6699
    %v6796 = vunpack.c.h.b16 %v6699
    %v6797 = vunpack.c.l.b16 %v6700
    %v6798 = vunpack.c.h.b16 %v6700
    %v6799 = vunpack.c.l.b16 %v6701
    %v6800 = vunpack.c.h.b16 %v6701
    %v6801 = vunpack.c.l.b16 %v6702
    %v6802 = vunpack.c.h.b16 %v6702
    %v6803 = vunpack.c.l.b16 %v6703
    %v6804 = vunpack.c.h.b16 %v6703
    %v6805 = vunpack.c.l.b16 %v6704
    %v6806 = vunpack.c.h.b16 %v6704
    %v6807 = vunpack.c.l.b16 %v6705
    %v6808 = vunpack.c.h.b16 %v6705
    %v6809 = vunpack.c.l.b16 %v6706
    %v6810 = vunpack.c.h.b16 %v6706
    %v6811 = vunpack.c.l.b16 %v6707
    %v6812 = vunpack.c.h.b16 %v6707
    %v6813 = vunpack.c.l.b16 %v6708
    %v6814 = vunpack.c.h.b16 %v6708
    %v6815 = vunpack.c.l.b16 %v6709
    %v6816 = vunpack.c.h.b16 %v6709
    %v6817 = vunpack.c.l.b16 %v6710
    %v6818 = vunpack.c.h.b16 %v6710
    %v6819 = vunpack.c.l.b16 %v6711
    %v6820 = vunpack.c.h.b16 %v6711
    %v6821 = vunpack.c.l.b16 %v6712
    %v6822 = vunpack.c.h.b16 %v6712
    %v6823 = vpack.c.b16 %v6761, %v6759
    %v6824 = vpack.c.b16 %v6762, %v6760
    %v6825 = vpack.c.b16 %v6765, %v6763
    %v6826 = vpack.c.b16 %v6766, %v6764
    %v6827 = vpack.c.b16 %v6769, %v6767
    %v6828 = vpack.c.b16 %v6770, %v6768
    %v6829 = vpack.c.b16 %v6773, %v6771
    %v6830 = vpack.c.b16 %v6774, %v6772
    %v6831 = vpack.c.b16 %v6777, %v6775
    %v6832 = vpack.c.b16 %v6778, %v6776
    %v6833 = vpack.c.b16 %v6781, %v6779
    %v6834 = vpack.c.b16 %v6782, %v6780
    %v6835 = vpack.c.b16 %v6785, %v6783
    %v6836 = vpack.c.b16 %v6786, %v6784
    %v6837 = vpack.c.b16 %v6789, %v6787
    %v6838 = vpack.c.b16 %v6790, %v6788
    %v6839 = vpack.c.b16 %v6793, %v6791
    %v6840 = vpack.c.b16 %v6794, %v6792
    %v6841 = vpack.c.b16 %v6797, %v6795
    %v6842 = vpack.c.b16 %v6798, %v6796
    %v6843 = vpack.c.b16 %v6801, %v6799
    %v6844 = vpack.c.b16 %v6802, %v6800
    %v6845 = vpack.c.b16 %v6805, %v6803
    %v6846 = vpack.c.b16 %v6806, %v6804
    %v6847 = vpack.c.b16 %v6809, %v6807
    %v6848 = vpack.c.b16 %v6810, %v6808
    %v6849 = vpack.c.b16 %v6813, %v6811
    %v6850 = vpack.c.b16 %v6814, %v6812
    %v6851 = vpack.c.b16 %v6817, %v6815
    %v6852 = vpack.c.b16 %v6818, %v6816
    %v6853 = vpack.c.b16 %v6821, %v6819
    %v6854 = vpack.c.b16 %v6822, %v6820
    %6887 = vmatprep.subr.bf16.mxu0 %v6824
    %6888 = vmatpush1.bf16.msra.mxu0 %v6823
    %6889 = vmatprep.subr.bf16.mxu0 %v6826
    %6890 = vmatpush1.bf16.msra.mxu0 %v6825
    %6891 = vmatprep.subr.bf16.mxu0 %v6828
    %6892 = vmatpush1.bf16.msra.mxu0 %v6827
    %6893 = vmatprep.subr.bf16.mxu0 %v6830
    %6894 = vmatpush1.bf16.msra.mxu0 %v6829
    %6895 = vmatprep.subr.bf16.mxu0 %v6832
    %6896 = vmatpush1.bf16.msra.mxu0 %v6831
    %6897 = vmatprep.subr.bf16.mxu0 %v6834
    %6898 = vmatpush1.bf16.msra.mxu0 %v6833
    %6899 = vmatprep.subr.bf16.mxu0 %v6836
    %6900 = vmatpush1.bf16.msra.mxu0 %v6835
    %6901 = vmatprep.subr.bf16.mxu0 %v6838
    %6902 = vmatpush1.bf16.msra.mxu0 %v6837
    %6903 = vmatprep.subr.bf16.mxu0 %v6840
    %6904 = vmatpush1.bf16.msra.mxu0 %v6839
    %6905 = vmatprep.subr.bf16.mxu0 %v6842
    %6906 = vmatpush1.bf16.msra.mxu0 %v6841
    %6907 = vmatprep.subr.bf16.mxu0 %v6844
    %6908 = vmatpush1.bf16.msra.mxu0 %v6843
    %6909 = vmatprep.subr.bf16.mxu0 %v6846
    %6910 = vmatpush1.bf16.msra.mxu0 %v6845
    %6911 = vmatprep.subr.bf16.mxu0 %v6848
    %6912 = vmatpush1.bf16.msra.mxu0 %v6847
    %6913 = vmatprep.subr.bf16.mxu0 %v6850
    %6914 = vmatpush1.bf16.msra.mxu0 %v6849
    %6915 = vmatprep.subr.bf16.mxu0 %v6852
    %6916 = vmatpush1.bf16.msra.mxu0 %v6851
    %6917 = vmatprep.subr.bf16.mxu0 %v6854
    %6918 = vmatpush1.bf16.msra.mxu0 %v6853
    %6919 = vmatprep.mubr.bf16.mxu0 %v6715
    %6920 = vmatmul.mubr.bf16.gmra.mrb[0].mxu0 %v6714
    %v6921 = vpop.f32.mrb[0].mxu0
    %v6922 = vadd.f32 %v6720, %v6921
    %v6923 = vpop.f32.mrb[0].mxu0
    %v6924 = vadd.f32 %v6724, %v6923
    %v6925 = vpop.f32.mrb[0].mxu0
    %v6926 = vadd.f32 %v6720, %v6925
    %v6927 = vpop.f32.mrb[0].mxu0
    %v6928 = vadd.f32 %v6724, %v6927
    %6929 = vdwg.mxu0
    %v6930 = vmul.f32 %v6922, 0.2
    %v6931 = vmul.f32 %v6924, 0.2
    %v6932 = vmul.f32 %v6926, 0.2
    %v6933 = vmul.f32 %v6928, 0.2
    %v6934 = vmax.f32 %v6922, %v6930
    %v6935 = vmax.f32 %v6924, %v6931
    %v6936 = vmax.f32 %v6926, %v6932
    %v6937 = vmax.f32 %v6928, %v6933
    %v6938 = vld [vmem:[#allocation12] sm:$0xff]
    %v6939 = vld [vmem:[#allocation12 + $0x8] sm:$0xff]
    %v6940 = vld [vmem:[#allocation12 + $0x10] sm:$0xff]
    %v6941 = vld [vmem:[#allocation12 + $0x18] sm:$0xff]
    %v6942 = vld [vmem:[#allocation12 + $0x20] sm:$0xff]
    %v6943 = vld [vmem:[#allocation12 + $0x28] sm:$0xff]
    %v6944 = vld [vmem:[#allocation12 + $0x30] sm:$0xff]
    %v6945 = vld [vmem:[#allocation12 + $0x38] sm:$0xff]
    %v6946 = vld [vmem:[#allocation12 + $0x40] sm:$0xff]
    %v6947 = vld [vmem:[#allocation12 + $0x48] sm:$0xff]
    %v6948 = vld [vmem:[#allocation12 + $0x50] sm:$0xff]
    %v6949 = vld [vmem:[#allocation12 + $0x58] sm:$0xff]
    %v6950 = vld [vmem:[#allocation12 + $0x60] sm:$0xff]
    %v6951 = vld [vmem:[#allocation12 + $0x68] sm:$0xff]
    %v6952 = vld [vmem:[#allocation12 + $0x70] sm:$0xff]
    %v6953 = vld [vmem:[#allocation12 + $0x78] sm:$0xff]
    %v6954 = vld [vmem:[#allocation12 + $0x80] sm:$0xff]
    %v6955 = vld [vmem:[#allocation12 + $0x88] sm:$0xff]
    %v6956 = vld [vmem:[#allocation12 + $0x90] sm:$0xff]
    %v6957 = vld [vmem:[#allocation12 + $0x98] sm:$0xff]
    %v6958 = vld [vmem:[#allocation12 + $0xa0] sm:$0xff]
    %v6959 = vld [vmem:[#allocation12 + $0xa8] sm:$0xff]
    %v6960 = vld [vmem:[#allocation12 + $0xb0] sm:$0xff]
    %v6961 = vld [vmem:[#allocation12 + $0xb8] sm:$0xff]
    %v6962 = vld [vmem:[#allocation12 + $0xc0] sm:$0xff]
    %v6963 = vld [vmem:[#allocation12 + $0xc8] sm:$0xff]
    %v6964 = vld [vmem:[#allocation12 + $0xd0] sm:$0xff]
    %v6965 = vld [vmem:[#allocation12 + $0xd8] sm:$0xff]
    %v6966 = vld [vmem:[#allocation12 + $0xe0] sm:$0xff]
    %v6967 = vld [vmem:[#allocation12 + $0xe8] sm:$0xff]
    %v6968 = vld [vmem:[#allocation12 + $0xf0] sm:$0xff]
    %v6969 = vld [vmem:[#allocation12 + $0xf8] sm:$0xff]
    %v6970 = vld [vmem:[#allocation12 + $0x100] sm:$0xff]
    %v6971 = vld [vmem:[#allocation12 + $0x108] sm:$0xff]
    %v6972 = vld [vmem:[#allocation12 + $0x110] sm:$0xff]
    %v6973 = vld [vmem:[#allocation12 + $0x118] sm:$0xff]
    %v6974 = vld [vmem:[#allocation12 + $0x120] sm:$0xff]
    %v6975 = vld [vmem:[#allocation12 + $0x128] sm:$0xff]
    %v6976 = vld [vmem:[#allocation12 + $0x130] sm:$0xff]
    %v6977 = vld [vmem:[#allocation12 + $0x138] sm:$0xff]
    %v6978 = vld [vmem:[#allocation12 + $0x140] sm:$0xff]
    %v6979 = vld [vmem:[#allocation12 + $0x148] sm:$0xff]
    %v6980 = vld [vmem:[#allocation12 + $0x150] sm:$0xff]
    %v6981 = vld [vmem:[#allocation12 + $0x158] sm:$0xff]
    %v6982 = vld [vmem:[#allocation12 + $0x160] sm:$0xff]
    %v6983 = vld [vmem:[#allocation12 + $0x168] sm:$0xff]
    %v6984 = vld [vmem:[#allocation12 + $0x170] sm:$0xff]
    %v6985 = vld [vmem:[#allocation12 + $0x178] sm:$0xff]
    %v6986 = vld [vmem:[#allocation12 + $0x180] sm:$0xff]
    %v6987 = vld [vmem:[#allocation12 + $0x188] sm:$0xff]
    %v6988 = vld [vmem:[#allocation12 + $0x190] sm:$0xff]
    %v6989 = vld [vmem:[#allocation12 + $0x198] sm:$0xff]
    %v6990 = vld [vmem:[#allocation12 + $0x1a0] sm:$0xff]
    %v6991 = vld [vmem:[#allocation12 + $0x1a8] sm:$0xff]
    %v6992 = vld [vmem:[#allocation12 + $0x1b0] sm:$0xff]
    %v6993 = vld [vmem:[#allocation12 + $0x1b8] sm:$0xff]
    %v6994 = vld [vmem:[#allocation12 + $0x1c0] sm:$0xff]
    %v6995 = vld [vmem:[#allocation12 + $0x1c8] sm:$0xff]
    %v6996 = vld [vmem:[#allocation12 + $0x1d0] sm:$0xff]
    %v6997 = vld [vmem:[#allocation12 + $0x1d8] sm:$0xff]
    %v6998 = vld [vmem:[#allocation12 + $0x1e0] sm:$0xff]
    %v6999 = vld [vmem:[#allocation12 + $0x1e8] sm:$0xff]
    %v7000 = vld [vmem:[#allocation12 + $0x1f0] sm:$0xff]
    %v7001 = vld [vmem:[#allocation12 + $0x1f8] sm:$0xff]
    %v7002 = vld [vmem:[#allocation12 + $0x200] sm:$0xff]
    %v7003 = vld [vmem:[#allocation12 + $0x208] sm:$0xff]
    %v7004 = vld [vmem:[#allocation12 + $0x210] sm:$0xff]
    %v7005 = vld [vmem:[#allocation12 + $0x218] sm:$0xff]
    %v7006 = vld [vmem:[#allocation12 + $0x220] sm:$0xff]
    %v7007 = vld [vmem:[#allocation12 + $0x228] sm:$0xff]
    %v7008 = vld [vmem:[#allocation12 + $0x230] sm:$0xff]
    %v7009 = vld [vmem:[#allocation12 + $0x238] sm:$0xff]
    %v7010 = vld [vmem:[#allocation12 + $0x240] sm:$0xff]
    %v7011 = vld [vmem:[#allocation12 + $0x248] sm:$0xff]
    %v7012 = vld [vmem:[#allocation12 + $0x250] sm:$0xff]
    %v7013 = vld [vmem:[#allocation12 + $0x258] sm:$0xff]
    %v7014 = vld [vmem:[#allocation12 + $0x260] sm:$0xff]
    %v7015 = vld [vmem:[#allocation12 + $0x268] sm:$0xff]
    %v7016 = vld [vmem:[#allocation12 + $0x270] sm:$0xff]
    %v7017 = vld [vmem:[#allocation12 + $0x278] sm:$0xff]
    %v7018 = vld [vmem:[#allocation12 + $0x280] sm:$0xff]
    %v7019 = vld [vmem:[#allocation12 + $0x288] sm:$0xff]
    %v7020 = vld [vmem:[#allocation12 + $0x290] sm:$0xff]
    %v7021 = vld [vmem:[#allocation12 + $0x298] sm:$0xff]
    %v7022 = vld [vmem:[#allocation12 + $0x2a0] sm:$0xff]
    %v7023 = vld [vmem:[#allocation12 + $0x2a8] sm:$0xff]
    %v7024 = vld [vmem:[#allocation12 + $0x2b0] sm:$0xff]
    %v7025 = vld [vmem:[#allocation12 + $0x2b8] sm:$0xff]
    %v7026 = vld [vmem:[#allocation12 + $0x2c0] sm:$0xff]
    %v7027 = vld [vmem:[#allocation12 + $0x2c8] sm:$0xff]
    %v7028 = vld [vmem:[#allocation12 + $0x2d0] sm:$0xff]
    %v7029 = vld [vmem:[#allocation12 + $0x2d8] sm:$0xff]
    %v7030 = vld [vmem:[#allocation12 + $0x2e0] sm:$0xff]
    %v7031 = vld [vmem:[#allocation12 + $0x2e8] sm:$0xff]
    %v7032 = vld [vmem:[#allocation12 + $0x2f0] sm:$0xff]
    %v7033 = vld [vmem:[#allocation12 + $0x2f8] sm:$0xff]
    %v7034 = vld [vmem:[#allocation12 + $0x300] sm:$0xff]
    %v7035 = vld [vmem:[#allocation12 + $0x308] sm:$0xff]
    %v7036 = vld [vmem:[#allocation12 + $0x310] sm:$0xff]
    %v7037 = vld [vmem:[#allocation12 + $0x318] sm:$0xff]
    %v7038 = vld [vmem:[#allocation12 + $0x320] sm:$0xff]
    %v7039 = vld [vmem:[#allocation12 + $0x328] sm:$0xff]
    %v7040 = vld [vmem:[#allocation12 + $0x330] sm:$0xff]
    %v7041 = vld [vmem:[#allocation12 + $0x338] sm:$0xff]
    %v7042 = vld [vmem:[#allocation12 + $0x340] sm:$0xff]
    %v7043 = vld [vmem:[#allocation12 + $0x348] sm:$0xff]
    %v7044 = vld [vmem:[#allocation12 + $0x350] sm:$0xff]
    %v7045 = vld [vmem:[#allocation12 + $0x358] sm:$0xff]
    %v7046 = vld [vmem:[#allocation12 + $0x360] sm:$0xff]
    %v7047 = vld [vmem:[#allocation12 + $0x368] sm:$0xff]
    %v7048 = vld [vmem:[#allocation12 + $0x370] sm:$0xff]
    %v7049 = vld [vmem:[#allocation12 + $0x378] sm:$0xff]
    %v7050 = vld [vmem:[#allocation12 + $0x380] sm:$0xff]
    %v7051 = vld [vmem:[#allocation12 + $0x388] sm:$0xff]
    %v7052 = vld [vmem:[#allocation12 + $0x390] sm:$0xff]
    %v7053 = vld [vmem:[#allocation12 + $0x398] sm:$0xff]
    %v7054 = vld [vmem:[#allocation12 + $0x3a0] sm:$0xff]
    %v7055 = vld [vmem:[#allocation12 + $0x3a8] sm:$0xff]
    %v7056 = vld [vmem:[#allocation12 + $0x3b0] sm:$0xff]
    %v7057 = vld [vmem:[#allocation12 + $0x3b8] sm:$0xff]
    %v7058 = vld [vmem:[#allocation12 + $0x3c0] sm:$0xff]
    %v7059 = vld [vmem:[#allocation12 + $0x3c8] sm:$0xff]
    %v7060 = vld [vmem:[#allocation12 + $0x3d0] sm:$0xff]
    %v7061 = vld [vmem:[#allocation12 + $0x3d8] sm:$0xff]
    %v7062 = vld [vmem:[#allocation12 + $0x3e0] sm:$0xff]
    %v7063 = vld [vmem:[#allocation12 + $0x3e8] sm:$0xff]
    %v7064 = vld [vmem:[#allocation12 + $0x3f0] sm:$0xff]
    %v7065 = vld [vmem:[#allocation12 + $0x3f8] sm:$0xff]
    %v7066 = vld [vmem:[%s1133] ss:$8 sm:$0xf]
    %v7067 = vpack.c.bf16 %v6157, %v6153
    %v7068 = vpack.c.bf16 %v6158, %v6154
    %v7069 = vpack.c.bf16 %v6159, %v6155
    %v7070 = vpack.c.bf16 %v6160, %v6156
    %v7072 = vlaneseq
    %v7073 = vshrl.u32 %v7072, 7
    %v7074 = vsub.s32 0, %v7073
    %v7075 = vrot.slane %v7066, %v7074
    %v7076 = vlaneseq
    %v7077 = vshrl.u32 %v7076, 7
    %v7078 = vsub.s32 1, %v7077
    %v7079 = vrot.slane %v7066, %v7078
    %v7080 = vlaneseq
    %v7081 = vshrl.u32 %v7080, 7
    %v7082 = vsub.s32 2, %v7081
    %v7083 = vrot.slane %v7066, %v7082
    %v7084 = vlaneseq
    %v7085 = vshrl.u32 %v7084, 7
    %v7086 = vsub.s32 3, %v7085
    %v7087 = vrot.slane %v7066, %v7086
    %v7220 = vunpack.c.l.b16 %v6938
    %v7221 = vunpack.c.h.b16 %v6938
    %v7222 = vunpack.c.l.b16 %v6939
    %v7223 = vunpack.c.h.b16 %v6939
    %v7224 = vunpack.c.l.b16 %v6940
    %v7225 = vunpack.c.h.b16 %v6940
    %v7226 = vunpack.c.l.b16 %v6941
    %v7227 = vunpack.c.h.b16 %v6941
    %v7228 = vunpack.c.l.b16 %v6942
    %v7229 = vunpack.c.h.b16 %v6942
    %v7230 = vunpack.c.l.b16 %v6943
    %v7231 = vunpack.c.h.b16 %v6943
    %v7232 = vunpack.c.l.b16 %v6944
    %v7233 = vunpack.c.h.b16 %v6944
    %v7234 = vunpack.c.l.b16 %v6945
    %v7235 = vunpack.c.h.b16 %v6945
    %v7236 = vunpack.c.l.b16 %v6946
    %v7237 = vunpack.c.h.b16 %v6946
    %v7238 = vunpack.c.l.b16 %v6947
    %v7239 = vunpack.c.h.b16 %v6947
    %v7240 = vunpack.c.l.b16 %v6948
    %v7241 = vunpack.c.h.b16 %v6948
    %v7242 = vunpack.c.l.b16 %v6949
    %v7243 = vunpack.c.h.b16 %v6949
    %v7244 = vunpack.c.l.b16 %v6950
    %v7245 = vunpack.c.h.b16 %v6950
    %v7246 = vunpack.c.l.b16 %v6951
    %v7247 = vunpack.c.h.b16 %v6951
    %v7248 = vunpack.c.l.b16 %v6952
    %v7249 = vunpack.c.h.b16 %v6952
    %v7250 = vunpack.c.l.b16 %v6953
    %v7251 = vunpack.c.h.b16 %v6953
    %v7252 = vunpack.c.l.b16 %v6954
    %v7253 = vunpack.c.h.b16 %v6954
    %v7254 = vunpack.c.l.b16 %v6955
    %v7255 = vunpack.c.h.b16 %v6955
    %v7256 = vunpack.c.l.b16 %v6956
    %v7257 = vunpack.c.h.b16 %v6956
    %v7258 = vunpack.c.l.b16 %v6957
    %v7259 = vunpack.c.h.b16 %v6957
    %v7260 = vunpack.c.l.b16 %v6958
    %v7261 = vunpack.c.h.b16 %v6958
    %v7262 = vunpack.c.l.b16 %v6959
    %v7263 = vunpack.c.h.b16 %v6959
    %v7264 = vunpack.c.l.b16 %v6960
    %v7265 = vunpack.c.h.b16 %v6960
    %v7266 = vunpack.c.l.b16 %v6961
    %v7267 = vunpack.c.h.b16 %v6961
    %v7268 = vunpack.c.l.b16 %v6962
    %v7269 = vunpack.c.h.b16 %v6962
    %v7270 = vunpack.c.l.b16 %v6963
    %v7271 = vunpack.c.h.b16 %v6963
    %v7272 = vunpack.c.l.b16 %v6964
    %v7273 = vunpack.c.h.b16 %v6964
    %v7274 = vunpack.c.l.b16 %v6965
    %v7275 = vunpack.c.h.b16 %v6965
    %v7276 = vunpack.c.l.b16 %v6966
    %v7277 = vunpack.c.h.b16 %v6966
    %v7278 = vunpack.c.l.b16 %v6967
    %v7279 = vunpack.c.h.b16 %v6967
    %v7280 = vunpack.c.l.b16 %v6968
    %v7281 = vunpack.c.h.b16 %v6968
    %v7282 = vunpack.c.l.b16 %v6969
    %v7283 = vunpack.c.h.b16 %v6969
    %v7284 = vunpack.c.l.b16 %v6970
    %v7285 = vunpack.c.h.b16 %v6970
    %v7286 = vunpack.c.l.b16 %v6971
    %v7287 = vunpack.c.h.b16 %v6971
    %v7288 = vunpack.c.l.b16 %v6972
    %v7289 = vunpack.c.h.b16 %v6972
    %v7290 = vunpack.c.l.b16 %v6973
    %v7291 = vunpack.c.h.b16 %v6973
    %v7292 = vunpack.c.l.b16 %v6974
    %v7293 = vunpack.c.h.b16 %v6974
    %v7294 = vunpack.c.l.b16 %v6975
    %v7295 = vunpack.c.h.b16 %v6975
    %v7296 = vunpack.c.l.b16 %v6976
    %v7297 = vunpack.c.h.b16 %v6976
    %v7298 = vunpack.c.l.b16 %v6977
    %v7299 = vunpack.c.h.b16 %v6977
    %v7300 = vunpack.c.l.b16 %v6978
    %v7301 = vunpack.c.h.b16 %v6978
    %v7302 = vunpack.c.l.b16 %v6979
    %v7303 = vunpack.c.h.b16 %v6979
    %v7304 = vunpack.c.l.b16 %v6980
    %v7305 = vunpack.c.h.b16 %v6980
    %v7306 = vunpack.c.l.b16 %v6981
    %v7307 = vunpack.c.h.b16 %v6981
    %v7308 = vunpack.c.l.b16 %v6982
    %v7309 = vunpack.c.h.b16 %v6982
    %v7310 = vunpack.c.l.b16 %v6983
    %v7311 = vunpack.c.h.b16 %v6983
    %v7312 = vunpack.c.l.b16 %v6984
    %v7313 = vunpack.c.h.b16 %v6984
    %v7314 = vunpack.c.l.b16 %v6985
    %v7315 = vunpack.c.h.b16 %v6985
    %v7316 = vunpack.c.l.b16 %v6986
    %v7317 = vunpack.c.h.b16 %v6986
    %v7318 = vunpack.c.l.b16 %v6987
    %v7319 = vunpack.c.h.b16 %v6987
    %v7320 = vunpack.c.l.b16 %v6988
    %v7321 = vunpack.c.h.b16 %v6988
    %v7322 = vunpack.c.l.b16 %v6989
    %v7323 = vunpack.c.h.b16 %v6989
    %v7324 = vunpack.c.l.b16 %v6990
    %v7325 = vunpack.c.h.b16 %v6990
    %v7326 = vunpack.c.l.b16 %v6991
    %v7327 = vunpack.c.h.b16 %v6991
    %v7328 = vunpack.c.l.b16 %v6992
    %v7329 = vunpack.c.h.b16 %v6992
    %v7330 = vunpack.c.l.b16 %v6993
    %v7331 = vunpack.c.h.b16 %v6993
    %v7332 = vunpack.c.l.b16 %v6994
    %v7333 = vunpack.c.h.b16 %v6994
    %v7334 = vunpack.c.l.b16 %v6995
    %v7335 = vunpack.c.h.b16 %v6995
    %v7336 = vunpack.c.l.b16 %v6996
    %v7337 = vunpack.c.h.b16 %v6996
    %v7338 = vunpack.c.l.b16 %v6997
    %v7339 = vunpack.c.h.b16 %v6997
    %v7340 = vunpack.c.l.b16 %v6998
    %v7341 = vunpack.c.h.b16 %v6998
    %v7342 = vunpack.c.l.b16 %v6999
    %v7343 = vunpack.c.h.b16 %v6999
    %v7344 = vunpack.c.l.b16 %v7000
    %v7345 = vunpack.c.h.b16 %v7000
    %v7346 = vunpack.c.l.b16 %v7001
    %v7347 = vunpack.c.h.b16 %v7001
    %v7348 = vunpack.c.l.b16 %v7002
    %v7349 = vunpack.c.h.b16 %v7002
    %v7350 = vunpack.c.l.b16 %v7003
    %v7351 = vunpack.c.h.b16 %v7003
    %v7352 = vunpack.c.l.b16 %v7004
    %v7353 = vunpack.c.h.b16 %v7004
    %v7354 = vunpack.c.l.b16 %v7005
    %v7355 = vunpack.c.h.b16 %v7005
    %v7356 = vunpack.c.l.b16 %v7006
    %v7357 = vunpack.c.h.b16 %v7006
    %v7358 = vunpack.c.l.b16 %v7007
    %v7359 = vunpack.c.h.b16 %v7007
    %v7360 = vunpack.c.l.b16 %v7008
    %v7361 = vunpack.c.h.b16 %v7008
    %v7362 = vunpack.c.l.b16 %v7009
    %v7363 = vunpack.c.h.b16 %v7009
    %v7364 = vunpack.c.l.b16 %v7010
    %v7365 = vunpack.c.h.b16 %v7010
    %v7366 = vunpack.c.l.b16 %v7011
    %v7367 = vunpack.c.h.b16 %v7011
    %v7368 = vunpack.c.l.b16 %v7012
    %v7369 = vunpack.c.h.b16 %v7012
    %v7370 = vunpack.c.l.b16 %v7013
    %v7371 = vunpack.c.h.b16 %v7013
    %v7372 = vunpack.c.l.b16 %v7014
    %v7373 = vunpack.c.h.b16 %v7014
    %v7374 = vunpack.c.l.b16 %v7015
    %v7375 = vunpack.c.h.b16 %v7015
    %v7376 = vunpack.c.l.b16 %v7016
    %v7377 = vunpack.c.h.b16 %v7016
    %v7378 = vunpack.c.l.b16 %v7017
    %v7379 = vunpack.c.h.b16 %v7017
    %v7380 = vunpack.c.l.b16 %v7018
    %v7381 = vunpack.c.h.b16 %v7018
    %v7382 = vunpack.c.l.b16 %v7019
    %v7383 = vunpack.c.h.b16 %v7019
    %v7384 = vunpack.c.l.b16 %v7020
    %v7385 = vunpack.c.h.b16 %v7020
    %v7386 = vunpack.c.l.b16 %v7021
    %v7387 = vunpack.c.h.b16 %v7021
    %v7388 = vunpack.c.l.b16 %v7022
    %v7389 = vunpack.c.h.b16 %v7022
    %v7390 = vunpack.c.l.b16 %v7023
    %v7391 = vunpack.c.h.b16 %v7023
    %v7392 = vunpack.c.l.b16 %v7024
    %v7393 = vunpack.c.h.b16 %v7024
    %v7394 = vunpack.c.l.b16 %v7025
    %v7395 = vunpack.c.h.b16 %v7025
    %v7396 = vunpack.c.l.b16 %v7026
    %v7397 = vunpack.c.h.b16 %v7026
    %v7398 = vunpack.c.l.b16 %v7027
    %v7399 = vunpack.c.h.b16 %v7027
    %v7400 = vunpack.c.l.b16 %v7028
    %v7401 = vunpack.c.h.b16 %v7028
    %v7402 = vunpack.c.l.b16 %v7029
    %v7403 = vunpack.c.h.b16 %v7029
    %v7404 = vunpack.c.l.b16 %v7030
    %v7405 = vunpack.c.h.b16 %v7030
    %v7406 = vunpack.c.l.b16 %v7031
    %v7407 = vunpack.c.h.b16 %v7031
    %v7408 = vunpack.c.l.b16 %v7032
    %v7409 = vunpack.c.h.b16 %v7032
    %v7410 = vunpack.c.l.b16 %v7033
    %v7411 = vunpack.c.h.b16 %v7033
    %v7412 = vunpack.c.l.b16 %v7034
    %v7413 = vunpack.c.h.b16 %v7034
    %v7414 = vunpack.c.l.b16 %v7035
    %v7415 = vunpack.c.h.b16 %v7035
    %v7416 = vunpack.c.l.b16 %v7036
    %v7417 = vunpack.c.h.b16 %v7036
    %v7418 = vunpack.c.l.b16 %v7037
    %v7419 = vunpack.c.h.b16 %v7037
    %v7420 = vunpack.c.l.b16 %v7038
    %v7421 = vunpack.c.h.b16 %v7038
    %v7422 = vunpack.c.l.b16 %v7039
    %v7423 = vunpack.c.h.b16 %v7039
    %v7424 = vunpack.c.l.b16 %v7040
    %v7425 = vunpack.c.h.b16 %v7040
    %v7426 = vunpack.c.l.b16 %v7041
    %v7427 = vunpack.c.h.b16 %v7041
    %v7428 = vunpack.c.l.b16 %v7042
    %v7429 = vunpack.c.h.b16 %v7042
    %v7430 = vunpack.c.l.b16 %v7043
    %v7431 = vunpack.c.h.b16 %v7043
    %v7432 = vunpack.c.l.b16 %v7044
    %v7433 = vunpack.c.h.b16 %v7044
    %v7434 = vunpack.c.l.b16 %v7045
    %v7435 = vunpack.c.h.b16 %v7045
    %v7436 = vunpack.c.l.b16 %v7046
    %v7437 = vunpack.c.h.b16 %v7046
    %v7438 = vunpack.c.l.b16 %v7047
    %v7439 = vunpack.c.h.b16 %v7047
    %v7440 = vunpack.c.l.b16 %v7048
    %v7441 = vunpack.c.h.b16 %v7048
    %v7442 = vunpack.c.l.b16 %v7049
    %v7443 = vunpack.c.h.b16 %v7049
    %v7444 = vunpack.c.l.b16 %v7050
    %v7445 = vunpack.c.h.b16 %v7050
    %v7446 = vunpack.c.l.b16 %v7051
    %v7447 = vunpack.c.h.b16 %v7051
    %v7448 = vunpack.c.l.b16 %v7052
    %v7449 = vunpack.c.h.b16 %v7052
    %v7450 = vunpack.c.l.b16 %v7053
    %v7451 = vunpack.c.h.b16 %v7053
    %v7452 = vunpack.c.l.b16 %v7054
    %v7453 = vunpack.c.h.b16 %v7054
    %v7454 = vunpack.c.l.b16 %v7055
    %v7455 = vunpack.c.h.b16 %v7055
    %v7456 = vunpack.c.l.b16 %v7056
    %v7457 = vunpack.c.h.b16 %v7056
    %v7458 = vunpack.c.l.b16 %v7057
    %v7459 = vunpack.c.h.b16 %v7057
    %v7460 = vunpack.c.l.b16 %v7058
    %v7461 = vunpack.c.h.b16 %v7058
    %v7462 = vunpack.c.l.b16 %v7059
    %v7463 = vunpack.c.h.b16 %v7059
    %v7464 = vunpack.c.l.b16 %v7060
    %v7465 = vunpack.c.h.b16 %v7060
    %v7466 = vunpack.c.l.b16 %v7061
    %v7467 = vunpack.c.h.b16 %v7061
    %v7468 = vunpack.c.l.b16 %v7062
    %v7469 = vunpack.c.h.b16 %v7062
    %v7470 = vunpack.c.l.b16 %v7063
    %v7471 = vunpack.c.h.b16 %v7063
    %v7472 = vunpack.c.l.b16 %v7064
    %v7473 = vunpack.c.h.b16 %v7064
    %v7474 = vunpack.c.l.b16 %v7065
    %v7475 = vunpack.c.h.b16 %v7065
    %v7476 = vpack.c.b16 %v7224, %v7220
    %v7477 = vpack.c.b16 %v7225, %v7221
    %v7478 = vpack.c.b16 %v7226, %v7222
    %v7479 = vpack.c.b16 %v7227, %v7223
    %v7480 = vpack.c.b16 %v7232, %v7228
    %v7481 = vpack.c.b16 %v7233, %v7229
    %v7482 = vpack.c.b16 %v7234, %v7230
    %v7483 = vpack.c.b16 %v7235, %v7231
    %v7484 = vpack.c.b16 %v7240, %v7236
    %v7485 = vpack.c.b16 %v7241, %v7237
    %v7486 = vpack.c.b16 %v7242, %v7238
    %v7487 = vpack.c.b16 %v7243, %v7239
    %v7488 = vpack.c.b16 %v7248, %v7244
    %v7489 = vpack.c.b16 %v7249, %v7245
    %v7490 = vpack.c.b16 %v7250, %v7246
    %v7491 = vpack.c.b16 %v7251, %v7247
    %v7492 = vpack.c.b16 %v7256, %v7252
    %v7493 = vpack.c.b16 %v7257, %v7253
    %v7494 = vpack.c.b16 %v7258, %v7254
    %v7495 = vpack.c.b16 %v7259, %v7255
    %v7496 = vpack.c.b16 %v7264, %v7260
    %v7497 = vpack.c.b16 %v7265, %v7261
    %v7498 = vpack.c.b16 %v7266, %v7262
    %v7499 = vpack.c.b16 %v7267, %v7263
    %v7500 = vpack.c.b16 %v7272, %v7268
    %v7501 = vpack.c.b16 %v7273, %v7269
    %v7502 = vpack.c.b16 %v7274, %v7270
    %v7503 = vpack.c.b16 %v7275, %v7271
    %v7504 = vpack.c.b16 %v7280, %v7276
    %v7505 = vpack.c.b16 %v7281, %v7277
    %v7506 = vpack.c.b16 %v7282, %v7278
    %v7507 = vpack.c.b16 %v7283, %v7279
    %v7508 = vpack.c.b16 %v7288, %v7284
    %v7509 = vpack.c.b16 %v7289, %v7285
    %v7510 = vpack.c.b16 %v7290, %v7286
    %v7511 = vpack.c.b16 %v7291, %v7287
    %v7512 = vpack.c.b16 %v7296, %v7292
    %v7513 = vpack.c.b16 %v7297, %v7293
    %v7514 = vpack.c.b16 %v7298, %v7294
    %v7515 = vpack.c.b16 %v7299, %v7295
    %v7516 = vpack.c.b16 %v7304, %v7300
    %v7517 = vpack.c.b16 %v7305, %v7301
    %v7518 = vpack.c.b16 %v7306, %v7302
    %v7519 = vpack.c.b16 %v7307, %v7303
    %v7520 = vpack.c.b16 %v7312, %v7308
    %v7521 = vpack.c.b16 %v7313, %v7309
    %v7522 = vpack.c.b16 %v7314, %v7310
    %v7523 = vpack.c.b16 %v7315, %v7311
    %v7524 = vpack.c.b16 %v7320, %v7316
    %v7525 = vpack.c.b16 %v7321, %v7317
    %v7526 = vpack.c.b16 %v7322, %v7318
    %v7527 = vpack.c.b16 %v7323, %v7319
    %v7528 = vpack.c.b16 %v7328, %v7324
    %v7529 = vpack.c.b16 %v7329, %v7325
    %v7530 = vpack.c.b16 %v7330, %v7326
    %v7531 = vpack.c.b16 %v7331, %v7327
    %v7532 = vpack.c.b16 %v7336, %v7332
    %v7533 = vpack.c.b16 %v7337, %v7333
    %v7534 = vpack.c.b16 %v7338, %v7334
    %v7535 = vpack.c.b16 %v7339, %v7335
    %v7536 = vpack.c.b16 %v7344, %v7340
    %v7537 = vpack.c.b16 %v7345, %v7341
    %v7538 = vpack.c.b16 %v7346, %v7342
    %v7539 = vpack.c.b16 %v7347, %v7343
    %v7540 = vpack.c.b16 %v7352, %v7348
    %v7541 = vpack.c.b16 %v7353, %v7349
    %v7542 = vpack.c.b16 %v7354, %v7350
    %v7543 = vpack.c.b16 %v7355, %v7351
    %v7544 = vpack.c.b16 %v7360, %v7356
    %v7545 = vpack.c.b16 %v7361, %v7357
    %v7546 = vpack.c.b16 %v7362, %v7358
    %v7547 = vpack.c.b16 %v7363, %v7359
    %v7548 = vpack.c.b16 %v7368, %v7364
    %v7549 = vpack.c.b16 %v7369, %v7365
    %v7550 = vpack.c.b16 %v7370, %v7366
    %v7551 = vpack.c.b16 %v7371, %v7367
    %v7552 = vpack.c.b16 %v7376, %v7372
    %v7553 = vpack.c.b16 %v7377, %v7373
    %v7554 = vpack.c.b16 %v7378, %v7374
    %v7555 = vpack.c.b16 %v7379, %v7375
    %v7556 = vpack.c.b16 %v7384, %v7380
    %v7557 = vpack.c.b16 %v7385, %v7381
    %v7558 = vpack.c.b16 %v7386, %v7382
    %v7559 = vpack.c.b16 %v7387, %v7383
    %v7560 = vpack.c.b16 %v7392, %v7388
    %v7561 = vpack.c.b16 %v7393, %v7389
    %v7562 = vpack.c.b16 %v7394, %v7390
    %v7563 = vpack.c.b16 %v7395, %v7391
    %v7564 = vpack.c.b16 %v7400, %v7396
    %v7565 = vpack.c.b16 %v7401, %v7397
    %v7566 = vpack.c.b16 %v7402, %v7398
    %v7567 = vpack.c.b16 %v7403, %v7399
    %v7568 = vpack.c.b16 %v7408, %v7404
    %v7569 = vpack.c.b16 %v7409, %v7405
    %v7570 = vpack.c.b16 %v7410, %v7406
    %v7571 = vpack.c.b16 %v7411, %v7407
    %v7572 = vpack.c.b16 %v7416, %v7412
    %v7573 = vpack.c.b16 %v7417, %v7413
    %v7574 = vpack.c.b16 %v7418, %v7414
    %v7575 = vpack.c.b16 %v7419, %v7415
    %v7576 = vpack.c.b16 %v7424, %v7420
    %v7577 = vpack.c.b16 %v7425, %v7421
    %v7578 = vpack.c.b16 %v7426, %v7422
    %v7579 = vpack.c.b16 %v7427, %v7423
    %v7580 = vpack.c.b16 %v7432, %v7428
    %v7581 = vpack.c.b16 %v7433, %v7429
    %v7582 = vpack.c.b16 %v7434, %v7430
    %v7583 = vpack.c.b16 %v7435, %v7431
    %v7584 = vpack.c.b16 %v7440, %v7436
    %v7585 = vpack.c.b16 %v7441, %v7437
    %v7586 = vpack.c.b16 %v7442, %v7438
    %v7587 = vpack.c.b16 %v7443, %v7439
    %v7588 = vpack.c.b16 %v7448, %v7444
    %v7589 = vpack.c.b16 %v7449, %v7445
    %v7590 = vpack.c.b16 %v7450, %v7446
    %v7591 = vpack.c.b16 %v7451, %v7447
    %v7592 = vpack.c.b16 %v7456, %v7452
    %v7593 = vpack.c.b16 %v7457, %v7453
    %v7594 = vpack.c.b16 %v7458, %v7454
    %v7595 = vpack.c.b16 %v7459, %v7455
    %v7596 = vpack.c.b16 %v7464, %v7460
    %v7597 = vpack.c.b16 %v7465, %v7461
    %v7598 = vpack.c.b16 %v7466, %v7462
    %v7599 = vpack.c.b16 %v7467, %v7463
    %v7600 = vpack.c.b16 %v7472, %v7468
    %v7601 = vpack.c.b16 %v7473, %v7469
    %v7602 = vpack.c.b16 %v7474, %v7470
    %v7603 = vpack.c.b16 %v7475, %v7471
    %7732 = vmatprep.subr.bf16.mxu0 %v7477
    %7733 = vmatpush1.bf16.msra.mxu0 %v7476
    %7734 = vmatprep.subr.bf16.mxu0 %v7481
    %7735 = vmatpush1.bf16.msra.mxu0 %v7480
    %7736 = vmatprep.subr.bf16.mxu0 %v7485
    %7737 = vmatpush1.bf16.msra.mxu0 %v7484
    %7738 = vmatprep.subr.bf16.mxu0 %v7489
    %7739 = vmatpush1.bf16.msra.mxu0 %v7488
    %7740 = vmatprep.subr.bf16.mxu0 %v7493
    %7741 = vmatpush1.bf16.msra.mxu0 %v7492
    %7742 = vmatprep.subr.bf16.mxu0 %v7497
    %7743 = vmatpush1.bf16.msra.mxu0 %v7496
    %7744 = vmatprep.subr.bf16.mxu0 %v7501
    %7745 = vmatpush1.bf16.msra.mxu0 %v7500
    %7746 = vmatprep.subr.bf16.mxu0 %v7505
    %7747 = vmatpush1.bf16.msra.mxu0 %v7504
    %7748 = vmatprep.subr.bf16.mxu0 %v7509
    %7749 = vmatpush1.bf16.msra.mxu0 %v7508
    %7750 = vmatprep.subr.bf16.mxu0 %v7513
    %7751 = vmatpush1.bf16.msra.mxu0 %v7512
    %7752 = vmatprep.subr.bf16.mxu0 %v7517
    %7753 = vmatpush1.bf16.msra.mxu0 %v7516
    %7754 = vmatprep.subr.bf16.mxu0 %v7521
    %7755 = vmatpush1.bf16.msra.mxu0 %v7520
    %7756 = vmatprep.subr.bf16.mxu0 %v7525
    %7757 = vmatpush1.bf16.msra.mxu0 %v7524
    %7758 = vmatprep.subr.bf16.mxu0 %v7529
    %7759 = vmatpush1.bf16.msra.mxu0 %v7528
    %7760 = vmatprep.subr.bf16.mxu0 %v7533
    %7761 = vmatpush1.bf16.msra.mxu0 %v7532
    %7762 = vmatprep.subr.bf16.mxu0 %v7537
    %7763 = vmatpush1.bf16.msra.mxu0 %v7536
    %7764 = vmatprep.mubr.bf16.mxu0 %v7068
    %7765 = vmatmul.mubr.bf16.gmra.mrb[0].mxu0 %v7067
    %v7766 = vpop.f32.mrb[0].mxu0
    %v7767 = vadd.f32 %v7075, %v7766
    %v7768 = vpop.f32.mrb[0].mxu0
    %v7769 = vadd.f32 %v7079, %v7768
    %v7770 = vpop.f32.mrb[0].mxu0
    %v7771 = vadd.f32 %v7075, %v7770
    %v7772 = vpop.f32.mrb[0].mxu0
    %v7773 = vadd.f32 %v7079, %v7772
    %7774 = vdwg.mxu0
    %7775 = vmatprep.subr.bf16.mxu0 %v7541
    %7776 = vmatpush1.bf16.msra.mxu0 %v7540
    %7777 = vmatprep.subr.bf16.mxu0 %v7545
    %7778 = vmatpush1.bf16.msra.mxu0 %v7544
    %7779 = vmatprep.subr.bf16.mxu0 %v7549
    %7780 = vmatpush1.bf16.msra.mxu0 %v7548
    %7781 = vmatprep.subr.bf16.mxu0 %v7553
    %7782 = vmatpush1.bf16.msra.mxu0 %v7552
    %7783 = vmatprep.subr.bf16.mxu0 %v7557
    %7784 = vmatpush1.bf16.msra.mxu0 %v7556
    %7785 = vmatprep.subr.bf16.mxu0 %v7561
    %7786 = vmatpush1.bf16.msra.mxu0 %v7560
    %7787 = vmatprep.subr.bf16.mxu0 %v7565
    %7788 = vmatpush1.bf16.msra.mxu0 %v7564
    %7789 = vmatprep.subr.bf16.mxu0 %v7569
    %7790 = vmatpush1.bf16.msra.mxu0 %v7568
    %7791 = vmatprep.subr.bf16.mxu0 %v7573
    %7792 = vmatpush1.bf16.msra.mxu0 %v7572
    %7793 = vmatprep.subr.bf16.mxu0 %v7577
    %7794 = vmatpush1.bf16.msra.mxu0 %v7576
    %7795 = vmatprep.subr.bf16.mxu0 %v7581
    %7796 = vmatpush1.bf16.msra.mxu0 %v7580
    %7797 = vmatprep.subr.bf16.mxu0 %v7585
    %7798 = vmatpush1.bf16.msra.mxu0 %v7584
    %7799 = vmatprep.subr.bf16.mxu0 %v7589
    %7800 = vmatpush1.bf16.msra.mxu0 %v7588
    %7801 = vmatprep.subr.bf16.mxu0 %v7593
    %7802 = vmatpush1.bf16.msra.mxu0 %v7592
    %7803 = vmatprep.subr.bf16.mxu0 %v7597
    %7804 = vmatpush1.bf16.msra.mxu0 %v7596
    %7805 = vmatprep.subr.bf16.mxu0 %v7601
    %7806 = vmatpush1.bf16.msra.mxu0 %v7600
    %7807 = vmatprep.mubr.bf16.mxu0 %v7070
    %7808 = vmatmul.mubr.bf16.gmra.mrb[0].mxu0 %v7069
    %v7809 = vpop.f32.mrb[0].mxu0
    %v7810 = vadd.f32 %v7767, %v7809
    %v7811 = vpop.f32.mrb[0].mxu0
    %v7812 = vadd.f32 %v7769, %v7811
    %v7813 = vpop.f32.mrb[0].mxu0
    %v7814 = vadd.f32 %v7771, %v7813
    %v7815 = vpop.f32.mrb[0].mxu0
    %v7816 = vadd.f32 %v7773, %v7815
    %7817 = vdwg.mxu0
    %7818 = vmatprep.subr.bf16.mxu0 %v7479
    %7819 = vmatpush1.bf16.msra.mxu0 %v7478
    %7820 = vmatprep.subr.bf16.mxu0 %v7483
    %7821 = vmatpush1.bf16.msra.mxu0 %v7482
    %7822 = vmatprep.subr.bf16.mxu0 %v7487
    %7823 = vmatpush1.bf16.msra.mxu0 %v7486
    %7824 = vmatprep.subr.bf16.mxu0 %v7491
    %7825 = vmatpush1.bf16.msra.mxu0 %v7490
    %7826 = vmatprep.subr.bf16.mxu0 %v7495
    %7827 = vmatpush1.bf16.msra.mxu0 %v7494
    %7828 = vmatprep.subr.bf16.mxu0 %v7499
    %7829 = vmatpush1.bf16.msra.mxu0 %v7498
    %7830 = vmatprep.subr.bf16.mxu0 %v7503
    %7831 = vmatpush1.bf16.msra.mxu0 %v7502
    %7832 = vmatprep.subr.bf16.mxu0 %v7507
    %7833 = vmatpush1.bf16.msra.mxu0 %v7506
    %7834 = vmatprep.subr.bf16.mxu0 %v7511
    %7835 = vmatpush1.bf16.msra.mxu0 %v7510
    %7836 = vmatprep.subr.bf16.mxu0 %v7515
    %7837 = vmatpush1.bf16.msra.mxu0 %v7514
    %7838 = vmatprep.subr.bf16.mxu0 %v7519
    %7839 = vmatpush1.bf16.msra.mxu0 %v7518
    %7840 = vmatprep.subr.bf16.mxu0 %v7523
    %7841 = vmatpush1.bf16.msra.mxu0 %v7522
    %7842 = vmatprep.subr.bf16.mxu0 %v7527
    %7843 = vmatpush1.bf16.msra.mxu0 %v7526
    %7844 = vmatprep.subr.bf16.mxu0 %v7531
    %7845 = vmatpush1.bf16.msra.mxu0 %v7530
    %7846 = vmatprep.subr.bf16.mxu0 %v7535
    %7847 = vmatpush1.bf16.msra.mxu0 %v7534
    %7848 = vmatprep.subr.bf16.mxu0 %v7539
    %7849 = vmatpush1.bf16.msra.mxu0 %v7538
    %7850 = vmatprep.mubr.bf16.mxu0 %v7068
    %7851 = vmatmul.mubr.bf16.gmra.mrb[0].mxu0 %v7067
    %v7852 = vpop.f32.mrb[0].mxu0
    %v7853 = vadd.f32 %v7083, %v7852
    %v7854 = vpop.f32.mrb[0].mxu0
    %v7855 = vadd.f32 %v7087, %v7854
    %v7856 = vpop.f32.mrb[0].mxu0
    %v7857 = vadd.f32 %v7083, %v7856
    %v7858 = vpop.f32.mrb[0].mxu0
    %v7859 = vadd.f32 %v7087, %v7858
    %7860 = vdwg.mxu0
    %7861 = vmatprep.subr.bf16.mxu0 %v7543
    %7862 = vmatpush1.bf16.msra.mxu0 %v7542
    %7863 = vmatprep.subr.bf16.mxu0 %v7547
    %7864 = vmatpush1.bf16.msra.mxu0 %v7546
    %7865 = vmatprep.subr.bf16.mxu0 %v7551
    %7866 = vmatpush1.bf16.msra.mxu0 %v7550
    %7867 = vmatprep.subr.bf16.mxu0 %v7555
    %7868 = vmatpush1.bf16.msra.mxu0 %v7554
    %7869 = vmatprep.subr.bf16.mxu0 %v7559
    %7870 = vmatpush1.bf16.msra.mxu0 %v7558
    %7871 = vmatprep.subr.bf16.mxu0 %v7563
    %7872 = vmatpush1.bf16.msra.mxu0 %v7562
    %7873 = vmatprep.subr.bf16.mxu0 %v7567
    %7874 = vmatpush1.bf16.msra.mxu0 %v7566
    %7875 = vmatprep.subr.bf16.mxu0 %v7571
    %7876 = vmatpush1.bf16.msra.mxu0 %v7570
    %7877 = vmatprep.subr.bf16.mxu0 %v7575
    %7878 = vmatpush1.bf16.msra.mxu0 %v7574
    %7879 = vmatprep.subr.bf16.mxu0 %v7579
    %7880 = vmatpush1.bf16.msra.mxu0 %v7578
    %7881 = vmatprep.subr.bf16.mxu0 %v7583
    %7882 = vmatpush1.bf16.msra.mxu0 %v7582
    %7883 = vmatprep.subr.bf16.mxu0 %v7587
    %7884 = vmatpush1.bf16.msra.mxu0 %v7586
    %7885 = vmatprep.subr.bf16.mxu0 %v7591
    %7886 = vmatpush1.bf16.msra.mxu0 %v7590
    %7887 = vmatprep.subr.bf16.mxu0 %v7595
    %7888 = vmatpush1.bf16.msra.mxu0 %v7594
    %7889 = vmatprep.subr.bf16.mxu0 %v7599
    %7890 = vmatpush1.bf16.msra.mxu0 %v7598
    %7891 = vmatprep.subr.bf16.mxu0 %v7603
    %7892 = vmatpush1.bf16.msra.mxu0 %v7602
    %7893 = vmatprep.mubr.bf16.mxu0 %v7070
    %7894 = vmatmul.mubr.bf16.gmra.mrb[0].mxu0 %v7069
    %v7895 = vpop.f32.mrb[0].mxu0
    %v7896 = vadd.f32 %v7853, %v7895
    %v7897 = vpop.f32.mrb[0].mxu0
    %v7898 = vadd.f32 %v7855, %v7897
    %v7899 = vpop.f32.mrb[0].mxu0
    %v7900 = vadd.f32 %v7857, %v7899
    %v7901 = vpop.f32.mrb[0].mxu0
    %v7902 = vadd.f32 %v7859, %v7901
    %7903 = vdwg.mxu0
    %v7904 = vmul.f32 %v7810, 0.2
    %v7905 = vmul.f32 %v7812, 0.2
    %v7906 = vmul.f32 %v7896, 0.2
    %v7907 = vmul.f32 %v7898, 0.2
    %v7908 = vmul.f32 %v7814, 0.2
    %v7909 = vmul.f32 %v7816, 0.2
    %v7910 = vmul.f32 %v7900, 0.2
    %v7911 = vmul.f32 %v7902, 0.2
    %v7912 = vmax.f32 %v7810, %v7904
    %v7913 = vmax.f32 %v7812, %v7905
    %v7914 = vmax.f32 %v7896, %v7906
    %v7915 = vmax.f32 %v7898, %v7907
    %v7916 = vmax.f32 %v7814, %v7908
    %v7917 = vmax.f32 %v7816, %v7909
    %v7918 = vmax.f32 %v7900, %v7910
    %v7919 = vmax.f32 %v7902, %v7911
    %v7920 = vld [vmem:[#allocation11] sm:$0xff]
    %v7921 = vld [vmem:[#allocation11 + $0x8] sm:$0xff]
    %v7922 = vld [vmem:[#allocation11 + $0x10] sm:$0xff]
    %v7923 = vld [vmem:[#allocation11 + $0x18] sm:$0xff]
    %v7924 = vld [vmem:[#allocation11 + $0x20] sm:$0xff]
    %v7925 = vld [vmem:[#allocation11 + $0x28] sm:$0xff]
    %v7926 = vld [vmem:[#allocation11 + $0x30] sm:$0xff]
    %v7927 = vld [vmem:[#allocation11 + $0x38] sm:$0xff]
    %v7928 = vld [vmem:[#allocation11 + $0x40] sm:$0xff]
    %v7929 = vld [vmem:[#allocation11 + $0x48] sm:$0xff]
    %v7930 = vld [vmem:[#allocation11 + $0x50] sm:$0xff]
    %v7931 = vld [vmem:[#allocation11 + $0x58] sm:$0xff]
    %v7932 = vld [vmem:[#allocation11 + $0x60] sm:$0xff]
    %v7933 = vld [vmem:[#allocation11 + $0x68] sm:$0xff]
    %v7934 = vld [vmem:[#allocation11 + $0x70] sm:$0xff]
    %v7935 = vld [vmem:[#allocation11 + $0x78] sm:$0xff]
    %v7936 = vld [vmem:[#allocation11 + $0x80] sm:$0xff]
    %v7937 = vld [vmem:[#allocation11 + $0x88] sm:$0xff]
    %v7938 = vld [vmem:[#allocation11 + $0x90] sm:$0xff]
    %v7939 = vld [vmem:[#allocation11 + $0x98] sm:$0xff]
    %v7940 = vld [vmem:[#allocation11 + $0xa0] sm:$0xff]
    %v7941 = vld [vmem:[#allocation11 + $0xa8] sm:$0xff]
    %v7942 = vld [vmem:[#allocation11 + $0xb0] sm:$0xff]
    %v7943 = vld [vmem:[#allocation11 + $0xb8] sm:$0xff]
    %v7944 = vld [vmem:[#allocation11 + $0xc0] sm:$0xff]
    %v7945 = vld [vmem:[#allocation11 + $0xc8] sm:$0xff]
    %v7946 = vld [vmem:[#allocation11 + $0xd0] sm:$0xff]
    %v7947 = vld [vmem:[#allocation11 + $0xd8] sm:$0xff]
    %v7948 = vld [vmem:[#allocation11 + $0xe0] sm:$0xff]
    %v7949 = vld [vmem:[#allocation11 + $0xe8] sm:$0xff]
    %v7950 = vld [vmem:[#allocation11 + $0xf0] sm:$0xff]
    %v7951 = vld [vmem:[#allocation11 + $0xf8] sm:$0xff]
    %v7952 = vld [vmem:[#allocation11 + $0x100] sm:$0xff]
    %v7953 = vld [vmem:[#allocation11 + $0x108] sm:$0xff]
    %v7954 = vld [vmem:[#allocation11 + $0x110] sm:$0xff]
    %v7955 = vld [vmem:[#allocation11 + $0x118] sm:$0xff]
    %v7956 = vld [vmem:[#allocation11 + $0x120] sm:$0xff]
    %v7957 = vld [vmem:[#allocation11 + $0x128] sm:$0xff]
    %v7958 = vld [vmem:[#allocation11 + $0x130] sm:$0xff]
    %v7959 = vld [vmem:[#allocation11 + $0x138] sm:$0xff]
    %v7960 = vld [vmem:[#allocation11 + $0x140] sm:$0xff]
    %v7961 = vld [vmem:[#allocation11 + $0x148] sm:$0xff]
    %v7962 = vld [vmem:[#allocation11 + $0x150] sm:$0xff]
    %v7963 = vld [vmem:[#allocation11 + $0x158] sm:$0xff]
    %v7964 = vld [vmem:[#allocation11 + $0x160] sm:$0xff]
    %v7965 = vld [vmem:[#allocation11 + $0x168] sm:$0xff]
    %v7966 = vld [vmem:[#allocation11 + $0x170] sm:$0xff]
    %v7967 = vld [vmem:[#allocation11 + $0x178] sm:$0xff]
    %v7968 = vld [vmem:[#allocation11 + $0x180] sm:$0xff]
    %v7969 = vld [vmem:[#allocation11 + $0x188] sm:$0xff]
    %v7970 = vld [vmem:[#allocation11 + $0x190] sm:$0xff]
    %v7971 = vld [vmem:[#allocation11 + $0x198] sm:$0xff]
    %v7972 = vld [vmem:[#allocation11 + $0x1a0] sm:$0xff]
    %v7973 = vld [vmem:[#allocation11 + $0x1a8] sm:$0xff]
    %v7974 = vld [vmem:[#allocation11 + $0x1b0] sm:$0xff]
    %v7975 = vld [vmem:[#allocation11 + $0x1b8] sm:$0xff]
    %v7976 = vld [vmem:[#allocation11 + $0x1c0] sm:$0xff]
    %v7977 = vld [vmem:[#allocation11 + $0x1c8] sm:$0xff]
    %v7978 = vld [vmem:[#allocation11 + $0x1d0] sm:$0xff]
    %v7979 = vld [vmem:[#allocation11 + $0x1d8] sm:$0xff]
    %v7980 = vld [vmem:[#allocation11 + $0x1e0] sm:$0xff]
    %v7981 = vld [vmem:[#allocation11 + $0x1e8] sm:$0xff]
    %v7982 = vld [vmem:[#allocation11 + $0x1f0] sm:$0xff]
    %v7983 = vld [vmem:[#allocation11 + $0x1f8] sm:$0xff]
    %v7984 = vld [vmem:[%s2052] ss:$8 sm:$0x3]
    %v7985 = vpack.c.bf16 %v7916, %v7912
    %v7986 = vpack.c.bf16 %v7917, %v7913
    %v7987 = vpack.c.bf16 %v7918, %v7914
    %v7988 = vpack.c.bf16 %v7919, %v7915
    %v7990 = vlaneseq
    %v7991 = vshrl.u32 %v7990, 7
    %v7992 = vsub.s32 0, %v7991
    %v7993 = vrot.slane %v7984, %v7992
    %v7994 = vlaneseq
    %v7995 = vshrl.u32 %v7994, 7
    %v7996 = vsub.s32 1, %v7995
    %v7997 = vrot.slane %v7984, %v7996
    %v8064 = vunpack.c.l.b16 %v7920
    %v8065 = vunpack.c.h.b16 %v7920
    %v8066 = vunpack.c.l.b16 %v7921
    %v8067 = vunpack.c.h.b16 %v7921
    %v8068 = vunpack.c.l.b16 %v7922
    %v8069 = vunpack.c.h.b16 %v7922
    %v8070 = vunpack.c.l.b16 %v7923
    %v8071 = vunpack.c.h.b16 %v7923
    %v8072 = vunpack.c.l.b16 %v7924
    %v8073 = vunpack.c.h.b16 %v7924
    %v8074 = vunpack.c.l.b16 %v7925
    %v8075 = vunpack.c.h.b16 %v7925
    %v8076 = vunpack.c.l.b16 %v7926
    %v8077 = vunpack.c.h.b16 %v7926
    %v8078 = vunpack.c.l.b16 %v7927
    %v8079 = vunpack.c.h.b16 %v7927
    %v8080 = vunpack.c.l.b16 %v7928
    %v8081 = vunpack.c.h.b16 %v7928
    %v8082 = vunpack.c.l.b16 %v7929
    %v8083 = vunpack.c.h.b16 %v7929
    %v8084 = vunpack.c.l.b16 %v7930
    %v8085 = vunpack.c.h.b16 %v7930
    %v8086 = vunpack.c.l.b16 %v7931
    %v8087 = vunpack.c.h.b16 %v7931
    %v8088 = vunpack.c.l.b16 %v7932
    %v8089 = vunpack.c.h.b16 %v7932
    %v8090 = vunpack.c.l.b16 %v7933
    %v8091 = vunpack.c.h.b16 %v7933
    %v8092 = vunpack.c.l.b16 %v7934
    %v8093 = vunpack.c.h.b16 %v7934
    %v8094 = vunpack.c.l.b16 %v7935
    %v8095 = vunpack.c.h.b16 %v7935
    %v8096 = vunpack.c.l.b16 %v7936
    %v8097 = vunpack.c.h.b16 %v7936
    %v8098 = vunpack.c.l.b16 %v7937
    %v8099 = vunpack.c.h.b16 %v7937
    %v8100 = vunpack.c.l.b16 %v7938
    %v8101 = vunpack.c.h.b16 %v7938
    %v8102 = vunpack.c.l.b16 %v7939
    %v8103 = vunpack.c.h.b16 %v7939
    %v8104 = vunpack.c.l.b16 %v7940
    %v8105 = vunpack.c.h.b16 %v7940
    %v8106 = vunpack.c.l.b16 %v7941
    %v8107 = vunpack.c.h.b16 %v7941
    %v8108 = vunpack.c.l.b16 %v7942
    %v8109 = vunpack.c.h.b16 %v7942
    %v8110 = vunpack.c.l.b16 %v7943
    %v8111 = vunpack.c.h.b16 %v7943
    %v8112 = vunpack.c.l.b16 %v7944
    %v8113 = vunpack.c.h.b16 %v7944
    %v8114 = vunpack.c.l.b16 %v7945
    %v8115 = vunpack.c.h.b16 %v7945
    %v8116 = vunpack.c.l.b16 %v7946
    %v8117 = vunpack.c.h.b16 %v7946
    %v8118 = vunpack.c.l.b16 %v7947
    %v8119 = vunpack.c.h.b16 %v7947
    %v8120 = vunpack.c.l.b16 %v7948
    %v8121 = vunpack.c.h.b16 %v7948
    %v8122 = vunpack.c.l.b16 %v7949
    %v8123 = vunpack.c.h.b16 %v7949
    %v8124 = vunpack.c.l.b16 %v7950
    %v8125 = vunpack.c.h.b16 %v7950
    %v8126 = vunpack.c.l.b16 %v7951
    %v8127 = vunpack.c.h.b16 %v7951
    %v8128 = vunpack.c.l.b16 %v7952
    %v8129 = vunpack.c.h.b16 %v7952
    %v8130 = vunpack.c.l.b16 %v7953
    %v8131 = vunpack.c.h.b16 %v7953
    %v8132 = vunpack.c.l.b16 %v7954
    %v8133 = vunpack.c.h.b16 %v7954
    %v8134 = vunpack.c.l.b16 %v7955
    %v8135 = vunpack.c.h.b16 %v7955
    %v8136 = vunpack.c.l.b16 %v7956
    %v8137 = vunpack.c.h.b16 %v7956
    %v8138 = vunpack.c.l.b16 %v7957
    %v8139 = vunpack.c.h.b16 %v7957
    %v8140 = vunpack.c.l.b16 %v7958
    %v8141 = vunpack.c.h.b16 %v7958
    %v8142 = vunpack.c.l.b16 %v7959
    %v8143 = vunpack.c.h.b16 %v7959
    %v8144 = vunpack.c.l.b16 %v7960
    %v8145 = vunpack.c.h.b16 %v7960
    %v8146 = vunpack.c.l.b16 %v7961
    %v8147 = vunpack.c.h.b16 %v7961
    %v8148 = vunpack.c.l.b16 %v7962
    %v8149 = vunpack.c.h.b16 %v7962
    %v8150 = vunpack.c.l.b16 %v7963
    %v8151 = vunpack.c.h.b16 %v7963
    %v8152 = vunpack.c.l.b16 %v7964
    %v8153 = vunpack.c.h.b16 %v7964
    %v8154 = vunpack.c.l.b16 %v7965
    %v8155 = vunpack.c.h.b16 %v7965
    %v8156 = vunpack.c.l.b16 %v7966
    %v8157 = vunpack.c.h.b16 %v7966
    %v8158 = vunpack.c.l.b16 %v7967
    %v8159 = vunpack.c.h.b16 %v7967
    %v8160 = vunpack.c.l.b16 %v7968
    %v8161 = vunpack.c.h.b16 %v7968
    %v8162 = vunpack.c.l.b16 %v7969
    %v8163 = vunpack.c.h.b16 %v7969
    %v8164 = vunpack.c.l.b16 %v7970
    %v8165 = vunpack.c.h.b16 %v7970
    %v8166 = vunpack.c.l.b16 %v7971
    %v8167 = vunpack.c.h.b16 %v7971
    %v8168 = vunpack.c.l.b16 %v7972
    %v8169 = vunpack.c.h.b16 %v7972
    %v8170 = vunpack.c.l.b16 %v7973
    %v8171 = vunpack.c.h.b16 %v7973
    %v8172 = vunpack.c.l.b16 %v7974
    %v8173 = vunpack.c.h.b16 %v7974
    %v8174 = vunpack.c.l.b16 %v7975
    %v8175 = vunpack.c.h.b16 %v7975
    %v8176 = vunpack.c.l.b16 %v7976
    %v8177 = vunpack.c.h.b16 %v7976
    %v8178 = vunpack.c.l.b16 %v7977
    %v8179 = vunpack.c.h.b16 %v7977
    %v8180 = vunpack.c.l.b16 %v7978
    %v8181 = vunpack.c.h.b16 %v7978
    %v8182 = vunpack.c.l.b16 %v7979
    %v8183 = vunpack.c.h.b16 %v7979
    %v8184 = vunpack.c.l.b16 %v7980
    %v8185 = vunpack.c.h.b16 %v7980
    %v8186 = vunpack.c.l.b16 %v7981
    %v8187 = vunpack.c.h.b16 %v7981
    %v8188 = vunpack.c.l.b16 %v7982
    %v8189 = vunpack.c.h.b16 %v7982
    %v8190 = vunpack.c.l.b16 %v7983
    %v8191 = vunpack.c.h.b16 %v7983
    %v8192 = vpack.c.b16 %v8066, %v8064
    %v8193 = vpack.c.b16 %v8067, %v8065
    %v8194 = vpack.c.b16 %v8070, %v8068
    %v8195 = vpack.c.b16 %v8071, %v8069
    %v8196 = vpack.c.b16 %v8074, %v8072
    %v8197 = vpack.c.b16 %v8075, %v8073
    %v8198 = vpack.c.b16 %v8078, %v8076
    %v8199 = vpack.c.b16 %v8079, %v8077
    %v8200 = vpack.c.b16 %v8082, %v8080
    %v8201 = vpack.c.b16 %v8083, %v8081
    %v8202 = vpack.c.b16 %v8086, %v8084
    %v8203 = vpack.c.b16 %v8087, %v8085
    %v8204 = vpack.c.b16 %v8090, %v8088
    %v8205 = vpack.c.b16 %v8091, %v8089
    %v8206 = vpack.c.b16 %v8094, %v8092
    %v8207 = vpack.c.b16 %v8095, %v8093
    %v8208 = vpack.c.b16 %v8098, %v8096
    %v8209 = vpack.c.b16 %v8099, %v8097
    %v8210 = vpack.c.b16 %v8102, %v8100
    %v8211 = vpack.c.b16 %v8103, %v8101
    %v8212 = vpack.c.b16 %v8106, %v8104
    %v8213 = vpack.c.b16 %v8107, %v8105
    %v8214 = vpack.c.b16 %v8110, %v8108
    %v8215 = vpack.c.b16 %v8111, %v8109
    %v8216 = vpack.c.b16 %v8114, %v8112
    %v8217 = vpack.c.b16 %v8115, %v8113
    %v8218 = vpack.c.b16 %v8118, %v8116
    %v8219 = vpack.c.b16 %v8119, %v8117
    %v8220 = vpack.c.b16 %v8122, %v8120
    %v8221 = vpack.c.b16 %v8123, %v8121
    %v8222 = vpack.c.b16 %v8126, %v8124
    %v8223 = vpack.c.b16 %v8127, %v8125
    %v8224 = vpack.c.b16 %v8130, %v8128
    %v8225 = vpack.c.b16 %v8131, %v8129
    %v8226 = vpack.c.b16 %v8134, %v8132
    %v8227 = vpack.c.b16 %v8135, %v8133
    %v8228 = vpack.c.b16 %v8138, %v8136
    %v8229 = vpack.c.b16 %v8139, %v8137
    %v8230 = vpack.c.b16 %v8142, %v8140
    %v8231 = vpack.c.b16 %v8143, %v8141
    %v8232 = vpack.c.b16 %v8146, %v8144
    %v8233 = vpack.c.b16 %v8147, %v8145
    %v8234 = vpack.c.b16 %v8150, %v8148
    %v8235 = vpack.c.b16 %v8151, %v8149
    %v8236 = vpack.c.b16 %v8154, %v8152
    %v8237 = vpack.c.b16 %v8155, %v8153
    %v8238 = vpack.c.b16 %v8158, %v8156
    %v8239 = vpack.c.b16 %v8159, %v8157
    %v8240 = vpack.c.b16 %v8162, %v8160
    %v8241 = vpack.c.b16 %v8163, %v8161
    %v8242 = vpack.c.b16 %v8166, %v8164
    %v8243 = vpack.c.b16 %v8167, %v8165
    %v8244 = vpack.c.b16 %v8170, %v8168
    %v8245 = vpack.c.b16 %v8171, %v8169
    %v8246 = vpack.c.b16 %v8174, %v8172
    %v8247 = vpack.c.b16 %v8175, %v8173
    %v8248 = vpack.c.b16 %v8178, %v8176
    %v8249 = vpack.c.b16 %v8179, %v8177
    %v8250 = vpack.c.b16 %v8182, %v8180
    %v8251 = vpack.c.b16 %v8183, %v8181
    %v8252 = vpack.c.b16 %v8186, %v8184
    %v8253 = vpack.c.b16 %v8187, %v8185
    %v8254 = vpack.c.b16 %v8190, %v8188
    %v8255 = vpack.c.b16 %v8191, %v8189
    %8320 = vmatprep.subr.bf16.mxu0 %v8193
    %8321 = vmatpush1.bf16.msra.mxu0 %v8192
    %8322 = vmatprep.subr.bf16.mxu0 %v8195
    %8323 = vmatpush1.bf16.msra.mxu0 %v8194
    %8324 = vmatprep.subr.bf16.mxu0 %v8197
    %8325 = vmatpush1.bf16.msra.mxu0 %v8196
    %8326 = vmatprep.subr.bf16.mxu0 %v8199
    %8327 = vmatpush1.bf16.msra.mxu0 %v8198
    %8328 = vmatprep.subr.bf16.mxu0 %v8201
    %8329 = vmatpush1.bf16.msra.mxu0 %v8200
    %8330 = vmatprep.subr.bf16.mxu0 %v8203
    %8331 = vmatpush1.bf16.msra.mxu0 %v8202
    %8332 = vmatprep.subr.bf16.mxu0 %v8205
    %8333 = vmatpush1.bf16.msra.mxu0 %v8204
    %8334 = vmatprep.subr.bf16.mxu0 %v8207
    %8335 = vmatpush1.bf16.msra.mxu0 %v8206
    %8336 = vmatprep.subr.bf16.mxu0 %v8209
    %8337 = vmatpush1.bf16.msra.mxu0 %v8208
    %8338 = vmatprep.subr.bf16.mxu0 %v8211
    %8339 = vmatpush1.bf16.msra.mxu0 %v8210
    %8340 = vmatprep.subr.bf16.mxu0 %v8213
    %8341 = vmatpush1.bf16.msra.mxu0 %v8212
    %8342 = vmatprep.subr.bf16.mxu0 %v8215
    %8343 = vmatpush1.bf16.msra.mxu0 %v8214
    %8344 = vmatprep.subr.bf16.mxu0 %v8217
    %8345 = vmatpush1.bf16.msra.mxu0 %v8216
    %8346 = vmatprep.subr.bf16.mxu0 %v8219
    %8347 = vmatpush1.bf16.msra.mxu0 %v8218
    %8348 = vmatprep.subr.bf16.mxu0 %v8221
    %8349 = vmatpush1.bf16.msra.mxu0 %v8220
    %8350 = vmatprep.subr.bf16.mxu0 %v8223
    %8351 = vmatpush1.bf16.msra.mxu0 %v8222
    %8352 = vmatprep.mubr.bf16.mxu0 %v7986
    %8353 = vmatmul.mubr.bf16.gmra.mrb[0].mxu0 %v7985
    %v8354 = vpop.f32.mrb[0].mxu0
    %v8355 = vadd.f32 %v7993, %v8354
    %v8356 = vpop.f32.mrb[0].mxu0
    %v8357 = vadd.f32 %v7997, %v8356
    %v8358 = vpop.f32.mrb[0].mxu0
    %v8359 = vadd.f32 %v7993, %v8358
    %v8360 = vpop.f32.mrb[0].mxu0
    %v8361 = vadd.f32 %v7997, %v8360
    %8362 = vdwg.mxu0
    %8363 = vmatprep.subr.bf16.mxu0 %v8225
    %8364 = vmatpush1.bf16.msra.mxu0 %v8224
    %8365 = vmatprep.subr.bf16.mxu0 %v8227
    %8366 = vmatpush1.bf16.msra.mxu0 %v8226
    %8367 = vmatprep.subr.bf16.mxu0 %v8229
    %8368 = vmatpush1.bf16.msra.mxu0 %v8228
    %8369 = vmatprep.subr.bf16.mxu0 %v8231
    %8370 = vmatpush1.bf16.msra.mxu0 %v8230
    %8371 = vmatprep.subr.bf16.mxu0 %v8233
    %8372 = vmatpush1.bf16.msra.mxu0 %v8232
    %8373 = vmatprep.subr.bf16.mxu0 %v8235
    %8374 = vmatpush1.bf16.msra.mxu0 %v8234
    %8375 = vmatprep.subr.bf16.mxu0 %v8237
    %8376 = vmatpush1.bf16.msra.mxu0 %v8236
    %8377 = vmatprep.subr.bf16.mxu0 %v8239
    %8378 = vmatpush1.bf16.msra.mxu0 %v8238
    %8379 = vmatprep.subr.bf16.mxu0 %v8241
    %8380 = vmatpush1.bf16.msra.mxu0 %v8240
    %8381 = vmatprep.subr.bf16.mxu0 %v8243
    %8382 = vmatpush1.bf16.msra.mxu0 %v8242
    %8383 = vmatprep.subr.bf16.mxu0 %v8245
    %8384 = vmatpush1.bf16.msra.mxu0 %v8244
    %8385 = vmatprep.subr.bf16.mxu0 %v8247
    %8386 = vmatpush1.bf16.msra.mxu0 %v8246
    %8387 = vmatprep.subr.bf16.mxu0 %v8249
    %8388 = vmatpush1.bf16.msra.mxu0 %v8248
    %8389 = vmatprep.subr.bf16.mxu0 %v8251
    %8390 = vmatpush1.bf16.msra.mxu0 %v8250
    %8391 = vmatprep.subr.bf16.mxu0 %v8253
    %8392 = vmatpush1.bf16.msra.mxu0 %v8252
    %8393 = vmatprep.subr.bf16.mxu0 %v8255
    %8394 = vmatpush1.bf16.msra.mxu0 %v8254
    %8395 = vmatprep.mubr.bf16.mxu0 %v7988
    %8396 = vmatmul.mubr.bf16.gmra.mrb[0].mxu0 %v7987
    %v8397 = vpop.f32.mrb[0].mxu0
    %v8398 = vadd.f32 %v8355, %v8397
    %v8399 = vpop.f32.mrb[0].mxu0
    %v8400 = vadd.f32 %v8357, %v8399
    %v8401 = vpop.f32.mrb[0].mxu0
    %v8402 = vadd.f32 %v8359, %v8401
    %v8403 = vpop.f32.mrb[0].mxu0
    %v8404 = vadd.f32 %v8361, %v8403
    %8405 = vdwg.mxu0
    %v8406 = vmul.f32 %v8398, 0.2
    %v8407 = vmul.f32 %v8400, 0.2
    %v8408 = vmul.f32 %v8402, 0.2
    %v8409 = vmul.f32 %v8404, 0.2
    %v8410 = vmax.f32 %v8398, %v8406
    %v8411 = vmax.f32 %v8400, %v8407
    %v8412 = vmax.f32 %v8402, %v8408
    %v8413 = vmax.f32 %v8404, %v8409
    %v8414 = vld [vmem:[%s2483] sm:$0xff]
    %v8415 = vld [vmem:[%s2483 + $0x8] sm:$0xff]
    %v8416 = vld [vmem:[%s2483 + $0x10] sm:$0xff]
    %v8417 = vld [vmem:[%s2483 + $0x18] sm:$0xff]
    %v8418 = vld [vmem:[%s2483 + $0x20] sm:$0xff]
    %v8419 = vld [vmem:[%s2483 + $0x28] sm:$0xff]
    %v8420 = vld [vmem:[%s2483 + $0x30] sm:$0xff]
    %v8421 = vld [vmem:[%s2483 + $0x38] sm:$0xff]
    %v8422 = vld [vmem:[%s2483 + $0x40] sm:$0xff]
    %v8423 = vld [vmem:[%s2483 + $0x48] sm:$0xff]
    %v8424 = vld [vmem:[%s2483 + $0x50] sm:$0xff]
    %v8425 = vld [vmem:[%s2483 + $0x58] sm:$0xff]
    %v8426 = vld [vmem:[%s2483 + $0x60] sm:$0xff]
    %v8427 = vld [vmem:[%s2483 + $0x68] sm:$0xff]
    %v8428 = vld [vmem:[%s2483 + $0x70] sm:$0xff]
    %v8429 = vld [vmem:[%s2483 + $0x78] sm:$0xff]
    %v8430 = vld [vmem:[%s2483 + $0x80] sm:$0xff]
    %v8431 = vld [vmem:[%s2483 + $0x88] sm:$0xff]
    %v8432 = vld [vmem:[%s2483 + $0x90] sm:$0xff]
    %v8433 = vld [vmem:[%s2483 + $0x98] sm:$0xff]
    %v8434 = vld [vmem:[%s2483 + $0xa0] sm:$0xff]
    %v8435 = vld [vmem:[%s2483 + $0xa8] sm:$0xff]
    %v8436 = vld [vmem:[%s2483 + $0xb0] sm:$0xff]
    %v8437 = vld [vmem:[%s2483 + $0xb8] sm:$0xff]
    %v8438 = vld [vmem:[%s2483 + $0xc0] sm:$0xff]
    %v8439 = vld [vmem:[%s2483 + $0xc8] sm:$0xff]
    %v8440 = vld [vmem:[%s2483 + $0xd0] sm:$0xff]
    %v8441 = vld [vmem:[%s2483 + $0xd8] sm:$0xff]
    %v8442 = vld [vmem:[%s2483 + $0xe0] sm:$0xff]
    %v8443 = vld [vmem:[%s2483 + $0xe8] sm:$0xff]
    %v8444 = vld [vmem:[%s2483 + $0xf0] sm:$0xff]
    %v8445 = vld [vmem:[%s2483 + $0xf8] sm:$0xff]
    %v8446 = vld [vmem:[%s2516] ss:$8 sm:$0x3]
    %v8447 = vpack.c.bf16 %v8412, %v8410
    %v8448 = vpack.c.bf16 %v8413, %v8411
    %v8450 = vlaneseq
    %v8451 = vshrl.u32 %v8450, 7
    %v8452 = vsub.s32 0, %v8451
    %v8453 = vrot.slane %v8446, %v8452
    %v8454 = vlaneseq
    %v8455 = vshrl.u32 %v8454, 7
    %v8456 = vsub.s32 1, %v8455
    %v8457 = vrot.slane %v8446, %v8456
    %v8492 = vunpack.c.l.b16 %v8414
    %v8493 = vunpack.c.h.b16 %v8414
    %v8494 = vunpack.c.l.b16 %v8415
    %v8495 = vunpack.c.h.b16 %v8415
    %v8496 = vunpack.c.l.b16 %v8416
    %v8497 = vunpack.c.h.b16 %v8416
    %v8498 = vunpack.c.l.b16 %v8417
    %v8499 = vunpack.c.h.b16 %v8417
    %v8500 = vunpack.c.l.b16 %v8418
    %v8501 = vunpack.c.h.b16 %v8418
    %v8502 = vunpack.c.l.b16 %v8419
    %v8503 = vunpack.c.h.b16 %v8419
    %v8504 = vunpack.c.l.b16 %v8420
    %v8505 = vunpack.c.h.b16 %v8420
    %v8506 = vunpack.c.l.b16 %v8421
    %v8507 = vunpack.c.h.b16 %v8421
    %v8508 = vunpack.c.l.b16 %v8422
    %v8509 = vunpack.c.h.b16 %v8422
    %v8510 = vunpack.c.l.b16 %v8423
    %v8511 = vunpack.c.h.b16 %v8423
    %v8512 = vunpack.c.l.b16 %v8424
    %v8513 = vunpack.c.h.b16 %v8424
    %v8514 = vunpack.c.l.b16 %v8425
    %v8515 = vunpack.c.h.b16 %v8425
    %v8516 = vunpack.c.l.b16 %v8426
    %v8517 = vunpack.c.h.b16 %v8426
    %v8518 = vunpack.c.l.b16 %v8427
    %v8519 = vunpack.c.h.b16 %v8427
    %v8520 = vunpack.c.l.b16 %v8428
    %v8521 = vunpack.c.h.b16 %v8428
    %v8522 = vunpack.c.l.b16 %v8429
    %v8523 = vunpack.c.h.b16 %v8429
    %v8524 = vunpack.c.l.b16 %v8430
    %v8525 = vunpack.c.h.b16 %v8430
    %v8526 = vunpack.c.l.b16 %v8431
    %v8527 = vunpack.c.h.b16 %v8431
    %v8528 = vunpack.c.l.b16 %v8432
    %v8529 = vunpack.c.h.b16 %v8432
    %v8530 = vunpack.c.l.b16 %v8433
    %v8531 = vunpack.c.h.b16 %v8433
    %v8532 = vunpack.c.l.b16 %v8434
    %v8533 = vunpack.c.h.b16 %v8434
    %v8534 = vunpack.c.l.b16 %v8435
    %v8535 = vunpack.c.h.b16 %v8435
    %v8536 = vunpack.c.l.b16 %v8436
    %v8537 = vunpack.c.h.b16 %v8436
    %v8538 = vunpack.c.l.b16 %v8437
    %v8539 = vunpack.c.h.b16 %v8437
    %v8540 = vunpack.c.l.b16 %v8438
    %v8541 = vunpack.c.h.b16 %v8438
    %v8542 = vunpack.c.l.b16 %v8439
    %v8543 = vunpack.c.h.b16 %v8439
    %v8544 = vunpack.c.l.b16 %v8440
    %v8545 = vunpack.c.h.b16 %v8440
    %v8546 = vunpack.c.l.b16 %v8441
    %v8547 = vunpack.c.h.b16 %v8441
    %v8548 = vunpack.c.l.b16 %v8442
    %v8549 = vunpack.c.h.b16 %v8442
    %v8550 = vunpack.c.l.b16 %v8443
    %v8551 = vunpack.c.h.b16 %v8443
    %v8552 = vunpack.c.l.b16 %v8444
    %v8553 = vunpack.c.h.b16 %v8444
    %v8554 = vunpack.c.l.b16 %v8445
    %v8555 = vunpack.c.h.b16 %v8445
    %v8556 = vpack.c.b16 %v8494, %v8492
    %v8557 = vpack.c.b16 %v8495, %v8493
    %v8558 = vpack.c.b16 %v8498, %v8496
    %v8559 = vpack.c.b16 %v8499, %v8497
    %v8560 = vpack.c.b16 %v8502, %v8500
    %v8561 = vpack.c.b16 %v8503, %v8501
    %v8562 = vpack.c.b16 %v8506, %v8504
    %v8563 = vpack.c.b16 %v8507, %v8505
    %v8564 = vpack.c.b16 %v8510, %v8508
    %v8565 = vpack.c.b16 %v8511, %v8509
    %v8566 = vpack.c.b16 %v8514, %v8512
    %v8567 = vpack.c.b16 %v8515, %v8513
    %v8568 = vpack.c.b16 %v8518, %v8516
    %v8569 = vpack.c.b16 %v8519, %v8517
    %v8570 = vpack.c.b16 %v8522, %v8520
    %v8571 = vpack.c.b16 %v8523, %v8521
    %v8572 = vpack.c.b16 %v8526, %v8524
    %v8573 = vpack.c.b16 %v8527, %v8525
    %v8574 = vpack.c.b16 %v8530, %v8528
    %v8575 = vpack.c.b16 %v8531, %v8529
    %v8576 = vpack.c.b16 %v8534, %v8532
    %v8577 = vpack.c.b16 %v8535, %v8533
    %v8578 = vpack.c.b16 %v8538, %v8536
    %v8579 = vpack.c.b16 %v8539, %v8537
    %v8580 = vpack.c.b16 %v8542, %v8540
    %v8581 = vpack.c.b16 %v8543, %v8541
    %v8582 = vpack.c.b16 %v8546, %v8544
    %v8583 = vpack.c.b16 %v8547, %v8545
    %v8584 = vpack.c.b16 %v8550, %v8548
    %v8585 = vpack.c.b16 %v8551, %v8549
    %v8586 = vpack.c.b16 %v8554, %v8552
    %v8587 = vpack.c.b16 %v8555, %v8553
    %8620 = vmatprep.subr.bf16.mxu0 %v8557
    %8621 = vmatpush1.bf16.msra.mxu0 %v8556
    %8622 = vmatprep.subr.bf16.mxu0 %v8559
    %8623 = vmatpush1.bf16.msra.mxu0 %v8558
    %8624 = vmatprep.subr.bf16.mxu0 %v8561
    %8625 = vmatpush1.bf16.msra.mxu0 %v8560
    %8626 = vmatprep.subr.bf16.mxu0 %v8563
    %8627 = vmatpush1.bf16.msra.mxu0 %v8562
    %8628 = vmatprep.subr.bf16.mxu0 %v8565
    %8629 = vmatpush1.bf16.msra.mxu0 %v8564
    %8630 = vmatprep.subr.bf16.mxu0 %v8567
    %8631 = vmatpush1.bf16.msra.mxu0 %v8566
    %8632 = vmatprep.subr.bf16.mxu0 %v8569
    %8633 = vmatpush1.bf16.msra.mxu0 %v8568
    %8634 = vmatprep.subr.bf16.mxu0 %v8571
    %8635 = vmatpush1.bf16.msra.mxu0 %v8570
    %8636 = vmatprep.subr.bf16.mxu0 %v8573
    %8637 = vmatpush1.bf16.msra.mxu0 %v8572
    %8638 = vmatprep.subr.bf16.mxu0 %v8575
    %8639 = vmatpush1.bf16.msra.mxu0 %v8574
    %8640 = vmatprep.subr.bf16.mxu0 %v8577
    %8641 = vmatpush1.bf16.msra.mxu0 %v8576
    %8642 = vmatprep.subr.bf16.mxu0 %v8579
    %8643 = vmatpush1.bf16.msra.mxu0 %v8578
    %8644 = vmatprep.subr.bf16.mxu0 %v8581
    %8645 = vmatpush1.bf16.msra.mxu0 %v8580
    %8646 = vmatprep.subr.bf16.mxu0 %v8583
    %8647 = vmatpush1.bf16.msra.mxu0 %v8582
    %8648 = vmatprep.subr.bf16.mxu0 %v8585
    %8649 = vmatpush1.bf16.msra.mxu0 %v8584
    %8650 = vmatprep.subr.bf16.mxu0 %v8587
    %8651 = vmatpush1.bf16.msra.mxu0 %v8586
    %8652 = vmatprep.mubr.bf16.mxu0 %v8448
    %8653 = vmatmul.mubr.bf16.gmra.mrb[0].mxu0 %v8447
    %v8654 = vpop.f32.mrb[0].mxu0
    %v8655 = vadd.f32 %v8453, %v8654
    %v8656 = vpop.f32.mrb[0].mxu0
    %v8657 = vadd.f32 %v8457, %v8656
    %v8658 = vpop.f32.mrb[0].mxu0
    %v8659 = vadd.f32 %v8453, %v8658
    %v8660 = vpop.f32.mrb[0].mxu0
    %v8661 = vadd.f32 %v8457, %v8660
    %8662 = vdwg.mxu0
    %v8663 = vmul.f32 %v8655, 0.2
    %v8664 = vmul.f32 %v8657, 0.2
    %v8665 = vmul.f32 %v8659, 0.2
    %v8666 = vmul.f32 %v8661, 0.2
    %v8667 = vmax.f32 %v8655, %v8663
    %v8668 = vmax.f32 %v8657, %v8664
    %v8669 = vmax.f32 %v8659, %v8665
    %v8670 = vmax.f32 %v8661, %v8666
    %v8671 = vld [vmem:[%s2742] sm:$0xff]
    %v8672 = vld [vmem:[%s2742 + $0x8] sm:$0xff]
    %v8673 = vld [vmem:[%s2742 + $0x10] sm:$0xff]
    %v8674 = vld [vmem:[%s2742 + $0x18] sm:$0xff]
    %v8675 = vld [vmem:[%s2742 + $0x20] sm:$0xff]
    %v8676 = vld [vmem:[%s2742 + $0x28] sm:$0xff]
    %v8677 = vld [vmem:[%s2742 + $0x30] sm:$0xff]
    %v8678 = vld [vmem:[%s2742 + $0x38] sm:$0xff]
    %v8679 = vld [vmem:[%s2742 + $0x40] sm:$0xff]
    %v8680 = vld [vmem:[%s2742 + $0x48] sm:$0xff]
    %v8681 = vld [vmem:[%s2742 + $0x50] sm:$0xff]
    %v8682 = vld [vmem:[%s2742 + $0x58] sm:$0xff]
    %v8683 = vld [vmem:[%s2742 + $0x60] sm:$0xff]
    %v8684 = vld [vmem:[%s2742 + $0x68] sm:$0xff]
    %v8685 = vld [vmem:[%s2742 + $0x70] sm:$0xff]
    %v8686 = vld [vmem:[%s2742 + $0x78] sm:$0xff]
    %v8687 = vld [vmem:[%s2742 + $0x80] sm:$0xff]
    %v8688 = vld [vmem:[%s2742 + $0x88] sm:$0xff]
    %v8689 = vld [vmem:[%s2742 + $0x90] sm:$0xff]
    %v8690 = vld [vmem:[%s2742 + $0x98] sm:$0xff]
    %v8691 = vld [vmem:[%s2742 + $0xa0] sm:$0xff]
    %v8692 = vld [vmem:[%s2742 + $0xa8] sm:$0xff]
    %v8693 = vld [vmem:[%s2742 + $0xb0] sm:$0xff]
    %v8694 = vld [vmem:[%s2742 + $0xb8] sm:$0xff]
    %v8695 = vld [vmem:[%s2742 + $0xc0] sm:$0xff]
    %v8696 = vld [vmem:[%s2742 + $0xc8] sm:$0xff]
    %v8697 = vld [vmem:[%s2742 + $0xd0] sm:$0xff]
    %v8698 = vld [vmem:[%s2742 + $0xd8] sm:$0xff]
    %v8699 = vld [vmem:[%s2742 + $0xe0] sm:$0xff]
    %v8700 = vld [vmem:[%s2742 + $0xe8] sm:$0xff]
    %v8701 = vld [vmem:[%s2742 + $0xf0] sm:$0xff]
    %v8702 = vld [vmem:[%s2742 + $0xf8] sm:$0xff]
    %v8703 = vld [vmem:[%s2775] ss:$8 sm:$0x3]
    %v8704 = vpack.c.bf16 %v6936, %v6934
    %v8705 = vpack.c.bf16 %v6937, %v6935
    %v8707 = vlaneseq
    %v8708 = vshrl.u32 %v8707, 7
    %v8709 = vsub.s32 0, %v8708
    %v8710 = vrot.slane %v8703, %v8709
    %v8711 = vlaneseq
    %v8712 = vshrl.u32 %v8711, 7
    %v8713 = vsub.s32 1, %v8712
    %v8714 = vrot.slane %v8703, %v8713
    %v8749 = vunpack.c.l.b16 %v8671
    %v8750 = vunpack.c.h.b16 %v8671
    %v8751 = vunpack.c.l.b16 %v8672
    %v8752 = vunpack.c.h.b16 %v8672
    %v8753 = vunpack.c.l.b16 %v8673
    %v8754 = vunpack.c.h.b16 %v8673
    %v8755 = vunpack.c.l.b16 %v8674
    %v8756 = vunpack.c.h.b16 %v8674
    %v8757 = vunpack.c.l.b16 %v8675
    %v8758 = vunpack.c.h.b16 %v8675
    %v8759 = vunpack.c.l.b16 %v8676
    %v8760 = vunpack.c.h.b16 %v8676
    %v8761 = vunpack.c.l.b16 %v8677
    %v8762 = vunpack.c.h.b16 %v8677
    %v8763 = vunpack.c.l.b16 %v8678
    %v8764 = vunpack.c.h.b16 %v8678
    %v8765 = vunpack.c.l.b16 %v8679
    %v8766 = vunpack.c.h.b16 %v8679
    %v8767 = vunpack.c.l.b16 %v8680
    %v8768 = vunpack.c.h.b16 %v8680
    %v8769 = vunpack.c.l.b16 %v8681
    %v8770 = vunpack.c.h.b16 %v8681
    %v8771 = vunpack.c.l.b16 %v8682
    %v8772 = vunpack.c.h.b16 %v8682
    %v8773 = vunpack.c.l.b16 %v8683
    %v8774 = vunpack.c.h.b16 %v8683
    %v8775 = vunpack.c.l.b16 %v8684
    %v8776 = vunpack.c.h.b16 %v8684
    %v8777 = vunpack.c.l.b16 %v8685
    %v8778 = vunpack.c.h.b16 %v8685
    %v8779 = vunpack.c.l.b16 %v8686
    %v8780 = vunpack.c.h.b16 %v8686
    %v8781 = vunpack.c.l.b16 %v8687
    %v8782 = vunpack.c.h.b16 %v8687
    %v8783 = vunpack.c.l.b16 %v8688
    %v8784 = vunpack.c.h.b16 %v8688
    %v8785 = vunpack.c.l.b16 %v8689
    %v8786 = vunpack.c.h.b16 %v8689
    %v8787 = vunpack.c.l.b16 %v8690
    %v8788 = vunpack.c.h.b16 %v8690
    %v8789 = vunpack.c.l.b16 %v8691
    %v8790 = vunpack.c.h.b16 %v8691
    %v8791 = vunpack.c.l.b16 %v8692
    %v8792 = vunpack.c.h.b16 %v8692
    %v8793 = vunpack.c.l.b16 %v8693
    %v8794 = vunpack.c.h.b16 %v8693
    %v8795 = vunpack.c.l.b16 %v8694
    %v8796 = vunpack.c.h.b16 %v8694
    %v8797 = vunpack.c.l.b16 %v8695
    %v8798 = vunpack.c.h.b16 %v8695
    %v8799 = vunpack.c.l.b16 %v8696
    %v8800 = vunpack.c.h.b16 %v8696
    %v8801 = vunpack.c.l.b16 %v8697
    %v8802 = vunpack.c.h.b16 %v8697
    %v8803 = vunpack.c.l.b16 %v8698
    %v8804 = vunpack.c.h.b16 %v8698
    %v8805 = vunpack.c.l.b16 %v8699
    %v8806 = vunpack.c.h.b16 %v8699
    %v8807 = vunpack.c.l.b16 %v8700
    %v8808 = vunpack.c.h.b16 %v8700
    %v8809 = vunpack.c.l.b16 %v8701
    %v8810 = vunpack.c.h.b16 %v8701
    %v8811 = vunpack.c.l.b16 %v8702
    %v8812 = vunpack.c.h.b16 %v8702
    %v8813 = vpack.c.b16 %v8751, %v8749
    %v8814 = vpack.c.b16 %v8752, %v8750
    %v8815 = vpack.c.b16 %v8755, %v8753
    %v8816 = vpack.c.b16 %v8756, %v8754
    %v8817 = vpack.c.b16 %v8759, %v8757
    %v8818 = vpack.c.b16 %v8760, %v8758
    %v8819 = vpack.c.b16 %v8763, %v8761
    %v8820 = vpack.c.b16 %v8764, %v8762
    %v8821 = vpack.c.b16 %v8767, %v8765
    %v8822 = vpack.c.b16 %v8768, %v8766
    %v8823 = vpack.c.b16 %v8771, %v8769
    %v8824 = vpack.c.b16 %v8772, %v8770
    %v8825 = vpack.c.b16 %v8775, %v8773
    %v8826 = vpack.c.b16 %v8776, %v8774
    %v8827 = vpack.c.b16 %v8779, %v8777
    %v8828 = vpack.c.b16 %v8780, %v8778
    %v8829 = vpack.c.b16 %v8783, %v8781
    %v8830 = vpack.c.b16 %v8784, %v8782
    %v8831 = vpack.c.b16 %v8787, %v8785
    %v8832 = vpack.c.b16 %v8788, %v8786
    %v8833 = vpack.c.b16 %v8791, %v8789
    %v8834 = vpack.c.b16 %v8792, %v8790
    %v8835 = vpack.c.b16 %v8795, %v8793
    %v8836 = vpack.c.b16 %v8796, %v8794
    %v8837 = vpack.c.b16 %v8799, %v8797
    %v8838 = vpack.c.b16 %v8800, %v8798
    %v8839 = vpack.c.b16 %v8803, %v8801
    %v8840 = vpack.c.b16 %v8804, %v8802
    %v8841 = vpack.c.b16 %v8807, %v8805
    %v8842 = vpack.c.b16 %v8808, %v8806
    %v8843 = vpack.c.b16 %v8811, %v8809
    %v8844 = vpack.c.b16 %v8812, %v8810
    %8877 = vmatprep.subr.bf16.mxu0 %v8814
    %8878 = vmatpush1.bf16.msra.mxu0 %v8813
    %8879 = vmatprep.subr.bf16.mxu0 %v8816
    %8880 = vmatpush1.bf16.msra.mxu0 %v8815
    %8881 = vmatprep.subr.bf16.mxu0 %v8818
    %8882 = vmatpush1.bf16.msra.mxu0 %v8817
    %8883 = vmatprep.subr.bf16.mxu0 %v8820
    %8884 = vmatpush1.bf16.msra.mxu0 %v8819
    %8885 = vmatprep.subr.bf16.mxu0 %v8822
    %8886 = vmatpush1.bf16.msra.mxu0 %v8821
    %8887 = vmatprep.subr.bf16.mxu0 %v8824
    %8888 = vmatpush1.bf16.msra.mxu0 %v8823
    %8889 = vmatprep.subr.bf16.mxu0 %v8826
    %8890 = vmatpush1.bf16.msra.mxu0 %v8825
    %8891 = vmatprep.subr.bf16.mxu0 %v8828
    %8892 = vmatpush1.bf16.msra.mxu0 %v8827
    %8893 = vmatprep.subr.bf16.mxu0 %v8830
    %8894 = vmatpush1.bf16.msra.mxu0 %v8829
    %8895 = vmatprep.subr.bf16.mxu0 %v8832
    %8896 = vmatpush1.bf16.msra.mxu0 %v8831
    %8897 = vmatprep.subr.bf16.mxu0 %v8834
    %8898 = vmatpush1.bf16.msra.mxu0 %v8833
    %8899 = vmatprep.subr.bf16.mxu0 %v8836
    %8900 = vmatpush1.bf16.msra.mxu0 %v8835
    %8901 = vmatprep.subr.bf16.mxu0 %v8838
    %8902 = vmatpush1.bf16.msra.mxu0 %v8837
    %8903 = vmatprep.subr.bf16.mxu0 %v8840
    %8904 = vmatpush1.bf16.msra.mxu0 %v8839
    %8905 = vmatprep.subr.bf16.mxu0 %v8842
    %8906 = vmatpush1.bf16.msra.mxu0 %v8841
    %8907 = vmatprep.subr.bf16.mxu0 %v8844
    %8908 = vmatpush1.bf16.msra.mxu0 %v8843
    %8909 = vmatprep.mubr.bf16.mxu0 %v8705
    %8910 = vmatmul.mubr.bf16.gmra.mrb[0].mxu0 %v8704
    %v8911 = vpop.f32.mrb[0].mxu0
    %v8912 = vadd.f32 %v8710, %v8911
    %v8913 = vpop.f32.mrb[0].mxu0
    %v8914 = vadd.f32 %v8714, %v8913
    %v8915 = vpop.f32.mrb[0].mxu0
    %v8916 = vadd.f32 %v8710, %v8915
    %v8917 = vpop.f32.mrb[0].mxu0
    %v8918 = vadd.f32 %v8714, %v8917
    %8919 = vdwg.mxu0
    %v8920 = vmul.f32 %v8912, 0.2
    %v8921 = vmul.f32 %v8914, 0.2
    %v8922 = vmul.f32 %v8916, 0.2
    %v8923 = vmul.f32 %v8918, 0.2
    %v8924 = vmax.f32 %v8912, %v8920
    %v8925 = vmax.f32 %v8914, %v8921
    %v8926 = vmax.f32 %v8916, %v8922
    %v8927 = vmax.f32 %v8918, %v8923
    %v8928 = vld [vmem:[#allocation7] sm:$0xf]
    %v8929 = vld [vmem:[#allocation7 + $0x4] sm:$0xf]
    %v8930 = vld [vmem:[#allocation7 + $0x8] sm:$0xf]
    %v8931 = vld [vmem:[#allocation7 + $0xc] sm:$0xf]
    %v8932 = vld [vmem:[#allocation7 + $0x10] sm:$0xf]
    %v8933 = vld [vmem:[#allocation7 + $0x14] sm:$0xf]
    %v8934 = vld [vmem:[#allocation7 + $0x18] sm:$0xf]
    %v8935 = vld [vmem:[#allocation7 + $0x1c] sm:$0xf]
    %v8936 = vld [vmem:[#allocation7 + $0x20] sm:$0xf]
    %v8937 = vld [vmem:[#allocation7 + $0x24] sm:$0xf]
    %v8938 = vld [vmem:[#allocation7 + $0x28] sm:$0xf]
    %v8939 = vld [vmem:[#allocation7 + $0x2c] sm:$0xf]
    %v8940 = vld [vmem:[#allocation7 + $0x30] sm:$0xf]
    %v8941 = vld [vmem:[#allocation7 + $0x34] sm:$0xf]
    %v8942 = vld [vmem:[#allocation7 + $0x38] sm:$0xf]
    %v8943 = vld [vmem:[#allocation7 + $0x3c] sm:$0xf]
    %v8944 = vld [vmem:[#allocation7 + $0x40] sm:$0xf]
    %v8945 = vld [vmem:[#allocation7 + $0x44] sm:$0xf]
    %v8946 = vld [vmem:[#allocation7 + $0x48] sm:$0xf]
    %v8947 = vld [vmem:[#allocation7 + $0x4c] sm:$0xf]
    %v8948 = vld [vmem:[#allocation7 + $0x50] sm:$0xf]
    %v8949 = vld [vmem:[#allocation7 + $0x54] sm:$0xf]
    %v8950 = vld [vmem:[#allocation7 + $0x58] sm:$0xf]
    %v8951 = vld [vmem:[#allocation7 + $0x5c] sm:$0xf]
    %v8952 = vld [vmem:[#allocation7 + $0x60] sm:$0xf]
    %v8953 = vld [vmem:[#allocation7 + $0x64] sm:$0xf]
    %v8954 = vld [vmem:[#allocation7 + $0x68] sm:$0xf]
    %v8955 = vld [vmem:[#allocation7 + $0x6c] sm:$0xf]
    %v8956 = vld [vmem:[#allocation7 + $0x70] sm:$0xf]
    %v8957 = vld [vmem:[#allocation7 + $0x74] sm:$0xf]
    %v8958 = vld [vmem:[#allocation7 + $0x78] sm:$0xf]
    %v8959 = vld [vmem:[#allocation7 + $0x7c] sm:$0xf]
    %v8960 = vld [vmem:[%s8 + $0x4] ss:$0 sm:$0xff]
    %v8961 = vpack.c.bf16 %v8926, %v8924
    %v8962 = vpack.c.bf16 %v8927, %v8925
    %v8995 = vunpack.c.l.b16 %v8928
    %v8996 = vunpack.c.l.b16 %v8929
    %v8997 = vunpack.c.l.b16 %v8930
    %v8998 = vunpack.c.l.b16 %v8931
    %v8999 = vunpack.c.l.b16 %v8932
    %v9000 = vunpack.c.l.b16 %v8933
    %v9001 = vunpack.c.l.b16 %v8934
    %v9002 = vunpack.c.l.b16 %v8935
    %v9003 = vunpack.c.l.b16 %v8936
    %v9004 = vunpack.c.l.b16 %v8937
    %v9005 = vunpack.c.l.b16 %v8938
    %v9006 = vunpack.c.l.b16 %v8939
    %v9007 = vunpack.c.l.b16 %v8940
    %v9008 = vunpack.c.l.b16 %v8941
    %v9009 = vunpack.c.l.b16 %v8942
    %v9010 = vunpack.c.l.b16 %v8943
    %v9011 = vunpack.c.l.b16 %v8944
    %v9012 = vunpack.c.l.b16 %v8945
    %v9013 = vunpack.c.l.b16 %v8946
    %v9014 = vunpack.c.l.b16 %v8947
    %v9015 = vunpack.c.l.b16 %v8948
    %v9016 = vunpack.c.l.b16 %v8949
    %v9017 = vunpack.c.l.b16 %v8950
    %v9018 = vunpack.c.l.b16 %v8951
    %v9019 = vunpack.c.l.b16 %v8952
    %v9020 = vunpack.c.l.b16 %v8953
    %v9021 = vunpack.c.l.b16 %v8954
    %v9022 = vunpack.c.l.b16 %v8955
    %v9023 = vunpack.c.l.b16 %v8956
    %v9024 = vunpack.c.l.b16 %v8957
    %v9025 = vunpack.c.l.b16 %v8958
    %v9026 = vunpack.c.l.b16 %v8959
    %v9027 = vpack.c.b16 %v8996, %v8995
    %v9028 = vpack.c.b16 %v8998, %v8997
    %v9029 = vpack.c.b16 %v9000, %v8999
    %v9030 = vpack.c.b16 %v9002, %v9001
    %v9031 = vpack.c.b16 %v9004, %v9003
    %v9032 = vpack.c.b16 %v9006, %v9005
    %v9033 = vpack.c.b16 %v9008, %v9007
    %v9034 = vpack.c.b16 %v9010, %v9009
    %v9035 = vpack.c.b16 %v9012, %v9011
    %v9036 = vpack.c.b16 %v9014, %v9013
    %v9037 = vpack.c.b16 %v9016, %v9015
    %v9038 = vpack.c.b16 %v9018, %v9017
    %v9039 = vpack.c.b16 %v9020, %v9019
    %v9040 = vpack.c.b16 %v9022, %v9021
    %v9041 = vpack.c.b16 %v9024, %v9023
    %v9042 = vpack.c.b16 %v9026, %v9025
    %9059 = vmatprep.subr.bf16.mxu0 0
    %9060 = vmatpush1.bf16.msra.mxu0 %v9027
    %9061 = vmatprep.subr.bf16.mxu0 0
    %9062 = vmatpush1.bf16.msra.mxu0 %v9028
    %9063 = vmatprep.subr.bf16.mxu0 0
    %9064 = vmatpush1.bf16.msra.mxu0 %v9029
    %9065 = vmatprep.subr.bf16.mxu0 0
    %9066 = vmatpush1.bf16.msra.mxu0 %v9030
    %9067 = vmatprep.subr.bf16.mxu0 0
    %9068 = vmatpush1.bf16.msra.mxu0 %v9031
    %9069 = vmatprep.subr.bf16.mxu0 0
    %9070 = vmatpush1.bf16.msra.mxu0 %v9032
    %9071 = vmatprep.subr.bf16.mxu0 0
    %9072 = vmatpush1.bf16.msra.mxu0 %v9033
    %9073 = vmatprep.subr.bf16.mxu0 0
    %9074 = vmatpush1.bf16.msra.mxu0 %v9034
    %9075 = vmatprep.subr.bf16.mxu0 0
    %9076 = vmatpush1.bf16.msra.mxu0 %v9035
    %9077 = vmatprep.subr.bf16.mxu0 0
    %9078 = vmatpush1.bf16.msra.mxu0 %v9036
    %9079 = vmatprep.subr.bf16.mxu0 0
    %9080 = vmatpush1.bf16.msra.mxu0 %v9037
    %9081 = vmatprep.subr.bf16.mxu0 0
    %9082 = vmatpush1.bf16.msra.mxu0 %v9038
    %9083 = vmatprep.subr.bf16.mxu0 0
    %9084 = vmatpush1.bf16.msra.mxu0 %v9039
    %9085 = vmatprep.subr.bf16.mxu0 0
    %9086 = vmatpush1.bf16.msra.mxu0 %v9040
    %9087 = vmatprep.subr.bf16.mxu0 0
    %9088 = vmatpush1.bf16.msra.mxu0 %v9041
    %9089 = vmatprep.subr.bf16.mxu0 0
    %9090 = vmatpush1.bf16.msra.mxu0 %v9042
    %9091 = vmatprep.mubr.bf16.mxu0 %v8962
    %9092 = vmatmul.mubr.bf16.gmra.mrb[0].mxu0 %v8961
    %v9093 = vpop.f32.mrb[0].mxu0
    %v9094 = vadd.f32 %v8960, %v9093
    %v9095 = vpop.f32.mrb[0].mxu0
    %v9096 = vpop.f32.mrb[0].mxu0
    %v9097 = vadd.f32 %v8960, %v9096
    %v9098 = vpop.f32.mrb[0].mxu0
    %9099 = vdwg.mxu0
    %9100 = vst [vmem:[%s16] sm:$0xff] %v9094
    %9101 = vst [vmem:[%s17] sm:$0xff] %v9097
    %v9102 = vld [vmem:[%s3175] sm:$0xff]
    %v9103 = vld [vmem:[%s3175 + $0x8] sm:$0xff]
    %v9104 = vld [vmem:[%s3175 + $0x10] sm:$0xff]
    %v9105 = vld [vmem:[%s3175 + $0x18] sm:$0xff]
    %v9106 = vld [vmem:[%s3175 + $0x20] sm:$0xff]
    %v9107 = vld [vmem:[%s3175 + $0x28] sm:$0xff]
    %v9108 = vld [vmem:[%s3175 + $0x30] sm:$0xff]
    %v9109 = vld [vmem:[%s3175 + $0x38] sm:$0xff]
    %v9110 = vld [vmem:[%s3175 + $0x40] sm:$0xff]
    %v9111 = vld [vmem:[%s3175 + $0x48] sm:$0xff]
    %v9112 = vld [vmem:[%s3175 + $0x50] sm:$0xff]
    %v9113 = vld [vmem:[%s3175 + $0x58] sm:$0xff]
    %v9114 = vld [vmem:[%s3175 + $0x60] sm:$0xff]
    %v9115 = vld [vmem:[%s3175 + $0x68] sm:$0xff]
    %v9116 = vld [vmem:[%s3175 + $0x70] sm:$0xff]
    %v9117 = vld [vmem:[%s3175 + $0x78] sm:$0xff]
    %v9118 = vld [vmem:[%s3175 + $0x80] sm:$0xff]
    %v9119 = vld [vmem:[%s3175 + $0x88] sm:$0xff]
    %v9120 = vld [vmem:[%s3175 + $0x90] sm:$0xff]
    %v9121 = vld [vmem:[%s3175 + $0x98] sm:$0xff]
    %v9122 = vld [vmem:[%s3175 + $0xa0] sm:$0xff]
    %v9123 = vld [vmem:[%s3175 + $0xa8] sm:$0xff]
    %v9124 = vld [vmem:[%s3175 + $0xb0] sm:$0xff]
    %v9125 = vld [vmem:[%s3175 + $0xb8] sm:$0xff]
    %v9126 = vld [vmem:[%s3175 + $0xc0] sm:$0xff]
    %v9127 = vld [vmem:[%s3175 + $0xc8] sm:$0xff]
    %v9128 = vld [vmem:[%s3175 + $0xd0] sm:$0xff]
    %v9129 = vld [vmem:[%s3175 + $0xd8] sm:$0xff]
    %v9130 = vld [vmem:[%s3175 + $0xe0] sm:$0xff]
    %v9131 = vld [vmem:[%s3175 + $0xe8] sm:$0xff]
    %v9132 = vld [vmem:[%s3175 + $0xf0] sm:$0xff]
    %v9133 = vld [vmem:[%s3175 + $0xf8] sm:$0xff]
    %v9134 = vld [vmem:[%s3208] ss:$8 sm:$0x3]
    %v9136 = vlaneseq
    %v9137 = vshrl.u32 %v9136, 7
    %v9138 = vsub.s32 0, %v9137
    %v9139 = vrot.slane %v9134, %v9138
    %v9140 = vlaneseq
    %v9141 = vshrl.u32 %v9140, 7
    %v9142 = vsub.s32 1, %v9141
    %v9143 = vrot.slane %v9134, %v9142
    %v9178 = vunpack.c.l.b16 %v9102
    %v9179 = vunpack.c.h.b16 %v9102
    %v9180 = vunpack.c.l.b16 %v9103
    %v9181 = vunpack.c.h.b16 %v9103
    %v9182 = vunpack.c.l.b16 %v9104
    %v9183 = vunpack.c.h.b16 %v9104
    %v9184 = vunpack.c.l.b16 %v9105
    %v9185 = vunpack.c.h.b16 %v9105
    %v9186 = vunpack.c.l.b16 %v9106
    %v9187 = vunpack.c.h.b16 %v9106
    %v9188 = vunpack.c.l.b16 %v9107
    %v9189 = vunpack.c.h.b16 %v9107
    %v9190 = vunpack.c.l.b16 %v9108
    %v9191 = vunpack.c.h.b16 %v9108
    %v9192 = vunpack.c.l.b16 %v9109
    %v9193 = vunpack.c.h.b16 %v9109
    %v9194 = vunpack.c.l.b16 %v9110
    %v9195 = vunpack.c.h.b16 %v9110
    %v9196 = vunpack.c.l.b16 %v9111
    %v9197 = vunpack.c.h.b16 %v9111
    %v9198 = vunpack.c.l.b16 %v9112
    %v9199 = vunpack.c.h.b16 %v9112
    %v9200 = vunpack.c.l.b16 %v9113
    %v9201 = vunpack.c.h.b16 %v9113
    %v9202 = vunpack.c.l.b16 %v9114
    %v9203 = vunpack.c.h.b16 %v9114
    %v9204 = vunpack.c.l.b16 %v9115
    %v9205 = vunpack.c.h.b16 %v9115
    %v9206 = vunpack.c.l.b16 %v9116
    %v9207 = vunpack.c.h.b16 %v9116
    %v9208 = vunpack.c.l.b16 %v9117
    %v9209 = vunpack.c.h.b16 %v9117
    %v9210 = vunpack.c.l.b16 %v9118
    %v9211 = vunpack.c.h.b16 %v9118
    %v9212 = vunpack.c.l.b16 %v9119
    %v9213 = vunpack.c.h.b16 %v9119
    %v9214 = vunpack.c.l.b16 %v9120
    %v9215 = vunpack.c.h.b16 %v9120
    %v9216 = vunpack.c.l.b16 %v9121
    %v9217 = vunpack.c.h.b16 %v9121
    %v9218 = vunpack.c.l.b16 %v9122
    %v9219 = vunpack.c.h.b16 %v9122
    %v9220 = vunpack.c.l.b16 %v9123
    %v9221 = vunpack.c.h.b16 %v9123
    %v9222 = vunpack.c.l.b16 %v9124
    %v9223 = vunpack.c.h.b16 %v9124
    %v9224 = vunpack.c.l.b16 %v9125
    %v9225 = vunpack.c.h.b16 %v9125
    %v9226 = vunpack.c.l.b16 %v9126
    %v9227 = vunpack.c.h.b16 %v9126
    %v9228 = vunpack.c.l.b16 %v9127
    %v9229 = vunpack.c.h.b16 %v9127
    %v9230 = vunpack.c.l.b16 %v9128
    %v9231 = vunpack.c.h.b16 %v9128
    %v9232 = vunpack.c.l.b16 %v9129
    %v9233 = vunpack.c.h.b16 %v9129
    %v9234 = vunpack.c.l.b16 %v9130
    %v9235 = vunpack.c.h.b16 %v9130
    %v9236 = vunpack.c.l.b16 %v9131
    %v9237 = vunpack.c.h.b16 %v9131
    %v9238 = vunpack.c.l.b16 %v9132
    %v9239 = vunpack.c.h.b16 %v9132
    %v9240 = vunpack.c.l.b16 %v9133
    %v9241 = vunpack.c.h.b16 %v9133
    %v9242 = vpack.c.b16 %v9180, %v9178
    %v9243 = vpack.c.b16 %v9181, %v9179
    %v9244 = vpack.c.b16 %v9184, %v9182
    %v9245 = vpack.c.b16 %v9185, %v9183
    %v9246 = vpack.c.b16 %v9188, %v9186
    %v9247 = vpack.c.b16 %v9189, %v9187
    %v9248 = vpack.c.b16 %v9192, %v9190
    %v9249 = vpack.c.b16 %v9193, %v9191
    %v9250 = vpack.c.b16 %v9196, %v9194
    %v9251 = vpack.c.b16 %v9197, %v9195
    %v9252 = vpack.c.b16 %v9200, %v9198
    %v9253 = vpack.c.b16 %v9201, %v9199
    %v9254 = vpack.c.b16 %v9204, %v9202
    %v9255 = vpack.c.b16 %v9205, %v9203
    %v9256 = vpack.c.b16 %v9208, %v9206
    %v9257 = vpack.c.b16 %v9209, %v9207
    %v9258 = vpack.c.b16 %v9212, %v9210
    %v9259 = vpack.c.b16 %v9213, %v9211
    %v9260 = vpack.c.b16 %v9216, %v9214
    %v9261 = vpack.c.b16 %v9217, %v9215
    %v9262 = vpack.c.b16 %v9220, %v9218
    %v9263 = vpack.c.b16 %v9221, %v9219
    %v9264 = vpack.c.b16 %v9224, %v9222
    %v9265 = vpack.c.b16 %v9225, %v9223
    %v9266 = vpack.c.b16 %v9228, %v9226
    %v9267 = vpack.c.b16 %v9229, %v9227
    %v9268 = vpack.c.b16 %v9232, %v9230
    %v9269 = vpack.c.b16 %v9233, %v9231
    %v9270 = vpack.c.b16 %v9236, %v9234
    %v9271 = vpack.c.b16 %v9237, %v9235
    %v9272 = vpack.c.b16 %v9240, %v9238
    %v9273 = vpack.c.b16 %v9241, %v9239
    %9306 = vmatprep.subr.bf16.mxu0 %v9243
    %9307 = vmatpush1.bf16.msra.mxu0 %v9242
    %9308 = vmatprep.subr.bf16.mxu0 %v9245
    %9309 = vmatpush1.bf16.msra.mxu0 %v9244
    %9310 = vmatprep.subr.bf16.mxu0 %v9247
    %9311 = vmatpush1.bf16.msra.mxu0 %v9246
    %9312 = vmatprep.subr.bf16.mxu0 %v9249
    %9313 = vmatpush1.bf16.msra.mxu0 %v9248
    %9314 = vmatprep.subr.bf16.mxu0 %v9251
    %9315 = vmatpush1.bf16.msra.mxu0 %v9250
    %9316 = vmatprep.subr.bf16.mxu0 %v9253
    %9317 = vmatpush1.bf16.msra.mxu0 %v9252
    %9318 = vmatprep.subr.bf16.mxu0 %v9255
    %9319 = vmatpush1.bf16.msra.mxu0 %v9254
    %9320 = vmatprep.subr.bf16.mxu0 %v9257
    %9321 = vmatpush1.bf16.msra.mxu0 %v9256
    %9322 = vmatprep.subr.bf16.mxu0 %v9259
    %9323 = vmatpush1.bf16.msra.mxu0 %v9258
    %9324 = vmatprep.subr.bf16.mxu0 %v9261
    %9325 = vmatpush1.bf16.msra.mxu0 %v9260
    %9326 = vmatprep.subr.bf16.mxu0 %v9263
    %9327 = vmatpush1.bf16.msra.mxu0 %v9262
    %9328 = vmatprep.subr.bf16.mxu0 %v9265
    %9329 = vmatpush1.bf16.msra.mxu0 %v9264
    %9330 = vmatprep.subr.bf16.mxu0 %v9267
    %9331 = vmatpush1.bf16.msra.mxu0 %v9266
    %9332 = vmatprep.subr.bf16.mxu0 %v9269
    %9333 = vmatpush1.bf16.msra.mxu0 %v9268
    %9334 = vmatprep.subr.bf16.mxu0 %v9271
    %9335 = vmatpush1.bf16.msra.mxu0 %v9270
    %9336 = vmatprep.subr.bf16.mxu0 %v9273
    %9337 = vmatpush1.bf16.msra.mxu0 %v9272
    %9338 = vmatprep.mubr.bf16.mxu0 %v8705
    %9339 = vmatmul.mubr.bf16.gmra.mrb[0].mxu0 %v8704
    %v9340 = vpop.f32.mrb[0].mxu0
    %v9341 = vadd.f32 %v9139, %v9340
    %v9342 = vpop.f32.mrb[0].mxu0
    %v9343 = vadd.f32 %v9143, %v9342
    %v9344 = vpop.f32.mrb[0].mxu0
    %v9345 = vadd.f32 %v9139, %v9344
    %v9346 = vpop.f32.mrb[0].mxu0
    %v9347 = vadd.f32 %v9143, %v9346
    %9348 = vdwg.mxu0
    %v9349 = vmul.f32 %v9341, 0.2
    %v9350 = vmul.f32 %v9343, 0.2
    %v9351 = vmul.f32 %v9345, 0.2
    %v9352 = vmul.f32 %v9347, 0.2
    %v9353 = vmax.f32 %v9341, %v9349
    %v9354 = vmax.f32 %v9343, %v9350
    %v9355 = vmax.f32 %v9345, %v9351
    %v9356 = vmax.f32 %v9347, %v9352
    %v9357 = vld [vmem:[%s3432] sm:$0xf]
    %v9358 = vld [vmem:[%s3432 + $0x4] sm:$0xf]
    %v9359 = vld [vmem:[%s3432 + $0x8] sm:$0xf]
    %v9360 = vld [vmem:[%s3432 + $0xc] sm:$0xf]
    %v9361 = vld [vmem:[%s3432 + $0x10] sm:$0xf]
    %v9362 = vld [vmem:[%s3432 + $0x14] sm:$0xf]
    %v9363 = vld [vmem:[%s3432 + $0x18] sm:$0xf]
    %v9364 = vld [vmem:[%s3432 + $0x1c] sm:$0xf]
    %v9365 = vld [vmem:[%s3432 + $0x20] sm:$0xf]
    %v9366 = vld [vmem:[%s3432 + $0x24] sm:$0xf]
    %v9367 = vld [vmem:[%s3432 + $0x28] sm:$0xf]
    %v9368 = vld [vmem:[%s3432 + $0x2c] sm:$0xf]
    %v9369 = vld [vmem:[%s3432 + $0x30] sm:$0xf]
    %v9370 = vld [vmem:[%s3432 + $0x34] sm:$0xf]
    %v9371 = vld [vmem:[%s3432 + $0x38] sm:$0xf]
    %v9372 = vld [vmem:[%s3432 + $0x3c] sm:$0xf]
    %v9373 = vld [vmem:[%s3432 + $0x40] sm:$0xf]
    %v9374 = vld [vmem:[%s3432 + $0x44] sm:$0xf]
    %v9375 = vld [vmem:[%s3432 + $0x48] sm:$0xf]
    %v9376 = vld [vmem:[%s3432 + $0x4c] sm:$0xf]
    %v9377 = vld [vmem:[%s3432 + $0x50] sm:$0xf]
    %v9378 = vld [vmem:[%s3432 + $0x54] sm:$0xf]
    %v9379 = vld [vmem:[%s3432 + $0x58] sm:$0xf]
    %v9380 = vld [vmem:[%s3432 + $0x5c] sm:$0xf]
    %v9381 = vld [vmem:[%s3432 + $0x60] sm:$0xf]
    %v9382 = vld [vmem:[%s3432 + $0x64] sm:$0xf]
    %v9383 = vld [vmem:[%s3432 + $0x68] sm:$0xf]
    %v9384 = vld [vmem:[%s3432 + $0x6c] sm:$0xf]
    %v9385 = vld [vmem:[%s3432 + $0x70] sm:$0xf]
    %v9386 = vld [vmem:[%s3432 + $0x74] sm:$0xf]
    %v9387 = vld [vmem:[%s3432 + $0x78] sm:$0xf]
    %v9388 = vld [vmem:[%s3432 + $0x7c] sm:$0xf]
    %v9389 = vld [vmem:[%s8 + $0x6] ss:$0 sm:$0xff]
    %v9390 = vpack.c.bf16 %v9355, %v9353
    %v9391 = vpack.c.bf16 %v9356, %v9354
    %v9424 = vunpack.c.l.b16 %v9357
    %v9425 = vunpack.c.l.b16 %v9358
    %v9426 = vunpack.c.l.b16 %v9359
    %v9427 = vunpack.c.l.b16 %v9360
    %v9428 = vunpack.c.l.b16 %v9361
    %v9429 = vunpack.c.l.b16 %v9362
    %v9430 = vunpack.c.l.b16 %v9363
    %v9431 = vunpack.c.l.b16 %v9364
    %v9432 = vunpack.c.l.b16 %v9365
    %v9433 = vunpack.c.l.b16 %v9366
    %v9434 = vunpack.c.l.b16 %v9367
    %v9435 = vunpack.c.l.b16 %v9368
    %v9436 = vunpack.c.l.b16 %v9369
    %v9437 = vunpack.c.l.b16 %v9370
    %v9438 = vunpack.c.l.b16 %v9371
    %v9439 = vunpack.c.l.b16 %v9372
    %v9440 = vunpack.c.l.b16 %v9373
    %v9441 = vunpack.c.l.b16 %v9374
    %v9442 = vunpack.c.l.b16 %v9375
    %v9443 = vunpack.c.l.b16 %v9376
    %v9444 = vunpack.c.l.b16 %v9377
    %v9445 = vunpack.c.l.b16 %v9378
    %v9446 = vunpack.c.l.b16 %v9379
    %v9447 = vunpack.c.l.b16 %v9380
    %v9448 = vunpack.c.l.b16 %v9381
    %v9449 = vunpack.c.l.b16 %v9382
    %v9450 = vunpack.c.l.b16 %v9383
    %v9451 = vunpack.c.l.b16 %v9384
    %v9452 = vunpack.c.l.b16 %v9385
    %v9453 = vunpack.c.l.b16 %v9386
    %v9454 = vunpack.c.l.b16 %v9387
    %v9455 = vunpack.c.l.b16 %v9388
    %v9456 = vpack.c.b16 %v9425, %v9424
    %v9457 = vpack.c.b16 %v9427, %v9426
    %v9458 = vpack.c.b16 %v9429, %v9428
    %v9459 = vpack.c.b16 %v9431, %v9430
    %v9460 = vpack.c.b16 %v9433, %v9432
    %v9461 = vpack.c.b16 %v9435, %v9434
    %v9462 = vpack.c.b16 %v9437, %v9436
    %v9463 = vpack.c.b16 %v9439, %v9438
    %v9464 = vpack.c.b16 %v9441, %v9440
    %v9465 = vpack.c.b16 %v9443, %v9442
    %v9466 = vpack.c.b16 %v9445, %v9444
    %v9467 = vpack.c.b16 %v9447, %v9446
    %v9468 = vpack.c.b16 %v9449, %v9448
    %v9469 = vpack.c.b16 %v9451, %v9450
    %v9470 = vpack.c.b16 %v9453, %v9452
    %v9471 = vpack.c.b16 %v9455, %v9454
    %9488 = vmatprep.subr.bf16.mxu0 0
    %9489 = vmatpush1.bf16.msra.mxu0 %v9456
    %9490 = vmatprep.subr.bf16.mxu0 0
    %9491 = vmatpush1.bf16.msra.mxu0 %v9457
    %9492 = vmatprep.subr.bf16.mxu0 0
    %9493 = vmatpush1.bf16.msra.mxu0 %v9458
    %9494 = vmatprep.subr.bf16.mxu0 0
    %9495 = vmatpush1.bf16.msra.mxu0 %v9459
    %9496 = vmatprep.subr.bf16.mxu0 0
    %9497 = vmatpush1.bf16.msra.mxu0 %v9460
    %9498 = vmatprep.subr.bf16.mxu0 0
    %9499 = vmatpush1.bf16.msra.mxu0 %v9461
    %9500 = vmatprep.subr.bf16.mxu0 0
    %9501 = vmatpush1.bf16.msra.mxu0 %v9462
    %9502 = vmatprep.subr.bf16.mxu0 0
    %9503 = vmatpush1.bf16.msra.mxu0 %v9463
    %9504 = vmatprep.subr.bf16.mxu0 0
    %9505 = vmatpush1.bf16.msra.mxu0 %v9464
    %9506 = vmatprep.subr.bf16.mxu0 0
    %9507 = vmatpush1.bf16.msra.mxu0 %v9465
    %9508 = vmatprep.subr.bf16.mxu0 0
    %9509 = vmatpush1.bf16.msra.mxu0 %v9466
    %9510 = vmatprep.subr.bf16.mxu0 0
    %9511 = vmatpush1.bf16.msra.mxu0 %v9467
    %9512 = vmatprep.subr.bf16.mxu0 0
    %9513 = vmatpush1.bf16.msra.mxu0 %v9468
    %9514 = vmatprep.subr.bf16.mxu0 0
    %9515 = vmatpush1.bf16.msra.mxu0 %v9469
    %9516 = vmatprep.subr.bf16.mxu0 0
    %9517 = vmatpush1.bf16.msra.mxu0 %v9470
    %9518 = vmatprep.subr.bf16.mxu0 0
    %9519 = vmatpush1.bf16.msra.mxu0 %v9471
    %9520 = vmatprep.mubr.bf16.mxu0 %v9391
    %9521 = vmatmul.mubr.bf16.gmra.mrb[0].mxu0 %v9390
    %v9522 = vpop.f32.mrb[0].mxu0
    %v9523 = vadd.f32 %v9389, %v9522
    %v9524 = vpop.f32.mrb[0].mxu0
    %v9525 = vpop.f32.mrb[0].mxu0
    %v9526 = vadd.f32 %v9389, %v9525
    %v9527 = vpop.f32.mrb[0].mxu0
    %9528 = vdwg.mxu0
    %9529 = vst [vmem:[%s16 + $0x8] sm:$0xff] %v9523
    %9530 = vst [vmem:[%s17 + $0x8] sm:$0xff] %v9526
    %v9531 = vld [vmem:[%s3607] sm:$0xff]
    %v9532 = vld [vmem:[%s3607 + $0x8] sm:$0xff]
    %v9533 = vld [vmem:[%s3607 + $0x10] sm:$0xff]
    %v9534 = vld [vmem:[%s3607 + $0x18] sm:$0xff]
    %v9535 = vld [vmem:[%s3607 + $0x20] sm:$0xff]
    %v9536 = vld [vmem:[%s3607 + $0x28] sm:$0xff]
    %v9537 = vld [vmem:[%s3607 + $0x30] sm:$0xff]
    %v9538 = vld [vmem:[%s3607 + $0x38] sm:$0xff]
    %v9539 = vld [vmem:[%s3607 + $0x40] sm:$0xff]
    %v9540 = vld [vmem:[%s3607 + $0x48] sm:$0xff]
    %v9541 = vld [vmem:[%s3607 + $0x50] sm:$0xff]
    %v9542 = vld [vmem:[%s3607 + $0x58] sm:$0xff]
    %v9543 = vld [vmem:[%s3607 + $0x60] sm:$0xff]
    %v9544 = vld [vmem:[%s3607 + $0x68] sm:$0xff]
    %v9545 = vld [vmem:[%s3607 + $0x70] sm:$0xff]
    %v9546 = vld [vmem:[%s3607 + $0x78] sm:$0xff]
    %v9547 = vld [vmem:[%s3607 + $0x80] sm:$0xff]
    %v9548 = vld [vmem:[%s3607 + $0x88] sm:$0xff]
    %v9549 = vld [vmem:[%s3607 + $0x90] sm:$0xff]
    %v9550 = vld [vmem:[%s3607 + $0x98] sm:$0xff]
    %v9551 = vld [vmem:[%s3607 + $0xa0] sm:$0xff]
    %v9552 = vld [vmem:[%s3607 + $0xa8] sm:$0xff]
    %v9553 = vld [vmem:[%s3607 + $0xb0] sm:$0xff]
    %v9554 = vld [vmem:[%s3607 + $0xb8] sm:$0xff]
    %v9555 = vld [vmem:[%s3607 + $0xc0] sm:$0xff]
    %v9556 = vld [vmem:[%s3607 + $0xc8] sm:$0xff]
    %v9557 = vld [vmem:[%s3607 + $0xd0] sm:$0xff]
    %v9558 = vld [vmem:[%s3607 + $0xd8] sm:$0xff]
    %v9559 = vld [vmem:[%s3607 + $0xe0] sm:$0xff]
    %v9560 = vld [vmem:[%s3607 + $0xe8] sm:$0xff]
    %v9561 = vld [vmem:[%s3607 + $0xf0] sm:$0xff]
    %v9562 = vld [vmem:[%s3607 + $0xf8] sm:$0xff]
    %v9563 = vld [vmem:[%s3640] ss:$8 sm:$0x3]
    %v9564 = vpack.c.bf16 %v8669, %v8667
    %v9565 = vpack.c.bf16 %v8670, %v8668
    %v9567 = vlaneseq
    %v9568 = vshrl.u32 %v9567, 7
    %v9569 = vsub.s32 0, %v9568
    %v9570 = vrot.slane %v9563, %v9569
    %v9571 = vlaneseq
    %v9572 = vshrl.u32 %v9571, 7
    %v9573 = vsub.s32 1, %v9572
    %v9574 = vrot.slane %v9563, %v9573
    %v9609 = vunpack.c.l.b16 %v9531
    %v9610 = vunpack.c.h.b16 %v9531
    %v9611 = vunpack.c.l.b16 %v9532
    %v9612 = vunpack.c.h.b16 %v9532
    %v9613 = vunpack.c.l.b16 %v9533
    %v9614 = vunpack.c.h.b16 %v9533
    %v9615 = vunpack.c.l.b16 %v9534
    %v9616 = vunpack.c.h.b16 %v9534
    %v9617 = vunpack.c.l.b16 %v9535
    %v9618 = vunpack.c.h.b16 %v9535
    %v9619 = vunpack.c.l.b16 %v9536
    %v9620 = vunpack.c.h.b16 %v9536
    %v9621 = vunpack.c.l.b16 %v9537
    %v9622 = vunpack.c.h.b16 %v9537
    %v9623 = vunpack.c.l.b16 %v9538
    %v9624 = vunpack.c.h.b16 %v9538
    %v9625 = vunpack.c.l.b16 %v9539
    %v9626 = vunpack.c.h.b16 %v9539
    %v9627 = vunpack.c.l.b16 %v9540
    %v9628 = vunpack.c.h.b16 %v9540
    %v9629 = vunpack.c.l.b16 %v9541
    %v9630 = vunpack.c.h.b16 %v9541
    %v9631 = vunpack.c.l.b16 %v9542
    %v9632 = vunpack.c.h.b16 %v9542
    %v9633 = vunpack.c.l.b16 %v9543
    %v9634 = vunpack.c.h.b16 %v9543
    %v9635 = vunpack.c.l.b16 %v9544
    %v9636 = vunpack.c.h.b16 %v9544
    %v9637 = vunpack.c.l.b16 %v9545
    %v9638 = vunpack.c.h.b16 %v9545
    %v9639 = vunpack.c.l.b16 %v9546
    %v9640 = vunpack.c.h.b16 %v9546
    %v9641 = vunpack.c.l.b16 %v9547
    %v9642 = vunpack.c.h.b16 %v9547
    %v9643 = vunpack.c.l.b16 %v9548
    %v9644 = vunpack.c.h.b16 %v9548
    %v9645 = vunpack.c.l.b16 %v9549
    %v9646 = vunpack.c.h.b16 %v9549
    %v9647 = vunpack.c.l.b16 %v9550
    %v9648 = vunpack.c.h.b16 %v9550
    %v9649 = vunpack.c.l.b16 %v9551
    %v9650 = vunpack.c.h.b16 %v9551
    %v9651 = vunpack.c.l.b16 %v9552
    %v9652 = vunpack.c.h.b16 %v9552
    %v9653 = vunpack.c.l.b16 %v9553
    %v9654 = vunpack.c.h.b16 %v9553
    %v9655 = vunpack.c.l.b16 %v9554
    %v9656 = vunpack.c.h.b16 %v9554
    %v9657 = vunpack.c.l.b16 %v9555
    %v9658 = vunpack.c.h.b16 %v9555
    %v9659 = vunpack.c.l.b16 %v9556
    %v9660 = vunpack.c.h.b16 %v9556
    %v9661 = vunpack.c.l.b16 %v9557
    %v9662 = vunpack.c.h.b16 %v9557
    %v9663 = vunpack.c.l.b16 %v9558
    %v9664 = vunpack.c.h.b16 %v9558
    %v9665 = vunpack.c.l.b16 %v9559
    %v9666 = vunpack.c.h.b16 %v9559
    %v9667 = vunpack.c.l.b16 %v9560
    %v9668 = vunpack.c.h.b16 %v9560
    %v9669 = vunpack.c.l.b16 %v9561
    %v9670 = vunpack.c.h.b16 %v9561
    %v9671 = vunpack.c.l.b16 %v9562
    %v9672 = vunpack.c.h.b16 %v9562
    %v9673 = vpack.c.b16 %v9611, %v9609
    %v9674 = vpack.c.b16 %v9612, %v9610
    %v9675 = vpack.c.b16 %v9615, %v9613
    %v9676 = vpack.c.b16 %v9616, %v9614
    %v9677 = vpack.c.b16 %v9619, %v9617
    %v9678 = vpack.c.b16 %v9620, %v9618
    %v9679 = vpack.c.b16 %v9623, %v9621
    %v9680 = vpack.c.b16 %v9624, %v9622
    %v9681 = vpack.c.b16 %v9627, %v9625
    %v9682 = vpack.c.b16 %v9628, %v9626
    %v9683 = vpack.c.b16 %v9631, %v9629
    %v9684 = vpack.c.b16 %v9632, %v9630
    %v9685 = vpack.c.b16 %v9635, %v9633
    %v9686 = vpack.c.b16 %v9636, %v9634
    %v9687 = vpack.c.b16 %v9639, %v9637
    %v9688 = vpack.c.b16 %v9640, %v9638
    %v9689 = vpack.c.b16 %v9643, %v9641
    %v9690 = vpack.c.b16 %v9644, %v9642
    %v9691 = vpack.c.b16 %v9647, %v9645
    %v9692 = vpack.c.b16 %v9648, %v9646
    %v9693 = vpack.c.b16 %v9651, %v9649
    %v9694 = vpack.c.b16 %v9652, %v9650
    %v9695 = vpack.c.b16 %v9655, %v9653
    %v9696 = vpack.c.b16 %v9656, %v9654
    %v9697 = vpack.c.b16 %v9659, %v9657
    %v9698 = vpack.c.b16 %v9660, %v9658
    %v9699 = vpack.c.b16 %v9663, %v9661
    %v9700 = vpack.c.b16 %v9664, %v9662
    %v9701 = vpack.c.b16 %v9667, %v9665
    %v9702 = vpack.c.b16 %v9668, %v9666
    %v9703 = vpack.c.b16 %v9671, %v9669
    %v9704 = vpack.c.b16 %v9672, %v9670
    %9737 = vmatprep.subr.bf16.mxu0 %v9674
    %9738 = vmatpush1.bf16.msra.mxu0 %v9673
    %9739 = vmatprep.subr.bf16.mxu0 %v9676
    %9740 = vmatpush1.bf16.msra.mxu0 %v9675
    %9741 = vmatprep.subr.bf16.mxu0 %v9678
    %9742 = vmatpush1.bf16.msra.mxu0 %v9677
    %9743 = vmatprep.subr.bf16.mxu0 %v9680
    %9744 = vmatpush1.bf16.msra.mxu0 %v9679
    %9745 = vmatprep.subr.bf16.mxu0 %v9682
    %9746 = vmatpush1.bf16.msra.mxu0 %v9681
    %9747 = vmatprep.subr.bf16.mxu0 %v9684
    %9748 = vmatpush1.bf16.msra.mxu0 %v9683
    %9749 = vmatprep.subr.bf16.mxu0 %v9686
    %9750 = vmatpush1.bf16.msra.mxu0 %v9685
    %9751 = vmatprep.subr.bf16.mxu0 %v9688
    %9752 = vmatpush1.bf16.msra.mxu0 %v9687
    %9753 = vmatprep.subr.bf16.mxu0 %v9690
    %9754 = vmatpush1.bf16.msra.mxu0 %v9689
    %9755 = vmatprep.subr.bf16.mxu0 %v9692
    %9756 = vmatpush1.bf16.msra.mxu0 %v9691
    %9757 = vmatprep.subr.bf16.mxu0 %v9694
    %9758 = vmatpush1.bf16.msra.mxu0 %v9693
    %9759 = vmatprep.subr.bf16.mxu0 %v9696
    %9760 = vmatpush1.bf16.msra.mxu0 %v9695
    %9761 = vmatprep.subr.bf16.mxu0 %v9698
    %9762 = vmatpush1.bf16.msra.mxu0 %v9697
    %9763 = vmatprep.subr.bf16.mxu0 %v9700
    %9764 = vmatpush1.bf16.msra.mxu0 %v9699
    %9765 = vmatprep.subr.bf16.mxu0 %v9702
    %9766 = vmatpush1.bf16.msra.mxu0 %v9701
    %9767 = vmatprep.subr.bf16.mxu0 %v9704
    %9768 = vmatpush1.bf16.msra.mxu0 %v9703
    %9769 = vmatprep.mubr.bf16.mxu0 %v9565
    %9770 = vmatmul.mubr.bf16.gmra.mrb[0].mxu0 %v9564
    %v9771 = vpop.f32.mrb[0].mxu0
    %v9772 = vadd.f32 %v9570, %v9771
    %v9773 = vpop.f32.mrb[0].mxu0
    %v9774 = vadd.f32 %v9574, %v9773
    %v9775 = vpop.f32.mrb[0].mxu0
    %v9776 = vadd.f32 %v9570, %v9775
    %v9777 = vpop.f32.mrb[0].mxu0
    %v9778 = vadd.f32 %v9574, %v9777
    %9779 = vdwg.mxu0
    %v9780 = vmul.f32 %v9772, 0.2
    %v9781 = vmul.f32 %v9774, 0.2
    %v9782 = vmul.f32 %v9776, 0.2
    %v9783 = vmul.f32 %v9778, 0.2
    %v9784 = vmax.f32 %v9772, %v9780
    %v9785 = vmax.f32 %v9774, %v9781
    %v9786 = vmax.f32 %v9776, %v9782
    %v9787 = vmax.f32 %v9778, %v9783
    %v9788 = vld [vmem:[%s3866] sm:$0xf]
    %v9789 = vld [vmem:[%s3866 + $0x4] sm:$0xf]
    %v9790 = vld [vmem:[%s3866 + $0x8] sm:$0xf]
    %v9791 = vld [vmem:[%s3866 + $0xc] sm:$0xf]
    %v9792 = vld [vmem:[%s3866 + $0x10] sm:$0xf]
    %v9793 = vld [vmem:[%s3866 + $0x14] sm:$0xf]
    %v9794 = vld [vmem:[%s3866 + $0x18] sm:$0xf]
    %v9795 = vld [vmem:[%s3866 + $0x1c] sm:$0xf]
    %v9796 = vld [vmem:[%s3866 + $0x20] sm:$0xf]
    %v9797 = vld [vmem:[%s3866 + $0x24] sm:$0xf]
    %v9798 = vld [vmem:[%s3866 + $0x28] sm:$0xf]
    %v9799 = vld [vmem:[%s3866 + $0x2c] sm:$0xf]
    %v9800 = vld [vmem:[%s3866 + $0x30] sm:$0xf]
    %v9801 = vld [vmem:[%s3866 + $0x34] sm:$0xf]
    %v9802 = vld [vmem:[%s3866 + $0x38] sm:$0xf]
    %v9803 = vld [vmem:[%s3866 + $0x3c] sm:$0xf]
    %v9804 = vld [vmem:[%s3866 + $0x40] sm:$0xf]
    %v9805 = vld [vmem:[%s3866 + $0x44] sm:$0xf]
    %v9806 = vld [vmem:[%s3866 + $0x48] sm:$0xf]
    %v9807 = vld [vmem:[%s3866 + $0x4c] sm:$0xf]
    %v9808 = vld [vmem:[%s3866 + $0x50] sm:$0xf]
    %v9809 = vld [vmem:[%s3866 + $0x54] sm:$0xf]
    %v9810 = vld [vmem:[%s3866 + $0x58] sm:$0xf]
    %v9811 = vld [vmem:[%s3866 + $0x5c] sm:$0xf]
    %v9812 = vld [vmem:[%s3866 + $0x60] sm:$0xf]
    %v9813 = vld [vmem:[%s3866 + $0x64] sm:$0xf]
    %v9814 = vld [vmem:[%s3866 + $0x68] sm:$0xf]
    %v9815 = vld [vmem:[%s3866 + $0x6c] sm:$0xf]
    %v9816 = vld [vmem:[%s3866 + $0x70] sm:$0xf]
    %v9817 = vld [vmem:[%s3866 + $0x74] sm:$0xf]
    %v9818 = vld [vmem:[%s3866 + $0x78] sm:$0xf]
    %v9819 = vld [vmem:[%s3866 + $0x7c] sm:$0xf]
    %v9820 = vld [vmem:[%s8 + $0x23] ss:$0 sm:$0xff]
    %v9821 = vpack.c.bf16 %v9786, %v9784
    %v9822 = vpack.c.bf16 %v9787, %v9785
    %v9855 = vunpack.c.l.b16 %v9788
    %v9856 = vunpack.c.l.b16 %v9789
    %v9857 = vunpack.c.l.b16 %v9790
    %v9858 = vunpack.c.l.b16 %v9791
    %v9859 = vunpack.c.l.b16 %v9792
    %v9860 = vunpack.c.l.b16 %v9793
    %v9861 = vunpack.c.l.b16 %v9794
    %v9862 = vunpack.c.l.b16 %v9795
    %v9863 = vunpack.c.l.b16 %v9796
    %v9864 = vunpack.c.l.b16 %v9797
    %v9865 = vunpack.c.l.b16 %v9798
    %v9866 = vunpack.c.l.b16 %v9799
    %v9867 = vunpack.c.l.b16 %v9800
    %v9868 = vunpack.c.l.b16 %v9801
    %v9869 = vunpack.c.l.b16 %v9802
    %v9870 = vunpack.c.l.b16 %v9803
    %v9871 = vunpack.c.l.b16 %v9804
    %v9872 = vunpack.c.l.b16 %v9805
    %v9873 = vunpack.c.l.b16 %v9806
    %v9874 = vunpack.c.l.b16 %v9807
    %v9875 = vunpack.c.l.b16 %v9808
    %v9876 = vunpack.c.l.b16 %v9809
    %v9877 = vunpack.c.l.b16 %v9810
    %v9878 = vunpack.c.l.b16 %v9811
    %v9879 = vunpack.c.l.b16 %v9812
    %v9880 = vunpack.c.l.b16 %v9813
    %v9881 = vunpack.c.l.b16 %v9814
    %v9882 = vunpack.c.l.b16 %v9815
    %v9883 = vunpack.c.l.b16 %v9816
    %v9884 = vunpack.c.l.b16 %v9817
    %v9885 = vunpack.c.l.b16 %v9818
    %v9886 = vunpack.c.l.b16 %v9819
    %v9887 = vpack.c.b16 %v9856, %v9855
    %v9888 = vpack.c.b16 %v9858, %v9857
    %v9889 = vpack.c.b16 %v9860, %v9859
    %v9890 = vpack.c.b16 %v9862, %v9861
    %v9891 = vpack.c.b16 %v9864, %v9863
    %v9892 = vpack.c.b16 %v9866, %v9865
    %v9893 = vpack.c.b16 %v9868, %v9867
    %v9894 = vpack.c.b16 %v9870, %v9869
    %v9895 = vpack.c.b16 %v9872, %v9871
    %v9896 = vpack.c.b16 %v9874, %v9873
    %v9897 = vpack.c.b16 %v9876, %v9875
    %v9898 = vpack.c.b16 %v9878, %v9877
    %v9899 = vpack.c.b16 %v9880, %v9879
    %v9900 = vpack.c.b16 %v9882, %v9881
    %v9901 = vpack.c.b16 %v9884, %v9883
    %v9902 = vpack.c.b16 %v9886, %v9885
    %9919 = vmatprep.subr.bf16.mxu0 0
    %9920 = vmatpush1.bf16.msra.mxu0 %v9887
    %9921 = vmatprep.subr.bf16.mxu0 0
    %9922 = vmatpush1.bf16.msra.mxu0 %v9888
    %9923 = vmatprep.subr.bf16.mxu0 0
    %9924 = vmatpush1.bf16.msra.mxu0 %v9889
    %9925 = vmatprep.subr.bf16.mxu0 0
    %9926 = vmatpush1.bf16.msra.mxu0 %v9890
    %9927 = vmatprep.subr.bf16.mxu0 0
    %9928 = vmatpush1.bf16.msra.mxu0 %v9891
    %9929 = vmatprep.subr.bf16.mxu0 0
    %9930 = vmatpush1.bf16.msra.mxu0 %v9892
    %9931 = vmatprep.subr.bf16.mxu0 0
    %9932 = vmatpush1.bf16.msra.mxu0 %v9893
    %9933 = vmatprep.subr.bf16.mxu0 0
    %9934 = vmatpush1.bf16.msra.mxu0 %v9894
    %9935 = vmatprep.subr.bf16.mxu0 0
    %9936 = vmatpush1.bf16.msra.mxu0 %v9895
    %9937 = vmatprep.subr.bf16.mxu0 0
    %9938 = vmatpush1.bf16.msra.mxu0 %v9896
    %9939 = vmatprep.subr.bf16.mxu0 0
    %9940 = vmatpush1.bf16.msra.mxu0 %v9897
    %9941 = vmatprep.subr.bf16.mxu0 0
    %9942 = vmatpush1.bf16.msra.mxu0 %v9898
    %9943 = vmatprep.subr.bf16.mxu0 0
    %9944 = vmatpush1.bf16.msra.mxu0 %v9899
    %9945 = vmatprep.subr.bf16.mxu0 0
    %9946 = vmatpush1.bf16.msra.mxu0 %v9900
    %9947 = vmatprep.subr.bf16.mxu0 0
    %9948 = vmatpush1.bf16.msra.mxu0 %v9901
    %9949 = vmatprep.subr.bf16.mxu0 0
    %9950 = vmatpush1.bf16.msra.mxu0 %v9902
    %9951 = vmatprep.mubr.bf16.mxu0 %v9822
    %9952 = vmatmul.mubr.bf16.gmra.mrb[0].mxu0 %v9821
    %v9953 = vpop.f32.mrb[0].mxu0
    %v9954 = vadd.f32 %v9820, %v9953
    %v9955 = vpop.f32.mrb[0].mxu0
    %v9956 = vpop.f32.mrb[0].mxu0
    %v9957 = vadd.f32 %v9820, %v9956
    %v9958 = vpop.f32.mrb[0].mxu0
    %9959 = vdwg.mxu0
    %9960 = vst [vmem:[%s16 + $0x10] sm:$0xff] %v9954
    %9961 = vst [vmem:[%s17 + $0x10] sm:$0xff] %v9957
    %v9962 = vld [vmem:[%s4041] sm:$0xff]
    %v9963 = vld [vmem:[%s4041 + $0x8] sm:$0xff]
    %v9964 = vld [vmem:[%s4041 + $0x10] sm:$0xff]
    %v9965 = vld [vmem:[%s4041 + $0x18] sm:$0xff]
    %v9966 = vld [vmem:[%s4041 + $0x20] sm:$0xff]
    %v9967 = vld [vmem:[%s4041 + $0x28] sm:$0xff]
    %v9968 = vld [vmem:[%s4041 + $0x30] sm:$0xff]
    %v9969 = vld [vmem:[%s4041 + $0x38] sm:$0xff]
    %v9970 = vld [vmem:[%s4041 + $0x40] sm:$0xff]
    %v9971 = vld [vmem:[%s4041 + $0x48] sm:$0xff]
    %v9972 = vld [vmem:[%s4041 + $0x50] sm:$0xff]
    %v9973 = vld [vmem:[%s4041 + $0x58] sm:$0xff]
    %v9974 = vld [vmem:[%s4041 + $0x60] sm:$0xff]
    %v9975 = vld [vmem:[%s4041 + $0x68] sm:$0xff]
    %v9976 = vld [vmem:[%s4041 + $0x70] sm:$0xff]
    %v9977 = vld [vmem:[%s4041 + $0x78] sm:$0xff]
    %v9978 = vld [vmem:[%s4041 + $0x80] sm:$0xff]
    %v9979 = vld [vmem:[%s4041 + $0x88] sm:$0xff]
    %v9980 = vld [vmem:[%s4041 + $0x90] sm:$0xff]
    %v9981 = vld [vmem:[%s4041 + $0x98] sm:$0xff]
    %v9982 = vld [vmem:[%s4041 + $0xa0] sm:$0xff]
    %v9983 = vld [vmem:[%s4041 + $0xa8] sm:$0xff]
    %v9984 = vld [vmem:[%s4041 + $0xb0] sm:$0xff]
    %v9985 = vld [vmem:[%s4041 + $0xb8] sm:$0xff]
    %v9986 = vld [vmem:[%s4041 + $0xc0] sm:$0xff]
    %v9987 = vld [vmem:[%s4041 + $0xc8] sm:$0xff]
    %v9988 = vld [vmem:[%s4041 + $0xd0] sm:$0xff]
    %v9989 = vld [vmem:[%s4041 + $0xd8] sm:$0xff]
    %v9990 = vld [vmem:[%s4041 + $0xe0] sm:$0xff]
    %v9991 = vld [vmem:[%s4041 + $0xe8] sm:$0xff]
    %v9992 = vld [vmem:[%s4041 + $0xf0] sm:$0xff]
    %v9993 = vld [vmem:[%s4041 + $0xf8] sm:$0xff]
    %v9994 = vld [vmem:[%s4074] ss:$8 sm:$0x3]
    %v9996 = vlaneseq
    %v9997 = vshrl.u32 %v9996, 7
    %v9998 = vsub.s32 0, %v9997
    %v9999 = vrot.slane %v9994, %v9998
    %v10000 = vlaneseq
    %v10001 = vshrl.u32 %v10000, 7
    %v10002 = vsub.s32 1, %v10001
    %v10003 = vrot.slane %v9994, %v10002
    %v10038 = vunpack.c.l.b16 %v9962
    %v10039 = vunpack.c.h.b16 %v9962
    %v10040 = vunpack.c.l.b16 %v9963
    %v10041 = vunpack.c.h.b16 %v9963
    %v10042 = vunpack.c.l.b16 %v9964
    %v10043 = vunpack.c.h.b16 %v9964
    %v10044 = vunpack.c.l.b16 %v9965
    %v10045 = vunpack.c.h.b16 %v9965
    %v10046 = vunpack.c.l.b16 %v9966
    %v10047 = vunpack.c.h.b16 %v9966
    %v10048 = vunpack.c.l.b16 %v9967
    %v10049 = vunpack.c.h.b16 %v9967
    %v10050 = vunpack.c.l.b16 %v9968
    %v10051 = vunpack.c.h.b16 %v9968
    %v10052 = vunpack.c.l.b16 %v9969
    %v10053 = vunpack.c.h.b16 %v9969
    %v10054 = vunpack.c.l.b16 %v9970
    %v10055 = vunpack.c.h.b16 %v9970
    %v10056 = vunpack.c.l.b16 %v9971
    %v10057 = vunpack.c.h.b16 %v9971
    %v10058 = vunpack.c.l.b16 %v9972
    %v10059 = vunpack.c.h.b16 %v9972
    %v10060 = vunpack.c.l.b16 %v9973
    %v10061 = vunpack.c.h.b16 %v9973
    %v10062 = vunpack.c.l.b16 %v9974
    %v10063 = vunpack.c.h.b16 %v9974
    %v10064 = vunpack.c.l.b16 %v9975
    %v10065 = vunpack.c.h.b16 %v9975
    %v10066 = vunpack.c.l.b16 %v9976
    %v10067 = vunpack.c.h.b16 %v9976
    %v10068 = vunpack.c.l.b16 %v9977
    %v10069 = vunpack.c.h.b16 %v9977
    %v10070 = vunpack.c.l.b16 %v9978
    %v10071 = vunpack.c.h.b16 %v9978
    %v10072 = vunpack.c.l.b16 %v9979
    %v10073 = vunpack.c.h.b16 %v9979
    %v10074 = vunpack.c.l.b16 %v9980
    %v10075 = vunpack.c.h.b16 %v9980
    %v10076 = vunpack.c.l.b16 %v9981
    %v10077 = vunpack.c.h.b16 %v9981
    %v10078 = vunpack.c.l.b16 %v9982
    %v10079 = vunpack.c.h.b16 %v9982
    %v10080 = vunpack.c.l.b16 %v9983
    %v10081 = vunpack.c.h.b16 %v9983
    %v10082 = vunpack.c.l.b16 %v9984
    %v10083 = vunpack.c.h.b16 %v9984
    %v10084 = vunpack.c.l.b16 %v9985
    %v10085 = vunpack.c.h.b16 %v9985
    %v10086 = vunpack.c.l.b16 %v9986
    %v10087 = vunpack.c.h.b16 %v9986
    %v10088 = vunpack.c.l.b16 %v9987
    %v10089 = vunpack.c.h.b16 %v9987
    %v10090 = vunpack.c.l.b16 %v9988
    %v10091 = vunpack.c.h.b16 %v9988
    %v10092 = vunpack.c.l.b16 %v9989
    %v10093 = vunpack.c.h.b16 %v9989
    %v10094 = vunpack.c.l.b16 %v9990
    %v10095 = vunpack.c.h.b16 %v9990
    %v10096 = vunpack.c.l.b16 %v9991
    %v10097 = vunpack.c.h.b16 %v9991
    %v10098 = vunpack.c.l.b16 %v9992
    %v10099 = vunpack.c.h.b16 %v9992
    %v10100 = vunpack.c.l.b16 %v9993
    %v10101 = vunpack.c.h.b16 %v9993
    %v10102 = vpack.c.b16 %v10040, %v10038
    %v10103 = vpack.c.b16 %v10041, %v10039
    %v10104 = vpack.c.b16 %v10044, %v10042
    %v10105 = vpack.c.b16 %v10045, %v10043
    %v10106 = vpack.c.b16 %v10048, %v10046
    %v10107 = vpack.c.b16 %v10049, %v10047
    %v10108 = vpack.c.b16 %v10052, %v10050
    %v10109 = vpack.c.b16 %v10053, %v10051
    %v10110 = vpack.c.b16 %v10056, %v10054
    %v10111 = vpack.c.b16 %v10057, %v10055
    %v10112 = vpack.c.b16 %v10060, %v10058
    %v10113 = vpack.c.b16 %v10061, %v10059
    %v10114 = vpack.c.b16 %v10064, %v10062
    %v10115 = vpack.c.b16 %v10065, %v10063
    %v10116 = vpack.c.b16 %v10068, %v10066
    %v10117 = vpack.c.b16 %v10069, %v10067
    %v10118 = vpack.c.b16 %v10072, %v10070
    %v10119 = vpack.c.b16 %v10073, %v10071
    %v10120 = vpack.c.b16 %v10076, %v10074
    %v10121 = vpack.c.b16 %v10077, %v10075
    %v10122 = vpack.c.b16 %v10080, %v10078
    %v10123 = vpack.c.b16 %v10081, %v10079
    %v10124 = vpack.c.b16 %v10084, %v10082
    %v10125 = vpack.c.b16 %v10085, %v10083
    %v10126 = vpack.c.b16 %v10088, %v10086
    %v10127 = vpack.c.b16 %v10089, %v10087
    %v10128 = vpack.c.b16 %v10092, %v10090
    %v10129 = vpack.c.b16 %v10093, %v10091
    %v10130 = vpack.c.b16 %v10096, %v10094
    %v10131 = vpack.c.b16 %v10097, %v10095
    %v10132 = vpack.c.b16 %v10100, %v10098
    %v10133 = vpack.c.b16 %v10101, %v10099
    %10166 = vmatprep.subr.bf16.mxu0 %v10103
    %10167 = vmatpush1.bf16.msra.mxu0 %v10102
    %10168 = vmatprep.subr.bf16.mxu0 %v10105
    %10169 = vmatpush1.bf16.msra.mxu0 %v10104
    %10170 = vmatprep.subr.bf16.mxu0 %v10107
    %10171 = vmatpush1.bf16.msra.mxu0 %v10106
    %10172 = vmatprep.subr.bf16.mxu0 %v10109
    %10173 = vmatpush1.bf16.msra.mxu0 %v10108
    %10174 = vmatprep.subr.bf16.mxu0 %v10111
    %10175 = vmatpush1.bf16.msra.mxu0 %v10110
    %10176 = vmatprep.subr.bf16.mxu0 %v10113
    %10177 = vmatpush1.bf16.msra.mxu0 %v10112
    %10178 = vmatprep.subr.bf16.mxu0 %v10115
    %10179 = vmatpush1.bf16.msra.mxu0 %v10114
    %10180 = vmatprep.subr.bf16.mxu0 %v10117
    %10181 = vmatpush1.bf16.msra.mxu0 %v10116
    %10182 = vmatprep.subr.bf16.mxu0 %v10119
    %10183 = vmatpush1.bf16.msra.mxu0 %v10118
    %10184 = vmatprep.subr.bf16.mxu0 %v10121
    %10185 = vmatpush1.bf16.msra.mxu0 %v10120
    %10186 = vmatprep.subr.bf16.mxu0 %v10123
    %10187 = vmatpush1.bf16.msra.mxu0 %v10122
    %10188 = vmatprep.subr.bf16.mxu0 %v10125
    %10189 = vmatpush1.bf16.msra.mxu0 %v10124
    %10190 = vmatprep.subr.bf16.mxu0 %v10127
    %10191 = vmatpush1.bf16.msra.mxu0 %v10126
    %10192 = vmatprep.subr.bf16.mxu0 %v10129
    %10193 = vmatpush1.bf16.msra.mxu0 %v10128
    %10194 = vmatprep.subr.bf16.mxu0 %v10131
    %10195 = vmatpush1.bf16.msra.mxu0 %v10130
    %10196 = vmatprep.subr.bf16.mxu0 %v10133
    %10197 = vmatpush1.bf16.msra.mxu0 %v10132
    %10198 = vmatprep.mubr.bf16.mxu0 %v9565
    %10199 = vmatmul.mubr.bf16.gmra.mrb[0].mxu0 %v9564
    %v10200 = vpop.f32.mrb[0].mxu0
    %v10201 = vadd.f32 %v9999, %v10200
    %v10202 = vpop.f32.mrb[0].mxu0
    %v10203 = vadd.f32 %v10003, %v10202
    %v10204 = vpop.f32.mrb[0].mxu0
    %v10205 = vadd.f32 %v9999, %v10204
    %v10206 = vpop.f32.mrb[0].mxu0
    %v10207 = vadd.f32 %v10003, %v10206
    %10208 = vdwg.mxu0
    %v10209 = vmul.f32 %v10201, 0.2
    %v10210 = vmul.f32 %v10203, 0.2
    %v10211 = vmul.f32 %v10205, 0.2
    %v10212 = vmul.f32 %v10207, 0.2
    %v10213 = vmax.f32 %v10201, %v10209
    %v10214 = vmax.f32 %v10203, %v10210
    %v10215 = vmax.f32 %v10205, %v10211
    %v10216 = vmax.f32 %v10207, %v10212
    %v10217 = vld [vmem:[%s4298] sm:$0xf]
    %v10218 = vld [vmem:[%s4298 + $0x4] sm:$0xf]
    %v10219 = vld [vmem:[%s4298 + $0x8] sm:$0xf]
    %v10220 = vld [vmem:[%s4298 + $0xc] sm:$0xf]
    %v10221 = vld [vmem:[%s4298 + $0x10] sm:$0xf]
    %v10222 = vld [vmem:[%s4298 + $0x14] sm:$0xf]
    %v10223 = vld [vmem:[%s4298 + $0x18] sm:$0xf]
    %v10224 = vld [vmem:[%s4298 + $0x1c] sm:$0xf]
    %v10225 = vld [vmem:[%s4298 + $0x20] sm:$0xf]
    %v10226 = vld [vmem:[%s4298 + $0x24] sm:$0xf]
    %v10227 = vld [vmem:[%s4298 + $0x28] sm:$0xf]
    %v10228 = vld [vmem:[%s4298 + $0x2c] sm:$0xf]
    %v10229 = vld [vmem:[%s4298 + $0x30] sm:$0xf]
    %v10230 = vld [vmem:[%s4298 + $0x34] sm:$0xf]
    %v10231 = vld [vmem:[%s4298 + $0x38] sm:$0xf]
    %v10232 = vld [vmem:[%s4298 + $0x3c] sm:$0xf]
    %v10233 = vld [vmem:[%s4298 + $0x40] sm:$0xf]
    %v10234 = vld [vmem:[%s4298 + $0x44] sm:$0xf]
    %v10235 = vld [vmem:[%s4298 + $0x48] sm:$0xf]
    %v10236 = vld [vmem:[%s4298 + $0x4c] sm:$0xf]
    %v10237 = vld [vmem:[%s4298 + $0x50] sm:$0xf]
    %v10238 = vld [vmem:[%s4298 + $0x54] sm:$0xf]
    %v10239 = vld [vmem:[%s4298 + $0x58] sm:$0xf]
    %v10240 = vld [vmem:[%s4298 + $0x5c] sm:$0xf]
    %v10241 = vld [vmem:[%s4298 + $0x60] sm:$0xf]
    %v10242 = vld [vmem:[%s4298 + $0x64] sm:$0xf]
    %v10243 = vld [vmem:[%s4298 + $0x68] sm:$0xf]
    %v10244 = vld [vmem:[%s4298 + $0x6c] sm:$0xf]
    %v10245 = vld [vmem:[%s4298 + $0x70] sm:$0xf]
    %v10246 = vld [vmem:[%s4298 + $0x74] sm:$0xf]
    %v10247 = vld [vmem:[%s4298 + $0x78] sm:$0xf]
    %v10248 = vld [vmem:[%s4298 + $0x7c] sm:$0xf]
    %v10249 = vld [vmem:[%s8 + $0x25] ss:$0 sm:$0xff]
    %v10250 = vpack.c.bf16 %v10215, %v10213
    %v10251 = vpack.c.bf16 %v10216, %v10214
    %v10284 = vunpack.c.l.b16 %v10217
    %v10285 = vunpack.c.l.b16 %v10218
    %v10286 = vunpack.c.l.b16 %v10219
    %v10287 = vunpack.c.l.b16 %v10220
    %v10288 = vunpack.c.l.b16 %v10221
    %v10289 = vunpack.c.l.b16 %v10222
    %v10290 = vunpack.c.l.b16 %v10223
    %v10291 = vunpack.c.l.b16 %v10224
    %v10292 = vunpack.c.l.b16 %v10225
    %v10293 = vunpack.c.l.b16 %v10226
    %v10294 = vunpack.c.l.b16 %v10227
    %v10295 = vunpack.c.l.b16 %v10228
    %v10296 = vunpack.c.l.b16 %v10229
    %v10297 = vunpack.c.l.b16 %v10230
    %v10298 = vunpack.c.l.b16 %v10231
    %v10299 = vunpack.c.l.b16 %v10232
    %v10300 = vunpack.c.l.b16 %v10233
    %v10301 = vunpack.c.l.b16 %v10234
    %v10302 = vunpack.c.l.b16 %v10235
    %v10303 = vunpack.c.l.b16 %v10236
    %v10304 = vunpack.c.l.b16 %v10237
    %v10305 = vunpack.c.l.b16 %v10238
    %v10306 = vunpack.c.l.b16 %v10239
    %v10307 = vunpack.c.l.b16 %v10240
    %v10308 = vunpack.c.l.b16 %v10241
    %v10309 = vunpack.c.l.b16 %v10242
    %v10310 = vunpack.c.l.b16 %v10243
    %v10311 = vunpack.c.l.b16 %v10244
    %v10312 = vunpack.c.l.b16 %v10245
    %v10313 = vunpack.c.l.b16 %v10246
    %v10314 = vunpack.c.l.b16 %v10247
    %v10315 = vunpack.c.l.b16 %v10248
    %v10316 = vpack.c.b16 %v10285, %v10284
    %v10317 = vpack.c.b16 %v10287, %v10286
    %v10318 = vpack.c.b16 %v10289, %v10288
    %v10319 = vpack.c.b16 %v10291, %v10290
    %v10320 = vpack.c.b16 %v10293, %v10292
    %v10321 = vpack.c.b16 %v10295, %v10294
    %v10322 = vpack.c.b16 %v10297, %v10296
    %v10323 = vpack.c.b16 %v10299, %v10298
    %v10324 = vpack.c.b16 %v10301, %v10300
    %v10325 = vpack.c.b16 %v10303, %v10302
    %v10326 = vpack.c.b16 %v10305, %v10304
    %v10327 = vpack.c.b16 %v10307, %v10306
    %v10328 = vpack.c.b16 %v10309, %v10308
    %v10329 = vpack.c.b16 %v10311, %v10310
    %v10330 = vpack.c.b16 %v10313, %v10312
    %v10331 = vpack.c.b16 %v10315, %v10314
    %10348 = vmatprep.subr.bf16.mxu0 0
    %10349 = vmatpush1.bf16.msra.mxu0 %v10316
    %10350 = vmatprep.subr.bf16.mxu0 0
    %10351 = vmatpush1.bf16.msra.mxu0 %v10317
    %10352 = vmatprep.subr.bf16.mxu0 0
    %10353 = vmatpush1.bf16.msra.mxu0 %v10318
    %10354 = vmatprep.subr.bf16.mxu0 0
    %10355 = vmatpush1.bf16.msra.mxu0 %v10319
    %10356 = vmatprep.subr.bf16.mxu0 0
    %10357 = vmatpush1.bf16.msra.mxu0 %v10320
    %10358 = vmatprep.subr.bf16.mxu0 0
    %10359 = vmatpush1.bf16.msra.mxu0 %v10321
    %10360 = vmatprep.subr.bf16.mxu0 0
    %10361 = vmatpush1.bf16.msra.mxu0 %v10322
    %10362 = vmatprep.subr.bf16.mxu0 0
    %10363 = vmatpush1.bf16.msra.mxu0 %v10323
    %10364 = vmatprep.subr.bf16.mxu0 0
    %10365 = vmatpush1.bf16.msra.mxu0 %v10324
    %10366 = vmatprep.subr.bf16.mxu0 0
    %10367 = vmatpush1.bf16.msra.mxu0 %v10325
    %10368 = vmatprep.subr.bf16.mxu0 0
    %10369 = vmatpush1.bf16.msra.mxu0 %v10326
    %10370 = vmatprep.subr.bf16.mxu0 0
    %10371 = vmatpush1.bf16.msra.mxu0 %v10327
    %10372 = vmatprep.subr.bf16.mxu0 0
    %10373 = vmatpush1.bf16.msra.mxu0 %v10328
    %10374 = vmatprep.subr.bf16.mxu0 0
    %10375 = vmatpush1.bf16.msra.mxu0 %v10329
    %10376 = vmatprep.subr.bf16.mxu0 0
    %10377 = vmatpush1.bf16.msra.mxu0 %v10330
    %10378 = vmatprep.subr.bf16.mxu0 0
    %10379 = vmatpush1.bf16.msra.mxu0 %v10331
    %10380 = vmatprep.mubr.bf16.mxu0 %v10251
    %10381 = vmatmul.mubr.bf16.gmra.mrb[0].mxu0 %v10250
    %v10382 = vpop.f32.mrb[0].mxu0
    %v10383 = vadd.f32 %v10249, %v10382
    %v10384 = vpop.f32.mrb[0].mxu0
    %v10385 = vpop.f32.mrb[0].mxu0
    %v10386 = vadd.f32 %v10249, %v10385
    %v10387 = vpop.f32.mrb[0].mxu0
    %10388 = vdwg.mxu0
    %10389 = vst [vmem:[%s16 + $0x18] sm:$0xff] %v10383
    %10390 = vst [vmem:[%s17 + $0x18] sm:$0xff] %v10386
    // Predicated region
    $region62: #{forward.1} parent=1 // pred_check
      _
    $region63: #{forward.1} parent=1 // pred_check_branch
      %10392 = sbr.rel (0) target = $region65
    $region64: #{forward.1} parent=1 // pred_region
      _
    $region65: #{forward.1} parent=1 // pred_fallthru
      _
    // Predicated region
    $region66: #{forward.1} parent=1 // pred_check
      _
    $region67: #{forward.1} parent=1 // pred_check_branch
      %10394 = sbr.rel (0) target = $region69
    $region68: #{forward.1} parent=1 // pred_region
      _
    $region69: #{forward.1} parent=1 // pred_fallthru
      _
    // Predicated region
    $region70: #{forward.1} parent=1 // pred_check
      _
    $region71: #{forward.1} parent=1 // pred_check_branch
      %10396 = sbr.rel (0) target = $region73
    $region72: #{forward.1} parent=1 // pred_region
      _
    $region73: #{forward.1} parent=1 // pred_fallthru
      _
    // Predicated region
    $region74: #{forward.1} parent=1 // pred_check
      _
    $region75: #{forward.1} parent=1 // pred_check_branch
      %10398 = sbr.rel (0) target = $region77
    $region76: #{forward.1} parent=1 // pred_region
      _
    $region77: #{forward.1} parent=1 // pred_fallthru
      _
    // Predicated region
    $region78: #{forward.1} parent=1 // pred_check
      _
    $region79: #{forward.1} parent=1 // pred_check_branch
      %10400 = sbr.rel (0) target = $region81
    $region80: #{forward.1} parent=1 // pred_region
      _
    $region81: #{forward.1} parent=1 // pred_fallthru
      _
    // Predicated region
    $region82: #{forward.1} parent=1 // pred_check
      _
    $region83: #{forward.1} parent=1 // pred_check_branch
      %10402 = sbr.rel (0) target = $region85
    $region84: #{forward.1} parent=1 // pred_region
      _
    $region85: #{forward.1} parent=1 // pred_fallthru
      _
    // Predicated region
    $region86: #{forward.1} parent=1 // pred_check
      _
    $region87: #{forward.1} parent=1 // pred_check_branch
      %10404 = sbr.rel (0) target = $region89
    $region88: #{forward.1} parent=1 // pred_region
      _
    $region89: #{forward.1} parent=1 // pred_fallthru
      _
    // Predicated region
    $region90: #{forward.1} parent=1 // pred_check
      _
    $region91: #{forward.1} parent=1 // pred_check_branch
      %10406 = sbr.rel (0) target = $region93
    $region92: #{forward.1} parent=1 // pred_region
      _
    $region93: #{forward.1} parent=1 // pred_fallthru
      _
    // Predicated region
    $region94: #{forward.1} parent=1 // pred_check
      _
    $region95: #{forward.1} parent=1 // pred_check_branch
      %10408 = sbr.rel (0) target = $region97
    $region96: #{forward.1} parent=1 // pred_region
      _
    $region97: #{forward.1} parent=1 // pred_fallthru
      _
    // Predicated region
    $region98: #{forward.1} parent=1 // pred_check
      _
    $region99: #{forward.1} parent=1 // pred_check_branch
      %10410 = sbr.rel (0) target = $region101
    $region100: #{forward.1} parent=1 // pred_region
      _
    $region101: #{forward.1} parent=1 // pred_fallthru
      _
    // Predicated region
    $region102: #{forward.1} parent=1 // pred_check
      _
    $region103: #{forward.1} parent=1 // pred_check_branch
      %10412 = sbr.rel (0) target = $region105
    $region104: #{forward.1} parent=1 // pred_region
      _
    $region105: #{forward.1} parent=1 // pred_fallthru
      _
    // Predicated region
    $region106: #{forward.1} parent=1 // pred_check
      _
    $region107: #{forward.1} parent=1 // pred_check_branch
      %10414 = sbr.rel (0) target = $region109
    $region108: #{forward.1} parent=1 // pred_region
      _
    $region109: #{forward.1} parent=1 // pred_fallthru
      _
    %10415 = vsyncpa [#allocation8], 1
    %10416 = vsyncpa [#allocation10], 1
    %10417 = vsyncpa [#allocation13], 1
  %10418 = vsyncmov [#allocation6]
  %s10419 = vpop.sfrf %10418
  %p10420 = scmp.eq.s32.totalorder %s10419, 0
  %p10421 = pneg %p10420
  %10423 = shalt.err (%p10421)
  %s10424 = scalar_lea.sflag [#allocation6], 1
  %10425 = vsyncmov %s10424
  %s10426 = vpop.sfrf %10425
  %p10427 = scmp.eq.s32.totalorder %s10426, 0
  %p10428 = pneg %p10427
  %10430 = shalt.err (%p10428)
  %s10431 = scalar_lea.sflag [#allocation6], 2
  %10432 = vsyncmov %s10431
  %s10433 = vpop.sfrf %10432
  %p10434 = scmp.eq.s32.totalorder %s10433, 0
  %p10435 = pneg %p10434
  %10437 = shalt.err (%p10435)
  %s10438 = scalar_lea.sflag [#allocation6], 3
  %10439 = vsyncmov %s10438
  %s10440 = vpop.sfrf %10439
  %p10441 = scmp.eq.s32.totalorder %s10440, 0
  %p10442 = pneg %p10441
  %10444 = shalt.err (%p10442)

</llo_original>
